<compile_context>
chip_gen: v6e
topology: v6e:2x2x1
jax: 0.10.0
libtpu: 0.0.40
codegen_flags: <defaults>
</compile_context>

<pallas_src>
import functools
import math

import jax
import jax.numpy as jnp
from jax.experimental import pallas as pl
from jax.experimental.pallas import tpu as pltpu

VMEM = pl.BlockSpec(memory_space=pltpu.MemorySpace.VMEM)


def _bf(a):
    """Cast an MXU operand to bf16 (accumulation stays f32 via preferred_element_type)."""
    return a.astype(jnp.bfloat16)


# ----------------------------------------------------------------------------
# Pallas kernels
# ----------------------------------------------------------------------------
def _linear_kernel(x_ref, w_ref, b_ref, o_ref):
    o_ref[...] = (
        jnp.dot(_bf(x_ref[...]), _bf(w_ref[...]),
                preferred_element_type=jnp.float32)
        + b_ref[...]
    )


def _node_feature_kernel(x_ref, de_ref, pe_ref, wnp_ref, bnp_ref,
                         wnf_ref, bnf_ref, o_ref):
    """node_proj(x) -> concat([node_emb, depth_emb, pos_enc]) -> node_feature."""
    ne = jnp.dot(_bf(x_ref[...]), _bf(wnp_ref[...]),
                 preferred_element_type=jnp.float32) + bnp_ref[...]
    cat = jnp.concatenate([ne, de_ref[...], pe_ref[...]], axis=1)
    o_ref[...] = jnp.dot(_bf(cat), _bf(wnf_ref[...]),
                         preferred_element_type=jnp.float32) + bnf_ref[...]


def _edge_proj_kernel(ea_ref, wef_ref, bef_ref, weall_ref, o_ref):
    """edge_feature linear followed by the concatenated per-SAN-layer E projections."""
    e = jnp.dot(_bf(ea_ref[...]), _bf(wef_ref[...]),
                preferred_element_type=jnp.float32) + bef_ref[...]
    o_ref[...] = jnp.dot(_bf(e), _bf(weall_ref[...]),
                         preferred_element_type=jnp.float32)


def _pe_attn_kernel(qkv_ref, m_ref, o_ref, *, num_heads, head_dim, emb):
    """PyTorch MHA self-attention (batch_first, eval). qkv: [B,S,3E], mask bias: [B,1,S]."""
    scale = 1.0 / math.sqrt(head_dim)
    qkv = qkv_ref[...]
    mb = m_ref[...]
    outs = []
    for h in range(num_heads):
        d0 = h * head_dim
        q = qkv[:, :, d0:d0 + head_dim]
        k = qkv[:, :, emb + d0:emb + d0 + head_dim]
        v = qkv[:, :, 2 * emb + d0:2 * emb + d0 + head_dim]
        s = jnp.einsum('bqd,bkd->bqk', _bf(q), _bf(k),
                       preferred_element_type=jnp.float32) * scale + mb
        p = jax.nn.softmax(s, axis=-1)
        outs.append(jnp.einsum('bqk,bkd->bqd', _bf(p), _bf(v),
                               preferred_element_type=jnp.float32))
    o_ref[...] = jnp.concatenate(outs, axis=-1)   # single lane-dense store


def _layer_norm(x, w, b, eps=1e-5):
    mu = jnp.mean(x, axis=-1, keepdims=True)
    var = jnp.mean((x - mu) ** 2, axis=-1, keepdims=True)
    return (x - mu) * jax.lax.rsqrt(var + eps) * w + b


def _pe_post_kernel(attn_ref, res_ref, wo_ref, bo_ref, ln1w_ref, ln1b_ref,
                    w1_ref, b1_ref, w2_ref, b2_ref, ln2w_ref, ln2b_ref, o_ref):
    """out_proj + residual + LN1 + FFN(relu) + residual + LN2 (post-norm encoder layer)."""
    a = jnp.dot(_bf(attn_ref[...]), _bf(wo_ref[...]),
                preferred_element_type=jnp.float32) + bo_ref[...]
    h = _layer_norm(res_ref[...] + a, ln1w_ref[...], ln1b_ref[...])
    f = jnp.maximum(
        jnp.dot(_bf(h), _bf(w1_ref[...]),
                preferred_element_type=jnp.float32) + b1_ref[...], 0.0)
    f = jnp.dot(_bf(f), _bf(w2_ref[...]),
                preferred_element_type=jnp.float32) + b2_ref[...]
    o_ref[...] = _layer_norm(h + f, ln2w_ref[...], ln2b_ref[...])


def _san_layer_kernel(x_ref, eT_ref, art_ref, aft_ref, wqkv_ref, e2_ref,
                      wo_ref, bo_ref, bn1s_ref, bn1t_ref,
                      w1_ref, b1_ref, w2_ref, b2_ref, bn2s_ref, bn2t_ref,
                      o_ref, *, gamma, num_heads, head_dim):
    """One full SANLayer (attention + O + BN + FFN + BN), everything fused.

    x: [N, hidden]; eT: [dst, src, hidden] dense per-layer-projected edge feats;
    art/aft: [dst, src] real/fake adjacency; wqkv: [hidden, 5*hidden] (Q|K|V|Q2|K2).
    """
    N = x_ref.shape[0]
    hidden = num_heads * head_dim
    scale = 1.0 / math.sqrt(head_dim)
    inv_g1 = 1.0 / (gamma + 1.0)

    x = x_ref[...]
    qkv = jnp.dot(_bf(x), _bf(wqkv_ref[...]),
                  preferred_element_type=jnp.float32)           # [N, 5*hidden]
    eT = eT_ref[...]
    a_real = art_ref[...]
    a_fake = aft_ref[...]
    e2 = e2_ref[...]                                            # [1, hidden]
    ones_col = jnp.ones((N, 1), jnp.float32)

    head_outs = []
    for h in range(num_heads):
        d0 = h * head_dim
        Qh = qkv[:, 0 * hidden + d0:0 * hidden + d0 + head_dim] * scale
        Kh = qkv[:, 1 * hidden + d0:1 * hidden + d0 + head_dim]
        Vh = qkv[:, 2 * hidden + d0:2 * hidden + d0 + head_dim]
        Q2h = qkv[:, 3 * hidden + d0:3 * hidden + d0 + head_dim] * scale
        K2h = qkv[:, 4 * hidden + d0:4 * hidden + d0 + head_dim]
        EhT = eT[:, :, d0:d0 + head_dim]                        # [dst, src, Dh]
        e2h = e2[:, d0:d0 + head_dim]                           # [1, Dh]

        # real-edge score on the MXU:
        #   s1[dst,src] = sum_d E[dst,src,d] * K[src,d] * Q[dst,d] / sqrt(Dh)
        M = EhT * Kh[None, :, :]                                # VPU multiply
        s1 = jnp.sum(
            jnp.einsum('tsd,tkd->tsk', _bf(M), _bf(Qh)[:, None, :],
                       preferred_element_type=jnp.float32),
            axis=-1)                                            # [dst, src]
        sc1 = jnp.exp(jnp.clip(s1, -5.0, 5.0)) * a_real * inv_g1

        # fake-edge score (shared E2 feature):
        s2 = jnp.einsum('td,sd->ts', _bf(Q2h * e2h), _bf(K2h),
                        preferred_element_type=jnp.float32)     # [dst, src]
        sc2 = gamma * jnp.exp(jnp.clip(s2, -5.0, 5.0)) * a_fake * inv_g1

        s = sc1 + sc2
        # ones-column trick: one MXU matmul gives both wV and Z
        v_ext = jnp.concatenate([Vh, ones_col], axis=1)         # [src, Dh+1]
        wvz = jnp.dot(_bf(s), _bf(v_ext),
                      preferred_element_type=jnp.float32)       # [dst, Dh+1]
        z = wvz[:, head_dim:head_dim + 1]
        head_outs.append(wvz[:, :head_dim]
                         * pl.reciprocal(z + 1e-6, approx=True))

    attn = jnp.concatenate(head_outs, axis=1)                   # [N, hidden]
    h1 = jnp.dot(_bf(attn), _bf(wo_ref[...]),
                 preferred_element_type=jnp.float32) + bo_ref[...]
    h1 = x + h1                                                 # residual
    h1 = h1 * bn1s_ref[...] + bn1t_ref[...]                     # folded eval BN
    f = jnp.maximum(
        jnp.dot(_bf(h1), _bf(w1_ref[...]),
                preferred_element_type=jnp.float32) + b1_ref[...], 0.0)
    f = jnp.dot(_bf(f), _bf(w2_ref[...]),
                preferred_element_type=jnp.float32) + b2_ref[...]
    h2 = h1 + f                                                 # residual
    o_ref[...] = h2 * bn2s_ref[...] + bn2t_ref[...]


def _policy_head_kernel(cur_ref, am_ref, wc_ref, bc_ref, wa_ref, ba_ref,
                        wv_ref, bv_ref, logit_ref, v_ref):
    """constraints linear + concat + actor + critic (kept f32, tiny)."""
    c = jnp.dot(am_ref[...], wc_ref[...],
                preferred_element_type=jnp.float32) + bc_ref[...]
    pin = jnp.concatenate([cur_ref[...], c], axis=1)
    logit_ref[...] = jnp.dot(pin, wa_ref[...],
                             preferred_element_type=jnp.float32) + ba_ref[...]
    v_ref[...] = jnp.dot(pin, wv_ref[...],
                         preferred_element_type=jnp.float32) + bv_ref[...]


# ----------------------------------------------------------------------------
# pallas_call wrappers
# ----------------------------------------------------------------------------
def fused_linear(x, w, b):
    return pl.pallas_call(
        _linear_kernel,
        out_shape=jax.ShapeDtypeStruct((x.shape[0], w.shape[1]), jnp.float32),
        in_specs=[VMEM, VMEM, VMEM], out_specs=VMEM,
    )(x, w, b)


def node_feature_fused(x_raw, depth_emb, pos_enc, kp):
    return pl.pallas_call(
        _node_feature_kernel,
        out_shape=jax.ShapeDtypeStruct(
            (x_raw.shape[0], kp['node_feature_w'].shape[1]), jnp.float32),
        in_specs=[VMEM] * 7, out_specs=VMEM,
    )(x_raw, depth_emb, pos_enc,
      kp['node_proj_w'], kp['node_proj_b'],
      kp['node_feature_w'], kp['node_feature_b'])


def edge_proj_all(edge_attr, kp):
    return pl.pallas_call(
        _edge_proj_kernel,
        out_shape=jax.ShapeDtypeStruct(
            (edge_attr.shape[0], kp['e_all_w'].shape[1]), jnp.float32),
        in_specs=[VMEM] * 4, out_specs=VMEM,
    )(edge_attr, kp['edge_feature_w'], kp['edge_feature_b'], kp['e_all_w'])


def pe_attention(qkv3, mask_bias, num_heads, head_dim, emb):
    B, S, _ = qkv3.shape
    return pl.pallas_call(
        functools.partial(_pe_attn_kernel, num_heads=num_heads,
                          head_dim=head_dim, emb=emb),
        out_shape=jax.ShapeDtypeStruct((B, S, emb), jnp.float32),
        in_specs=[VMEM, VMEM], out_specs=VMEM,
    )(qkv3, mask_bias)


def pe_post_ffn(attn2, resid, lyr):
    return pl.pallas_call(
        _pe_post_kernel,
        out_shape=jax.ShapeDtypeStruct(resid.shape, jnp.float32),
        in_specs=[VMEM] * 12, out_specs=VMEM,
    )(attn2, resid, lyr['out_w'], lyr['out_b'], lyr['ln1_w'], lyr['ln1_b'],
      lyr['ff1_w'], lyr['ff1_b'], lyr['ff2_w'], lyr['ff2_b'],
      lyr['ln2_w'], lyr['ln2_b'])


def san_layer(x, eT, adjT_real, adjT_fake, lp, gamma, num_heads, head_dim):
    N, hidden = x.shape
    kernel = functools.partial(_san_layer_kernel, gamma=gamma,
                               num_heads=num_heads, head_dim=head_dim)
    return pl.pallas_call(
        kernel,
        out_shape=jax.ShapeDtypeStruct((N, hidden), jnp.float32),
        in_specs=[VMEM] * 16, out_specs=VMEM,
    )(x, eT, adjT_real, adjT_fake, lp['wqkv'], lp['e2'],
      lp['wo'], lp['bo'], lp['bn1s'], lp['bn1t'],
      lp['w1'], lp['b1'], lp['w2'], lp['b2'], lp['bn2s'], lp['bn2t'])


def policy_head(cur, action_masks_f, kp):
    n = cur.shape[0]
    na = kp['actor_w'].shape[1]
    return pl.pallas_call(
        _policy_head_kernel,
        out_shape=(jax.ShapeDtypeStruct((n, na), jnp.float32),
                   jax.ShapeDtypeStruct((n, 1), jnp.float32)),
        in_specs=[VMEM] * 8, out_specs=(VMEM, VMEM),
    )(cur, action_masks_f, kp['constraints_w'], kp['constraints_b'],
      kp['actor_w'], kp['actor_b'], kp['critic_w'], kp['critic_b'])


# ----------------------------------------------------------------------------
# Forward pass (plain-JAX glue around the fused kernels)
# ----------------------------------------------------------------------------
def san_policy_forward(kp, batch, action_masks, sample_key, cfg):
    H = cfg['num_heads']
    hidden = cfg['hidden_dim']
    pe_dim = cfg['pe_dim']
    gamma = cfg['gamma']
    L = cfg['san_layers']
    N = batch['x'].shape[0]

    # --- Laplacian-PE encoder (eval: no sign flip, no dropout) ---
    pos_enc = jnp.concatenate([batch['EigVecs'][:, :, None], batch['EigVals']],
                              axis=2)                              # [N, K, 2]
    empty_mask = jnp.isnan(pos_enc)
    pos_enc = jnp.where(empty_mask, 0.0, pos_enc).astype(jnp.float32)
    K = pos_enc.shape[1]
    key_pad = empty_mask[:, :, 0]                                  # [N, K]
    x2 = fused_linear(pos_enc.reshape(N * K, 2),
                      kp['lap_pe']['linear_A_w'], kp['lap_pe']['linear_A_b'])
    mask_bias = jnp.where(key_pad, -1e9, 0.0).astype(jnp.float32)[:, None, :]
    pe_dh = pe_dim // H
    for lyr in kp['lap_pe']['layers']:
        qkv = fused_linear(x2, lyr['in_w'], lyr['in_b'])           # [N*K, 3*pe]
        attn = pe_attention(qkv.reshape(N, K, 3 * pe_dim), mask_bias,
                            H, pe_dh, pe_dim)                      # [N, K, pe]
        x2 = pe_post_ffn(attn.reshape(N * K, pe_dim), x2, lyr)     # [N*K, pe]
    pe = jnp.where(key_pad.reshape(N * K, 1), 0.0, x2)
    pe = pe.reshape(N, K, pe_dim).sum(axis=1)                      # [N, pe]

    # --- node features: node_proj + depth embed + pos_enc + node_feature fused ---
    de = kp['depth_embed'][batch['node_depth']]
    x = node_feature_fused(batch['x'].astype(jnp.float32), de, pe, kp)

    # --- edge features: edge_feature + all per-layer E projections in one kernel ---
    e_all = edge_proj_all(batch['edge_attr'].astype(jnp.float32), kp)
    ei = batch['edge_index']
    # dense dst-major scatter == edge_index gather / negate_edge_index
    # (last-write-wins; equivalent for duplicate-free edge lists)
    edense_T = jnp.zeros((N, N, L * hidden), jnp.float32).at[ei[1], ei[0]].set(e_all)
    adjT_real = jnp.zeros((N, N), jnp.float32).at[ei[1], ei[0]].set(1.0)
    same_graph = batch['batch'][:, None] == batch['batch'][None, :]
    adjT_fake = (same_graph & (~jnp.eye(N, dtype=bool))
                 & (adjT_real == 0.0)).astype(jnp.float32)

    for l, lp in enumerate(kp['san_layers']):
        eT = edense_T[:, :, l * hidden:(l + 1) * hidden]
        x = san_layer(x, eT, adjT_real, adjT_fake, lp, gamma, H, hidden // H)

    # --- policy / value heads ---
    cur = x[batch['current_node_idx']]
    logits, vpred = policy_head(cur, action_masks.astype(jnp.float32), kp)
    logits = jnp.where(action_masks, logits, jnp.full_like(logits, -1e6))
    # TODO(synk): torch.distributions.Categorical returned as masked logits + explicit sample/logp.
    act = jax.random.categorical(sample_key, logits, axis=-1)
    logp = jax.nn.log_softmax(logits, axis=-1)[jnp.arange(logits.shape[0]), act]
    return {'logits': logits, 'act': act, 'logp': logp, 'vpred': vpred[:, 0]}


# ----------------------------------------------------------------------------
# Parameter init (PyTorch layout) + one-time kernel-layout preparation
# ----------------------------------------------------------------------------
def init_linear(key, in_dim, out_dim, bias=True):
    kw, kb = jax.random.split(key)
    bound = 1.0 / math.sqrt(in_dim)
    w = jax.random.uniform(kw, (out_dim, in_dim), jnp.float32, -bound, bound)
    b = (jax.random.uniform(kb, (out_dim,), jnp.float32, -bound, bound)
         if bias else None)
    return w, b


def init_params(key, cfg):
    hidden = cfg['hidden_dim']
    pe_dim = cfg['pe_dim']
    ff_pe = 2048  # PyTorch TransformerEncoderLayer default dim_feedforward
    keys = iter(jax.random.split(key, 256))

    def lin(i, o, bias=True):
        return init_linear(next(keys), i, o, bias)

    p = {}
    p['node_proj_w'], p['node_proj_b'] = lin(cfg['node_dim'], hidden)
    p['depth_embed'] = jax.random.normal(next(keys),
                                         (cfg['max_depth'] + 1, hidden),
                                         jnp.float32)
    lap = {}
    lap['linear_A_w'], lap['linear_A_b'] = lin(2, pe_dim)
    lap['layers'] = []
    for _ in range(cfg['pe_layers']):
        layer = {}
        in_w, in_b = lin(pe_dim, 3 * pe_dim)
        op_w, op_b = lin(pe_dim, pe_dim)
        layer['mha'] = {'in_proj_w': in_w, 'in_proj_b': in_b,
                        'out_proj_w': op_w, 'out_proj_b': op_b}
        layer['ln1_w'] = jnp.ones((pe_dim,), jnp.float32)
        layer['ln1_b'] = jnp.zeros((pe_dim,), jnp.float32)
        layer['ln2_w'] = jnp.ones((pe_dim,), jnp.float32)
        layer['ln2_b'] = jnp.zeros((pe_dim,), jnp.float32)
        layer['ff1_w'], layer['ff1_b'] = lin(pe_dim, ff_pe)
        layer['ff2_w'], layer['ff2_b'] = lin(ff_pe, pe_dim)
        lap['layers'].append(layer)
    p['lap_pe'] = lap

    p['node_feature_w'], p['node_feature_b'] = lin(hidden * 2 + pe_dim, hidden)
    p['edge_feature_w'], p['edge_feature_b'] = lin(cfg['edge_dim'], hidden)

    p['san_layers'] = []
    for _ in range(cfg['san_layers']):
        lp = {}
        attn = {}
        for name in ['Q_w', 'K_w', 'E_w', 'Q2_w', 'K2_w', 'E2_w', 'V_w']:
            attn[name], _ = lin(hidden, hidden, bias=False)
        attn['fake_edge_emb'] = jax.random.normal(next(keys), (1, hidden),
                                                  jnp.float32)
        lp['attn'] = attn
        lp['O_w'], lp['O_b'] = lin(hidden, hidden)
        lp['ff1_w'], lp['ff1_b'] = lin(hidden, 2 * hidden)
        lp['ff2_w'], lp['ff2_b'] = lin(2 * hidden, hidden)
        for tag in ['bn1', 'bn2']:
            lp[f'{tag}_w'] = jnp.ones((hidden,), jnp.float32)
            lp[f'{tag}_b'] = jnp.zeros((hidden,), jnp.float32)
            lp[f'{tag}_rm'] = jnp.zeros((hidden,), jnp.float32)
            lp[f'{tag}_rv'] = jnp.ones((hidden,), jnp.float32)
        p['san_layers'].append(lp)

    p['constraints_w'], p['constraints_b'] = lin(cfg['num_actions'], hidden)
    p['actor_w'], p['actor_b'] = lin(hidden * 2, cfg['num_actions'])
    p['critic_w'], p['critic_b'] = lin(hidden * 2, 1)
    return p


def prepare_params(p, cfg):
    """One-time transform to kernel-ready layout: transposed [K,N] weights,
    concatenated QKVQ2K2 / per-layer E weights, precomputed E2 row, folded BN."""
    def t(w):
        return jnp.asarray(w.T, jnp.float32)

    def row(b):
        return jnp.asarray(b, jnp.float32).reshape(1, -1)

    kp = {}
    kp['node_proj_w'] = t(p['node_proj_w'])
    kp['node_proj_b'] = row(p['node_proj_b'])
    kp['depth_embed'] = jnp.asarray(p['depth_embed'], jnp.float32)

    lap = p['lap_pe']
    kl = {'linear_A_w': t(lap['linear_A_w']), 'linear_A_b': row(lap['linear_A_b']),
          'layers': []}
    for lyr in lap['layers']:
        kl['layers'].append(dict(
            in_w=t(lyr['mha']['in_proj_w']), in_b=row(lyr['mha']['in_proj_b']),
            out_w=t(lyr['mha']['out_proj_w']), out_b=row(lyr['mha']['out_proj_b']),
            ln1_w=row(lyr['ln1_w']), ln1_b=row(lyr['ln1_b']),
            ln2_w=row(lyr['ln2_w']), ln2_b=row(lyr['ln2_b']),
            ff1_w=t(lyr['ff1_w']), ff1_b=row(lyr['ff1_b']),
            ff2_w=t(lyr['ff2_w']), ff2_b=row(lyr['ff2_b'])))
    kp['lap_pe'] = kl

    kp['node_feature_w'] = t(p['node_feature_w'])
    kp['node_feature_b'] = row(p['node_feature_b'])
    kp['edge_feature_w'] = t(p['edge_feature_w'])
    kp['edge_feature_b'] = row(p['edge_feature_b'])
    kp['e_all_w'] = jnp.concatenate([t(lp['attn']['E_w'])
                                     for lp in p['san_layers']], axis=1)

    ks = []
    for lp in p['san_layers']:
        a = lp['attn']
        wqkv = jnp.concatenate([t(a['Q_w']), t(a['K_w']), t(a['V_w']),
                                t(a['Q2_w']), t(a['K2_w'])], axis=1)
        e2 = jnp.dot(a['fake_edge_emb'], a['E2_w'].T).astype(jnp.float32)

        def bn_fold(tag, lp=lp):
            s = lp[f'{tag}_w'] / jnp.sqrt(lp[f'{tag}_rv'] + 1e-5)
            sh = lp[f'{tag}_b'] - lp[f'{tag}_rm'] * s
            return row(s), row(sh)

        bn1s, bn1t = bn_fold('bn1')
        bn2s, bn2t = bn_fold('bn2')
        ks.append(dict(wqkv=wqkv, e2=e2,
                       wo=t(lp['O_w']), bo=row(lp['O_b']),
                       bn1s=bn1s, bn1t=bn1t,
                       w1=t(lp['ff1_w']), b1=row(lp['ff1_b']),
                       w2=t(lp['ff2_w']), b2=row(lp['ff2_b']),
                       bn2s=bn2s, bn2t=bn2t))
    kp['san_layers'] = ks

    kp['constraints_w'] = t(p['constraints_w'])
    kp['constraints_b'] = row(p['constraints_b'])
    kp['actor_w'] = t(p['actor_w'])
    kp['actor_b'] = row(p['actor_b'])
    kp['critic_w'] = t(p['critic_w'])
    kp['critic_b'] = row(p['critic_b'])
    return kp


# ----------------------------------------------------------------------------
# Main
# ----------------------------------------------------------------------------
if __name__ == "__main__":
    cfg = dict(gamma=0.1, node_dim=6, max_depth=5, edge_dim=4, hidden_dim=16,
               pe_dim=8, pe_layers=1, san_layers=2, num_heads=2, dropout=0.0,
               layer_norm=False, batch_norm=True, residual=True,
               full_graph=True, num_actions=5)

    root = jax.random.PRNGKey(0)
    k_param, k_x, k_ea, k_ev, k_el, k_depth, k_sample = jax.random.split(root, 7)

    params = init_params(k_param, cfg)
    kparams = prepare_params(params, cfg)

    # two graphs of 6 nodes each, ring topology (bidirectional edges)
    nodes_per_graph, n_graphs = 6, 2
    N = nodes_per_graph * n_graphs
    edges = []
    for g in range(n_graphs):
        o = g * nodes_per_graph
        for i in range(nodes_per_graph):
            j = (i + 1) % nodes_per_graph
            edges.append((o + i, o + j))
            edges.append((o + j, o + i))
    edge_index = jnp.array(edges, dtype=jnp.int32).T            # [2, 24]
    n_edges = edge_index.shape[1]
    n_freq = 3

    batch = {
        'x': jax.random.normal(k_x, (N, cfg['node_dim']), jnp.float32),
        'node_depth': jax.random.randint(k_depth, (N,), 0, cfg['max_depth'] + 1),
        'edge_index': edge_index,
        'edge_attr': jax.random.normal(k_ea, (n_edges, cfg['edge_dim']),
                                       jnp.float32),
        'EigVecs': jax.random.normal(k_ev, (N, n_freq), jnp.float32),
        'EigVals': jax.random.normal(k_el, (N, n_freq, 1), jnp.float32),
        'batch': jnp.array([0] * nodes_per_graph + [1] * nodes_per_graph,
                           dtype=jnp.int32),
        'current_node_idx': jnp.array([0, nodes_per_graph], dtype=jnp.int32),
    }
    action_masks = jnp.array([[True, True, False, True, False],
                              [False, True, True, True, True]])

    fwd = jax.jit(lambda kp, b, am, key: san_policy_forward(kp, b, am, key, cfg))
    out = fwd(kparams, batch, action_masks, k_sample)
    out = jax.block_until_ready(out)

    assert out['logits'].shape == (n_graphs, cfg['num_actions'])
    assert out['act'].shape == (n_graphs,)
    assert out['logp'].shape == (n_graphs,)
    assert out['vpred'].shape == (n_graphs,)
    assert bool(jnp.all(jnp.isfinite(out['logp'])))
    assert bool(jnp.all(jnp.isfinite(out['vpred'])))
    print("KERNEL_OK")
</pallas_src>

<mosaic_0001>
module attributes {stable_mosaic.version = 11 : i64} {
  func.func @_linear_kernel(%arg0: memref<36x8xf32, #tpu.memory_space<vmem>>, %arg1: memref<8x24xf32, #tpu.memory_space<vmem>>, %arg2: memref<1x24xf32, #tpu.memory_space<vmem>>, %arg3: memref<36x24xf32, #tpu.memory_space<vmem>>) attributes {dimension_semantics = [], scalar_prefetch = 0 : i64, scratch_operands = 0 : i64, tpu.core_type = #tpu.core_type<tc>} {
    %c0 = arith.constant 0 : index
    %c0_0 = arith.constant 0 : index
    %0 = vector.load %arg0[%c0, %c0_0] : memref<36x8xf32, #tpu.memory_space<vmem>>, vector<36x8xf32>
    %1 = arith.truncf %0 : vector<36x8xf32> to vector<36x8xbf16>
    %c0_1 = arith.constant 0 : index
    %c0_2 = arith.constant 0 : index
    %2 = vector.load %arg1[%c0_1, %c0_2] : memref<8x24xf32, #tpu.memory_space<vmem>>, vector<8x24xf32>
    %3 = arith.truncf %2 : vector<8x24xf32> to vector<8x24xbf16>
    %cst = arith.constant dense<0.000000e+00> : vector<36x24xf32>
    %4 = tpu.matmul %1, %3, %cst {dimension_numbers = #tpu.dot_dimension_numbers<[1], [0], [0], [1], [0, 0, 1, 1], [], []>} : vector<36x8xbf16>, vector<8x24xbf16>, vector<36x24xf32> -> vector<36x24xf32>
    %c0_3 = arith.constant 0 : index
    %c0_4 = arith.constant 0 : index
    %5 = vector.load %arg2[%c0_3, %c0_4] : memref<1x24xf32, #tpu.memory_space<vmem>>, vector<1x24xf32>
    %6 = vector.broadcast %5 : vector<1x24xf32> to vector<36x24xf32>
    %7 = arith.addf %4, %6 : vector<36x24xf32>
    %c0_5 = arith.constant 0 : index
    %c0_6 = arith.constant 0 : index
    %8 = vector.load %arg3[%c0_5, %c0_6] : memref<36x24xf32, #tpu.memory_space<vmem>>, vector<36x24xf32>
    tpu.vector_store %arg3[%c0_5, %c0_6], %7 {strides = array<i32>} : memref<36x24xf32, #tpu.memory_space<vmem>>, vector<36x24xf32>,
    return
  }
}

module attributes {stable_mosaic.version = 11 : i64} {
  func.func @_linear_kernel(%arg0: memref<36x2xf32, #tpu.memory_space<vmem>>, %arg1: memref<2x8xf32, #tpu.memory_space<vmem>>, %arg2: memref<1x8xf32, #tpu.memory_space<vmem>>, %arg3: memref<36x8xf32, #tpu.memory_space<vmem>>) attributes {dimension_semantics = [], scalar_prefetch = 0 : i64, scratch_operands = 0 : i64, tpu.core_type = #tpu.core_type<tc>} {
    %c0 = arith.constant 0 : index
    %c0_0 = arith.constant 0 : index
    %0 = vector.load %arg0[%c0, %c0_0] : memref<36x2xf32, #tpu.memory_space<vmem>>, vector<36x2xf32>
    %1 = arith.truncf %0 : vector<36x2xf32> to vector<36x2xbf16>
    %c0_1 = arith.constant 0 : index
    %c0_2 = arith.constant 0 : index
    %2 = vector.load %arg1[%c0_1, %c0_2] : memref<2x8xf32, #tpu.memory_space<vmem>>, vector<2x8xf32>
    %3 = arith.truncf %2 : vector<2x8xf32> to vector<2x8xbf16>
    %cst = arith.constant dense<0.000000e+00> : vector<36x8xf32>
    %4 = tpu.matmul %1, %3, %cst {dimension_numbers = #tpu.dot_dimension_numbers<[1], [0], [0], [1], [0, 0, 1, 1], [], []>} : vector<36x2xbf16>, vector<2x8xbf16>, vector<36x8xf32> -> vector<36x8xf32>
    %c0_3 = arith.constant 0 : index
    %c0_4 = arith.constant 0 : index
    %5 = vector.load %arg2[%c0_3, %c0_4] : memref<1x8xf32, #tpu.memory_space<vmem>>, vector<1x8xf32>
    %6 = vector.broadcast %5 : vector<1x8xf32> to vector<36x8xf32>
    %7 = arith.addf %4, %6 : vector<36x8xf32>
    %c0_5 = arith.constant 0 : index
    %c0_6 = arith.constant 0 : index
    %8 = vector.load %arg3[%c0_5, %c0_6] : memref<36x8xf32, #tpu.memory_space<vmem>>, vector<36x8xf32>
    tpu.vector_store %arg3[%c0_5, %c0_6], %7 {strides = array<i32>} : memref<36x8xf32, #tpu.memory_space<vmem>>, vector<36x8xf32>,
    return
  }
}

module attributes {stable_mosaic.version = 11 : i64} {
  func.func @_pe_attn_kernel(%arg0: memref<12x3x24xf32, #tpu.memory_space<vmem>>, %arg1: memref<12x1x3xf32, #tpu.memory_space<vmem>>, %arg2: memref<12x3x8xf32, #tpu.memory_space<vmem>>) attributes {dimension_semantics = [], scalar_prefetch = 0 : i64, scratch_operands = 0 : i64, tpu.core_type = #tpu.core_type<tc>} {
    %c0 = arith.constant 0 : index
    %c0_0 = arith.constant 0 : index
    %c0_1 = arith.constant 0 : index
    %0 = vector.load %arg0[%c0, %c0_0, %c0_1] : memref<12x3x24xf32, #tpu.memory_space<vmem>>, vector<12x3x24xf32>
    %c0_2 = arith.constant 0 : index
    %c0_3 = arith.constant 0 : index
    %c0_4 = arith.constant 0 : index
    %1 = vector.load %arg1[%c0_2, %c0_3, %c0_4] : memref<12x1x3xf32, #tpu.memory_space<vmem>>, vector<12x1x3xf32>
    %2 = vector.extract_strided_slice %0 {offsets = [0, 0, 0], sizes = [12, 3, 4], strides = [1, 1, 1]} : vector<12x3x24xf32> to vector<12x3x4xf32>
    %3 = vector.extract_strided_slice %0 {offsets = [0, 0, 8], sizes = [12, 3, 4], strides = [1, 1, 1]} : vector<12x3x24xf32> to vector<12x3x4xf32>
    %4 = vector.extract_strided_slice %0 {offsets = [0, 0, 16], sizes = [12, 3, 4], strides = [1, 1, 1]} : vector<12x3x24xf32> to vector<12x3x4xf32>
    %5 = arith.truncf %2 : vector<12x3x4xf32> to vector<12x3x4xbf16>
    %6 = arith.truncf %3 : vector<12x3x4xf32> to vector<12x3x4xbf16>
    "tpu.trace_start"() <{level = 10 : i32, message = "bqd,bkd->bqk"}> : () -> ()
    %cst = arith.constant dense<0.000000e+00> : vector<12x3x3xf32>
    %7 = tpu.matmul %5, %6, %cst {dimension_numbers = #tpu.dot_dimension_numbers<[2], [2], [1], [1], [0, 0, 0, 1, 1, 1], [0], [0]>} : vector<12x3x4xbf16>, vector<12x3x4xbf16>, vector<12x3x3xf32> -> vector<12x3x3xf32>
    "tpu.trace_stop"() : () -> ()
    %cst_5 = arith.constant 5.000000e-01 : f32
    %8 = vector.broadcast %cst_5 : f32 to vector<12x3x3xf32>
    %9 = arith.mulf %7, %8 : vector<12x3x3xf32>
    %10 = vector.broadcast %1 : vector<12x1x3xf32> to vector<12x3x3xf32>
    %11 = arith.addf %9, %10 : vector<12x3x3xf32>
    %cst_6 = arith.constant dense<0xFF800000> : vector<12x3xf32>
    %12 = vector.multi_reduction <maximumf>, %11, %cst_6 [2] : vector<12x3x3xf32> to vector<12x3xf32>
    %cst_7 = arith.constant 0xFF800000 : f32
    %13 = vector.broadcast %cst_7 : f32 to vector<12x3xf32>
    %14 = arith.maximumf %13, %12 : vector<12x3xf32>
    %15 = vector.shape_cast %14 : vector<12x3xf32> to vector<12x3x1xf32>
    %16 = vector.broadcast %15 : vector<12x3x1xf32> to vector<12x3x3xf32>
    %17 = arith.subf %11, %16 : vector<12x3x3xf32>
    %18 = math.exp %17 : vector<12x3x3xf32>
    %cst_8 = arith.constant dense<0.000000e+00> : vector<12x3xf32>
    %19 = vector.multi_reduction <add>, %18, %cst_8 [2] : vector<12x3x3xf32> to vector<12x3xf32>
    %20 = vector.shape_cast %19 : vector<12x3xf32> to vector<12x3x1xf32>
    %21 = vector.broadcast %20 : vector<12x3x1xf32> to vector<12x3x3xf32>
    %22 = arith.divf %18, %21 : vector<12x3x3xf32>
    %23 = arith.truncf %22 : vector<12x3x3xf32> to vector<12x3x3xbf16>
    %24 = arith.truncf %4 : vector<12x3x4xf32> to vector<12x3x4xbf16>
    "tpu.trace_start"() <{level = 10 : i32, message = "bqk,bkd->bqd"}> : () -> ()
    %cst_9 = arith.constant dense<0.000000e+00> : vector<12x3x4xf32>
    %25 = tpu.matmul %23, %24, %cst_9 {dimension_numbers = #tpu.dot_dimension_numbers<[2], [1], [1], [2], [0, 0, 0, 1, 1, 2], [0], [0]>} : vector<12x3x3xbf16>, vector<12x3x4xbf16>, vector<12x3x4xf32> -> vector<12x3x4xf32>
    "tpu.trace_stop"() : () -> ()
    %26 = vector.extract_strided_slice %0 {offsets = [0, 0, 4], sizes = [12, 3, 4], strides = [1, 1, 1]} : vector<12x3x24xf32> to vector<12x3x4xf32>
    %27 = vector.extract_strided_slice %0 {offsets = [0, 0, 12], sizes = [12, 3, 4], strides = [1, 1, 1]} : vector<12x3x24xf32> to vector<12x3x4xf32>
    %28 = vector.extract_strided_slice %0 {offsets = [0, 0, 20], sizes = [12, 3, 4], strides = [1, 1, 1]} : vector<12x3x24xf32> to vector<12x3x4xf32>
    %29 = arith.truncf %26 : vector<12x3x4xf32> to vector<12x3x4xbf16>
    %30 = arith.truncf %27 : vector<12x3x4xf32> to vector<12x3x4xbf16>
    "tpu.trace_start"() <{level = 10 : i32, message = "bqd,bkd->bqk"}> : () -> ()
    %cst_10 = arith.constant dense<0.000000e+00> : vector<12x3x3xf32>
    %31 = tpu.matmul %29, %30, %cst_10 {dimension_numbers = #tpu.dot_dimension_numbers<[2], [2], [1], [1], [0, 0, 0, 1, 1, 1], [0], [0]>} : vector<12x3x4xbf16>, vector<12x3x4xbf16>, vector<12x3x3xf32> -> vector<12x3x3xf32>
    "tpu.trace_stop"() : () -> ()
    %cst_11 = arith.constant 5.000000e-01 : f32
    %32 = vector.broadcast %cst_11 : f32 to vector<12x3x3xf32>
    %33 = arith.mulf %31, %32 : vector<12x3x3xf32>
    %34 = vector.broadcast %1 : vector<12x1x3xf32> to vector<12x3x3xf32>
    %35 = arith.addf %33, %34 : vector<12x3x3xf32>
    %cst_12 = arith.constant dense<0xFF800000> : vector<12x3xf32>
    %36 = vector.multi_reduction <maximumf>, %35, %cst_12 [2] : vector<12x3x3xf32> to vector<12x3xf32>
    %cst_13 = arith.constant 0xFF800000 : f32
    %37 = vector.broadcast %cst_13 : f32 to vector<12x3xf32>
    %38 = arith.maximumf %37, %36 : vector<12x3xf32>
    %39 = vector.shape_cast %38 : vector<12x3xf32> to vector<12x3x1xf32>
    %40 = vector.broadcast %39 : vector<12x3x1xf32> to vector<12x3x3xf32>
    %41 = arith.subf %35, %40 : vector<12x3x3xf32>
    %42 = math.exp %41 : vector<12x3x3xf32>
    %cst_14 = arith.constant dense<0.000000e+00> : vector<12x3xf32>
    %43 = vector.multi_reduction <add>, %42, %cst_14 [2] : vector<12x3x3xf32> to vector<12x3xf32>
    %44 = vector.shape_cast %43 : vector<12x3xf32> to vector<12x3x1xf32>
    %45 = vector.broadcast %44 : vector<12x3x1xf32> to vector<12x3x3xf32>
    %46 = arith.divf %42, %45 : vector<12x3x3xf32>
    %47 = arith.truncf %46 : vector<12x3x3xf32> to vector<12x3x3xbf16>
    %48 = arith.truncf %28 : vector<12x3x4xf32> to vector<12x3x4xbf16>
    "tpu.trace_start"() <{level = 10 : i32, message = "bqk,bkd->bqd"}> : () -> ()
    %cst_15 = arith.constant dense<0.000000e+00> : vector<12x3x4xf32>
    %49 = tpu.matmul %47, %48, %cst_15 {dimension_numbers = #tpu.dot_dimension_numbers<[2], [1], [1], [2], [0, 0, 0, 1, 1, 2], [0], [0]>} : vector<12x3x3xbf16>, vector<12x3x4xbf16>, vector<12x3x4xf32> -> vector<12x3x4xf32>
    "tpu.trace_stop"() : () -> ()
    %50 = tpu.concatenate %25, %49 in 2 : vector<12x3x4xf32>, vector<12x3x4xf32> -> vector<12x3x8xf32>
    %c0_16 = arith.constant 0 : index
    %c0_17 = arith.constant 0 : index
    %c0_18 = arith.constant 0 : index
    %51 = vector.load %arg2[%c0_16, %c0_17, %c0_18] : memref<12x3x8xf32, #tpu.memory_space<vmem>>, vector<12x3x8xf32>
    tpu.vector_store %arg2[%c0_16, %c0_17, %c0_18], %50 {strides = array<i32>} : memref<12x3x8xf32, #tpu.memory_space<vmem>>, vector<12x3x8xf32>,
    return
  }
}

module attributes {stable_mosaic.version = 11 : i64} {
  func.func @_pe_post_kernel(%arg0: memref<36x8xf32, #tpu.memory_space<vmem>>, %arg1: memref<36x8xf32, #tpu.memory_space<vmem>>, %arg2: memref<8x8xf32, #tpu.memory_space<vmem>>, %arg3: memref<1x8xf32, #tpu.memory_space<vmem>>, %arg4: memref<1x8xf32, #tpu.memory_space<vmem>>, %arg5: memref<1x8xf32, #tpu.memory_space<vmem>>, %arg6: memref<8x2048xf32, #tpu.memory_space<vmem>>, %arg7: memref<1x2048xf32, #tpu.memory_space<vmem>>, %arg8: memref<2048x8xf32, #tpu.memory_space<vmem>>, %arg9: memref<1x8xf32, #tpu.memory_space<vmem>>, %arg10: memref<1x8xf32, #tpu.memory_space<vmem>>, %arg11: memref<1x8xf32, #tpu.memory_space<vmem>>, %arg12: memref<36x8xf32, #tpu.memory_space<vmem>>) attributes {dimension_semantics = [], scalar_prefetch = 0 : i64, scratch_operands = 0 : i64, tpu.core_type = #tpu.core_type<tc>} {
    %c0 = arith.constant 0 : index
    %c0_0 = arith.constant 0 : index
    %0 = vector.load %arg0[%c0, %c0_0] : memref<36x8xf32, #tpu.memory_space<vmem>>, vector<36x8xf32>
    %1 = arith.truncf %0 : vector<36x8xf32> to vector<36x8xbf16>
    %c0_1 = arith.constant 0 : index
    %c0_2 = arith.constant 0 : index
    %2 = vector.load %arg2[%c0_1, %c0_2] : memref<8x8xf32, #tpu.memory_space<vmem>>, vector<8x8xf32>
    %3 = arith.truncf %2 : vector<8x8xf32> to vector<8x8xbf16>
    %cst = arith.constant dense<0.000000e+00> : vector<36x8xf32>
    %4 = tpu.matmul %1, %3, %cst {dimension_numbers = #tpu.dot_dimension_numbers<[1], [0], [0], [1], [0, 0, 1, 1], [], []>} : vector<36x8xbf16>, vector<8x8xbf16>, vector<36x8xf32> -> vector<36x8xf32>
    %c0_3 = arith.constant 0 : index
    %c0_4 = arith.constant 0 : index
    %5 = vector.load %arg3[%c0_3, %c0_4] : memref<1x8xf32, #tpu.memory_space<vmem>>, vector<1x8xf32>
    %6 = vector.broadcast %5 : vector<1x8xf32> to vector<36x8xf32>
    %7 = arith.addf %4, %6 : vector<36x8xf32>
    %c0_5 = arith.constant 0 : index
    %c0_6 = arith.constant 0 : index
    %8 = vector.load %arg1[%c0_5, %c0_6] : memref<36x8xf32, #tpu.memory_space<vmem>>, vector<36x8xf32>
    %9 = arith.addf %8, %7 : vector<36x8xf32>
    %c0_7 = arith.constant 0 : index
    %c0_8 = arith.constant 0 : index
    %10 = vector.load %arg4[%c0_7, %c0_8] : memref<1x8xf32, #tpu.memory_space<vmem>>, vector<1x8xf32>
    %c0_9 = arith.constant 0 : index
    %c0_10 = arith.constant 0 : index
    %11 = vector.load %arg5[%c0_9, %c0_10] : memref<1x8xf32, #tpu.memory_space<vmem>>, vector<1x8xf32>
    %cst_11 = arith.constant dense<0.000000e+00> : vector<36xf32>
    %12 = vector.multi_reduction <add>, %9, %cst_11 [1] : vector<36x8xf32> to vector<36xf32>
    %13 = vector.shape_cast %12 : vector<36xf32> to vector<36x1xf32>
    %cst_12 = arith.constant 8.000000e+00 : f32
    %14 = vector.broadcast %cst_12 : f32 to vector<36x1xf32>
    %15 = arith.divf %13, %14 : vector<36x1xf32>
    %16 = vector.broadcast %15 : vector<36x1xf32> to vector<36x8xf32>
    %17 = arith.subf %9, %16 : vector<36x8xf32>
    %18 = arith.mulf %17, %17 : vector<36x8xf32>
    %cst_13 = arith.constant dense<0.000000e+00> : vector<36xf32>
    %19 = vector.multi_reduction <add>, %18, %cst_13 [1] : vector<36x8xf32> to vector<36xf32>
    %20 = vector.shape_cast %19 : vector<36xf32> to vector<36x1xf32>
    %cst_14 = arith.constant 8.000000e+00 : f32
    %21 = vector.broadcast %cst_14 : f32 to vector<36x1xf32>
    %22 = arith.divf %20, %21 : vector<36x1xf32>
    %23 = vector.broadcast %15 : vector<36x1xf32> to vector<36x8xf32>
    %24 = arith.subf %9, %23 : vector<36x8xf32>
    %cst_15 = arith.constant 9.99999974E-6 : f32
    %25 = vector.broadcast %cst_15 : f32 to vector<36x1xf32>
    %26 = arith.addf %22, %25 : vector<36x1xf32>
    %27 = math.rsqrt %26 : vector<36x1xf32>
    %28 = vector.broadcast %27 : vector<36x1xf32> to vector<36x8xf32>
    %29 = arith.mulf %24, %28 : vector<36x8xf32>
    %30 = vector.broadcast %10 : vector<1x8xf32> to vector<36x8xf32>
    %31 = arith.mulf %29, %30 : vector<36x8xf32>
    %32 = vector.broadcast %11 : vector<1x8xf32> to vector<36x8xf32>
    %33 = arith.addf %31, %32 : vector<36x8xf32>
    %34 = arith.truncf %33 : vector<36x8xf32> to vector<36x8xbf16>
    %c0_16 = arith.constant 0 : index
    %c0_17 = arith.constant 0 : index
    %35 = vector.load %arg6[%c0_16, %c0_17] : memref<8x2048xf32, #tpu.memory_space<vmem>>, vector<8x2048xf32>
    %36 = arith.truncf %35 : vector<8x2048xf32> to vector<8x2048xbf16>
    %cst_18 = arith.constant dense<0.000000e+00> : vector<36x2048xf32>
    %37 = tpu.matmul %34, %36, %cst_18 {dimension_numbers = #tpu.dot_dimension_numbers<[1], [0], [0], [1], [0, 0, 1, 1], [], []>} : vector<36x8xbf16>, vector<8x2048xbf16>, vector<36x2048xf32> -> vector<36x2048xf32>
    %c0_19 = arith.constant 0 : index
    %c0_20 = arith.constant 0 : index
    %38 = vector.load %arg7[%c0_19, %c0_20] : memref<1x2048xf32, #tpu.memory_space<vmem>>, vector<1x2048xf32>
    %39 = vector.broadcast %38 : vector<1x2048xf32> to vector<36x2048xf32>
    %40 = arith.addf %37, %39 : vector<36x2048xf32>
    %cst_21 = arith.constant 0.000000e+00 : f32
    %41 = vector.broadcast %cst_21 : f32 to vector<36x2048xf32>
    %42 = arith.maximumf %40, %41 : vector<36x2048xf32>
    %43 = arith.truncf %42 : vector<36x2048xf32> to vector<36x2048xbf16>
    %c0_22 = arith.constant 0 : index
    %c0_23 = arith.constant 0 : index
    %44 = vector.load %arg8[%c0_22, %c0_23] : memref<2048x8xf32, #tpu.memory_space<vmem>>, vector<2048x8xf32>
    %45 = arith.truncf %44 : vector<2048x8xf32> to vector<2048x8xbf16>
    %cst_24 = arith.constant dense<0.000000e+00> : vector<36x8xf32>
    %46 = tpu.matmul %43, %45, %cst_24 {dimension_numbers = #tpu.dot_dimension_numbers<[1], [0], [0], [1], [0, 0, 1, 1], [], []>} : vector<36x2048xbf16>, vector<2048x8xbf16>, vector<36x8xf32> -> vector<36x8xf32>
    %c0_25 = arith.constant 0 : index
    %c0_26 = arith.constant 0 : index
    %47 = vector.load %arg9[%c0_25, %c0_26] : memref<1x8xf32, #tpu.memory_space<vmem>>, vector<1x8xf32>
    %48 = vector.broadcast %47 : vector<1x8xf32> to vector<36x8xf32>
    %49 = arith.addf %46, %48 : vector<36x8xf32>
    %50 = arith.addf %33, %49 : vector<36x8xf32>
    %c0_27 = arith.constant 0 : index
    %c0_28 = arith.constant 0 : index
    %51 = vector.load %arg10[%c0_27, %c0_28] : memref<1x8xf32, #tpu.memory_space<vmem>>, vector<1x8xf32>
    %c0_29 = arith.constant 0 : index
    %c0_30 = arith.constant 0 : index
    %52 = vector.load %arg11[%c0_29, %c0_30] : memref<1x8xf32, #tpu.memory_space<vmem>>, vector<1x8xf32>
    %cst_31 = arith.constant dense<0.000000e+00> : vector<36xf32>
    %53 = vector.multi_reduction <add>, %50, %cst_31 [1] : vector<36x8xf32> to vector<36xf32>
    %54 = vector.shape_cast %53 : vector<36xf32> to vector<36x1xf32>
    %cst_32 = arith.constant 8.000000e+00 : f32
    %55 = vector.broadcast %cst_32 : f32 to vector<36x1xf32>
    %56 = arith.divf %54, %55 : vector<36x1xf32>
    %57 = vector.broadcast %56 : vector<36x1xf32> to vector<36x8xf32>
    %58 = arith.subf %50, %57 : vector<36x8xf32>
    %59 = arith.mulf %58, %58 : vector<36x8xf32>
    %cst_33 = arith.constant dense<0.000000e+00> : vector<36xf32>
    %60 = vector.multi_reduction <add>, %59, %cst_33 [1] : vector<36x8xf32> to vector<36xf32>
    %61 = vector.shape_cast %60 : vector<36xf32> to vector<36x1xf32>
    %cst_34 = arith.constant 8.000000e+00 : f32
    %62 = vector.broadcast %cst_34 : f32 to vector<36x1xf32>
    %63 = arith.divf %61, %62 : vector<36x1xf32>
    %64 = vector.broadcast %56 : vector<36x1xf32> to vector<36x8xf32>
    %65 = arith.subf %50, %64 : vector<36x8xf32>
    %cst_35 = arith.constant 9.99999974E-6 : f32
    %66 = vector.broadcast %cst_35 : f32 to vector<36x1xf32>
    %67 = arith.addf %63, %66 : vector<36x1xf32>
    %68 = math.rsqrt %67 : vector<36x1xf32>
    %69 = vector.broadcast %68 : vector<36x1xf32> to vector<36x8xf32>
    %70 = arith.mulf %65, %69 : vector<36x8xf32>
    %71 = vector.broadcast %51 : vector<1x8xf32> to vector<36x8xf32>
    %72 = arith.mulf %70, %71 : vector<36x8xf32>
    %73 = vector.broadcast %52 : vector<1x8xf32> to vector<36x8xf32>
    %74 = arith.addf %72, %73 : vector<36x8xf32>
    %c0_36 = arith.constant 0 : index
    %c0_37 = arith.constant 0 : index
    %75 = vector.load %arg12[%c0_36, %c0_37] : memref<36x8xf32, #tpu.memory_space<vmem>>, vector<36x8xf32>
    tpu.vector_store %arg12[%c0_36, %c0_37], %74 {strides = array<i32>} : memref<36x8xf32, #tpu.memory_space<vmem>>, vector<36x8xf32>,
    return
  }
}

module attributes {stable_mosaic.version = 11 : i64} {
  func.func @_node_feature_kernel(%arg0: memref<12x6xf32, #tpu.memory_space<vmem>>, %arg1: memref<12x16xf32, #tpu.memory_space<vmem>>, %arg2: memref<12x8xf32, #tpu.memory_space<vmem>>, %arg3: memref<6x16xf32, #tpu.memory_space<vmem>>, %arg4: memref<1x16xf32, #tpu.memory_space<vmem>>, %arg5: memref<40x16xf32, #tpu.memory_space<vmem>>, %arg6: memref<1x16xf32, #tpu.memory_space<vmem>>, %arg7: memref<12x16xf32, #tpu.memory_space<vmem>>) attributes {dimension_semantics = [], scalar_prefetch = 0 : i64, scratch_operands = 0 : i64, tpu.core_type = #tpu.core_type<tc>} {
    %c0 = arith.constant 0 : index
    %c0_0 = arith.constant 0 : index
    %0 = vector.load %arg0[%c0, %c0_0] : memref<12x6xf32, #tpu.memory_space<vmem>>, vector<12x6xf32>
    %1 = arith.truncf %0 : vector<12x6xf32> to vector<12x6xbf16>
    %c0_1 = arith.constant 0 : index
    %c0_2 = arith.constant 0 : index
    %2 = vector.load %arg3[%c0_1, %c0_2] : memref<6x16xf32, #tpu.memory_space<vmem>>, vector<6x16xf32>
    %3 = arith.truncf %2 : vector<6x16xf32> to vector<6x16xbf16>
    %cst = arith.constant dense<0.000000e+00> : vector<12x16xf32>
    %4 = tpu.matmul %1, %3, %cst {dimension_numbers = #tpu.dot_dimension_numbers<[1], [0], [0], [1], [0, 0, 1, 1], [], []>} : vector<12x6xbf16>, vector<6x16xbf16>, vector<12x16xf32> -> vector<12x16xf32>
    %c0_3 = arith.constant 0 : index
    %c0_4 = arith.constant 0 : index
    %5 = vector.load %arg4[%c0_3, %c0_4] : memref<1x16xf32, #tpu.memory_space<vmem>>, vector<1x16xf32>
    %6 = vector.broadcast %5 : vector<1x16xf32> to vector<12x16xf32>
    %7 = arith.addf %4, %6 : vector<12x16xf32>
    %c0_5 = arith.constant 0 : index
    %c0_6 = arith.constant 0 : index
    %8 = vector.load %arg1[%c0_5, %c0_6] : memref<12x16xf32, #tpu.memory_space<vmem>>, vector<12x16xf32>
    %c0_7 = arith.constant 0 : index
    %c0_8 = arith.constant 0 : index
    %9 = vector.load %arg2[%c0_7, %c0_8] : memref<12x8xf32, #tpu.memory_space<vmem>>, vector<12x8xf32>
    %10 = tpu.concatenate %7, %8, %9 in 1 : vector<12x16xf32>, vector<12x16xf32>, vector<12x8xf32> -> vector<12x40xf32>
    %11 = arith.truncf %10 : vector<12x40xf32> to vector<12x40xbf16>
    %c0_9 = arith.constant 0 : index
    %c0_10 = arith.constant 0 : index
    %12 = vector.load %arg5[%c0_9, %c0_10] : memref<40x16xf32, #tpu.memory_space<vmem>>, vector<40x16xf32>
    %13 = arith.truncf %12 : vector<40x16xf32> to vector<40x16xbf16>
    %cst_11 = arith.constant dense<0.000000e+00> : vector<12x16xf32>
    %14 = tpu.matmul %11, %13, %cst_11 {dimension_numbers = #tpu.dot_dimension_numbers<[1], [0], [0], [1], [0, 0, 1, 1], [], []>} : vector<12x40xbf16>, vector<40x16xbf16>, vector<12x16xf32> -> vector<12x16xf32>
    %c0_12 = arith.constant 0 : index
    %c0_13 = arith.constant 0 : index
    %15 = vector.load %arg6[%c0_12, %c0_13] : memref<1x16xf32, #tpu.memory_space<vmem>>, vector<1x16xf32>
    %16 = vector.broadcast %15 : vector<1x16xf32> to vector<12x16xf32>
    %17 = arith.addf %14, %16 : vector<12x16xf32>
    %c0_14 = arith.constant 0 : index
    %c0_15 = arith.constant 0 : index
    %18 = vector.load %arg7[%c0_14, %c0_15] : memref<12x16xf32, #tpu.memory_space<vmem>>, vector<12x16xf32>
    tpu.vector_store %arg7[%c0_14, %c0_15], %17 {strides = array<i32>} : memref<12x16xf32, #tpu.memory_space<vmem>>, vector<12x16xf32>,
    return
  }
}

module attributes {stable_mosaic.version = 11 : i64} {
  func.func @_edge_proj_kernel(%arg0: memref<24x4xf32, #tpu.memory_space<vmem>>, %arg1: memref<4x16xf32, #tpu.memory_space<vmem>>, %arg2: memref<1x16xf32, #tpu.memory_space<vmem>>, %arg3: memref<16x32xf32, #tpu.memory_space<vmem>>, %arg4: memref<24x32xf32, #tpu.memory_space<vmem>>) attributes {dimension_semantics = [], scalar_prefetch = 0 : i64, scratch_operands = 0 : i64, tpu.core_type = #tpu.core_type<tc>} {
    %c0 = arith.constant 0 : index
    %c0_0 = arith.constant 0 : index
    %0 = vector.load %arg0[%c0, %c0_0] : memref<24x4xf32, #tpu.memory_space<vmem>>, vector<24x4xf32>
    %1 = arith.truncf %0 : vector<24x4xf32> to vector<24x4xbf16>
    %c0_1 = arith.constant 0 : index
    %c0_2 = arith.constant 0 : index
    %2 = vector.load %arg1[%c0_1, %c0_2] : memref<4x16xf32, #tpu.memory_space<vmem>>, vector<4x16xf32>
    %3 = arith.truncf %2 : vector<4x16xf32> to vector<4x16xbf16>
    %cst = arith.constant dense<0.000000e+00> : vector<24x16xf32>
    %4 = tpu.matmul %1, %3, %cst {dimension_numbers = #tpu.dot_dimension_numbers<[1], [0], [0], [1], [0, 0, 1, 1], [], []>} : vector<24x4xbf16>, vector<4x16xbf16>, vector<24x16xf32> -> vector<24x16xf32>
    %c0_3 = arith.constant 0 : index
    %c0_4 = arith.constant 0 : index
    %5 = vector.load %arg2[%c0_3, %c0_4] : memref<1x16xf32, #tpu.memory_space<vmem>>, vector<1x16xf32>
    %6 = vector.broadcast %5 : vector<1x16xf32> to vector<24x16xf32>
    %7 = arith.addf %4, %6 : vector<24x16xf32>
    %8 = arith.truncf %7 : vector<24x16xf32> to vector<24x16xbf16>
    %c0_5 = arith.constant 0 : index
    %c0_6 = arith.constant 0 : index
    %9 = vector.load %arg3[%c0_5, %c0_6] : memref<16x32xf32, #tpu.memory_space<vmem>>, vector<16x32xf32>
    %10 = arith.truncf %9 : vector<16x32xf32> to vector<16x32xbf16>
    %cst_7 = arith.constant dense<0.000000e+00> : vector<24x32xf32>
    %11 = tpu.matmul %8, %10, %cst_7 {dimension_numbers = #tpu.dot_dimension_numbers<[1], [0], [0], [1], [0, 0, 1, 1], [], []>} : vector<24x16xbf16>, vector<16x32xbf16>, vector<24x32xf32> -> vector<24x32xf32>
    %c0_8 = arith.constant 0 : index
    %c0_9 = arith.constant 0 : index
    %12 = vector.load %arg4[%c0_8, %c0_9] : memref<24x32xf32, #tpu.memory_space<vmem>>, vector<24x32xf32>
    tpu.vector_store %arg4[%c0_8, %c0_9], %11 {strides = array<i32>} : memref<24x32xf32, #tpu.memory_space<vmem>>, vector<24x32xf32>,
    return
  }
}

module attributes {stable_mosaic.version = 11 : i64} {
  func.func @_san_layer_kernel(%arg0: memref<12x16xf32, #tpu.memory_space<vmem>>, %arg1: memref<12x12x16xf32, #tpu.memory_space<vmem>>, %arg2: memref<12x12xf32, #tpu.memory_space<vmem>>, %arg3: memref<12x12xf32, #tpu.memory_space<vmem>>, %arg4: memref<16x80xf32, #tpu.memory_space<vmem>>, %arg5: memref<1x16xf32, #tpu.memory_space<vmem>>, %arg6: memref<16x16xf32, #tpu.memory_space<vmem>>, %arg7: memref<1x16xf32, #tpu.memory_space<vmem>>, %arg8: memref<1x16xf32, #tpu.memory_space<vmem>>, %arg9: memref<1x16xf32, #tpu.memory_space<vmem>>, %arg10: memref<16x32xf32, #tpu.memory_space<vmem>>, %arg11: memref<1x32xf32, #tpu.memory_space<vmem>>, %arg12: memref<32x16xf32, #tpu.memory_space<vmem>>, %arg13: memref<1x16xf32, #tpu.memory_space<vmem>>, %arg14: memref<1x16xf32, #tpu.memory_space<vmem>>, %arg15: memref<1x16xf32, #tpu.memory_space<vmem>>, %arg16: memref<12x16xf32, #tpu.memory_space<vmem>>) attributes {dimension_semantics = [], scalar_prefetch = 0 : i64, scratch_operands = 0 : i64, tpu.core_type = #tpu.core_type<tc>} {
    %c0 = arith.constant 0 : index
    %c0_0 = arith.constant 0 : index
    %0 = vector.load %arg0[%c0, %c0_0] : memref<12x16xf32, #tpu.memory_space<vmem>>, vector<12x16xf32>
    %1 = arith.truncf %0 : vector<12x16xf32> to vector<12x16xbf16>
    %c0_1 = arith.constant 0 : index
    %c0_2 = arith.constant 0 : index
    %2 = vector.load %arg4[%c0_1, %c0_2] : memref<16x80xf32, #tpu.memory_space<vmem>>, vector<16x80xf32>
    %3 = arith.truncf %2 : vector<16x80xf32> to vector<16x80xbf16>
    %cst = arith.constant dense<0.000000e+00> : vector<12x80xf32>
    %4 = tpu.matmul %1, %3, %cst {dimension_numbers = #tpu.dot_dimension_numbers<[1], [0], [0], [1], [0, 0, 1, 1], [], []>} : vector<12x16xbf16>, vector<16x80xbf16>, vector<12x80xf32> -> vector<12x80xf32>
    %c0_3 = arith.constant 0 : index
    %c0_4 = arith.constant 0 : index
    %c0_5 = arith.constant 0 : index
    %5 = vector.load %arg1[%c0_3, %c0_4, %c0_5] : memref<12x12x16xf32, #tpu.memory_space<vmem>>, vector<12x12x16xf32>
    %c0_6 = arith.constant 0 : index
    %c0_7 = arith.constant 0 : index
    %6 = vector.load %arg2[%c0_6, %c0_7] : memref<12x12xf32, #tpu.memory_space<vmem>>, vector<12x12xf32>
    %c0_8 = arith.constant 0 : index
    %c0_9 = arith.constant 0 : index
    %7 = vector.load %arg3[%c0_8, %c0_9] : memref<12x12xf32, #tpu.memory_space<vmem>>, vector<12x12xf32>
    %c0_10 = arith.constant 0 : index
    %c0_11 = arith.constant 0 : index
    %8 = vector.load %arg5[%c0_10, %c0_11] : memref<1x16xf32, #tpu.memory_space<vmem>>, vector<1x16xf32>
    %cst_12 = arith.constant 1.000000e+00 : f32
    %9 = vector.broadcast %cst_12 : f32 to vector<12x1xf32>
    %10 = vector.extract_strided_slice %4 {offsets = [0, 0], sizes = [12, 8], strides = [1, 1]} : vector<12x80xf32> to vector<12x8xf32>
    %cst_13 = arith.constant 0.353553385 : f32
    %11 = vector.broadcast %cst_13 : f32 to vector<12x8xf32>
    %12 = arith.mulf %10, %11 : vector<12x8xf32>
    %13 = vector.extract_strided_slice %4 {offsets = [0, 16], sizes = [12, 8], strides = [1, 1]} : vector<12x80xf32> to vector<12x8xf32>
    %14 = vector.extract_strided_slice %4 {offsets = [0, 32], sizes = [12, 8], strides = [1, 1]} : vector<12x80xf32> to vector<12x8xf32>
    %15 = vector.extract_strided_slice %4 {offsets = [0, 48], sizes = [12, 8], strides = [1, 1]} : vector<12x80xf32> to vector<12x8xf32>
    %cst_14 = arith.constant 0.353553385 : f32
    %16 = vector.broadcast %cst_14 : f32 to vector<12x8xf32>
    %17 = arith.mulf %15, %16 : vector<12x8xf32>
    %18 = vector.extract_strided_slice %4 {offsets = [0, 64], sizes = [12, 8], strides = [1, 1]} : vector<12x80xf32> to vector<12x8xf32>
    %19 = vector.extract_strided_slice %5 {offsets = [0, 0, 0], sizes = [12, 12, 8], strides = [1, 1, 1]} : vector<12x12x16xf32> to vector<12x12x8xf32>
    %20 = vector.extract_strided_slice %8 {offsets = [0, 0], sizes = [1, 8], strides = [1, 1]} : vector<1x16xf32> to vector<1x8xf32>
    %21 = vector.shape_cast %13 : vector<12x8xf32> to vector<1x12x8xf32>
    %22 = vector.broadcast %21 : vector<1x12x8xf32> to vector<12x12x8xf32>
    %23 = arith.mulf %19, %22 : vector<12x12x8xf32>
    %24 = arith.truncf %23 : vector<12x12x8xf32> to vector<12x12x8xbf16>
    %25 = arith.truncf %12 : vector<12x8xf32> to vector<12x8xbf16>
    %26 = vector.shape_cast %25 : vector<12x8xbf16> to vector<12x1x8xbf16>
    "tpu.trace_start"() <{level = 10 : i32, message = "tsd,tkd->tsk"}> : () -> ()
    %cst_15 = arith.constant dense<0.000000e+00> : vector<12x12x1xf32>
    %27 = tpu.matmul %24, %26, %cst_15 {dimension_numbers = #tpu.dot_dimension_numbers<[2], [2], [1], [1], [0, 0, 0, 1, 1, 1], [0], [0]>} : vector<12x12x8xbf16>, vector<12x1x8xbf16>, vector<12x12x1xf32> -> vector<12x12x1xf32>
    "tpu.trace_stop"() : () -> ()
    %cst_16 = arith.constant dense<0.000000e+00> : vector<12x12xf32>
    %28 = vector.multi_reduction <add>, %27, %cst_16 [2] : vector<12x12x1xf32> to vector<12x12xf32>
    %cst_17 = arith.constant -5.000000e+00 : f32
    %cst_18 = arith.constant 5.000000e+00 : f32
    %29 = vector.broadcast %cst_17 : f32 to vector<12x12xf32>
    %30 = arith.maximumf %29, %28 : vector<12x12xf32>
    %31 = vector.broadcast %cst_18 : f32 to vector<12x12xf32>
    %32 = arith.minimumf %31, %30 : vector<12x12xf32>
    %33 = math.exp %32 : vector<12x12xf32>
    %34 = arith.mulf %33, %6 : vector<12x12xf32>
    %cst_19 = arith.constant 0.909090936 : f32
    %35 = vector.broadcast %cst_19 : f32 to vector<12x12xf32>
    %36 = arith.mulf %34, %35 : vector<12x12xf32>
    %37 = vector.broadcast %20 : vector<1x8xf32> to vector<12x8xf32>
    %38 = arith.mulf %17, %37 : vector<12x8xf32>
    %39 = arith.truncf %38 : vector<12x8xf32> to vector<12x8xbf16>
    %40 = arith.truncf %18 : vector<12x8xf32> to vector<12x8xbf16>
    "tpu.trace_start"() <{level = 10 : i32, message = "td,sd->ts"}> : () -> ()
    %cst_20 = arith.constant dense<0.000000e+00> : vector<12x12xf32>
    %41 = tpu.matmul %39, %40, %cst_20 {dimension_numbers = #tpu.dot_dimension_numbers<[1], [1], [0], [0], [0, 0, 1, 0], [], []>} : vector<12x8xbf16>, vector<12x8xbf16>, vector<12x12xf32> -> vector<12x12xf32>
    %cst_21 = arith.constant -5.000000e+00 : f32
    %cst_22 = arith.constant 5.000000e+00 : f32
    "tpu.trace_stop"() : () -> ()
    %42 = vector.broadcast %cst_21 : f32 to vector<12x12xf32>
    %43 = arith.maximumf %42, %41 : vector<12x12xf32>
    %44 = vector.broadcast %cst_22 : f32 to vector<12x12xf32>
    %45 = arith.minimumf %44, %43 : vector<12x12xf32>
    %46 = math.exp %45 : vector<12x12xf32>
    %cst_23 = arith.constant 1.000000e-01 : f32
    %47 = vector.broadcast %cst_23 : f32 to vector<12x12xf32>
    %48 = arith.mulf %47, %46 : vector<12x12xf32>
    %49 = arith.mulf %48, %7 : vector<12x12xf32>
    %cst_24 = arith.constant 0.909090936 : f32
    %50 = vector.broadcast %cst_24 : f32 to vector<12x12xf32>
    %51 = arith.mulf %49, %50 : vector<12x12xf32>
    %52 = arith.addf %36, %51 : vector<12x12xf32>
    %53 = tpu.concatenate %14, %9 in 1 : vector<12x8xf32>, vector<12x1xf32> -> vector<12x9xf32>
    %54 = arith.truncf %52 : vector<12x12xf32> to vector<12x12xbf16>
    %55 = arith.truncf %53 : vector<12x9xf32> to vector<12x9xbf16>
    %cst_25 = arith.constant dense<0.000000e+00> : vector<12x9xf32>
    %56 = tpu.matmul %54, %55, %cst_25 {dimension_numbers = #tpu.dot_dimension_numbers<[1], [0], [0], [1], [0, 0, 1, 1], [], []>} : vector<12x12xbf16>, vector<12x9xbf16>, vector<12x9xf32> -> vector<12x9xf32>
    %57 = vector.extract_strided_slice %56 {offsets = [0, 8], sizes = [12, 1], strides = [1, 1]} : vector<12x9xf32> to vector<12x1xf32>
    %58 = vector.extract_strided_slice %56 {offsets = [0, 0], sizes = [12, 8], strides = [1, 1]} : vector<12x9xf32> to vector<12x8xf32>
    %cst_26 = arith.constant 9.99999997E-7 : f32
    %59 = vector.broadcast %cst_26 : f32 to vector<12x1xf32>
    %60 = arith.addf %57, %59 : vector<12x1xf32>
    %61 = tpu.reciprocal %60 {approx = true} : vector<12x1xf32> -> vector<12x1xf32>
    %62 = vector.broadcast %61 : vector<12x1xf32> to vector<12x8xf32>
    %63 = arith.mulf %58, %62 : vector<12x8xf32>
    %64 = vector.extract_strided_slice %4 {offsets = [0, 8], sizes = [12, 8], strides = [1, 1]} : vector<12x80xf32> to vector<12x8xf32>
    %cst_27 = arith.constant 0.353553385 : f32
    %65 = vector.broadcast %cst_27 : f32 to vector<12x8xf32>
    %66 = arith.mulf %64, %65 : vector<12x8xf32>
    %67 = vector.extract_strided_slice %4 {offsets = [0, 24], sizes = [12, 8], strides = [1, 1]} : vector<12x80xf32> to vector<12x8xf32>
    %68 = vector.extract_strided_slice %4 {offsets = [0, 40], sizes = [12, 8], strides = [1, 1]} : vector<12x80xf32> to vector<12x8xf32>
    %69 = vector.extract_strided_slice %4 {offsets = [0, 56], sizes = [12, 8], strides = [1, 1]} : vector<12x80xf32> to vector<12x8xf32>
    %cst_28 = arith.constant 0.353553385 : f32
    %70 = vector.broadcast %cst_28 : f32 to vector<12x8xf32>
    %71 = arith.mulf %69, %70 : vector<12x8xf32>
    %72 = vector.extract_strided_slice %4 {offsets = [0, 72], sizes = [12, 8], strides = [1, 1]} : vector<12x80xf32> to vector<12x8xf32>
    %73 = vector.extract_strided_slice %5 {offsets = [0, 0, 8], sizes = [12, 12, 8], strides = [1, 1, 1]} : vector<12x12x16xf32> to vector<12x12x8xf32>
    %74 = vector.extract_strided_slice %8 {offsets = [0, 8], sizes = [1, 8], strides = [1, 1]} : vector<1x16xf32> to vector<1x8xf32>
    %75 = vector.shape_cast %67 : vector<12x8xf32> to vector<1x12x8xf32>
    %76 = vector.broadcast %75 : vector<1x12x8xf32> to vector<12x12x8xf32>
    %77 = arith.mulf %73, %76 : vector<12x12x8xf32>
    %78 = arith.truncf %77 : vector<12x12x8xf32> to vector<12x12x8xbf16>
    %79 = arith.truncf %66 : vector<12x8xf32> to vector<12x8xbf16>
    %80 = vector.shape_cast %79 : vector<12x8xbf16> to vector<12x1x8xbf16>
    "tpu.trace_start"() <{level = 10 : i32, message = "tsd,tkd->tsk"}> : () -> ()
    %cst_29 = arith.constant dense<0.000000e+00> : vector<12x12x1xf32>
    %81 = tpu.matmul %78, %80, %cst_29 {dimension_numbers = #tpu.dot_dimension_numbers<[2], [2], [1], [1], [0, 0, 0, 1, 1, 1], [0], [0]>} : vector<12x12x8xbf16>, vector<12x1x8xbf16>, vector<12x12x1xf32> -> vector<12x12x1xf32>
    "tpu.trace_stop"() : () -> ()
    %cst_30 = arith.constant dense<0.000000e+00> : vector<12x12xf32>
    %82 = vector.multi_reduction <add>, %81, %cst_30 [2] : vector<12x12x1xf32> to vector<12x12xf32>
    %cst_31 = arith.constant -5.000000e+00 : f32
    %cst_32 = arith.constant 5.000000e+00 : f32
    %83 = vector.broadcast %cst_31 : f32 to vector<12x12xf32>
    %84 = arith.maximumf %83, %82 : vector<12x12xf32>
    %85 = vector.broadcast %cst_32 : f32 to vector<12x12xf32>
    %86 = arith.minimumf %85, %84 : vector<12x12xf32>
    %87 = math.exp %86 : vector<12x12xf32>
    %88 = arith.mulf %87, %6 : vector<12x12xf32>
    %cst_33 = arith.constant 0.909090936 : f32
    %89 = vector.broadcast %cst_33 : f32 to vector<12x12xf32>
    %90 = arith.mulf %88, %89 : vector<12x12xf32>
    %91 = vector.broadcast %74 : vector<1x8xf32> to vector<12x8xf32>
    %92 = arith.mulf %71, %91 : vector<12x8xf32>
    %93 = arith.truncf %92 : vector<12x8xf32> to vector<12x8xbf16>
    %94 = arith.truncf %72 : vector<12x8xf32> to vector<12x8xbf16>
    "tpu.trace_start"() <{level = 10 : i32, message = "td,sd->ts"}> : () -> ()
    %cst_34 = arith.constant dense<0.000000e+00> : vector<12x12xf32>
    %95 = tpu.matmul %93, %94, %cst_34 {dimension_numbers = #tpu.dot_dimension_numbers<[1], [1], [0], [0], [0, 0, 1, 0], [], []>} : vector<12x8xbf16>, vector<12x8xbf16>, vector<12x12xf32> -> vector<12x12xf32>
    %cst_35 = arith.constant -5.000000e+00 : f32
    %cst_36 = arith.constant 5.000000e+00 : f32
    "tpu.trace_stop"() : () -> ()
    %96 = vector.broadcast %cst_35 : f32 to vector<12x12xf32>
    %97 = arith.maximumf %96, %95 : vector<12x12xf32>
    %98 = vector.broadcast %cst_36 : f32 to vector<12x12xf32>
    %99 = arith.minimumf %98, %97 : vector<12x12xf32>
    %100 = math.exp %99 : vector<12x12xf32>
    %cst_37 = arith.constant 1.000000e-01 : f32
    %101 = vector.broadcast %cst_37 : f32 to vector<12x12xf32>
    %102 = arith.mulf %101, %100 : vector<12x12xf32>
    %103 = arith.mulf %102, %7 : vector<12x12xf32>
    %cst_38 = arith.constant 0.909090936 : f32
    %104 = vector.broadcast %cst_38 : f32 to vector<12x12xf32>
    %105 = arith.mulf %103, %104 : vector<12x12xf32>
    %106 = arith.addf %90, %105 : vector<12x12xf32>
    %107 = tpu.concatenate %68, %9 in 1 : vector<12x8xf32>, vector<12x1xf32> -> vector<12x9xf32>
    %108 = arith.truncf %106 : vector<12x12xf32> to vector<12x12xbf16>
    %109 = arith.truncf %107 : vector<12x9xf32> to vector<12x9xbf16>
    %cst_39 = arith.constant dense<0.000000e+00> : vector<12x9xf32>
    %110 = tpu.matmul %108, %109, %cst_39 {dimension_numbers = #tpu.dot_dimension_numbers<[1], [0], [0], [1], [0, 0, 1, 1], [], []>} : vector<12x12xbf16>, vector<12x9xbf16>, vector<12x9xf32> -> vector<12x9xf32>
    %111 = vector.extract_strided_slice %110 {offsets = [0, 8], sizes = [12, 1], strides = [1, 1]} : vector<12x9xf32> to vector<12x1xf32>
    %112 = vector.extract_strided_slice %110 {offsets = [0, 0], sizes = [12, 8], strides = [1, 1]} : vector<12x9xf32> to vector<12x8xf32>
    %cst_40 = arith.constant 9.99999997E-7 : f32
    %113 = vector.broadcast %cst_40 : f32 to vector<12x1xf32>
    %114 = arith.addf %111, %113 : vector<12x1xf32>
    %115 = tpu.reciprocal %114 {approx = true} : vector<12x1xf32> -> vector<12x1xf32>
    %116 = vector.broadcast %115 : vector<12x1xf32> to vector<12x8xf32>
    %117 = arith.mulf %112, %116 : vector<12x8xf32>
    %118 = tpu.concatenate %63, %117 in 1 : vector<12x8xf32>, vector<12x8xf32> -> vector<12x16xf32>
    %119 = arith.truncf %118 : vector<12x16xf32> to vector<12x16xbf16>
    %c0_41 = arith.constant 0 : index
    %c0_42 = arith.constant 0 : index
    %120 = vector.load %arg6[%c0_41, %c0_42] : memref<16x16xf32, #tpu.memory_space<vmem>>, vector<16x16xf32>
    %121 = arith.truncf %120 : vector<16x16xf32> to vector<16x16xbf16>
    %cst_43 = arith.constant dense<0.000000e+00> : vector<12x16xf32>
    %122 = tpu.matmul %119, %121, %cst_43 {dimension_numbers = #tpu.dot_dimension_numbers<[1], [0], [0], [1], [0, 0, 1, 1], [], []>} : vector<12x16xbf16>, vector<16x16xbf16>, vector<12x16xf32> -> vector<12x16xf32>
    %c0_44 = arith.constant 0 : index
    %c0_45 = arith.constant 0 : index
    %123 = vector.load %arg7[%c0_44, %c0_45] : memref<1x16xf32, #tpu.memory_space<vmem>>, vector<1x16xf32>
    %124 = vector.broadcast %123 : vector<1x16xf32> to vector<12x16xf32>
    %125 = arith.addf %122, %124 : vector<12x16xf32>
    %126 = arith.addf %0, %125 : vector<12x16xf32>
    %c0_46 = arith.constant 0 : index
    %c0_47 = arith.constant 0 : index
    %127 = vector.load %arg8[%c0_46, %c0_47] : memref<1x16xf32, #tpu.memory_space<vmem>>, vector<1x16xf32>
    %128 = vector.broadcast %127 : vector<1x16xf32> to vector<12x16xf32>
    %129 = arith.mulf %126, %128 : vector<12x16xf32>
    %c0_48 = arith.constant 0 : index
    %c0_49 = arith.constant 0 : index
    %130 = vector.load %arg9[%c0_48, %c0_49] : memref<1x16xf32, #tpu.memory_space<vmem>>, vector<1x16xf32>
    %131 = vector.broadcast %130 : vector<1x16xf32> to vector<12x16xf32>
    %132 = arith.addf %129, %131 : vector<12x16xf32>
    %133 = arith.truncf %132 : vector<12x16xf32> to vector<12x16xbf16>
    %c0_50 = arith.constant 0 : index
    %c0_51 = arith.constant 0 : index
    %134 = vector.load %arg10[%c0_50, %c0_51] : memref<16x32xf32, #tpu.memory_space<vmem>>, vector<16x32xf32>
    %135 = arith.truncf %134 : vector<16x32xf32> to vector<16x32xbf16>
    %cst_52 = arith.constant dense<0.000000e+00> : vector<12x32xf32>
    %136 = tpu.matmul %133, %135, %cst_52 {dimension_numbers = #tpu.dot_dimension_numbers<[1], [0], [0], [1], [0, 0, 1, 1], [], []>} : vector<12x16xbf16>, vector<16x32xbf16>, vector<12x32xf32> -> vector<12x32xf32>
    %c0_53 = arith.constant 0 : index
    %c0_54 = arith.constant 0 : index
    %137 = vector.load %arg11[%c0_53, %c0_54] : memref<1x32xf32, #tpu.memory_space<vmem>>, vector<1x32xf32>
    %138 = vector.broadcast %137 : vector<1x32xf32> to vector<12x32xf32>
    %139 = arith.addf %136, %138 : vector<12x32xf32>
    %cst_55 = arith.constant 0.000000e+00 : f32
    %140 = vector.broadcast %cst_55 : f32 to vector<12x32xf32>
    %141 = arith.maximumf %139, %140 : vector<12x32xf32>
    %142 = arith.truncf %141 : vector<12x32xf32> to vector<12x32xbf16>
    %c0_56 = arith.constant 0 : index
    %c0_57 = arith.constant 0 : index
    %143 = vector.load %arg12[%c0_56, %c0_57] : memref<32x16xf32, #tpu.memory_space<vmem>>, vector<32x16xf32>
    %144 = arith.truncf %143 : vector<32x16xf32> to vector<32x16xbf16>
    %cst_58 = arith.constant dense<0.000000e+00> : vector<12x16xf32>
    %145 = tpu.matmul %142, %144, %cst_58 {dimension_numbers = #tpu.dot_dimension_numbers<[1], [0], [0], [1], [0, 0, 1, 1], [], []>} : vector<12x32xbf16>, vector<32x16xbf16>, vector<12x16xf32> -> vector<12x16xf32>
    %c0_59 = arith.constant 0 : index
    %c0_60 = arith.constant 0 : index
    %146 = vector.load %arg13[%c0_59, %c0_60] : memref<1x16xf32, #tpu.memory_space<vmem>>, vector<1x16xf32>
    %147 = vector.broadcast %146 : vector<1x16xf32> to vector<12x16xf32>
    %148 = arith.addf %145, %147 : vector<12x16xf32>
    %149 = arith.addf %132, %148 : vector<12x16xf32>
    %c0_61 = arith.constant 0 : index
    %c0_62 = arith.constant 0 : index
    %150 = vector.load %arg14[%c0_61, %c0_62] : memref<1x16xf32, #tpu.memory_space<vmem>>, vector<1x16xf32>
    %151 = vector.broadcast %150 : vector<1x16xf32> to vector<12x16xf32>
    %152 = arith.mulf %149, %151 : vector<12x16xf32>
    %c0_63 = arith.constant 0 : index
    %c0_64 = arith.constant 0 : index
    %153 = vector.load %arg15[%c0_63, %c0_64] : memref<1x16xf32, #tpu.memory_space<vmem>>, vector<1x16xf32>
    %154 = vector.broadcast %153 : vector<1x16xf32> to vector<12x16xf32>
    %155 = arith.addf %152, %154 : vector<12x16xf32>
    %c0_65 = arith.constant 0 : index
    %c0_66 = arith.constant 0 : index
    %156 = vector.load %arg16[%c0_65, %c0_66] : memref<12x16xf32, #tpu.memory_space<vmem>>, vector<12x16xf32>
    tpu.vector_store %arg16[%c0_65, %c0_66], %155 {strides = array<i32>} : memref<12x16xf32, #tpu.memory_space<vmem>>, vector<12x16xf32>,
    return
  }
}

module attributes {stable_mosaic.version = 11 : i64} {
  func.func @_policy_head_kernel(%arg0: memref<2x16xf32, #tpu.memory_space<vmem>>, %arg1: memref<2x5xf32, #tpu.memory_space<vmem>>, %arg2: memref<5x16xf32, #tpu.memory_space<vmem>>, %arg3: memref<1x16xf32, #tpu.memory_space<vmem>>, %arg4: memref<32x5xf32, #tpu.memory_space<vmem>>, %arg5: memref<1x5xf32, #tpu.memory_space<vmem>>, %arg6: memref<32x1xf32, #tpu.memory_space<vmem>>, %arg7: memref<1x1xf32, #tpu.memory_space<vmem>>, %arg8: memref<2x5xf32, #tpu.memory_space<vmem>>, %arg9: memref<2x1xf32, #tpu.memory_space<vmem>>) attributes {dimension_semantics = [], scalar_prefetch = 0 : i64, scratch_operands = 0 : i64, tpu.core_type = #tpu.core_type<tc>} {
    %c0 = arith.constant 0 : index
    %c0_0 = arith.constant 0 : index
    %0 = vector.load %arg1[%c0, %c0_0] : memref<2x5xf32, #tpu.memory_space<vmem>>, vector<2x5xf32>
    %c0_1 = arith.constant 0 : index
    %c0_2 = arith.constant 0 : index
    %1 = vector.load %arg2[%c0_1, %c0_2] : memref<5x16xf32, #tpu.memory_space<vmem>>, vector<5x16xf32>
    %cst = arith.constant dense<0.000000e+00> : vector<2x16xf32>
    %2 = tpu.matmul %0, %1, %cst {dimension_numbers = #tpu.dot_dimension_numbers<[1], [0], [0], [1], [0, 0, 1, 1], [], []>} : vector<2x5xf32>, vector<5x16xf32>, vector<2x16xf32> -> vector<2x16xf32>
    %c0_3 = arith.constant 0 : index
    %c0_4 = arith.constant 0 : index
    %3 = vector.load %arg3[%c0_3, %c0_4] : memref<1x16xf32, #tpu.memory_space<vmem>>, vector<1x16xf32>
    %4 = vector.broadcast %3 : vector<1x16xf32> to vector<2x16xf32>
    %5 = arith.addf %2, %4 : vector<2x16xf32>
    %c0_5 = arith.constant 0 : index
    %c0_6 = arith.constant 0 : index
    %6 = vector.load %arg0[%c0_5, %c0_6] : memref<2x16xf32, #tpu.memory_space<vmem>>, vector<2x16xf32>
    %7 = tpu.concatenate %6, %5 in 1 : vector<2x16xf32>, vector<2x16xf32> -> vector<2x32xf32>
    %c0_7 = arith.constant 0 : index
    %c0_8 = arith.constant 0 : index
    %8 = vector.load %arg4[%c0_7, %c0_8] : memref<32x5xf32, #tpu.memory_space<vmem>>, vector<32x5xf32>
    %cst_9 = arith.constant dense<0.000000e+00> : vector<2x5xf32>
    %9 = tpu.matmul %7, %8, %cst_9 {dimension_numbers = #tpu.dot_dimension_numbers<[1], [0], [0], [1], [0, 0, 1, 1], [], []>} : vector<2x32xf32>, vector<32x5xf32>, vector<2x5xf32> -> vector<2x5xf32>
    %c0_10 = arith.constant 0 : index
    %c0_11 = arith.constant 0 : index
    %10 = vector.load %arg5[%c0_10, %c0_11] : memref<1x5xf32, #tpu.memory_space<vmem>>, vector<1x5xf32>
    %11 = vector.broadcast %10 : vector<1x5xf32> to vector<2x5xf32>
    %12 = arith.addf %9, %11 : vector<2x5xf32>
    %c0_12 = arith.constant 0 : index
    %c0_13 = arith.constant 0 : index
    %13 = vector.load %arg8[%c0_12, %c0_13] : memref<2x5xf32, #tpu.memory_space<vmem>>, vector<2x5xf32>
    tpu.vector_store %arg8[%c0_12, %c0_13], %12 {strides = array<i32>} : memref<2x5xf32, #tpu.memory_space<vmem>>, vector<2x5xf32>,
    %c0_14 = arith.constant 0 : index
    %c0_15 = arith.constant 0 : index
    %14 = vector.load %arg6[%c0_14, %c0_15] : memref<32x1xf32, #tpu.memory_space<vmem>>, vector<32x1xf32>
    %cst_16 = arith.constant dense<0.000000e+00> : vector<2x1xf32>
    %15 = tpu.matmul %7, %14, %cst_16 {dimension_numbers = #tpu.dot_dimension_numbers<[1], [0], [0], [1], [0, 0, 1, 1], [], []>} : vector<2x32xf32>, vector<32x1xf32>, vector<2x1xf32> -> vector<2x1xf32>
    %c0_17 = arith.constant 0 : index
    %c0_18 = arith.constant 0 : index
    %16 = vector.load %arg7[%c0_17, %c0_18] : memref<1x1xf32, #tpu.memory_space<vmem>>, vector<1x1xf32>
    %17 = vector.broadcast %16 : vector<1x1xf32> to vector<2x1xf32>
    %18 = arith.addf %15, %17 : vector<2x1xf32>
    %c0_19 = arith.constant 0 : index
    %c0_20 = arith.constant 0 : index
    %19 = vector.load %arg9[%c0_19, %c0_20] : memref<2x1xf32, #tpu.memory_space<vmem>>, vector<2x1xf32>
    tpu.vector_store %arg9[%c0_19, %c0_20], %18 {strides = array<i32>} : memref<2x1xf32, #tpu.memory_space<vmem>>, vector<2x1xf32>,
    return
  }
}

</mosaic_0001>

<llo_original>
// kernel: _lambda_.9
$region0: #{_lambda_.9}
  #allocation0 [shape = 'u32[]', space=smem, size = 0x4, offset = 0x4, fixed_abs, tag = 'smem constant byte address 0x4 - core index']
  #allocation1 [shape = 'u32[144,128]{1,0:T(1,128)}', space=vmem, size = 0x12000, scoped, tag = 'internal scratch']
  %s0 = inlined_call_operand.vmem [shape: f32[36,2], index: 0, kind: input, shape index: {}]
  %s1 = inlined_call_operand.vmem [shape: f32[2,8], index: 1, kind: input, shape index: {}]
  %s2 = inlined_call_operand.vmem [shape: f32[1,8], index: 2, kind: input, shape index: {}]
  %s3 = inlined_call_operand.vmem [shape: f32[36,8], index: 3, kind: output, shape index: {}]
  %s4 = sld [smem:[#allocation0]]
  $region22: #{_lambda_.9} parent=0
    _
  %s6 = ssub.s32 1, %s4
  %s7 = scalar_select 0, %s6, %s4
  // Predicated region
  $region2: #{_lambda_.9} parent=0 // pred_check
    _
  $region3: #{_lambda_.9} parent=0 // pred_check_branch
    %9 = sbr.rel (0) target = $region5
  $region4: #{_lambda_.9} parent=0 // pred_region
    _
  $region5: #{_lambda_.9} parent=0 // pred_fallthru
    _
  // Predicated region
  $region6: #{_lambda_.9} parent=0 // pred_check
    _
  $region7: #{_lambda_.9} parent=0 // pred_check_branch
    %11 = sbr.rel (0) target = $region9
  $region8: #{_lambda_.9} parent=0 // pred_region
    _
  $region9: #{_lambda_.9} parent=0 // pred_fallthru
    _
  // Predicated region
  $region10: #{_lambda_.9} parent=0 // pred_check
    _
  $region11: #{_lambda_.9} parent=0 // pred_check_branch
    %13 = sbr.rel (0) target = $region13
  $region12: #{_lambda_.9} parent=0 // pred_region
    _
  $region13: #{_lambda_.9} parent=0 // pred_fallthru
    _
  %v15 = vld [vmem:[%s0] sm:$0xff]
  %v16 = vld [vmem:[%s0 + $0x8] sm:$0xff]
  %v17 = vld [vmem:[%s0 + $0x10] sm:$0xff]
  %v18 = vld [vmem:[%s0 + $0x18] sm:$0xff]
  %v19 = vld [vmem:[%s0 + $0x20] sm:$0xf]
  %v20 = vpack.c.bf16 %v16, %v15
  %v21 = vpack.c.bf16 %v18, %v17
  %v22 = vpack.c.bf16 %v19, %v19
  %v23 = vld [vmem:[%s1] sm:$0x3]
  %v24 = vpack.c.bf16 %v23, %v23
  %v25 = vld [vmem:[%s2] sm:$0x1]
  %v27 = vlaneseq
  %v28 = vshrl.u32 %v27, 7
  %v29 = vsub.s32 0, %v28
  %v30 = vrot.slane %v25, %v29
  %vm32 = vcmask 15360
  %v34 = vsel %vm32, %v20, 0
  %v37 = vsel %vm32, %v21, 0
  %v40 = vsel %vm32, %v22, 0
  %vm42 = vcmask 1040384
  %v44 = vsel %vm42, %v24, 0
  %46 = vmatprep.subr.bf16.mxu0 0
  %47 = vmatpush1.bf16.msra.mxu0 0
  %48 = vmatprep.subr.bf16.mxu0 0
  %49 = vmatpush1.bf16.msra.mxu0 0
  %50 = vmatprep.subr.bf16.mxu0 0
  %51 = vmatpush1.bf16.msra.mxu0 0
  %52 = vmatprep.subr.bf16.mxu0 0
  %53 = vmatpush1.bf16.msra.mxu0 0
  %54 = vmatprep.subr.bf16.mxu0 0
  %55 = vmatpush1.bf16.msra.mxu0 0
  %56 = vmatprep.subr.bf16.mxu0 0
  %57 = vmatpush1.bf16.msra.mxu0 0
  %58 = vmatprep.subr.bf16.mxu0 0
  %59 = vmatpush1.bf16.msra.mxu0 0
  %60 = vmatprep.subr.bf16.mxu0 0
  %61 = vmatpush1.bf16.msra.mxu0 %v44
  %62 = vmatprep.subr.bf16.mxu0 0
  %63 = vmatpush2.bf16.msra.mxu0 0
  %64 = vmatprep.subr.bf16.mxu0 0
  %65 = vmatpush2.bf16.msra.mxu0 0
  %66 = vmatprep.subr.bf16.mxu0 0
  %67 = vmatpush2.bf16.msra.mxu0 0
  %68 = vmatprep.subr.bf16.mxu0 0
  %69 = vmatpush2.bf16.msra.mxu0 0
  %70 = vmatprep.subr.bf16.mxu0 0
  %71 = vmatpush2.bf16.msra.mxu0 0
  %72 = vmatprep.subr.bf16.mxu0 0
  %73 = vmatpush2.bf16.msra.mxu0 0
  %74 = vmatprep.subr.bf16.mxu0 0
  %75 = vmatpush2.bf16.msra.mxu0 0
  %76 = vmatprep.subr.bf16.mxu0 0
  %77 = vmatpush2.bf16.msra.mxu0 0
  %78 = vmatprep.mubr.bf16.mxu0 0
  %79 = vmatmul.mubr.bf16.gmra.mxu0 %v34
  %v80 = vpop.f32.mrf.mxu0
  %v81 = vadd.f32 %v30, %v80
  %v82 = vpop.f32.mrf.mxu0
  %v83 = vpop.f32.mrf.mxu0
  %v84 = vadd.f32 %v30, %v83
  %v85 = vpop.f32.mrf.mxu0
  %86 = vmatprep.mubr.bf16.mxu0 0
  %87 = vmatmul.mubr.bf16.gmra.mxu0 %v37
  %v88 = vpop.f32.mrf.mxu0
  %v89 = vadd.f32 %v30, %v88
  %v90 = vpop.f32.mrf.mxu0
  %v91 = vpop.f32.mrf.mxu0
  %v92 = vadd.f32 %v30, %v91
  %v93 = vpop.f32.mrf.mxu0
  %94 = vmatprep.mubr.bf16.mxu0 0
  %95 = vmatmul.mubr.bf16.gmra.mxu0 %v40
  %v96 = vpop.f32.mrf.mxu0
  %v97 = vadd.f32 %v30, %v96
  %v98 = vpop.f32.mrf.mxu0
  %v99 = vpop.f32.mrf.mxu0
  %v100 = vpop.f32.mrf.mxu0
  %101 = vdwg.mxu0
  %vm102 = vcmask 64512
  %103 = vst.msk [vmem:[%s3] sm:$0xff] %vm102, %v81
  %104 = vst.msk [vmem:[%s3 + $0x8] sm:$0xff] %vm102, %v84
  %105 = vst.msk [vmem:[%s3 + $0x10] sm:$0xff] %vm102, %v89
  %106 = vst.msk [vmem:[%s3 + $0x18] sm:$0xff] %vm102, %v92
  %vm107 = vcmask 60416
  %108 = vst.msk [vmem:[%s3 + $0x20] sm:$0xf] %vm107, %v97
  // Predicated region
  $region14: #{_lambda_.9} parent=0 // pred_check
    _
  $region15: #{_lambda_.9} parent=0 // pred_check_branch
    %110 = sbr.rel (0) target = $region17
  $region16: #{_lambda_.9} parent=0 // pred_region
    _
  $region17: #{_lambda_.9} parent=0 // pred_fallthru
    _
  // Predicated region
  $region18: #{_lambda_.9} parent=0 // pred_check
    _
  $region19: #{_lambda_.9} parent=0 // pred_check_branch
    %112 = sbr.rel (0) target = $region21
  $region20: #{_lambda_.9} parent=0 // pred_region
    _
  $region21: #{_lambda_.9} parent=0 // pred_fallthru
    _

// kernel: _lambda_.10
$region0: #{_lambda_.10}
  #allocation0 [shape = 'u32[]', space=smem, size = 0x4, offset = 0x4, fixed_abs, tag = 'smem constant byte address 0x4 - core index']
  #allocation1 [shape = 'u32[144,128]{1,0:T(1,128)}', space=vmem, size = 0x12000, scoped, tag = 'internal scratch']
  %s0 = inlined_call_operand.vmem [shape: f32[36,8], index: 0, kind: input, shape index: {}]
  %s1 = inlined_call_operand.vmem [shape: f32[8,24], index: 1, kind: input, shape index: {}]
  %s2 = inlined_call_operand.vmem [shape: f32[1,24], index: 2, kind: input, shape index: {}]
  %s3 = inlined_call_operand.vmem [shape: f32[36,24], index: 3, kind: output, shape index: {}]
  %s4 = sld [smem:[#allocation0]]
  $region22: #{_lambda_.10} parent=0
    _
  %s6 = ssub.s32 1, %s4
  %s7 = scalar_select 0, %s6, %s4
  // Predicated region
  $region2: #{_lambda_.10} parent=0 // pred_check
    _
  $region3: #{_lambda_.10} parent=0 // pred_check_branch
    %9 = sbr.rel (0) target = $region5
  $region4: #{_lambda_.10} parent=0 // pred_region
    _
  $region5: #{_lambda_.10} parent=0 // pred_fallthru
    _
  // Predicated region
  $region6: #{_lambda_.10} parent=0 // pred_check
    _
  $region7: #{_lambda_.10} parent=0 // pred_check_branch
    %11 = sbr.rel (0) target = $region9
  $region8: #{_lambda_.10} parent=0 // pred_region
    _
  $region9: #{_lambda_.10} parent=0 // pred_fallthru
    _
  // Predicated region
  $region10: #{_lambda_.10} parent=0 // pred_check
    _
  $region11: #{_lambda_.10} parent=0 // pred_check_branch
    %13 = sbr.rel (0) target = $region13
  $region12: #{_lambda_.10} parent=0 // pred_region
    _
  $region13: #{_lambda_.10} parent=0 // pred_fallthru
    _
  %v15 = vld [vmem:[%s0] sm:$0xff]
  %v16 = vld [vmem:[%s0 + $0x8] sm:$0xff]
  %v17 = vld [vmem:[%s0 + $0x10] sm:$0xff]
  %v18 = vld [vmem:[%s0 + $0x18] sm:$0xff]
  %v19 = vld [vmem:[%s0 + $0x20] sm:$0xf]
  %v20 = vpack.c.bf16 %v16, %v15
  %v21 = vpack.c.bf16 %v18, %v17
  %v22 = vpack.c.bf16 %v19, %v19
  %v23 = vld [vmem:[%s1] sm:$0xff]
  %v24 = vpack.c.bf16 %v23, %v23
  %v25 = vld [vmem:[%s2] sm:$0x1]
  %v27 = vlaneseq
  %v28 = vshrl.u32 %v27, 7
  %v29 = vsub.s32 0, %v28
  %v30 = vrot.slane %v25, %v29
  %vm32 = vcmask 64512
  %v34 = vsel %vm32, %v20, 0
  %v37 = vsel %vm32, %v21, 0
  %v40 = vsel %vm32, %v22, 0
  %vm42 = vcmask 1043456
  %v44 = vsel %vm42, %v24, 0
  %46 = vmatprep.subr.bf16.mxu0 0
  %47 = vmatpush1.bf16.msra.mxu0 0
  %48 = vmatprep.subr.bf16.mxu0 0
  %49 = vmatpush1.bf16.msra.mxu0 0
  %50 = vmatprep.subr.bf16.mxu0 0
  %51 = vmatpush1.bf16.msra.mxu0 0
  %52 = vmatprep.subr.bf16.mxu0 0
  %53 = vmatpush1.bf16.msra.mxu0 0
  %54 = vmatprep.subr.bf16.mxu0 0
  %55 = vmatpush1.bf16.msra.mxu0 0
  %56 = vmatprep.subr.bf16.mxu0 0
  %57 = vmatpush1.bf16.msra.mxu0 0
  %58 = vmatprep.subr.bf16.mxu0 0
  %59 = vmatpush1.bf16.msra.mxu0 0
  %60 = vmatprep.subr.bf16.mxu0 0
  %61 = vmatpush1.bf16.msra.mxu0 %v44
  %62 = vmatprep.subr.bf16.mxu0 0
  %63 = vmatpush2.bf16.msra.mxu0 0
  %64 = vmatprep.subr.bf16.mxu0 0
  %65 = vmatpush2.bf16.msra.mxu0 0
  %66 = vmatprep.subr.bf16.mxu0 0
  %67 = vmatpush2.bf16.msra.mxu0 0
  %68 = vmatprep.subr.bf16.mxu0 0
  %69 = vmatpush2.bf16.msra.mxu0 0
  %70 = vmatprep.subr.bf16.mxu0 0
  %71 = vmatpush2.bf16.msra.mxu0 0
  %72 = vmatprep.subr.bf16.mxu0 0
  %73 = vmatpush2.bf16.msra.mxu0 0
  %74 = vmatprep.subr.bf16.mxu0 0
  %75 = vmatpush2.bf16.msra.mxu0 0
  %76 = vmatprep.subr.bf16.mxu0 0
  %77 = vmatpush2.bf16.msra.mxu0 0
  %78 = vmatprep.mubr.bf16.mxu0 0
  %79 = vmatmul.mubr.bf16.gmra.mxu0 %v34
  %v80 = vpop.f32.mrf.mxu0
  %v81 = vadd.f32 %v30, %v80
  %v82 = vpop.f32.mrf.mxu0
  %v83 = vpop.f32.mrf.mxu0
  %v84 = vadd.f32 %v30, %v83
  %v85 = vpop.f32.mrf.mxu0
  %86 = vmatprep.mubr.bf16.mxu0 0
  %87 = vmatmul.mubr.bf16.gmra.mxu0 %v37
  %v88 = vpop.f32.mrf.mxu0
  %v89 = vadd.f32 %v30, %v88
  %v90 = vpop.f32.mrf.mxu0
  %v91 = vpop.f32.mrf.mxu0
  %v92 = vadd.f32 %v30, %v91
  %v93 = vpop.f32.mrf.mxu0
  %94 = vmatprep.mubr.bf16.mxu0 0
  %95 = vmatmul.mubr.bf16.gmra.mxu0 %v40
  %v96 = vpop.f32.mrf.mxu0
  %v97 = vadd.f32 %v30, %v96
  %v98 = vpop.f32.mrf.mxu0
  %v99 = vpop.f32.mrf.mxu0
  %v100 = vpop.f32.mrf.mxu0
  %101 = vdwg.mxu0
  %vm102 = vcmask 195584
  %103 = vst.msk [vmem:[%s3] sm:$0xff] %vm102, %v81
  %104 = vst.msk [vmem:[%s3 + $0x8] sm:$0xff] %vm102, %v84
  %105 = vst.msk [vmem:[%s3 + $0x10] sm:$0xff] %vm102, %v89
  %106 = vst.msk [vmem:[%s3 + $0x18] sm:$0xff] %vm102, %v92
  %vm107 = vcmask 191488
  %108 = vst.msk [vmem:[%s3 + $0x20] sm:$0xf] %vm107, %v97
  // Predicated region
  $region14: #{_lambda_.10} parent=0 // pred_check
    _
  $region15: #{_lambda_.10} parent=0 // pred_check_branch
    %110 = sbr.rel (0) target = $region17
  $region16: #{_lambda_.10} parent=0 // pred_region
    _
  $region17: #{_lambda_.10} parent=0 // pred_fallthru
    _
  // Predicated region
  $region18: #{_lambda_.10} parent=0 // pred_check
    _
  $region19: #{_lambda_.10} parent=0 // pred_check_branch
    %112 = sbr.rel (0) target = $region21
  $region20: #{_lambda_.10} parent=0 // pred_region
    _
  $region21: #{_lambda_.10} parent=0 // pred_fallthru
    _

// kernel: _lambda_.13
$region0: #{_lambda_.13}
  #allocation0 [shape = 'u32[]', space=smem, size = 0x4, offset = 0x4, fixed_abs, tag = 'smem constant byte address 0x4 - core index']
  #allocation1 [shape = 'u32[144,128]{1,0:T(1,128)}', space=vmem, size = 0x12000, scoped, tag = 'internal scratch']
  %s0 = inlined_call_operand.vmem [shape: f32[12,6], index: 0, kind: input, shape index: {}]
  %s1 = inlined_call_operand.vmem [shape: f32[12,16], index: 1, kind: input, shape index: {}]
  %s2 = inlined_call_operand.vmem [shape: f32[12,8], index: 2, kind: input, shape index: {}]
  %s3 = inlined_call_operand.vmem [shape: f32[6,16], index: 3, kind: input, shape index: {}]
  %s4 = inlined_call_operand.vmem [shape: f32[1,16], index: 4, kind: input, shape index: {}]
  %s5 = inlined_call_operand.vmem [shape: f32[40,16], index: 5, kind: input, shape index: {}]
  %s6 = inlined_call_operand.vmem [shape: f32[1,16], index: 6, kind: input, shape index: {}]
  %s7 = inlined_call_operand.vmem [shape: f32[12,16], index: 7, kind: output, shape index: {}]
  %s8 = sld [smem:[#allocation0]]
  $region38: #{_lambda_.13} parent=0
    _
  %s10 = ssub.s32 1, %s8
  %s11 = scalar_select 0, %s10, %s8
  // Predicated region
  $region2: #{_lambda_.13} parent=0 // pred_check
    _
  $region3: #{_lambda_.13} parent=0 // pred_check_branch
    %13 = sbr.rel (0) target = $region5
  $region4: #{_lambda_.13} parent=0 // pred_region
    _
  $region5: #{_lambda_.13} parent=0 // pred_fallthru
    _
  // Predicated region
  $region6: #{_lambda_.13} parent=0 // pred_check
    _
  $region7: #{_lambda_.13} parent=0 // pred_check_branch
    %15 = sbr.rel (0) target = $region9
  $region8: #{_lambda_.13} parent=0 // pred_region
    _
  $region9: #{_lambda_.13} parent=0 // pred_fallthru
    _
  // Predicated region
  $region10: #{_lambda_.13} parent=0 // pred_check
    _
  $region11: #{_lambda_.13} parent=0 // pred_check_branch
    %17 = sbr.rel (0) target = $region13
  $region12: #{_lambda_.13} parent=0 // pred_region
    _
  $region13: #{_lambda_.13} parent=0 // pred_fallthru
    _
  // Predicated region
  $region14: #{_lambda_.13} parent=0 // pred_check
    _
  $region15: #{_lambda_.13} parent=0 // pred_check_branch
    %19 = sbr.rel (0) target = $region17
  $region16: #{_lambda_.13} parent=0 // pred_region
    _
  $region17: #{_lambda_.13} parent=0 // pred_fallthru
    _
  // Predicated region
  $region18: #{_lambda_.13} parent=0 // pred_check
    _
  $region19: #{_lambda_.13} parent=0 // pred_check_branch
    %21 = sbr.rel (0) target = $region21
  $region20: #{_lambda_.13} parent=0 // pred_region
    _
  $region21: #{_lambda_.13} parent=0 // pred_fallthru
    _
  // Predicated region
  $region22: #{_lambda_.13} parent=0 // pred_check
    _
  $region23: #{_lambda_.13} parent=0 // pred_check_branch
    %23 = sbr.rel (0) target = $region25
  $region24: #{_lambda_.13} parent=0 // pred_region
    _
  $region25: #{_lambda_.13} parent=0 // pred_fallthru
    _
  // Predicated region
  $region26: #{_lambda_.13} parent=0 // pred_check
    _
  $region27: #{_lambda_.13} parent=0 // pred_check_branch
    %25 = sbr.rel (0) target = $region29
  $region28: #{_lambda_.13} parent=0 // pred_region
    _
  $region29: #{_lambda_.13} parent=0 // pred_fallthru
    _
  %v27 = vld [vmem:[%s0] sm:$0xff]
  %v28 = vld [vmem:[%s0 + $0x8] sm:$0xf]
  %v29 = vpack.c.bf16 %v28, %v27
  %v30 = vld [vmem:[%s3] sm:$0x3f]
  %v31 = vpack.c.bf16 %v30, %v30
  %v32 = vld [vmem:[%s4] sm:$0x1]
  %v34 = vlaneseq
  %v35 = vshrl.u32 %v34, 7
  %v36 = vsub.s32 0, %v35
  %v37 = vrot.slane %v32, %v36
  %vm39 = vcmask 48128
  %v41 = vsel %vm39, %v29, 0
  %vm43 = vcmask 1042432
  %v45 = vsel %vm43, %v31, 0
  %47 = vmatprep.subr.bf16.mxu0 0
  %48 = vmatpush1.bf16.msra.mxu0 0
  %49 = vmatprep.subr.bf16.mxu0 0
  %50 = vmatpush1.bf16.msra.mxu0 0
  %51 = vmatprep.subr.bf16.mxu0 0
  %52 = vmatpush1.bf16.msra.mxu0 0
  %53 = vmatprep.subr.bf16.mxu0 0
  %54 = vmatpush1.bf16.msra.mxu0 0
  %55 = vmatprep.subr.bf16.mxu0 0
  %56 = vmatpush1.bf16.msra.mxu0 0
  %57 = vmatprep.subr.bf16.mxu0 0
  %58 = vmatpush1.bf16.msra.mxu0 0
  %59 = vmatprep.subr.bf16.mxu0 0
  %60 = vmatpush1.bf16.msra.mxu0 0
  %61 = vmatprep.subr.bf16.mxu0 0
  %62 = vmatpush1.bf16.msra.mxu0 %v45
  %63 = vmatprep.subr.bf16.mxu0 0
  %64 = vmatpush2.bf16.msra.mxu0 0
  %65 = vmatprep.subr.bf16.mxu0 0
  %66 = vmatpush2.bf16.msra.mxu0 0
  %67 = vmatprep.subr.bf16.mxu0 0
  %68 = vmatpush2.bf16.msra.mxu0 0
  %69 = vmatprep.subr.bf16.mxu0 0
  %70 = vmatpush2.bf16.msra.mxu0 0
  %71 = vmatprep.subr.bf16.mxu0 0
  %72 = vmatpush2.bf16.msra.mxu0 0
  %73 = vmatprep.subr.bf16.mxu0 0
  %74 = vmatpush2.bf16.msra.mxu0 0
  %75 = vmatprep.subr.bf16.mxu0 0
  %76 = vmatpush2.bf16.msra.mxu0 0
  %77 = vmatprep.subr.bf16.mxu0 0
  %78 = vmatpush2.bf16.msra.mxu0 0
  %79 = vmatprep.mubr.bf16.mxu0 0
  %80 = vmatmul.mubr.bf16.gmra.mxu0 %v41
  %v81 = vpop.f32.mrf.mxu0
  %v82 = vadd.f32 %v37, %v81
  %v83 = vpop.f32.mrf.mxu0
  %v84 = vpop.f32.mrf.mxu0
  %v85 = vadd.f32 %v37, %v84
  %v86 = vpop.f32.mrf.mxu0
  %87 = vdwg.mxu0
  %v88 = vld [vmem:[%s1] sm:$0xff]
  %v89 = vld [vmem:[%s1 + $0x8] sm:$0xf]
  %v90 = vld [vmem:[%s2] sm:$0xff]
  %v91 = vld [vmem:[%s2 + $0x8] sm:$0xf]
  %94 = vrot.lane.b32.xlu0 %v88, 16
  %v95 = vpop.permute.xlu0 %94
  %96 = vrot.lane.b32.xlu0 %v89, 16
  %v97 = vpop.permute.xlu0 %96
  %102 = vrot.lane.b32.xlu0 %v90, 32
  %v103 = vpop.permute.xlu0 %102
  %104 = vrot.lane.b32.xlu0 %v91, 32
  %v105 = vpop.permute.xlu0 %104
  %vm108 = vcmask 130048
  %v109 = vsel %vm108, %v82, %v95
  %v110 = vsel %vm108, %v85, %v97
  %vm111 = vcmask 261120
  %v112 = vsel %vm111, %v109, %v103
  %v113 = vsel %vm111, %v110, %v105
  %v114 = vpack.c.bf16 %v113, %v112
  %v115 = vld [vmem:[%s5] sm:$0xff]
  %v116 = vld [vmem:[%s5 + $0x8] sm:$0xff]
  %v117 = vld [vmem:[%s5 + $0x10] sm:$0xff]
  %v118 = vld [vmem:[%s5 + $0x18] sm:$0xff]
  %v119 = vld [vmem:[%s5 + $0x20] sm:$0xff]
  %v120 = vpack.c.bf16 %v116, %v115
  %v121 = vpack.c.bf16 %v118, %v117
  %v122 = vpack.c.bf16 %v119, %v119
  %v123 = vld [vmem:[%s6] sm:$0x1]
  %v125 = vlaneseq
  %v126 = vshrl.u32 %v125, 7
  %v127 = vsub.s32 0, %v126
  %v128 = vrot.slane %v123, %v127
  %vm130 = vcmask 326656
  %v132 = vsel %vm130, %v114, 0
  %vm134 = vcmask 1043456
  %v136 = vsel %vm134, %v122, 0
  %138 = vmatprep.subr.bf16.mxu0 0
  %139 = vmatpush1.bf16.msra.mxu0 0
  %140 = vmatprep.subr.bf16.mxu0 0
  %141 = vmatpush1.bf16.msra.mxu0 0
  %142 = vmatprep.subr.bf16.mxu0 0
  %143 = vmatpush1.bf16.msra.mxu0 0
  %144 = vmatprep.subr.bf16.mxu0 0
  %145 = vmatpush1.bf16.msra.mxu0 0
  %146 = vmatprep.subr.bf16.mxu0 0
  %147 = vmatpush1.bf16.msra.mxu0 0
  %148 = vmatprep.subr.bf16.mxu0 0
  %149 = vmatpush1.bf16.msra.mxu0 %v136
  %150 = vmatprep.subr.bf16.mxu0 0
  %151 = vmatpush1.bf16.msra.mxu0 %v121
  %152 = vmatprep.subr.bf16.mxu0 0
  %153 = vmatpush1.bf16.msra.mxu0 %v120
  %154 = vmatprep.subr.bf16.mxu0 0
  %155 = vmatpush2.bf16.msra.mxu0 0
  %156 = vmatprep.subr.bf16.mxu0 0
  %157 = vmatpush2.bf16.msra.mxu0 0
  %158 = vmatprep.subr.bf16.mxu0 0
  %159 = vmatpush2.bf16.msra.mxu0 0
  %160 = vmatprep.subr.bf16.mxu0 0
  %161 = vmatpush2.bf16.msra.mxu0 0
  %162 = vmatprep.subr.bf16.mxu0 0
  %163 = vmatpush2.bf16.msra.mxu0 0
  %164 = vmatprep.subr.bf16.mxu0 0
  %165 = vmatpush2.bf16.msra.mxu0 0
  %166 = vmatprep.subr.bf16.mxu0 0
  %167 = vmatpush2.bf16.msra.mxu0 0
  %168 = vmatprep.subr.bf16.mxu0 0
  %169 = vmatpush2.bf16.msra.mxu0 0
  %170 = vmatprep.mubr.bf16.mxu0 0
  %171 = vmatmul.mubr.bf16.gmra.mxu0 %v132
  %v172 = vpop.f32.mrf.mxu0
  %v173 = vadd.f32 %v128, %v172
  %v174 = vpop.f32.mrf.mxu0
  %v175 = vpop.f32.mrf.mxu0
  %v176 = vadd.f32 %v128, %v175
  %v177 = vpop.f32.mrf.mxu0
  %178 = vdwg.mxu0
  %179 = vst.msk [vmem:[%s7] sm:$0xff] %vm108, %v173
  %vm180 = vcmask 125952
  %181 = vst.msk [vmem:[%s7 + $0x8] sm:$0xf] %vm180, %v176
  // Predicated region
  $region30: #{_lambda_.13} parent=0 // pred_check
    _
  $region31: #{_lambda_.13} parent=0 // pred_check_branch
    %183 = sbr.rel (0) target = $region33
  $region32: #{_lambda_.13} parent=0 // pred_region
    _
  $region33: #{_lambda_.13} parent=0 // pred_fallthru
    _
  // Predicated region
  $region34: #{_lambda_.13} parent=0 // pred_check
    _
  $region35: #{_lambda_.13} parent=0 // pred_check_branch
    %185 = sbr.rel (0) target = $region37
  $region36: #{_lambda_.13} parent=0 // pred_region
    _
  $region37: #{_lambda_.13} parent=0 // pred_fallthru
    _

// kernel: _lambda_.11
$region0: #{_lambda_.11}
  #allocation0 [shape = 'u32[]', space=smem, size = 0x4, offset = 0x4, fixed_abs, tag = 'smem constant byte address 0x4 - core index']
  #allocation1 [shape = 'u32[144,128]{1,0:T(1,128)}', space=vmem, size = 0x12000, scoped, tag = 'internal scratch']
  %s0 = inlined_call_operand.vmem [shape: f32[12,3,24], index: 0, kind: input, shape index: {}]
  %s1 = inlined_call_operand.vmem [shape: f32[12,1,3], index: 1, kind: input, shape index: {}]
  %s2 = inlined_call_operand.vmem [shape: f32[12,3,8], index: 2, kind: output, shape index: {}]
  %s3 = sld [smem:[#allocation0]]
  $region18: #{_lambda_.11} parent=0
    _
  %s5 = ssub.s32 1, %s3
  %s6 = scalar_select 0, %s5, %s3
  // Predicated region
  $region2: #{_lambda_.11} parent=0 // pred_check
    _
  $region3: #{_lambda_.11} parent=0 // pred_check_branch
    %8 = sbr.rel (0) target = $region5
  $region4: #{_lambda_.11} parent=0 // pred_region
    _
  $region5: #{_lambda_.11} parent=0 // pred_fallthru
    _
  // Predicated region
  $region6: #{_lambda_.11} parent=0 // pred_check
    _
  $region7: #{_lambda_.11} parent=0 // pred_check_branch
    %10 = sbr.rel (0) target = $region9
  $region8: #{_lambda_.11} parent=0 // pred_region
    _
  $region9: #{_lambda_.11} parent=0 // pred_fallthru
    _
  %v12 = vld [vmem:[%s0] sm:$0x7]
  %v13 = vld [vmem:[%s0 + $0x4] sm:$0x7]
  %v14 = vld [vmem:[%s0 + $0x8] sm:$0x7]
  %v15 = vld [vmem:[%s0 + $0xc] sm:$0x7]
  %v16 = vld [vmem:[%s0 + $0x10] sm:$0x7]
  %v17 = vld [vmem:[%s0 + $0x14] sm:$0x7]
  %v18 = vld [vmem:[%s0 + $0x18] sm:$0x7]
  %v19 = vld [vmem:[%s0 + $0x1c] sm:$0x7]
  %v20 = vld [vmem:[%s0 + $0x20] sm:$0x7]
  %v21 = vld [vmem:[%s0 + $0x24] sm:$0x7]
  %v22 = vld [vmem:[%s0 + $0x28] sm:$0x7]
  %v23 = vld [vmem:[%s0 + $0x2c] sm:$0x7]
  %v24 = vld [vmem:[%s1] sm:$0x1]
  %v25 = vld [vmem:[%s1 + $0x1] sm:$0x1]
  %v26 = vld [vmem:[%s1 + $0x2] sm:$0x1]
  %v27 = vld [vmem:[%s1 + $0x3] sm:$0x1]
  %v28 = vld [vmem:[%s1 + $0x4] sm:$0x1]
  %v29 = vld [vmem:[%s1 + $0x5] sm:$0x1]
  %v30 = vld [vmem:[%s1 + $0x6] sm:$0x1]
  %v31 = vld [vmem:[%s1 + $0x7] sm:$0x1]
  %v32 = vld [vmem:[%s1 + $0x8] sm:$0x1]
  %v33 = vld [vmem:[%s1 + $0x9] sm:$0x1]
  %v34 = vld [vmem:[%s1 + $0xa] sm:$0x1]
  %v35 = vld [vmem:[%s1 + $0xb] sm:$0x1]
  %v36 = vpack.c.bf16 %v12, %v12
  %v37 = vpack.c.bf16 %v13, %v13
  %v38 = vpack.c.bf16 %v14, %v14
  %v39 = vpack.c.bf16 %v15, %v15
  %v40 = vpack.c.bf16 %v16, %v16
  %v41 = vpack.c.bf16 %v17, %v17
  %v42 = vpack.c.bf16 %v18, %v18
  %v43 = vpack.c.bf16 %v19, %v19
  %v44 = vpack.c.bf16 %v20, %v20
  %v45 = vpack.c.bf16 %v21, %v21
  %v46 = vpack.c.bf16 %v22, %v22
  %v47 = vpack.c.bf16 %v23, %v23
  %49 = vrot.lane.b32.xlu0 %v36, 120
  %v50 = vpop.permute.xlu0 %49
  %vm51 = vcmask 31744
  %v53 = vsel %vm51, %v36, 0
  %v56 = vsel %vm51, %v50, 0
  %58 = vmatprep.subr.bf16.mxu0 0
  %59 = vmatpush1.bf16.xpose.msra.mxu0 0
  %60 = vmatprep.subr.bf16.mxu0 0
  %61 = vmatpush1.bf16.xpose.msra.mxu0 0
  %62 = vmatprep.subr.bf16.mxu0 0
  %63 = vmatpush1.bf16.xpose.msra.mxu0 0
  %64 = vmatprep.subr.bf16.mxu0 0
  %65 = vmatpush1.bf16.xpose.msra.mxu0 0
  %66 = vmatprep.subr.bf16.mxu0 0
  %67 = vmatpush1.bf16.xpose.msra.mxu0 0
  %68 = vmatprep.subr.bf16.mxu0 0
  %69 = vmatpush1.bf16.xpose.msra.mxu0 0
  %70 = vmatprep.subr.bf16.mxu0 0
  %71 = vmatpush1.bf16.xpose.msra.mxu0 0
  %72 = vmatprep.subr.bf16.mxu0 0
  %73 = vmatpush1.bf16.xpose.msra.mxu0 %v56
  %74 = vmatprep.subr.bf16.mxu0 0
  %75 = vmatpush2.bf16.xpose.msra.mxu0 0
  %76 = vmatprep.subr.bf16.mxu0 0
  %77 = vmatpush2.bf16.xpose.msra.mxu0 0
  %78 = vmatprep.subr.bf16.mxu0 0
  %79 = vmatpush2.bf16.xpose.msra.mxu0 0
  %80 = vmatprep.subr.bf16.mxu0 0
  %81 = vmatpush2.bf16.xpose.msra.mxu0 0
  %82 = vmatprep.subr.bf16.mxu0 0
  %83 = vmatpush2.bf16.xpose.msra.mxu0 0
  %84 = vmatprep.subr.bf16.mxu0 0
  %85 = vmatpush2.bf16.xpose.msra.mxu0 0
  %86 = vmatprep.subr.bf16.mxu0 0
  %87 = vmatpush2.bf16.xpose.msra.mxu0 0
  %88 = vmatprep.subr.bf16.mxu0 0
  %89 = vmatpush2.bf16.xpose.msra.mxu0 0
  %90 = vmatprep.mubr.bf16.mxu0 0
  %91 = vmatmul.mubr.bf16.gmra.mxu0 %v53
  %v92 = vpop.f32.mrf.mxu0
  %v93 = vadd.f32 0.0, %v92
  %v94 = vpop.f32.mrf.mxu0
  %v95 = vpop.f32.mrf.mxu0
  %v96 = vpop.f32.mrf.mxu0
  %97 = vdwg.mxu0
  %99 = vrot.lane.b32.xlu0 %v37, 120
  %v100 = vpop.permute.xlu0 %99
  %v102 = vsel %vm51, %v37, 0
  %v105 = vsel %vm51, %v100, 0
  %107 = vmatprep.subr.bf16.mxu0 0
  %108 = vmatpush1.bf16.xpose.msra.mxu0 0
  %109 = vmatprep.subr.bf16.mxu0 0
  %110 = vmatpush1.bf16.xpose.msra.mxu0 0
  %111 = vmatprep.subr.bf16.mxu0 0
  %112 = vmatpush1.bf16.xpose.msra.mxu0 0
  %113 = vmatprep.subr.bf16.mxu0 0
  %114 = vmatpush1.bf16.xpose.msra.mxu0 0
  %115 = vmatprep.subr.bf16.mxu0 0
  %116 = vmatpush1.bf16.xpose.msra.mxu0 0
  %117 = vmatprep.subr.bf16.mxu0 0
  %118 = vmatpush1.bf16.xpose.msra.mxu0 0
  %119 = vmatprep.subr.bf16.mxu0 0
  %120 = vmatpush1.bf16.xpose.msra.mxu0 0
  %121 = vmatprep.subr.bf16.mxu0 0
  %122 = vmatpush1.bf16.xpose.msra.mxu0 %v105
  %123 = vmatprep.subr.bf16.mxu0 0
  %124 = vmatpush2.bf16.xpose.msra.mxu0 0
  %125 = vmatprep.subr.bf16.mxu0 0
  %126 = vmatpush2.bf16.xpose.msra.mxu0 0
  %127 = vmatprep.subr.bf16.mxu0 0
  %128 = vmatpush2.bf16.xpose.msra.mxu0 0
  %129 = vmatprep.subr.bf16.mxu0 0
  %130 = vmatpush2.bf16.xpose.msra.mxu0 0
  %131 = vmatprep.subr.bf16.mxu0 0
  %132 = vmatpush2.bf16.xpose.msra.mxu0 0
  %133 = vmatprep.subr.bf16.mxu0 0
  %134 = vmatpush2.bf16.xpose.msra.mxu0 0
  %135 = vmatprep.subr.bf16.mxu0 0
  %136 = vmatpush2.bf16.xpose.msra.mxu0 0
  %137 = vmatprep.subr.bf16.mxu0 0
  %138 = vmatpush2.bf16.xpose.msra.mxu0 0
  %139 = vmatprep.mubr.bf16.mxu0 0
  %140 = vmatmul.mubr.bf16.gmra.mxu0 %v102
  %v141 = vpop.f32.mrf.mxu0
  %v142 = vadd.f32 0.0, %v141
  %v143 = vpop.f32.mrf.mxu0
  %v144 = vpop.f32.mrf.mxu0
  %v145 = vpop.f32.mrf.mxu0
  %146 = vdwg.mxu0
  %148 = vrot.lane.b32.xlu0 %v38, 120
  %v149 = vpop.permute.xlu0 %148
  %v151 = vsel %vm51, %v38, 0
  %v154 = vsel %vm51, %v149, 0
  %156 = vmatprep.subr.bf16.mxu0 0
  %157 = vmatpush1.bf16.xpose.msra.mxu0 0
  %158 = vmatprep.subr.bf16.mxu0 0
  %159 = vmatpush1.bf16.xpose.msra.mxu0 0
  %160 = vmatprep.subr.bf16.mxu0 0
  %161 = vmatpush1.bf16.xpose.msra.mxu0 0
  %162 = vmatprep.subr.bf16.mxu0 0
  %163 = vmatpush1.bf16.xpose.msra.mxu0 0
  %164 = vmatprep.subr.bf16.mxu0 0
  %165 = vmatpush1.bf16.xpose.msra.mxu0 0
  %166 = vmatprep.subr.bf16.mxu0 0
  %167 = vmatpush1.bf16.xpose.msra.mxu0 0
  %168 = vmatprep.subr.bf16.mxu0 0
  %169 = vmatpush1.bf16.xpose.msra.mxu0 0
  %170 = vmatprep.subr.bf16.mxu0 0
  %171 = vmatpush1.bf16.xpose.msra.mxu0 %v154
  %172 = vmatprep.subr.bf16.mxu0 0
  %173 = vmatpush2.bf16.xpose.msra.mxu0 0
  %174 = vmatprep.subr.bf16.mxu0 0
  %175 = vmatpush2.bf16.xpose.msra.mxu0 0
  %176 = vmatprep.subr.bf16.mxu0 0
  %177 = vmatpush2.bf16.xpose.msra.mxu0 0
  %178 = vmatprep.subr.bf16.mxu0 0
  %179 = vmatpush2.bf16.xpose.msra.mxu0 0
  %180 = vmatprep.subr.bf16.mxu0 0
  %181 = vmatpush2.bf16.xpose.msra.mxu0 0
  %182 = vmatprep.subr.bf16.mxu0 0
  %183 = vmatpush2.bf16.xpose.msra.mxu0 0
  %184 = vmatprep.subr.bf16.mxu0 0
  %185 = vmatpush2.bf16.xpose.msra.mxu0 0
  %186 = vmatprep.subr.bf16.mxu0 0
  %187 = vmatpush2.bf16.xpose.msra.mxu0 0
  %188 = vmatprep.mubr.bf16.mxu0 0
  %189 = vmatmul.mubr.bf16.gmra.mxu0 %v151
  %v190 = vpop.f32.mrf.mxu0
  %v191 = vadd.f32 0.0, %v190
  %v192 = vpop.f32.mrf.mxu0
  %v193 = vpop.f32.mrf.mxu0
  %v194 = vpop.f32.mrf.mxu0
  %195 = vdwg.mxu0
  %197 = vrot.lane.b32.xlu0 %v39, 120
  %v198 = vpop.permute.xlu0 %197
  %v200 = vsel %vm51, %v39, 0
  %v203 = vsel %vm51, %v198, 0
  %205 = vmatprep.subr.bf16.mxu0 0
  %206 = vmatpush1.bf16.xpose.msra.mxu0 0
  %207 = vmatprep.subr.bf16.mxu0 0
  %208 = vmatpush1.bf16.xpose.msra.mxu0 0
  %209 = vmatprep.subr.bf16.mxu0 0
  %210 = vmatpush1.bf16.xpose.msra.mxu0 0
  %211 = vmatprep.subr.bf16.mxu0 0
  %212 = vmatpush1.bf16.xpose.msra.mxu0 0
  %213 = vmatprep.subr.bf16.mxu0 0
  %214 = vmatpush1.bf16.xpose.msra.mxu0 0
  %215 = vmatprep.subr.bf16.mxu0 0
  %216 = vmatpush1.bf16.xpose.msra.mxu0 0
  %217 = vmatprep.subr.bf16.mxu0 0
  %218 = vmatpush1.bf16.xpose.msra.mxu0 0
  %219 = vmatprep.subr.bf16.mxu0 0
  %220 = vmatpush1.bf16.xpose.msra.mxu0 %v203
  %221 = vmatprep.subr.bf16.mxu0 0
  %222 = vmatpush2.bf16.xpose.msra.mxu0 0
  %223 = vmatprep.subr.bf16.mxu0 0
  %224 = vmatpush2.bf16.xpose.msra.mxu0 0
  %225 = vmatprep.subr.bf16.mxu0 0
  %226 = vmatpush2.bf16.xpose.msra.mxu0 0
  %227 = vmatprep.subr.bf16.mxu0 0
  %228 = vmatpush2.bf16.xpose.msra.mxu0 0
  %229 = vmatprep.subr.bf16.mxu0 0
  %230 = vmatpush2.bf16.xpose.msra.mxu0 0
  %231 = vmatprep.subr.bf16.mxu0 0
  %232 = vmatpush2.bf16.xpose.msra.mxu0 0
  %233 = vmatprep.subr.bf16.mxu0 0
  %234 = vmatpush2.bf16.xpose.msra.mxu0 0
  %235 = vmatprep.subr.bf16.mxu0 0
  %236 = vmatpush2.bf16.xpose.msra.mxu0 0
  %237 = vmatprep.mubr.bf16.mxu0 0
  %238 = vmatmul.mubr.bf16.gmra.mxu0 %v200
  %v239 = vpop.f32.mrf.mxu0
  %v240 = vadd.f32 0.0, %v239
  %v241 = vpop.f32.mrf.mxu0
  %v242 = vpop.f32.mrf.mxu0
  %v243 = vpop.f32.mrf.mxu0
  %244 = vdwg.mxu0
  %246 = vrot.lane.b32.xlu0 %v40, 120
  %v247 = vpop.permute.xlu0 %246
  %v249 = vsel %vm51, %v40, 0
  %v252 = vsel %vm51, %v247, 0
  %254 = vmatprep.subr.bf16.mxu0 0
  %255 = vmatpush1.bf16.xpose.msra.mxu0 0
  %256 = vmatprep.subr.bf16.mxu0 0
  %257 = vmatpush1.bf16.xpose.msra.mxu0 0
  %258 = vmatprep.subr.bf16.mxu0 0
  %259 = vmatpush1.bf16.xpose.msra.mxu0 0
  %260 = vmatprep.subr.bf16.mxu0 0
  %261 = vmatpush1.bf16.xpose.msra.mxu0 0
  %262 = vmatprep.subr.bf16.mxu0 0
  %263 = vmatpush1.bf16.xpose.msra.mxu0 0
  %264 = vmatprep.subr.bf16.mxu0 0
  %265 = vmatpush1.bf16.xpose.msra.mxu0 0
  %266 = vmatprep.subr.bf16.mxu0 0
  %267 = vmatpush1.bf16.xpose.msra.mxu0 0
  %268 = vmatprep.subr.bf16.mxu0 0
  %269 = vmatpush1.bf16.xpose.msra.mxu0 %v252
  %270 = vmatprep.subr.bf16.mxu0 0
  %271 = vmatpush2.bf16.xpose.msra.mxu0 0
  %272 = vmatprep.subr.bf16.mxu0 0
  %273 = vmatpush2.bf16.xpose.msra.mxu0 0
  %274 = vmatprep.subr.bf16.mxu0 0
  %275 = vmatpush2.bf16.xpose.msra.mxu0 0
  %276 = vmatprep.subr.bf16.mxu0 0
  %277 = vmatpush2.bf16.xpose.msra.mxu0 0
  %278 = vmatprep.subr.bf16.mxu0 0
  %279 = vmatpush2.bf16.xpose.msra.mxu0 0
  %280 = vmatprep.subr.bf16.mxu0 0
  %281 = vmatpush2.bf16.xpose.msra.mxu0 0
  %282 = vmatprep.subr.bf16.mxu0 0
  %283 = vmatpush2.bf16.xpose.msra.mxu0 0
  %284 = vmatprep.subr.bf16.mxu0 0
  %285 = vmatpush2.bf16.xpose.msra.mxu0 0
  %286 = vmatprep.mubr.bf16.mxu0 0
  %287 = vmatmul.mubr.bf16.gmra.mxu0 %v249
  %v288 = vpop.f32.mrf.mxu0
  %v289 = vadd.f32 0.0, %v288
  %v290 = vpop.f32.mrf.mxu0
  %v291 = vpop.f32.mrf.mxu0
  %v292 = vpop.f32.mrf.mxu0
  %293 = vdwg.mxu0
  %295 = vrot.lane.b32.xlu0 %v41, 120
  %v296 = vpop.permute.xlu0 %295
  %v298 = vsel %vm51, %v41, 0
  %v301 = vsel %vm51, %v296, 0
  %303 = vmatprep.subr.bf16.mxu0 0
  %304 = vmatpush1.bf16.xpose.msra.mxu0 0
  %305 = vmatprep.subr.bf16.mxu0 0
  %306 = vmatpush1.bf16.xpose.msra.mxu0 0
  %307 = vmatprep.subr.bf16.mxu0 0
  %308 = vmatpush1.bf16.xpose.msra.mxu0 0
  %309 = vmatprep.subr.bf16.mxu0 0
  %310 = vmatpush1.bf16.xpose.msra.mxu0 0
  %311 = vmatprep.subr.bf16.mxu0 0
  %312 = vmatpush1.bf16.xpose.msra.mxu0 0
  %313 = vmatprep.subr.bf16.mxu0 0
  %314 = vmatpush1.bf16.xpose.msra.mxu0 0
  %315 = vmatprep.subr.bf16.mxu0 0
  %316 = vmatpush1.bf16.xpose.msra.mxu0 0
  %317 = vmatprep.subr.bf16.mxu0 0
  %318 = vmatpush1.bf16.xpose.msra.mxu0 %v301
  %319 = vmatprep.subr.bf16.mxu0 0
  %320 = vmatpush2.bf16.xpose.msra.mxu0 0
  %321 = vmatprep.subr.bf16.mxu0 0
  %322 = vmatpush2.bf16.xpose.msra.mxu0 0
  %323 = vmatprep.subr.bf16.mxu0 0
  %324 = vmatpush2.bf16.xpose.msra.mxu0 0
  %325 = vmatprep.subr.bf16.mxu0 0
  %326 = vmatpush2.bf16.xpose.msra.mxu0 0
  %327 = vmatprep.subr.bf16.mxu0 0
  %328 = vmatpush2.bf16.xpose.msra.mxu0 0
  %329 = vmatprep.subr.bf16.mxu0 0
  %330 = vmatpush2.bf16.xpose.msra.mxu0 0
  %331 = vmatprep.subr.bf16.mxu0 0
  %332 = vmatpush2.bf16.xpose.msra.mxu0 0
  %333 = vmatprep.subr.bf16.mxu0 0
  %334 = vmatpush2.bf16.xpose.msra.mxu0 0
  %335 = vmatprep.mubr.bf16.mxu0 0
  %336 = vmatmul.mubr.bf16.gmra.mxu0 %v298
  %v337 = vpop.f32.mrf.mxu0
  %v338 = vadd.f32 0.0, %v337
  %v339 = vpop.f32.mrf.mxu0
  %v340 = vpop.f32.mrf.mxu0
  %v341 = vpop.f32.mrf.mxu0
  %342 = vdwg.mxu0
  %344 = vrot.lane.b32.xlu0 %v42, 120
  %v345 = vpop.permute.xlu0 %344
  %v347 = vsel %vm51, %v42, 0
  %v350 = vsel %vm51, %v345, 0
  %352 = vmatprep.subr.bf16.mxu0 0
  %353 = vmatpush1.bf16.xpose.msra.mxu0 0
  %354 = vmatprep.subr.bf16.mxu0 0
  %355 = vmatpush1.bf16.xpose.msra.mxu0 0
  %356 = vmatprep.subr.bf16.mxu0 0
  %357 = vmatpush1.bf16.xpose.msra.mxu0 0
  %358 = vmatprep.subr.bf16.mxu0 0
  %359 = vmatpush1.bf16.xpose.msra.mxu0 0
  %360 = vmatprep.subr.bf16.mxu0 0
  %361 = vmatpush1.bf16.xpose.msra.mxu0 0
  %362 = vmatprep.subr.bf16.mxu0 0
  %363 = vmatpush1.bf16.xpose.msra.mxu0 0
  %364 = vmatprep.subr.bf16.mxu0 0
  %365 = vmatpush1.bf16.xpose.msra.mxu0 0
  %366 = vmatprep.subr.bf16.mxu0 0
  %367 = vmatpush1.bf16.xpose.msra.mxu0 %v350
  %368 = vmatprep.subr.bf16.mxu0 0
  %369 = vmatpush2.bf16.xpose.msra.mxu0 0
  %370 = vmatprep.subr.bf16.mxu0 0
  %371 = vmatpush2.bf16.xpose.msra.mxu0 0
  %372 = vmatprep.subr.bf16.mxu0 0
  %373 = vmatpush2.bf16.xpose.msra.mxu0 0
  %374 = vmatprep.subr.bf16.mxu0 0
  %375 = vmatpush2.bf16.xpose.msra.mxu0 0
  %376 = vmatprep.subr.bf16.mxu0 0
  %377 = vmatpush2.bf16.xpose.msra.mxu0 0
  %378 = vmatprep.subr.bf16.mxu0 0
  %379 = vmatpush2.bf16.xpose.msra.mxu0 0
  %380 = vmatprep.subr.bf16.mxu0 0
  %381 = vmatpush2.bf16.xpose.msra.mxu0 0
  %382 = vmatprep.subr.bf16.mxu0 0
  %383 = vmatpush2.bf16.xpose.msra.mxu0 0
  %384 = vmatprep.mubr.bf16.mxu0 0
  %385 = vmatmul.mubr.bf16.gmra.mxu0 %v347
  %v386 = vpop.f32.mrf.mxu0
  %v387 = vadd.f32 0.0, %v386
  %v388 = vpop.f32.mrf.mxu0
  %v389 = vpop.f32.mrf.mxu0
  %v390 = vpop.f32.mrf.mxu0
  %391 = vdwg.mxu0
  %393 = vrot.lane.b32.xlu0 %v43, 120
  %v394 = vpop.permute.xlu0 %393
  %v396 = vsel %vm51, %v43, 0
  %v399 = vsel %vm51, %v394, 0
  %401 = vmatprep.subr.bf16.mxu0 0
  %402 = vmatpush1.bf16.xpose.msra.mxu0 0
  %403 = vmatprep.subr.bf16.mxu0 0
  %404 = vmatpush1.bf16.xpose.msra.mxu0 0
  %405 = vmatprep.subr.bf16.mxu0 0
  %406 = vmatpush1.bf16.xpose.msra.mxu0 0
  %407 = vmatprep.subr.bf16.mxu0 0
  %408 = vmatpush1.bf16.xpose.msra.mxu0 0
  %409 = vmatprep.subr.bf16.mxu0 0
  %410 = vmatpush1.bf16.xpose.msra.mxu0 0
  %411 = vmatprep.subr.bf16.mxu0 0
  %412 = vmatpush1.bf16.xpose.msra.mxu0 0
  %413 = vmatprep.subr.bf16.mxu0 0
  %414 = vmatpush1.bf16.xpose.msra.mxu0 0
  %415 = vmatprep.subr.bf16.mxu0 0
  %416 = vmatpush1.bf16.xpose.msra.mxu0 %v399
  %417 = vmatprep.subr.bf16.mxu0 0
  %418 = vmatpush2.bf16.xpose.msra.mxu0 0
  %419 = vmatprep.subr.bf16.mxu0 0
  %420 = vmatpush2.bf16.xpose.msra.mxu0 0
  %421 = vmatprep.subr.bf16.mxu0 0
  %422 = vmatpush2.bf16.xpose.msra.mxu0 0
  %423 = vmatprep.subr.bf16.mxu0 0
  %424 = vmatpush2.bf16.xpose.msra.mxu0 0
  %425 = vmatprep.subr.bf16.mxu0 0
  %426 = vmatpush2.bf16.xpose.msra.mxu0 0
  %427 = vmatprep.subr.bf16.mxu0 0
  %428 = vmatpush2.bf16.xpose.msra.mxu0 0
  %429 = vmatprep.subr.bf16.mxu0 0
  %430 = vmatpush2.bf16.xpose.msra.mxu0 0
  %431 = vmatprep.subr.bf16.mxu0 0
  %432 = vmatpush2.bf16.xpose.msra.mxu0 0
  %433 = vmatprep.mubr.bf16.mxu0 0
  %434 = vmatmul.mubr.bf16.gmra.mxu0 %v396
  %v435 = vpop.f32.mrf.mxu0
  %v436 = vadd.f32 0.0, %v435
  %v437 = vpop.f32.mrf.mxu0
  %v438 = vpop.f32.mrf.mxu0
  %v439 = vpop.f32.mrf.mxu0
  %440 = vdwg.mxu0
  %442 = vrot.lane.b32.xlu0 %v44, 120
  %v443 = vpop.permute.xlu0 %442
  %v445 = vsel %vm51, %v44, 0
  %v448 = vsel %vm51, %v443, 0
  %450 = vmatprep.subr.bf16.mxu0 0
  %451 = vmatpush1.bf16.xpose.msra.mxu0 0
  %452 = vmatprep.subr.bf16.mxu0 0
  %453 = vmatpush1.bf16.xpose.msra.mxu0 0
  %454 = vmatprep.subr.bf16.mxu0 0
  %455 = vmatpush1.bf16.xpose.msra.mxu0 0
  %456 = vmatprep.subr.bf16.mxu0 0
  %457 = vmatpush1.bf16.xpose.msra.mxu0 0
  %458 = vmatprep.subr.bf16.mxu0 0
  %459 = vmatpush1.bf16.xpose.msra.mxu0 0
  %460 = vmatprep.subr.bf16.mxu0 0
  %461 = vmatpush1.bf16.xpose.msra.mxu0 0
  %462 = vmatprep.subr.bf16.mxu0 0
  %463 = vmatpush1.bf16.xpose.msra.mxu0 0
  %464 = vmatprep.subr.bf16.mxu0 0
  %465 = vmatpush1.bf16.xpose.msra.mxu0 %v448
  %466 = vmatprep.subr.bf16.mxu0 0
  %467 = vmatpush2.bf16.xpose.msra.mxu0 0
  %468 = vmatprep.subr.bf16.mxu0 0
  %469 = vmatpush2.bf16.xpose.msra.mxu0 0
  %470 = vmatprep.subr.bf16.mxu0 0
  %471 = vmatpush2.bf16.xpose.msra.mxu0 0
  %472 = vmatprep.subr.bf16.mxu0 0
  %473 = vmatpush2.bf16.xpose.msra.mxu0 0
  %474 = vmatprep.subr.bf16.mxu0 0
  %475 = vmatpush2.bf16.xpose.msra.mxu0 0
  %476 = vmatprep.subr.bf16.mxu0 0
  %477 = vmatpush2.bf16.xpose.msra.mxu0 0
  %478 = vmatprep.subr.bf16.mxu0 0
  %479 = vmatpush2.bf16.xpose.msra.mxu0 0
  %480 = vmatprep.subr.bf16.mxu0 0
  %481 = vmatpush2.bf16.xpose.msra.mxu0 0
  %482 = vmatprep.mubr.bf16.mxu0 0
  %483 = vmatmul.mubr.bf16.gmra.mxu0 %v445
  %v484 = vpop.f32.mrf.mxu0
  %v485 = vadd.f32 0.0, %v484
  %v486 = vpop.f32.mrf.mxu0
  %v487 = vpop.f32.mrf.mxu0
  %v488 = vpop.f32.mrf.mxu0
  %489 = vdwg.mxu0
  %491 = vrot.lane.b32.xlu0 %v45, 120
  %v492 = vpop.permute.xlu0 %491
  %v494 = vsel %vm51, %v45, 0
  %v497 = vsel %vm51, %v492, 0
  %499 = vmatprep.subr.bf16.mxu0 0
  %500 = vmatpush1.bf16.xpose.msra.mxu0 0
  %501 = vmatprep.subr.bf16.mxu0 0
  %502 = vmatpush1.bf16.xpose.msra.mxu0 0
  %503 = vmatprep.subr.bf16.mxu0 0
  %504 = vmatpush1.bf16.xpose.msra.mxu0 0
  %505 = vmatprep.subr.bf16.mxu0 0
  %506 = vmatpush1.bf16.xpose.msra.mxu0 0
  %507 = vmatprep.subr.bf16.mxu0 0
  %508 = vmatpush1.bf16.xpose.msra.mxu0 0
  %509 = vmatprep.subr.bf16.mxu0 0
  %510 = vmatpush1.bf16.xpose.msra.mxu0 0
  %511 = vmatprep.subr.bf16.mxu0 0
  %512 = vmatpush1.bf16.xpose.msra.mxu0 0
  %513 = vmatprep.subr.bf16.mxu0 0
  %514 = vmatpush1.bf16.xpose.msra.mxu0 %v497
  %515 = vmatprep.subr.bf16.mxu0 0
  %516 = vmatpush2.bf16.xpose.msra.mxu0 0
  %517 = vmatprep.subr.bf16.mxu0 0
  %518 = vmatpush2.bf16.xpose.msra.mxu0 0
  %519 = vmatprep.subr.bf16.mxu0 0
  %520 = vmatpush2.bf16.xpose.msra.mxu0 0
  %521 = vmatprep.subr.bf16.mxu0 0
  %522 = vmatpush2.bf16.xpose.msra.mxu0 0
  %523 = vmatprep.subr.bf16.mxu0 0
  %524 = vmatpush2.bf16.xpose.msra.mxu0 0
  %525 = vmatprep.subr.bf16.mxu0 0
  %526 = vmatpush2.bf16.xpose.msra.mxu0 0
  %527 = vmatprep.subr.bf16.mxu0 0
  %528 = vmatpush2.bf16.xpose.msra.mxu0 0
  %529 = vmatprep.subr.bf16.mxu0 0
  %530 = vmatpush2.bf16.xpose.msra.mxu0 0
  %531 = vmatprep.mubr.bf16.mxu0 0
  %532 = vmatmul.mubr.bf16.gmra.mxu0 %v494
  %v533 = vpop.f32.mrf.mxu0
  %v534 = vadd.f32 0.0, %v533
  %v535 = vpop.f32.mrf.mxu0
  %v536 = vpop.f32.mrf.mxu0
  %v537 = vpop.f32.mrf.mxu0
  %538 = vdwg.mxu0
  %540 = vrot.lane.b32.xlu0 %v46, 120
  %v541 = vpop.permute.xlu0 %540
  %v543 = vsel %vm51, %v46, 0
  %v546 = vsel %vm51, %v541, 0
  %548 = vmatprep.subr.bf16.mxu0 0
  %549 = vmatpush1.bf16.xpose.msra.mxu0 0
  %550 = vmatprep.subr.bf16.mxu0 0
  %551 = vmatpush1.bf16.xpose.msra.mxu0 0
  %552 = vmatprep.subr.bf16.mxu0 0
  %553 = vmatpush1.bf16.xpose.msra.mxu0 0
  %554 = vmatprep.subr.bf16.mxu0 0
  %555 = vmatpush1.bf16.xpose.msra.mxu0 0
  %556 = vmatprep.subr.bf16.mxu0 0
  %557 = vmatpush1.bf16.xpose.msra.mxu0 0
  %558 = vmatprep.subr.bf16.mxu0 0
  %559 = vmatpush1.bf16.xpose.msra.mxu0 0
  %560 = vmatprep.subr.bf16.mxu0 0
  %561 = vmatpush1.bf16.xpose.msra.mxu0 0
  %562 = vmatprep.subr.bf16.mxu0 0
  %563 = vmatpush1.bf16.xpose.msra.mxu0 %v546
  %564 = vmatprep.subr.bf16.mxu0 0
  %565 = vmatpush2.bf16.xpose.msra.mxu0 0
  %566 = vmatprep.subr.bf16.mxu0 0
  %567 = vmatpush2.bf16.xpose.msra.mxu0 0
  %568 = vmatprep.subr.bf16.mxu0 0
  %569 = vmatpush2.bf16.xpose.msra.mxu0 0
  %570 = vmatprep.subr.bf16.mxu0 0
  %571 = vmatpush2.bf16.xpose.msra.mxu0 0
  %572 = vmatprep.subr.bf16.mxu0 0
  %573 = vmatpush2.bf16.xpose.msra.mxu0 0
  %574 = vmatprep.subr.bf16.mxu0 0
  %575 = vmatpush2.bf16.xpose.msra.mxu0 0
  %576 = vmatprep.subr.bf16.mxu0 0
  %577 = vmatpush2.bf16.xpose.msra.mxu0 0
  %578 = vmatprep.subr.bf16.mxu0 0
  %579 = vmatpush2.bf16.xpose.msra.mxu0 0
  %580 = vmatprep.mubr.bf16.mxu0 0
  %581 = vmatmul.mubr.bf16.gmra.mxu0 %v543
  %v582 = vpop.f32.mrf.mxu0
  %v583 = vadd.f32 0.0, %v582
  %v584 = vpop.f32.mrf.mxu0
  %v585 = vpop.f32.mrf.mxu0
  %v586 = vpop.f32.mrf.mxu0
  %587 = vdwg.mxu0
  %589 = vrot.lane.b32.xlu0 %v47, 120
  %v590 = vpop.permute.xlu0 %589
  %v592 = vsel %vm51, %v47, 0
  %v595 = vsel %vm51, %v590, 0
  %597 = vmatprep.subr.bf16.mxu0 0
  %598 = vmatpush1.bf16.xpose.msra.mxu0 0
  %599 = vmatprep.subr.bf16.mxu0 0
  %600 = vmatpush1.bf16.xpose.msra.mxu0 0
  %601 = vmatprep.subr.bf16.mxu0 0
  %602 = vmatpush1.bf16.xpose.msra.mxu0 0
  %603 = vmatprep.subr.bf16.mxu0 0
  %604 = vmatpush1.bf16.xpose.msra.mxu0 0
  %605 = vmatprep.subr.bf16.mxu0 0
  %606 = vmatpush1.bf16.xpose.msra.mxu0 0
  %607 = vmatprep.subr.bf16.mxu0 0
  %608 = vmatpush1.bf16.xpose.msra.mxu0 0
  %609 = vmatprep.subr.bf16.mxu0 0
  %610 = vmatpush1.bf16.xpose.msra.mxu0 0
  %611 = vmatprep.subr.bf16.mxu0 0
  %612 = vmatpush1.bf16.xpose.msra.mxu0 %v595
  %613 = vmatprep.subr.bf16.mxu0 0
  %614 = vmatpush2.bf16.xpose.msra.mxu0 0
  %615 = vmatprep.subr.bf16.mxu0 0
  %616 = vmatpush2.bf16.xpose.msra.mxu0 0
  %617 = vmatprep.subr.bf16.mxu0 0
  %618 = vmatpush2.bf16.xpose.msra.mxu0 0
  %619 = vmatprep.subr.bf16.mxu0 0
  %620 = vmatpush2.bf16.xpose.msra.mxu0 0
  %621 = vmatprep.subr.bf16.mxu0 0
  %622 = vmatpush2.bf16.xpose.msra.mxu0 0
  %623 = vmatprep.subr.bf16.mxu0 0
  %624 = vmatpush2.bf16.xpose.msra.mxu0 0
  %625 = vmatprep.subr.bf16.mxu0 0
  %626 = vmatpush2.bf16.xpose.msra.mxu0 0
  %627 = vmatprep.subr.bf16.mxu0 0
  %628 = vmatpush2.bf16.xpose.msra.mxu0 0
  %629 = vmatprep.mubr.bf16.mxu0 0
  %630 = vmatmul.mubr.bf16.gmra.mxu0 %v592
  %v631 = vpop.f32.mrf.mxu0
  %v632 = vadd.f32 0.0, %v631
  %v633 = vpop.f32.mrf.mxu0
  %v634 = vpop.f32.mrf.mxu0
  %v635 = vpop.f32.mrf.mxu0
  %636 = vdwg.mxu0
  %v637 = vmul.f32 %v93, 0.5
  %v638 = vmul.f32 %v142, 0.5
  %v639 = vmul.f32 %v191, 0.5
  %v640 = vmul.f32 %v240, 0.5
  %v641 = vmul.f32 %v289, 0.5
  %v642 = vmul.f32 %v338, 0.5
  %v643 = vmul.f32 %v387, 0.5
  %v644 = vmul.f32 %v436, 0.5
  %v645 = vmul.f32 %v485, 0.5
  %v646 = vmul.f32 %v534, 0.5
  %v647 = vmul.f32 %v583, 0.5
  %v648 = vmul.f32 %v632, 0.5
  %v661 = vlaneseq
  %v662 = vshrl.u32 %v661, 7
  %v663 = vsub.s32 0, %v662
  %v664 = vrot.slane %v24, %v663
  %v665 = vlaneseq
  %v666 = vshrl.u32 %v665, 7
  %v667 = vsub.s32 0, %v666
  %v668 = vrot.slane %v25, %v667
  %v669 = vlaneseq
  %v670 = vshrl.u32 %v669, 7
  %v671 = vsub.s32 0, %v670
  %v672 = vrot.slane %v26, %v671
  %v673 = vlaneseq
  %v674 = vshrl.u32 %v673, 7
  %v675 = vsub.s32 0, %v674
  %v676 = vrot.slane %v27, %v675
  %v677 = vlaneseq
  %v678 = vshrl.u32 %v677, 7
  %v679 = vsub.s32 0, %v678
  %v680 = vrot.slane %v28, %v679
  %v681 = vlaneseq
  %v682 = vshrl.u32 %v681, 7
  %v683 = vsub.s32 0, %v682
  %v684 = vrot.slane %v29, %v683
  %v685 = vlaneseq
  %v686 = vshrl.u32 %v685, 7
  %v687 = vsub.s32 0, %v686
  %v688 = vrot.slane %v30, %v687
  %v689 = vlaneseq
  %v690 = vshrl.u32 %v689, 7
  %v691 = vsub.s32 0, %v690
  %v692 = vrot.slane %v31, %v691
  %v693 = vlaneseq
  %v694 = vshrl.u32 %v693, 7
  %v695 = vsub.s32 0, %v694
  %v696 = vrot.slane %v32, %v695
  %v697 = vlaneseq
  %v698 = vshrl.u32 %v697, 7
  %v699 = vsub.s32 0, %v698
  %v700 = vrot.slane %v33, %v699
  %v701 = vlaneseq
  %v702 = vshrl.u32 %v701, 7
  %v703 = vsub.s32 0, %v702
  %v704 = vrot.slane %v34, %v703
  %v705 = vlaneseq
  %v706 = vshrl.u32 %v705, 7
  %v707 = vsub.s32 0, %v706
  %v708 = vrot.slane %v35, %v707
  %v721 = vadd.f32 %v637, %v664
  %v722 = vadd.f32 %v638, %v668
  %v723 = vadd.f32 %v639, %v672
  %v724 = vadd.f32 %v640, %v676
  %v725 = vadd.f32 %v641, %v680
  %v726 = vadd.f32 %v642, %v684
  %v727 = vadd.f32 %v643, %v688
  %v728 = vadd.f32 %v644, %v692
  %v729 = vadd.f32 %v645, %v696
  %v730 = vadd.f32 %v646, %v700
  %v731 = vadd.f32 %v647, %v704
  %v732 = vadd.f32 %v648, %v708
  %vm733 = vcmask 18432
  %v734 = vsel %vm733, %v721, -inf
  %735 = vmax.xlane.f32.xlu0 %v734
  %v736 = vpop.xlane.xlu0 %735
  %v737 = vsel %vm733, %v722, -inf
  %738 = vmax.xlane.f32.xlu0 %v737
  %v739 = vpop.xlane.xlu0 %738
  %v740 = vsel %vm733, %v723, -inf
  %741 = vmax.xlane.f32.xlu0 %v740
  %v742 = vpop.xlane.xlu0 %741
  %v743 = vsel %vm733, %v724, -inf
  %744 = vmax.xlane.f32.xlu0 %v743
  %v745 = vpop.xlane.xlu0 %744
  %v746 = vsel %vm733, %v725, -inf
  %747 = vmax.xlane.f32.xlu0 %v746
  %v748 = vpop.xlane.xlu0 %747
  %v749 = vsel %vm733, %v726, -inf
  %750 = vmax.xlane.f32.xlu0 %v749
  %v751 = vpop.xlane.xlu0 %750
  %v752 = vsel %vm733, %v727, -inf
  %753 = vmax.xlane.f32.xlu0 %v752
  %v754 = vpop.xlane.xlu0 %753
  %v755 = vsel %vm733, %v728, -inf
  %756 = vmax.xlane.f32.xlu0 %v755
  %v757 = vpop.xlane.xlu0 %756
  %v758 = vsel %vm733, %v729, -inf
  %759 = vmax.xlane.f32.xlu0 %v758
  %v760 = vpop.xlane.xlu0 %759
  %v761 = vsel %vm733, %v730, -inf
  %762 = vmax.xlane.f32.xlu0 %v761
  %v763 = vpop.xlane.xlu0 %762
  %v764 = vsel %vm733, %v731, -inf
  %765 = vmax.xlane.f32.xlu0 %v764
  %v766 = vpop.xlane.xlu0 %765
  %v767 = vsel %vm733, %v732, -inf
  %768 = vmax.xlane.f32.xlu0 %v767
  %v769 = vpop.xlane.xlu0 %768
  %v770 = vsub.f32 %v721, %v736
  %v771 = vsub.f32 %v722, %v739
  %v772 = vsub.f32 %v723, %v742
  %v773 = vsub.f32 %v724, %v745
  %v774 = vsub.f32 %v725, %v748
  %v775 = vsub.f32 %v726, %v751
  %v776 = vsub.f32 %v727, %v754
  %v777 = vsub.f32 %v728, %v757
  %v778 = vsub.f32 %v729, %v760
  %v779 = vsub.f32 %v730, %v763
  %v780 = vsub.f32 %v731, %v766
  %v781 = vsub.f32 %v732, %v769
  %v782 = vmul.f32 %v770, 1.442695
  %v783 = vpow.pop %v782
  %v784 = vmul.f32 %v771, 1.442695
  %v785 = vpow.pop %v784
  %v786 = vmul.f32 %v772, 1.442695
  %v787 = vpow.pop %v786
  %v788 = vmul.f32 %v773, 1.442695
  %v789 = vpow.pop %v788
  %v790 = vmul.f32 %v774, 1.442695
  %v791 = vpow.pop %v790
  %v792 = vmul.f32 %v775, 1.442695
  %v793 = vpow.pop %v792
  %v794 = vmul.f32 %v776, 1.442695
  %v795 = vpow.pop %v794
  %v796 = vmul.f32 %v777, 1.442695
  %v797 = vpow.pop %v796
  %v798 = vmul.f32 %v778, 1.442695
  %v799 = vpow.pop %v798
  %v800 = vmul.f32 %v779, 1.442695
  %v801 = vpow.pop %v800
  %v802 = vmul.f32 %v780, 1.442695
  %v803 = vpow.pop %v802
  %v804 = vmul.f32 %v781, 1.442695
  %v805 = vpow.pop %v804
  %v806 = vsel %vm733, %v783, 0.0
  %807 = vadd.xlane.f32.xlu0 %v806
  %v808 = vpop.xlane.xlu0 %807
  %v809 = vsel %vm733, %v785, 0.0
  %810 = vadd.xlane.f32.xlu0 %v809
  %v811 = vpop.xlane.xlu0 %810
  %v812 = vsel %vm733, %v787, 0.0
  %813 = vadd.xlane.f32.xlu0 %v812
  %v814 = vpop.xlane.xlu0 %813
  %v815 = vsel %vm733, %v789, 0.0
  %816 = vadd.xlane.f32.xlu0 %v815
  %v817 = vpop.xlane.xlu0 %816
  %v818 = vsel %vm733, %v791, 0.0
  %819 = vadd.xlane.f32.xlu0 %v818
  %v820 = vpop.xlane.xlu0 %819
  %v821 = vsel %vm733, %v793, 0.0
  %822 = vadd.xlane.f32.xlu0 %v821
  %v823 = vpop.xlane.xlu0 %822
  %v824 = vsel %vm733, %v795, 0.0
  %825 = vadd.xlane.f32.xlu0 %v824
  %v826 = vpop.xlane.xlu0 %825
  %v827 = vsel %vm733, %v797, 0.0
  %828 = vadd.xlane.f32.xlu0 %v827
  %v829 = vpop.xlane.xlu0 %828
  %v830 = vsel %vm733, %v799, 0.0
  %831 = vadd.xlane.f32.xlu0 %v830
  %v832 = vpop.xlane.xlu0 %831
  %v833 = vsel %vm733, %v801, 0.0
  %834 = vadd.xlane.f32.xlu0 %v833
  %v835 = vpop.xlane.xlu0 %834
  %v836 = vsel %vm733, %v803, 0.0
  %837 = vadd.xlane.f32.xlu0 %v836
  %v838 = vpop.xlane.xlu0 %837
  %v839 = vsel %vm733, %v805, 0.0
  %840 = vadd.xlane.f32.xlu0 %v839
  %v841 = vpop.xlane.xlu0 %840
  %v842 = vrcp.pop %v808
  %v843 = vmul.f32 %v783, %v842
  %v844 = vrcp.pop %v811
  %v845 = vmul.f32 %v785, %v844
  %v846 = vrcp.pop %v814
  %v847 = vmul.f32 %v787, %v846
  %v848 = vrcp.pop %v817
  %v849 = vmul.f32 %v789, %v848
  %v850 = vrcp.pop %v820
  %v851 = vmul.f32 %v791, %v850
  %v852 = vrcp.pop %v823
  %v853 = vmul.f32 %v793, %v852
  %v854 = vrcp.pop %v826
  %v855 = vmul.f32 %v795, %v854
  %v856 = vrcp.pop %v829
  %v857 = vmul.f32 %v797, %v856
  %v858 = vrcp.pop %v832
  %v859 = vmul.f32 %v799, %v858
  %v860 = vrcp.pop %v835
  %v861 = vmul.f32 %v801, %v860
  %v862 = vrcp.pop %v838
  %v863 = vmul.f32 %v803, %v862
  %v864 = vrcp.pop %v841
  %v865 = vmul.f32 %v805, %v864
  %v866 = vpack.c.bf16 %v843, %v843
  %v867 = vpack.c.bf16 %v845, %v845
  %v868 = vpack.c.bf16 %v847, %v847
  %v869 = vpack.c.bf16 %v849, %v849
  %v870 = vpack.c.bf16 %v851, %v851
  %v871 = vpack.c.bf16 %v853, %v853
  %v872 = vpack.c.bf16 %v855, %v855
  %v873 = vpack.c.bf16 %v857, %v857
  %v874 = vpack.c.bf16 %v859, %v859
  %v875 = vpack.c.bf16 %v861, %v861
  %v876 = vpack.c.bf16 %v863, %v863
  %v877 = vpack.c.bf16 %v865, %v865
  %878 = vrot.lane.b32.xlu0 %v36, 112
  %v879 = vpop.permute.xlu0 %878
  %vm880 = vcmask 23552
  %v882 = vsel %vm880, %v866, 0
  %vm884 = vcmask 1040384
  %vm885 = vcmask 1041408
  %v886 = vsel %vm884, 4294967295, 65535
  %v887 = vsel %vm885, %v886, 0
  %v889 = vand.u32 %v879, %v887
  %891 = vmatprep.subr.bf16.mxu0 0
  %892 = vmatpush1.bf16.msra.mxu0 0
  %893 = vmatprep.subr.bf16.mxu0 0
  %894 = vmatpush1.bf16.msra.mxu0 0
  %895 = vmatprep.subr.bf16.mxu0 0
  %896 = vmatpush1.bf16.msra.mxu0 0
  %897 = vmatprep.subr.bf16.mxu0 0
  %898 = vmatpush1.bf16.msra.mxu0 0
  %899 = vmatprep.subr.bf16.mxu0 0
  %900 = vmatpush1.bf16.msra.mxu0 0
  %901 = vmatprep.subr.bf16.mxu0 0
  %902 = vmatpush1.bf16.msra.mxu0 0
  %903 = vmatprep.subr.bf16.mxu0 0
  %904 = vmatpush1.bf16.msra.mxu0 0
  %905 = vmatprep.subr.bf16.mxu0 0
  %906 = vmatpush1.bf16.msra.mxu0 %v889
  %907 = vmatprep.subr.bf16.mxu0 0
  %908 = vmatpush2.bf16.msra.mxu0 0
  %909 = vmatprep.subr.bf16.mxu0 0
  %910 = vmatpush2.bf16.msra.mxu0 0
  %911 = vmatprep.subr.bf16.mxu0 0
  %912 = vmatpush2.bf16.msra.mxu0 0
  %913 = vmatprep.subr.bf16.mxu0 0
  %914 = vmatpush2.bf16.msra.mxu0 0
  %915 = vmatprep.subr.bf16.mxu0 0
  %916 = vmatpush2.bf16.msra.mxu0 0
  %917 = vmatprep.subr.bf16.mxu0 0
  %918 = vmatpush2.bf16.msra.mxu0 0
  %919 = vmatprep.subr.bf16.mxu0 0
  %920 = vmatpush2.bf16.msra.mxu0 0
  %921 = vmatprep.subr.bf16.mxu0 0
  %922 = vmatpush2.bf16.msra.mxu0 0
  %923 = vmatprep.mubr.bf16.mxu0 0
  %924 = vmatmul.mubr.bf16.gmra.mxu0 %v882
  %v925 = vpop.f32.mrf.mxu0
  %v926 = vadd.f32 0.0, %v925
  %v927 = vpop.f32.mrf.mxu0
  %v928 = vpop.f32.mrf.mxu0
  %v929 = vpop.f32.mrf.mxu0
  %930 = vdwg.mxu0
  %931 = vrot.lane.b32.xlu0 %v37, 112
  %v932 = vpop.permute.xlu0 %931
  %v934 = vsel %vm880, %v867, 0
  %v937 = vand.u32 %v932, %v887
  %939 = vmatprep.subr.bf16.mxu0 0
  %940 = vmatpush1.bf16.msra.mxu0 0
  %941 = vmatprep.subr.bf16.mxu0 0
  %942 = vmatpush1.bf16.msra.mxu0 0
  %943 = vmatprep.subr.bf16.mxu0 0
  %944 = vmatpush1.bf16.msra.mxu0 0
  %945 = vmatprep.subr.bf16.mxu0 0
  %946 = vmatpush1.bf16.msra.mxu0 0
  %947 = vmatprep.subr.bf16.mxu0 0
  %948 = vmatpush1.bf16.msra.mxu0 0
  %949 = vmatprep.subr.bf16.mxu0 0
  %950 = vmatpush1.bf16.msra.mxu0 0
  %951 = vmatprep.subr.bf16.mxu0 0
  %952 = vmatpush1.bf16.msra.mxu0 0
  %953 = vmatprep.subr.bf16.mxu0 0
  %954 = vmatpush1.bf16.msra.mxu0 %v937
  %955 = vmatprep.subr.bf16.mxu0 0
  %956 = vmatpush2.bf16.msra.mxu0 0
  %957 = vmatprep.subr.bf16.mxu0 0
  %958 = vmatpush2.bf16.msra.mxu0 0
  %959 = vmatprep.subr.bf16.mxu0 0
  %960 = vmatpush2.bf16.msra.mxu0 0
  %961 = vmatprep.subr.bf16.mxu0 0
  %962 = vmatpush2.bf16.msra.mxu0 0
  %963 = vmatprep.subr.bf16.mxu0 0
  %964 = vmatpush2.bf16.msra.mxu0 0
  %965 = vmatprep.subr.bf16.mxu0 0
  %966 = vmatpush2.bf16.msra.mxu0 0
  %967 = vmatprep.subr.bf16.mxu0 0
  %968 = vmatpush2.bf16.msra.mxu0 0
  %969 = vmatprep.subr.bf16.mxu0 0
  %970 = vmatpush2.bf16.msra.mxu0 0
  %971 = vmatprep.mubr.bf16.mxu0 0
  %972 = vmatmul.mubr.bf16.gmra.mxu0 %v934
  %v973 = vpop.f32.mrf.mxu0
  %v974 = vadd.f32 0.0, %v973
  %v975 = vpop.f32.mrf.mxu0
  %v976 = vpop.f32.mrf.mxu0
  %v977 = vpop.f32.mrf.mxu0
  %978 = vdwg.mxu0
  %979 = vrot.lane.b32.xlu0 %v38, 112
  %v980 = vpop.permute.xlu0 %979
  %v982 = vsel %vm880, %v868, 0
  %v985 = vand.u32 %v980, %v887
  %987 = vmatprep.subr.bf16.mxu0 0
  %988 = vmatpush1.bf16.msra.mxu0 0
  %989 = vmatprep.subr.bf16.mxu0 0
  %990 = vmatpush1.bf16.msra.mxu0 0
  %991 = vmatprep.subr.bf16.mxu0 0
  %992 = vmatpush1.bf16.msra.mxu0 0
  %993 = vmatprep.subr.bf16.mxu0 0
  %994 = vmatpush1.bf16.msra.mxu0 0
  %995 = vmatprep.subr.bf16.mxu0 0
  %996 = vmatpush1.bf16.msra.mxu0 0
  %997 = vmatprep.subr.bf16.mxu0 0
  %998 = vmatpush1.bf16.msra.mxu0 0
  %999 = vmatprep.subr.bf16.mxu0 0
  %1000 = vmatpush1.bf16.msra.mxu0 0
  %1001 = vmatprep.subr.bf16.mxu0 0
  %1002 = vmatpush1.bf16.msra.mxu0 %v985
  %1003 = vmatprep.subr.bf16.mxu0 0
  %1004 = vmatpush2.bf16.msra.mxu0 0
  %1005 = vmatprep.subr.bf16.mxu0 0
  %1006 = vmatpush2.bf16.msra.mxu0 0
  %1007 = vmatprep.subr.bf16.mxu0 0
  %1008 = vmatpush2.bf16.msra.mxu0 0
  %1009 = vmatprep.subr.bf16.mxu0 0
  %1010 = vmatpush2.bf16.msra.mxu0 0
  %1011 = vmatprep.subr.bf16.mxu0 0
  %1012 = vmatpush2.bf16.msra.mxu0 0
  %1013 = vmatprep.subr.bf16.mxu0 0
  %1014 = vmatpush2.bf16.msra.mxu0 0
  %1015 = vmatprep.subr.bf16.mxu0 0
  %1016 = vmatpush2.bf16.msra.mxu0 0
  %1017 = vmatprep.subr.bf16.mxu0 0
  %1018 = vmatpush2.bf16.msra.mxu0 0
  %1019 = vmatprep.mubr.bf16.mxu0 0
  %1020 = vmatmul.mubr.bf16.gmra.mxu0 %v982
  %v1021 = vpop.f32.mrf.mxu0
  %v1022 = vadd.f32 0.0, %v1021
  %v1023 = vpop.f32.mrf.mxu0
  %v1024 = vpop.f32.mrf.mxu0
  %v1025 = vpop.f32.mrf.mxu0
  %1026 = vdwg.mxu0
  %1027 = vrot.lane.b32.xlu0 %v39, 112
  %v1028 = vpop.permute.xlu0 %1027
  %v1030 = vsel %vm880, %v869, 0
  %v1033 = vand.u32 %v1028, %v887
  %1035 = vmatprep.subr.bf16.mxu0 0
  %1036 = vmatpush1.bf16.msra.mxu0 0
  %1037 = vmatprep.subr.bf16.mxu0 0
  %1038 = vmatpush1.bf16.msra.mxu0 0
  %1039 = vmatprep.subr.bf16.mxu0 0
  %1040 = vmatpush1.bf16.msra.mxu0 0
  %1041 = vmatprep.subr.bf16.mxu0 0
  %1042 = vmatpush1.bf16.msra.mxu0 0
  %1043 = vmatprep.subr.bf16.mxu0 0
  %1044 = vmatpush1.bf16.msra.mxu0 0
  %1045 = vmatprep.subr.bf16.mxu0 0
  %1046 = vmatpush1.bf16.msra.mxu0 0
  %1047 = vmatprep.subr.bf16.mxu0 0
  %1048 = vmatpush1.bf16.msra.mxu0 0
  %1049 = vmatprep.subr.bf16.mxu0 0
  %1050 = vmatpush1.bf16.msra.mxu0 %v1033
  %1051 = vmatprep.subr.bf16.mxu0 0
  %1052 = vmatpush2.bf16.msra.mxu0 0
  %1053 = vmatprep.subr.bf16.mxu0 0
  %1054 = vmatpush2.bf16.msra.mxu0 0
  %1055 = vmatprep.subr.bf16.mxu0 0
  %1056 = vmatpush2.bf16.msra.mxu0 0
  %1057 = vmatprep.subr.bf16.mxu0 0
  %1058 = vmatpush2.bf16.msra.mxu0 0
  %1059 = vmatprep.subr.bf16.mxu0 0
  %1060 = vmatpush2.bf16.msra.mxu0 0
  %1061 = vmatprep.subr.bf16.mxu0 0
  %1062 = vmatpush2.bf16.msra.mxu0 0
  %1063 = vmatprep.subr.bf16.mxu0 0
  %1064 = vmatpush2.bf16.msra.mxu0 0
  %1065 = vmatprep.subr.bf16.mxu0 0
  %1066 = vmatpush2.bf16.msra.mxu0 0
  %1067 = vmatprep.mubr.bf16.mxu0 0
  %1068 = vmatmul.mubr.bf16.gmra.mxu0 %v1030
  %v1069 = vpop.f32.mrf.mxu0
  %v1070 = vadd.f32 0.0, %v1069
  %v1071 = vpop.f32.mrf.mxu0
  %v1072 = vpop.f32.mrf.mxu0
  %v1073 = vpop.f32.mrf.mxu0
  %1074 = vdwg.mxu0
  %1075 = vrot.lane.b32.xlu0 %v40, 112
  %v1076 = vpop.permute.xlu0 %1075
  %v1078 = vsel %vm880, %v870, 0
  %v1081 = vand.u32 %v1076, %v887
  %1083 = vmatprep.subr.bf16.mxu0 0
  %1084 = vmatpush1.bf16.msra.mxu0 0
  %1085 = vmatprep.subr.bf16.mxu0 0
  %1086 = vmatpush1.bf16.msra.mxu0 0
  %1087 = vmatprep.subr.bf16.mxu0 0
  %1088 = vmatpush1.bf16.msra.mxu0 0
  %1089 = vmatprep.subr.bf16.mxu0 0
  %1090 = vmatpush1.bf16.msra.mxu0 0
  %1091 = vmatprep.subr.bf16.mxu0 0
  %1092 = vmatpush1.bf16.msra.mxu0 0
  %1093 = vmatprep.subr.bf16.mxu0 0
  %1094 = vmatpush1.bf16.msra.mxu0 0
  %1095 = vmatprep.subr.bf16.mxu0 0
  %1096 = vmatpush1.bf16.msra.mxu0 0
  %1097 = vmatprep.subr.bf16.mxu0 0
  %1098 = vmatpush1.bf16.msra.mxu0 %v1081
  %1099 = vmatprep.subr.bf16.mxu0 0
  %1100 = vmatpush2.bf16.msra.mxu0 0
  %1101 = vmatprep.subr.bf16.mxu0 0
  %1102 = vmatpush2.bf16.msra.mxu0 0
  %1103 = vmatprep.subr.bf16.mxu0 0
  %1104 = vmatpush2.bf16.msra.mxu0 0
  %1105 = vmatprep.subr.bf16.mxu0 0
  %1106 = vmatpush2.bf16.msra.mxu0 0
  %1107 = vmatprep.subr.bf16.mxu0 0
  %1108 = vmatpush2.bf16.msra.mxu0 0
  %1109 = vmatprep.subr.bf16.mxu0 0
  %1110 = vmatpush2.bf16.msra.mxu0 0
  %1111 = vmatprep.subr.bf16.mxu0 0
  %1112 = vmatpush2.bf16.msra.mxu0 0
  %1113 = vmatprep.subr.bf16.mxu0 0
  %1114 = vmatpush2.bf16.msra.mxu0 0
  %1115 = vmatprep.mubr.bf16.mxu0 0
  %1116 = vmatmul.mubr.bf16.gmra.mxu0 %v1078
  %v1117 = vpop.f32.mrf.mxu0
  %v1118 = vadd.f32 0.0, %v1117
  %v1119 = vpop.f32.mrf.mxu0
  %v1120 = vpop.f32.mrf.mxu0
  %v1121 = vpop.f32.mrf.mxu0
  %1122 = vdwg.mxu0
  %1123 = vrot.lane.b32.xlu0 %v41, 112
  %v1124 = vpop.permute.xlu0 %1123
  %v1126 = vsel %vm880, %v871, 0
  %v1129 = vand.u32 %v1124, %v887
  %1131 = vmatprep.subr.bf16.mxu0 0
  %1132 = vmatpush1.bf16.msra.mxu0 0
  %1133 = vmatprep.subr.bf16.mxu0 0
  %1134 = vmatpush1.bf16.msra.mxu0 0
  %1135 = vmatprep.subr.bf16.mxu0 0
  %1136 = vmatpush1.bf16.msra.mxu0 0
  %1137 = vmatprep.subr.bf16.mxu0 0
  %1138 = vmatpush1.bf16.msra.mxu0 0
  %1139 = vmatprep.subr.bf16.mxu0 0
  %1140 = vmatpush1.bf16.msra.mxu0 0
  %1141 = vmatprep.subr.bf16.mxu0 0
  %1142 = vmatpush1.bf16.msra.mxu0 0
  %1143 = vmatprep.subr.bf16.mxu0 0
  %1144 = vmatpush1.bf16.msra.mxu0 0
  %1145 = vmatprep.subr.bf16.mxu0 0
  %1146 = vmatpush1.bf16.msra.mxu0 %v1129
  %1147 = vmatprep.subr.bf16.mxu0 0
  %1148 = vmatpush2.bf16.msra.mxu0 0
  %1149 = vmatprep.subr.bf16.mxu0 0
  %1150 = vmatpush2.bf16.msra.mxu0 0
  %1151 = vmatprep.subr.bf16.mxu0 0
  %1152 = vmatpush2.bf16.msra.mxu0 0
  %1153 = vmatprep.subr.bf16.mxu0 0
  %1154 = vmatpush2.bf16.msra.mxu0 0
  %1155 = vmatprep.subr.bf16.mxu0 0
  %1156 = vmatpush2.bf16.msra.mxu0 0
  %1157 = vmatprep.subr.bf16.mxu0 0
  %1158 = vmatpush2.bf16.msra.mxu0 0
  %1159 = vmatprep.subr.bf16.mxu0 0
  %1160 = vmatpush2.bf16.msra.mxu0 0
  %1161 = vmatprep.subr.bf16.mxu0 0
  %1162 = vmatpush2.bf16.msra.mxu0 0
  %1163 = vmatprep.mubr.bf16.mxu0 0
  %1164 = vmatmul.mubr.bf16.gmra.mxu0 %v1126
  %v1165 = vpop.f32.mrf.mxu0
  %v1166 = vadd.f32 0.0, %v1165
  %v1167 = vpop.f32.mrf.mxu0
  %v1168 = vpop.f32.mrf.mxu0
  %v1169 = vpop.f32.mrf.mxu0
  %1170 = vdwg.mxu0
  %1171 = vrot.lane.b32.xlu0 %v42, 112
  %v1172 = vpop.permute.xlu0 %1171
  %v1174 = vsel %vm880, %v872, 0
  %v1177 = vand.u32 %v1172, %v887
  %1179 = vmatprep.subr.bf16.mxu0 0
  %1180 = vmatpush1.bf16.msra.mxu0 0
  %1181 = vmatprep.subr.bf16.mxu0 0
  %1182 = vmatpush1.bf16.msra.mxu0 0
  %1183 = vmatprep.subr.bf16.mxu0 0
  %1184 = vmatpush1.bf16.msra.mxu0 0
  %1185 = vmatprep.subr.bf16.mxu0 0
  %1186 = vmatpush1.bf16.msra.mxu0 0
  %1187 = vmatprep.subr.bf16.mxu0 0
  %1188 = vmatpush1.bf16.msra.mxu0 0
  %1189 = vmatprep.subr.bf16.mxu0 0
  %1190 = vmatpush1.bf16.msra.mxu0 0
  %1191 = vmatprep.subr.bf16.mxu0 0
  %1192 = vmatpush1.bf16.msra.mxu0 0
  %1193 = vmatprep.subr.bf16.mxu0 0
  %1194 = vmatpush1.bf16.msra.mxu0 %v1177
  %1195 = vmatprep.subr.bf16.mxu0 0
  %1196 = vmatpush2.bf16.msra.mxu0 0
  %1197 = vmatprep.subr.bf16.mxu0 0
  %1198 = vmatpush2.bf16.msra.mxu0 0
  %1199 = vmatprep.subr.bf16.mxu0 0
  %1200 = vmatpush2.bf16.msra.mxu0 0
  %1201 = vmatprep.subr.bf16.mxu0 0
  %1202 = vmatpush2.bf16.msra.mxu0 0
  %1203 = vmatprep.subr.bf16.mxu0 0
  %1204 = vmatpush2.bf16.msra.mxu0 0
  %1205 = vmatprep.subr.bf16.mxu0 0
  %1206 = vmatpush2.bf16.msra.mxu0 0
  %1207 = vmatprep.subr.bf16.mxu0 0
  %1208 = vmatpush2.bf16.msra.mxu0 0
  %1209 = vmatprep.subr.bf16.mxu0 0
  %1210 = vmatpush2.bf16.msra.mxu0 0
  %1211 = vmatprep.mubr.bf16.mxu0 0
  %1212 = vmatmul.mubr.bf16.gmra.mxu0 %v1174
  %v1213 = vpop.f32.mrf.mxu0
  %v1214 = vadd.f32 0.0, %v1213
  %v1215 = vpop.f32.mrf.mxu0
  %v1216 = vpop.f32.mrf.mxu0
  %v1217 = vpop.f32.mrf.mxu0
  %1218 = vdwg.mxu0
  %1219 = vrot.lane.b32.xlu0 %v43, 112
  %v1220 = vpop.permute.xlu0 %1219
  %v1222 = vsel %vm880, %v873, 0
  %v1225 = vand.u32 %v1220, %v887
  %1227 = vmatprep.subr.bf16.mxu0 0
  %1228 = vmatpush1.bf16.msra.mxu0 0
  %1229 = vmatprep.subr.bf16.mxu0 0
  %1230 = vmatpush1.bf16.msra.mxu0 0
  %1231 = vmatprep.subr.bf16.mxu0 0
  %1232 = vmatpush1.bf16.msra.mxu0 0
  %1233 = vmatprep.subr.bf16.mxu0 0
  %1234 = vmatpush1.bf16.msra.mxu0 0
  %1235 = vmatprep.subr.bf16.mxu0 0
  %1236 = vmatpush1.bf16.msra.mxu0 0
  %1237 = vmatprep.subr.bf16.mxu0 0
  %1238 = vmatpush1.bf16.msra.mxu0 0
  %1239 = vmatprep.subr.bf16.mxu0 0
  %1240 = vmatpush1.bf16.msra.mxu0 0
  %1241 = vmatprep.subr.bf16.mxu0 0
  %1242 = vmatpush1.bf16.msra.mxu0 %v1225
  %1243 = vmatprep.subr.bf16.mxu0 0
  %1244 = vmatpush2.bf16.msra.mxu0 0
  %1245 = vmatprep.subr.bf16.mxu0 0
  %1246 = vmatpush2.bf16.msra.mxu0 0
  %1247 = vmatprep.subr.bf16.mxu0 0
  %1248 = vmatpush2.bf16.msra.mxu0 0
  %1249 = vmatprep.subr.bf16.mxu0 0
  %1250 = vmatpush2.bf16.msra.mxu0 0
  %1251 = vmatprep.subr.bf16.mxu0 0
  %1252 = vmatpush2.bf16.msra.mxu0 0
  %1253 = vmatprep.subr.bf16.mxu0 0
  %1254 = vmatpush2.bf16.msra.mxu0 0
  %1255 = vmatprep.subr.bf16.mxu0 0
  %1256 = vmatpush2.bf16.msra.mxu0 0
  %1257 = vmatprep.subr.bf16.mxu0 0
  %1258 = vmatpush2.bf16.msra.mxu0 0
  %1259 = vmatprep.mubr.bf16.mxu0 0
  %1260 = vmatmul.mubr.bf16.gmra.mxu0 %v1222
  %v1261 = vpop.f32.mrf.mxu0
  %v1262 = vadd.f32 0.0, %v1261
  %v1263 = vpop.f32.mrf.mxu0
  %v1264 = vpop.f32.mrf.mxu0
  %v1265 = vpop.f32.mrf.mxu0
  %1266 = vdwg.mxu0
  %1267 = vrot.lane.b32.xlu0 %v44, 112
  %v1268 = vpop.permute.xlu0 %1267
  %v1270 = vsel %vm880, %v874, 0
  %v1273 = vand.u32 %v1268, %v887
  %1275 = vmatprep.subr.bf16.mxu0 0
  %1276 = vmatpush1.bf16.msra.mxu0 0
  %1277 = vmatprep.subr.bf16.mxu0 0
  %1278 = vmatpush1.bf16.msra.mxu0 0
  %1279 = vmatprep.subr.bf16.mxu0 0
  %1280 = vmatpush1.bf16.msra.mxu0 0
  %1281 = vmatprep.subr.bf16.mxu0 0
  %1282 = vmatpush1.bf16.msra.mxu0 0
  %1283 = vmatprep.subr.bf16.mxu0 0
  %1284 = vmatpush1.bf16.msra.mxu0 0
  %1285 = vmatprep.subr.bf16.mxu0 0
  %1286 = vmatpush1.bf16.msra.mxu0 0
  %1287 = vmatprep.subr.bf16.mxu0 0
  %1288 = vmatpush1.bf16.msra.mxu0 0
  %1289 = vmatprep.subr.bf16.mxu0 0
  %1290 = vmatpush1.bf16.msra.mxu0 %v1273
  %1291 = vmatprep.subr.bf16.mxu0 0
  %1292 = vmatpush2.bf16.msra.mxu0 0
  %1293 = vmatprep.subr.bf16.mxu0 0
  %1294 = vmatpush2.bf16.msra.mxu0 0
  %1295 = vmatprep.subr.bf16.mxu0 0
  %1296 = vmatpush2.bf16.msra.mxu0 0
  %1297 = vmatprep.subr.bf16.mxu0 0
  %1298 = vmatpush2.bf16.msra.mxu0 0
  %1299 = vmatprep.subr.bf16.mxu0 0
  %1300 = vmatpush2.bf16.msra.mxu0 0
  %1301 = vmatprep.subr.bf16.mxu0 0
  %1302 = vmatpush2.bf16.msra.mxu0 0
  %1303 = vmatprep.subr.bf16.mxu0 0
  %1304 = vmatpush2.bf16.msra.mxu0 0
  %1305 = vmatprep.subr.bf16.mxu0 0
  %1306 = vmatpush2.bf16.msra.mxu0 0
  %1307 = vmatprep.mubr.bf16.mxu0 0
  %1308 = vmatmul.mubr.bf16.gmra.mxu0 %v1270
  %v1309 = vpop.f32.mrf.mxu0
  %v1310 = vadd.f32 0.0, %v1309
  %v1311 = vpop.f32.mrf.mxu0
  %v1312 = vpop.f32.mrf.mxu0
  %v1313 = vpop.f32.mrf.mxu0
  %1314 = vdwg.mxu0
  %1315 = vrot.lane.b32.xlu0 %v45, 112
  %v1316 = vpop.permute.xlu0 %1315
  %v1318 = vsel %vm880, %v875, 0
  %v1321 = vand.u32 %v1316, %v887
  %1323 = vmatprep.subr.bf16.mxu0 0
  %1324 = vmatpush1.bf16.msra.mxu0 0
  %1325 = vmatprep.subr.bf16.mxu0 0
  %1326 = vmatpush1.bf16.msra.mxu0 0
  %1327 = vmatprep.subr.bf16.mxu0 0
  %1328 = vmatpush1.bf16.msra.mxu0 0
  %1329 = vmatprep.subr.bf16.mxu0 0
  %1330 = vmatpush1.bf16.msra.mxu0 0
  %1331 = vmatprep.subr.bf16.mxu0 0
  %1332 = vmatpush1.bf16.msra.mxu0 0
  %1333 = vmatprep.subr.bf16.mxu0 0
  %1334 = vmatpush1.bf16.msra.mxu0 0
  %1335 = vmatprep.subr.bf16.mxu0 0
  %1336 = vmatpush1.bf16.msra.mxu0 0
  %1337 = vmatprep.subr.bf16.mxu0 0
  %1338 = vmatpush1.bf16.msra.mxu0 %v1321
  %1339 = vmatprep.subr.bf16.mxu0 0
  %1340 = vmatpush2.bf16.msra.mxu0 0
  %1341 = vmatprep.subr.bf16.mxu0 0
  %1342 = vmatpush2.bf16.msra.mxu0 0
  %1343 = vmatprep.subr.bf16.mxu0 0
  %1344 = vmatpush2.bf16.msra.mxu0 0
  %1345 = vmatprep.subr.bf16.mxu0 0
  %1346 = vmatpush2.bf16.msra.mxu0 0
  %1347 = vmatprep.subr.bf16.mxu0 0
  %1348 = vmatpush2.bf16.msra.mxu0 0
  %1349 = vmatprep.subr.bf16.mxu0 0
  %1350 = vmatpush2.bf16.msra.mxu0 0
  %1351 = vmatprep.subr.bf16.mxu0 0
  %1352 = vmatpush2.bf16.msra.mxu0 0
  %1353 = vmatprep.subr.bf16.mxu0 0
  %1354 = vmatpush2.bf16.msra.mxu0 0
  %1355 = vmatprep.mubr.bf16.mxu0 0
  %1356 = vmatmul.mubr.bf16.gmra.mxu0 %v1318
  %v1357 = vpop.f32.mrf.mxu0
  %v1358 = vadd.f32 0.0, %v1357
  %v1359 = vpop.f32.mrf.mxu0
  %v1360 = vpop.f32.mrf.mxu0
  %v1361 = vpop.f32.mrf.mxu0
  %1362 = vdwg.mxu0
  %1363 = vrot.lane.b32.xlu0 %v46, 112
  %v1364 = vpop.permute.xlu0 %1363
  %v1366 = vsel %vm880, %v876, 0
  %v1369 = vand.u32 %v1364, %v887
  %1371 = vmatprep.subr.bf16.mxu0 0
  %1372 = vmatpush1.bf16.msra.mxu0 0
  %1373 = vmatprep.subr.bf16.mxu0 0
  %1374 = vmatpush1.bf16.msra.mxu0 0
  %1375 = vmatprep.subr.bf16.mxu0 0
  %1376 = vmatpush1.bf16.msra.mxu0 0
  %1377 = vmatprep.subr.bf16.mxu0 0
  %1378 = vmatpush1.bf16.msra.mxu0 0
  %1379 = vmatprep.subr.bf16.mxu0 0
  %1380 = vmatpush1.bf16.msra.mxu0 0
  %1381 = vmatprep.subr.bf16.mxu0 0
  %1382 = vmatpush1.bf16.msra.mxu0 0
  %1383 = vmatprep.subr.bf16.mxu0 0
  %1384 = vmatpush1.bf16.msra.mxu0 0
  %1385 = vmatprep.subr.bf16.mxu0 0
  %1386 = vmatpush1.bf16.msra.mxu0 %v1369
  %1387 = vmatprep.subr.bf16.mxu0 0
  %1388 = vmatpush2.bf16.msra.mxu0 0
  %1389 = vmatprep.subr.bf16.mxu0 0
  %1390 = vmatpush2.bf16.msra.mxu0 0
  %1391 = vmatprep.subr.bf16.mxu0 0
  %1392 = vmatpush2.bf16.msra.mxu0 0
  %1393 = vmatprep.subr.bf16.mxu0 0
  %1394 = vmatpush2.bf16.msra.mxu0 0
  %1395 = vmatprep.subr.bf16.mxu0 0
  %1396 = vmatpush2.bf16.msra.mxu0 0
  %1397 = vmatprep.subr.bf16.mxu0 0
  %1398 = vmatpush2.bf16.msra.mxu0 0
  %1399 = vmatprep.subr.bf16.mxu0 0
  %1400 = vmatpush2.bf16.msra.mxu0 0
  %1401 = vmatprep.subr.bf16.mxu0 0
  %1402 = vmatpush2.bf16.msra.mxu0 0
  %1403 = vmatprep.mubr.bf16.mxu0 0
  %1404 = vmatmul.mubr.bf16.gmra.mxu0 %v1366
  %v1405 = vpop.f32.mrf.mxu0
  %v1406 = vadd.f32 0.0, %v1405
  %v1407 = vpop.f32.mrf.mxu0
  %v1408 = vpop.f32.mrf.mxu0
  %v1409 = vpop.f32.mrf.mxu0
  %1410 = vdwg.mxu0
  %1411 = vrot.lane.b32.xlu0 %v47, 112
  %v1412 = vpop.permute.xlu0 %1411
  %v1414 = vsel %vm880, %v877, 0
  %v1417 = vand.u32 %v1412, %v887
  %1419 = vmatprep.subr.bf16.mxu0 0
  %1420 = vmatpush1.bf16.msra.mxu0 0
  %1421 = vmatprep.subr.bf16.mxu0 0
  %1422 = vmatpush1.bf16.msra.mxu0 0
  %1423 = vmatprep.subr.bf16.mxu0 0
  %1424 = vmatpush1.bf16.msra.mxu0 0
  %1425 = vmatprep.subr.bf16.mxu0 0
  %1426 = vmatpush1.bf16.msra.mxu0 0
  %1427 = vmatprep.subr.bf16.mxu0 0
  %1428 = vmatpush1.bf16.msra.mxu0 0
  %1429 = vmatprep.subr.bf16.mxu0 0
  %1430 = vmatpush1.bf16.msra.mxu0 0
  %1431 = vmatprep.subr.bf16.mxu0 0
  %1432 = vmatpush1.bf16.msra.mxu0 0
  %1433 = vmatprep.subr.bf16.mxu0 0
  %1434 = vmatpush1.bf16.msra.mxu0 %v1417
  %1435 = vmatprep.subr.bf16.mxu0 0
  %1436 = vmatpush2.bf16.msra.mxu0 0
  %1437 = vmatprep.subr.bf16.mxu0 0
  %1438 = vmatpush2.bf16.msra.mxu0 0
  %1439 = vmatprep.subr.bf16.mxu0 0
  %1440 = vmatpush2.bf16.msra.mxu0 0
  %1441 = vmatprep.subr.bf16.mxu0 0
  %1442 = vmatpush2.bf16.msra.mxu0 0
  %1443 = vmatprep.subr.bf16.mxu0 0
  %1444 = vmatpush2.bf16.msra.mxu0 0
  %1445 = vmatprep.subr.bf16.mxu0 0
  %1446 = vmatpush2.bf16.msra.mxu0 0
  %1447 = vmatprep.subr.bf16.mxu0 0
  %1448 = vmatpush2.bf16.msra.mxu0 0
  %1449 = vmatprep.subr.bf16.mxu0 0
  %1450 = vmatpush2.bf16.msra.mxu0 0
  %1451 = vmatprep.mubr.bf16.mxu0 0
  %1452 = vmatmul.mubr.bf16.gmra.mxu0 %v1414
  %v1453 = vpop.f32.mrf.mxu0
  %v1454 = vadd.f32 0.0, %v1453
  %v1455 = vpop.f32.mrf.mxu0
  %v1456 = vpop.f32.mrf.mxu0
  %v1457 = vpop.f32.mrf.mxu0
  %1458 = vdwg.mxu0
  %1459 = vrot.lane.b32.xlu0 %v36, 124
  %v1460 = vpop.permute.xlu0 %1459
  %1461 = vrot.lane.b32.xlu0 %v36, 116
  %v1462 = vpop.permute.xlu0 %1461
  %v1464 = vsel %vm51, %v1460, 0
  %v1467 = vsel %vm51, %v1462, 0
  %1469 = vmatprep.subr.bf16.mxu0 0
  %1470 = vmatpush1.bf16.xpose.msra.mxu0 0
  %1471 = vmatprep.subr.bf16.mxu0 0
  %1472 = vmatpush1.bf16.xpose.msra.mxu0 0
  %1473 = vmatprep.subr.bf16.mxu0 0
  %1474 = vmatpush1.bf16.xpose.msra.mxu0 0
  %1475 = vmatprep.subr.bf16.mxu0 0
  %1476 = vmatpush1.bf16.xpose.msra.mxu0 0
  %1477 = vmatprep.subr.bf16.mxu0 0
  %1478 = vmatpush1.bf16.xpose.msra.mxu0 0
  %1479 = vmatprep.subr.bf16.mxu0 0
  %1480 = vmatpush1.bf16.xpose.msra.mxu0 0
  %1481 = vmatprep.subr.bf16.mxu0 0
  %1482 = vmatpush1.bf16.xpose.msra.mxu0 0
  %1483 = vmatprep.subr.bf16.mxu0 0
  %1484 = vmatpush1.bf16.xpose.msra.mxu0 %v1467
  %1485 = vmatprep.subr.bf16.mxu0 0
  %1486 = vmatpush2.bf16.xpose.msra.mxu0 0
  %1487 = vmatprep.subr.bf16.mxu0 0
  %1488 = vmatpush2.bf16.xpose.msra.mxu0 0
  %1489 = vmatprep.subr.bf16.mxu0 0
  %1490 = vmatpush2.bf16.xpose.msra.mxu0 0
  %1491 = vmatprep.subr.bf16.mxu0 0
  %1492 = vmatpush2.bf16.xpose.msra.mxu0 0
  %1493 = vmatprep.subr.bf16.mxu0 0
  %1494 = vmatpush2.bf16.xpose.msra.mxu0 0
  %1495 = vmatprep.subr.bf16.mxu0 0
  %1496 = vmatpush2.bf16.xpose.msra.mxu0 0
  %1497 = vmatprep.subr.bf16.mxu0 0
  %1498 = vmatpush2.bf16.xpose.msra.mxu0 0
  %1499 = vmatprep.subr.bf16.mxu0 0
  %1500 = vmatpush2.bf16.xpose.msra.mxu0 0
  %1501 = vmatprep.mubr.bf16.mxu0 0
  %1502 = vmatmul.mubr.bf16.gmra.mxu0 %v1464
  %v1503 = vpop.f32.mrf.mxu0
  %v1504 = vadd.f32 0.0, %v1503
  %v1505 = vpop.f32.mrf.mxu0
  %v1506 = vpop.f32.mrf.mxu0
  %v1507 = vpop.f32.mrf.mxu0
  %1508 = vdwg.mxu0
  %1509 = vrot.lane.b32.xlu0 %v37, 124
  %v1510 = vpop.permute.xlu0 %1509
  %1511 = vrot.lane.b32.xlu0 %v37, 116
  %v1512 = vpop.permute.xlu0 %1511
  %v1514 = vsel %vm51, %v1510, 0
  %v1517 = vsel %vm51, %v1512, 0
  %1519 = vmatprep.subr.bf16.mxu0 0
  %1520 = vmatpush1.bf16.xpose.msra.mxu0 0
  %1521 = vmatprep.subr.bf16.mxu0 0
  %1522 = vmatpush1.bf16.xpose.msra.mxu0 0
  %1523 = vmatprep.subr.bf16.mxu0 0
  %1524 = vmatpush1.bf16.xpose.msra.mxu0 0
  %1525 = vmatprep.subr.bf16.mxu0 0
  %1526 = vmatpush1.bf16.xpose.msra.mxu0 0
  %1527 = vmatprep.subr.bf16.mxu0 0
  %1528 = vmatpush1.bf16.xpose.msra.mxu0 0
  %1529 = vmatprep.subr.bf16.mxu0 0
  %1530 = vmatpush1.bf16.xpose.msra.mxu0 0
  %1531 = vmatprep.subr.bf16.mxu0 0
  %1532 = vmatpush1.bf16.xpose.msra.mxu0 0
  %1533 = vmatprep.subr.bf16.mxu0 0
  %1534 = vmatpush1.bf16.xpose.msra.mxu0 %v1517
  %1535 = vmatprep.subr.bf16.mxu0 0
  %1536 = vmatpush2.bf16.xpose.msra.mxu0 0
  %1537 = vmatprep.subr.bf16.mxu0 0
  %1538 = vmatpush2.bf16.xpose.msra.mxu0 0
  %1539 = vmatprep.subr.bf16.mxu0 0
  %1540 = vmatpush2.bf16.xpose.msra.mxu0 0
  %1541 = vmatprep.subr.bf16.mxu0 0
  %1542 = vmatpush2.bf16.xpose.msra.mxu0 0
  %1543 = vmatprep.subr.bf16.mxu0 0
  %1544 = vmatpush2.bf16.xpose.msra.mxu0 0
  %1545 = vmatprep.subr.bf16.mxu0 0
  %1546 = vmatpush2.bf16.xpose.msra.mxu0 0
  %1547 = vmatprep.subr.bf16.mxu0 0
  %1548 = vmatpush2.bf16.xpose.msra.mxu0 0
  %1549 = vmatprep.subr.bf16.mxu0 0
  %1550 = vmatpush2.bf16.xpose.msra.mxu0 0
  %1551 = vmatprep.mubr.bf16.mxu0 0
  %1552 = vmatmul.mubr.bf16.gmra.mxu0 %v1514
  %v1553 = vpop.f32.mrf.mxu0
  %v1554 = vadd.f32 0.0, %v1553
  %v1555 = vpop.f32.mrf.mxu0
  %v1556 = vpop.f32.mrf.mxu0
  %v1557 = vpop.f32.mrf.mxu0
  %1558 = vdwg.mxu0
  %1559 = vrot.lane.b32.xlu0 %v38, 124
  %v1560 = vpop.permute.xlu0 %1559
  %1561 = vrot.lane.b32.xlu0 %v38, 116
  %v1562 = vpop.permute.xlu0 %1561
  %v1564 = vsel %vm51, %v1560, 0
  %v1567 = vsel %vm51, %v1562, 0
  %1569 = vmatprep.subr.bf16.mxu0 0
  %1570 = vmatpush1.bf16.xpose.msra.mxu0 0
  %1571 = vmatprep.subr.bf16.mxu0 0
  %1572 = vmatpush1.bf16.xpose.msra.mxu0 0
  %1573 = vmatprep.subr.bf16.mxu0 0
  %1574 = vmatpush1.bf16.xpose.msra.mxu0 0
  %1575 = vmatprep.subr.bf16.mxu0 0
  %1576 = vmatpush1.bf16.xpose.msra.mxu0 0
  %1577 = vmatprep.subr.bf16.mxu0 0
  %1578 = vmatpush1.bf16.xpose.msra.mxu0 0
  %1579 = vmatprep.subr.bf16.mxu0 0
  %1580 = vmatpush1.bf16.xpose.msra.mxu0 0
  %1581 = vmatprep.subr.bf16.mxu0 0
  %1582 = vmatpush1.bf16.xpose.msra.mxu0 0
  %1583 = vmatprep.subr.bf16.mxu0 0
  %1584 = vmatpush1.bf16.xpose.msra.mxu0 %v1567
  %1585 = vmatprep.subr.bf16.mxu0 0
  %1586 = vmatpush2.bf16.xpose.msra.mxu0 0
  %1587 = vmatprep.subr.bf16.mxu0 0
  %1588 = vmatpush2.bf16.xpose.msra.mxu0 0
  %1589 = vmatprep.subr.bf16.mxu0 0
  %1590 = vmatpush2.bf16.xpose.msra.mxu0 0
  %1591 = vmatprep.subr.bf16.mxu0 0
  %1592 = vmatpush2.bf16.xpose.msra.mxu0 0
  %1593 = vmatprep.subr.bf16.mxu0 0
  %1594 = vmatpush2.bf16.xpose.msra.mxu0 0
  %1595 = vmatprep.subr.bf16.mxu0 0
  %1596 = vmatpush2.bf16.xpose.msra.mxu0 0
  %1597 = vmatprep.subr.bf16.mxu0 0
  %1598 = vmatpush2.bf16.xpose.msra.mxu0 0
  %1599 = vmatprep.subr.bf16.mxu0 0
  %1600 = vmatpush2.bf16.xpose.msra.mxu0 0
  %1601 = vmatprep.mubr.bf16.mxu0 0
  %1602 = vmatmul.mubr.bf16.gmra.mxu0 %v1564
  %v1603 = vpop.f32.mrf.mxu0
  %v1604 = vadd.f32 0.0, %v1603
  %v1605 = vpop.f32.mrf.mxu0
  %v1606 = vpop.f32.mrf.mxu0
  %v1607 = vpop.f32.mrf.mxu0
  %1608 = vdwg.mxu0
  %1609 = vrot.lane.b32.xlu0 %v39, 124
  %v1610 = vpop.permute.xlu0 %1609
  %1611 = vrot.lane.b32.xlu0 %v39, 116
  %v1612 = vpop.permute.xlu0 %1611
  %v1614 = vsel %vm51, %v1610, 0
  %v1617 = vsel %vm51, %v1612, 0
  %1619 = vmatprep.subr.bf16.mxu0 0
  %1620 = vmatpush1.bf16.xpose.msra.mxu0 0
  %1621 = vmatprep.subr.bf16.mxu0 0
  %1622 = vmatpush1.bf16.xpose.msra.mxu0 0
  %1623 = vmatprep.subr.bf16.mxu0 0
  %1624 = vmatpush1.bf16.xpose.msra.mxu0 0
  %1625 = vmatprep.subr.bf16.mxu0 0
  %1626 = vmatpush1.bf16.xpose.msra.mxu0 0
  %1627 = vmatprep.subr.bf16.mxu0 0
  %1628 = vmatpush1.bf16.xpose.msra.mxu0 0
  %1629 = vmatprep.subr.bf16.mxu0 0
  %1630 = vmatpush1.bf16.xpose.msra.mxu0 0
  %1631 = vmatprep.subr.bf16.mxu0 0
  %1632 = vmatpush1.bf16.xpose.msra.mxu0 0
  %1633 = vmatprep.subr.bf16.mxu0 0
  %1634 = vmatpush1.bf16.xpose.msra.mxu0 %v1617
  %1635 = vmatprep.subr.bf16.mxu0 0
  %1636 = vmatpush2.bf16.xpose.msra.mxu0 0
  %1637 = vmatprep.subr.bf16.mxu0 0
  %1638 = vmatpush2.bf16.xpose.msra.mxu0 0
  %1639 = vmatprep.subr.bf16.mxu0 0
  %1640 = vmatpush2.bf16.xpose.msra.mxu0 0
  %1641 = vmatprep.subr.bf16.mxu0 0
  %1642 = vmatpush2.bf16.xpose.msra.mxu0 0
  %1643 = vmatprep.subr.bf16.mxu0 0
  %1644 = vmatpush2.bf16.xpose.msra.mxu0 0
  %1645 = vmatprep.subr.bf16.mxu0 0
  %1646 = vmatpush2.bf16.xpose.msra.mxu0 0
  %1647 = vmatprep.subr.bf16.mxu0 0
  %1648 = vmatpush2.bf16.xpose.msra.mxu0 0
  %1649 = vmatprep.subr.bf16.mxu0 0
  %1650 = vmatpush2.bf16.xpose.msra.mxu0 0
  %1651 = vmatprep.mubr.bf16.mxu0 0
  %1652 = vmatmul.mubr.bf16.gmra.mxu0 %v1614
  %v1653 = vpop.f32.mrf.mxu0
  %v1654 = vadd.f32 0.0, %v1653
  %v1655 = vpop.f32.mrf.mxu0
  %v1656 = vpop.f32.mrf.mxu0
  %v1657 = vpop.f32.mrf.mxu0
  %1658 = vdwg.mxu0
  %1659 = vrot.lane.b32.xlu0 %v40, 124
  %v1660 = vpop.permute.xlu0 %1659
  %1661 = vrot.lane.b32.xlu0 %v40, 116
  %v1662 = vpop.permute.xlu0 %1661
  %v1664 = vsel %vm51, %v1660, 0
  %v1667 = vsel %vm51, %v1662, 0
  %1669 = vmatprep.subr.bf16.mxu0 0
  %1670 = vmatpush1.bf16.xpose.msra.mxu0 0
  %1671 = vmatprep.subr.bf16.mxu0 0
  %1672 = vmatpush1.bf16.xpose.msra.mxu0 0
  %1673 = vmatprep.subr.bf16.mxu0 0
  %1674 = vmatpush1.bf16.xpose.msra.mxu0 0
  %1675 = vmatprep.subr.bf16.mxu0 0
  %1676 = vmatpush1.bf16.xpose.msra.mxu0 0
  %1677 = vmatprep.subr.bf16.mxu0 0
  %1678 = vmatpush1.bf16.xpose.msra.mxu0 0
  %1679 = vmatprep.subr.bf16.mxu0 0
  %1680 = vmatpush1.bf16.xpose.msra.mxu0 0
  %1681 = vmatprep.subr.bf16.mxu0 0
  %1682 = vmatpush1.bf16.xpose.msra.mxu0 0
  %1683 = vmatprep.subr.bf16.mxu0 0
  %1684 = vmatpush1.bf16.xpose.msra.mxu0 %v1667
  %1685 = vmatprep.subr.bf16.mxu0 0
  %1686 = vmatpush2.bf16.xpose.msra.mxu0 0
  %1687 = vmatprep.subr.bf16.mxu0 0
  %1688 = vmatpush2.bf16.xpose.msra.mxu0 0
  %1689 = vmatprep.subr.bf16.mxu0 0
  %1690 = vmatpush2.bf16.xpose.msra.mxu0 0
  %1691 = vmatprep.subr.bf16.mxu0 0
  %1692 = vmatpush2.bf16.xpose.msra.mxu0 0
  %1693 = vmatprep.subr.bf16.mxu0 0
  %1694 = vmatpush2.bf16.xpose.msra.mxu0 0
  %1695 = vmatprep.subr.bf16.mxu0 0
  %1696 = vmatpush2.bf16.xpose.msra.mxu0 0
  %1697 = vmatprep.subr.bf16.mxu0 0
  %1698 = vmatpush2.bf16.xpose.msra.mxu0 0
  %1699 = vmatprep.subr.bf16.mxu0 0
  %1700 = vmatpush2.bf16.xpose.msra.mxu0 0
  %1701 = vmatprep.mubr.bf16.mxu0 0
  %1702 = vmatmul.mubr.bf16.gmra.mxu0 %v1664
  %v1703 = vpop.f32.mrf.mxu0
  %v1704 = vadd.f32 0.0, %v1703
  %v1705 = vpop.f32.mrf.mxu0
  %v1706 = vpop.f32.mrf.mxu0
  %v1707 = vpop.f32.mrf.mxu0
  %1708 = vdwg.mxu0
  %1709 = vrot.lane.b32.xlu0 %v41, 124
  %v1710 = vpop.permute.xlu0 %1709
  %1711 = vrot.lane.b32.xlu0 %v41, 116
  %v1712 = vpop.permute.xlu0 %1711
  %v1714 = vsel %vm51, %v1710, 0
  %v1717 = vsel %vm51, %v1712, 0
  %1719 = vmatprep.subr.bf16.mxu0 0
  %1720 = vmatpush1.bf16.xpose.msra.mxu0 0
  %1721 = vmatprep.subr.bf16.mxu0 0
  %1722 = vmatpush1.bf16.xpose.msra.mxu0 0
  %1723 = vmatprep.subr.bf16.mxu0 0
  %1724 = vmatpush1.bf16.xpose.msra.mxu0 0
  %1725 = vmatprep.subr.bf16.mxu0 0
  %1726 = vmatpush1.bf16.xpose.msra.mxu0 0
  %1727 = vmatprep.subr.bf16.mxu0 0
  %1728 = vmatpush1.bf16.xpose.msra.mxu0 0
  %1729 = vmatprep.subr.bf16.mxu0 0
  %1730 = vmatpush1.bf16.xpose.msra.mxu0 0
  %1731 = vmatprep.subr.bf16.mxu0 0
  %1732 = vmatpush1.bf16.xpose.msra.mxu0 0
  %1733 = vmatprep.subr.bf16.mxu0 0
  %1734 = vmatpush1.bf16.xpose.msra.mxu0 %v1717
  %1735 = vmatprep.subr.bf16.mxu0 0
  %1736 = vmatpush2.bf16.xpose.msra.mxu0 0
  %1737 = vmatprep.subr.bf16.mxu0 0
  %1738 = vmatpush2.bf16.xpose.msra.mxu0 0
  %1739 = vmatprep.subr.bf16.mxu0 0
  %1740 = vmatpush2.bf16.xpose.msra.mxu0 0
  %1741 = vmatprep.subr.bf16.mxu0 0
  %1742 = vmatpush2.bf16.xpose.msra.mxu0 0
  %1743 = vmatprep.subr.bf16.mxu0 0
  %1744 = vmatpush2.bf16.xpose.msra.mxu0 0
  %1745 = vmatprep.subr.bf16.mxu0 0
  %1746 = vmatpush2.bf16.xpose.msra.mxu0 0
  %1747 = vmatprep.subr.bf16.mxu0 0
  %1748 = vmatpush2.bf16.xpose.msra.mxu0 0
  %1749 = vmatprep.subr.bf16.mxu0 0
  %1750 = vmatpush2.bf16.xpose.msra.mxu0 0
  %1751 = vmatprep.mubr.bf16.mxu0 0
  %1752 = vmatmul.mubr.bf16.gmra.mxu0 %v1714
  %v1753 = vpop.f32.mrf.mxu0
  %v1754 = vadd.f32 0.0, %v1753
  %v1755 = vpop.f32.mrf.mxu0
  %v1756 = vpop.f32.mrf.mxu0
  %v1757 = vpop.f32.mrf.mxu0
  %1758 = vdwg.mxu0
  %1759 = vrot.lane.b32.xlu0 %v42, 124
  %v1760 = vpop.permute.xlu0 %1759
  %1761 = vrot.lane.b32.xlu0 %v42, 116
  %v1762 = vpop.permute.xlu0 %1761
  %v1764 = vsel %vm51, %v1760, 0
  %v1767 = vsel %vm51, %v1762, 0
  %1769 = vmatprep.subr.bf16.mxu0 0
  %1770 = vmatpush1.bf16.xpose.msra.mxu0 0
  %1771 = vmatprep.subr.bf16.mxu0 0
  %1772 = vmatpush1.bf16.xpose.msra.mxu0 0
  %1773 = vmatprep.subr.bf16.mxu0 0
  %1774 = vmatpush1.bf16.xpose.msra.mxu0 0
  %1775 = vmatprep.subr.bf16.mxu0 0
  %1776 = vmatpush1.bf16.xpose.msra.mxu0 0
  %1777 = vmatprep.subr.bf16.mxu0 0
  %1778 = vmatpush1.bf16.xpose.msra.mxu0 0
  %1779 = vmatprep.subr.bf16.mxu0 0
  %1780 = vmatpush1.bf16.xpose.msra.mxu0 0
  %1781 = vmatprep.subr.bf16.mxu0 0
  %1782 = vmatpush1.bf16.xpose.msra.mxu0 0
  %1783 = vmatprep.subr.bf16.mxu0 0
  %1784 = vmatpush1.bf16.xpose.msra.mxu0 %v1767
  %1785 = vmatprep.subr.bf16.mxu0 0
  %1786 = vmatpush2.bf16.xpose.msra.mxu0 0
  %1787 = vmatprep.subr.bf16.mxu0 0
  %1788 = vmatpush2.bf16.xpose.msra.mxu0 0
  %1789 = vmatprep.subr.bf16.mxu0 0
  %1790 = vmatpush2.bf16.xpose.msra.mxu0 0
  %1791 = vmatprep.subr.bf16.mxu0 0
  %1792 = vmatpush2.bf16.xpose.msra.mxu0 0
  %1793 = vmatprep.subr.bf16.mxu0 0
  %1794 = vmatpush2.bf16.xpose.msra.mxu0 0
  %1795 = vmatprep.subr.bf16.mxu0 0
  %1796 = vmatpush2.bf16.xpose.msra.mxu0 0
  %1797 = vmatprep.subr.bf16.mxu0 0
  %1798 = vmatpush2.bf16.xpose.msra.mxu0 0
  %1799 = vmatprep.subr.bf16.mxu0 0
  %1800 = vmatpush2.bf16.xpose.msra.mxu0 0
  %1801 = vmatprep.mubr.bf16.mxu0 0
  %1802 = vmatmul.mubr.bf16.gmra.mxu0 %v1764
  %v1803 = vpop.f32.mrf.mxu0
  %v1804 = vadd.f32 0.0, %v1803
  %v1805 = vpop.f32.mrf.mxu0
  %v1806 = vpop.f32.mrf.mxu0
  %v1807 = vpop.f32.mrf.mxu0
  %1808 = vdwg.mxu0
  %1809 = vrot.lane.b32.xlu0 %v43, 124
  %v1810 = vpop.permute.xlu0 %1809
  %1811 = vrot.lane.b32.xlu0 %v43, 116
  %v1812 = vpop.permute.xlu0 %1811
  %v1814 = vsel %vm51, %v1810, 0
  %v1817 = vsel %vm51, %v1812, 0
  %1819 = vmatprep.subr.bf16.mxu0 0
  %1820 = vmatpush1.bf16.xpose.msra.mxu0 0
  %1821 = vmatprep.subr.bf16.mxu0 0
  %1822 = vmatpush1.bf16.xpose.msra.mxu0 0
  %1823 = vmatprep.subr.bf16.mxu0 0
  %1824 = vmatpush1.bf16.xpose.msra.mxu0 0
  %1825 = vmatprep.subr.bf16.mxu0 0
  %1826 = vmatpush1.bf16.xpose.msra.mxu0 0
  %1827 = vmatprep.subr.bf16.mxu0 0
  %1828 = vmatpush1.bf16.xpose.msra.mxu0 0
  %1829 = vmatprep.subr.bf16.mxu0 0
  %1830 = vmatpush1.bf16.xpose.msra.mxu0 0
  %1831 = vmatprep.subr.bf16.mxu0 0
  %1832 = vmatpush1.bf16.xpose.msra.mxu0 0
  %1833 = vmatprep.subr.bf16.mxu0 0
  %1834 = vmatpush1.bf16.xpose.msra.mxu0 %v1817
  %1835 = vmatprep.subr.bf16.mxu0 0
  %1836 = vmatpush2.bf16.xpose.msra.mxu0 0
  %1837 = vmatprep.subr.bf16.mxu0 0
  %1838 = vmatpush2.bf16.xpose.msra.mxu0 0
  %1839 = vmatprep.subr.bf16.mxu0 0
  %1840 = vmatpush2.bf16.xpose.msra.mxu0 0
  %1841 = vmatprep.subr.bf16.mxu0 0
  %1842 = vmatpush2.bf16.xpose.msra.mxu0 0
  %1843 = vmatprep.subr.bf16.mxu0 0
  %1844 = vmatpush2.bf16.xpose.msra.mxu0 0
  %1845 = vmatprep.subr.bf16.mxu0 0
  %1846 = vmatpush2.bf16.xpose.msra.mxu0 0
  %1847 = vmatprep.subr.bf16.mxu0 0
  %1848 = vmatpush2.bf16.xpose.msra.mxu0 0
  %1849 = vmatprep.subr.bf16.mxu0 0
  %1850 = vmatpush2.bf16.xpose.msra.mxu0 0
  %1851 = vmatprep.mubr.bf16.mxu0 0
  %1852 = vmatmul.mubr.bf16.gmra.mxu0 %v1814
  %v1853 = vpop.f32.mrf.mxu0
  %v1854 = vadd.f32 0.0, %v1853
  %v1855 = vpop.f32.mrf.mxu0
  %v1856 = vpop.f32.mrf.mxu0
  %v1857 = vpop.f32.mrf.mxu0
  %1858 = vdwg.mxu0
  %1859 = vrot.lane.b32.xlu0 %v44, 124
  %v1860 = vpop.permute.xlu0 %1859
  %1861 = vrot.lane.b32.xlu0 %v44, 116
  %v1862 = vpop.permute.xlu0 %1861
  %v1864 = vsel %vm51, %v1860, 0
  %v1867 = vsel %vm51, %v1862, 0
  %1869 = vmatprep.subr.bf16.mxu0 0
  %1870 = vmatpush1.bf16.xpose.msra.mxu0 0
  %1871 = vmatprep.subr.bf16.mxu0 0
  %1872 = vmatpush1.bf16.xpose.msra.mxu0 0
  %1873 = vmatprep.subr.bf16.mxu0 0
  %1874 = vmatpush1.bf16.xpose.msra.mxu0 0
  %1875 = vmatprep.subr.bf16.mxu0 0
  %1876 = vmatpush1.bf16.xpose.msra.mxu0 0
  %1877 = vmatprep.subr.bf16.mxu0 0
  %1878 = vmatpush1.bf16.xpose.msra.mxu0 0
  %1879 = vmatprep.subr.bf16.mxu0 0
  %1880 = vmatpush1.bf16.xpose.msra.mxu0 0
  %1881 = vmatprep.subr.bf16.mxu0 0
  %1882 = vmatpush1.bf16.xpose.msra.mxu0 0
  %1883 = vmatprep.subr.bf16.mxu0 0
  %1884 = vmatpush1.bf16.xpose.msra.mxu0 %v1867
  %1885 = vmatprep.subr.bf16.mxu0 0
  %1886 = vmatpush2.bf16.xpose.msra.mxu0 0
  %1887 = vmatprep.subr.bf16.mxu0 0
  %1888 = vmatpush2.bf16.xpose.msra.mxu0 0
  %1889 = vmatprep.subr.bf16.mxu0 0
  %1890 = vmatpush2.bf16.xpose.msra.mxu0 0
  %1891 = vmatprep.subr.bf16.mxu0 0
  %1892 = vmatpush2.bf16.xpose.msra.mxu0 0
  %1893 = vmatprep.subr.bf16.mxu0 0
  %1894 = vmatpush2.bf16.xpose.msra.mxu0 0
  %1895 = vmatprep.subr.bf16.mxu0 0
  %1896 = vmatpush2.bf16.xpose.msra.mxu0 0
  %1897 = vmatprep.subr.bf16.mxu0 0
  %1898 = vmatpush2.bf16.xpose.msra.mxu0 0
  %1899 = vmatprep.subr.bf16.mxu0 0
  %1900 = vmatpush2.bf16.xpose.msra.mxu0 0
  %1901 = vmatprep.mubr.bf16.mxu0 0
  %1902 = vmatmul.mubr.bf16.gmra.mxu0 %v1864
  %v1903 = vpop.f32.mrf.mxu0
  %v1904 = vadd.f32 0.0, %v1903
  %v1905 = vpop.f32.mrf.mxu0
  %v1906 = vpop.f32.mrf.mxu0
  %v1907 = vpop.f32.mrf.mxu0
  %1908 = vdwg.mxu0
  %1909 = vrot.lane.b32.xlu0 %v45, 124
  %v1910 = vpop.permute.xlu0 %1909
  %1911 = vrot.lane.b32.xlu0 %v45, 116
  %v1912 = vpop.permute.xlu0 %1911
  %v1914 = vsel %vm51, %v1910, 0
  %v1917 = vsel %vm51, %v1912, 0
  %1919 = vmatprep.subr.bf16.mxu0 0
  %1920 = vmatpush1.bf16.xpose.msra.mxu0 0
  %1921 = vmatprep.subr.bf16.mxu0 0
  %1922 = vmatpush1.bf16.xpose.msra.mxu0 0
  %1923 = vmatprep.subr.bf16.mxu0 0
  %1924 = vmatpush1.bf16.xpose.msra.mxu0 0
  %1925 = vmatprep.subr.bf16.mxu0 0
  %1926 = vmatpush1.bf16.xpose.msra.mxu0 0
  %1927 = vmatprep.subr.bf16.mxu0 0
  %1928 = vmatpush1.bf16.xpose.msra.mxu0 0
  %1929 = vmatprep.subr.bf16.mxu0 0
  %1930 = vmatpush1.bf16.xpose.msra.mxu0 0
  %1931 = vmatprep.subr.bf16.mxu0 0
  %1932 = vmatpush1.bf16.xpose.msra.mxu0 0
  %1933 = vmatprep.subr.bf16.mxu0 0
  %1934 = vmatpush1.bf16.xpose.msra.mxu0 %v1917
  %1935 = vmatprep.subr.bf16.mxu0 0
  %1936 = vmatpush2.bf16.xpose.msra.mxu0 0
  %1937 = vmatprep.subr.bf16.mxu0 0
  %1938 = vmatpush2.bf16.xpose.msra.mxu0 0
  %1939 = vmatprep.subr.bf16.mxu0 0
  %1940 = vmatpush2.bf16.xpose.msra.mxu0 0
  %1941 = vmatprep.subr.bf16.mxu0 0
  %1942 = vmatpush2.bf16.xpose.msra.mxu0 0
  %1943 = vmatprep.subr.bf16.mxu0 0
  %1944 = vmatpush2.bf16.xpose.msra.mxu0 0
  %1945 = vmatprep.subr.bf16.mxu0 0
  %1946 = vmatpush2.bf16.xpose.msra.mxu0 0
  %1947 = vmatprep.subr.bf16.mxu0 0
  %1948 = vmatpush2.bf16.xpose.msra.mxu0 0
  %1949 = vmatprep.subr.bf16.mxu0 0
  %1950 = vmatpush2.bf16.xpose.msra.mxu0 0
  %1951 = vmatprep.mubr.bf16.mxu0 0
  %1952 = vmatmul.mubr.bf16.gmra.mxu0 %v1914
  %v1953 = vpop.f32.mrf.mxu0
  %v1954 = vadd.f32 0.0, %v1953
  %v1955 = vpop.f32.mrf.mxu0
  %v1956 = vpop.f32.mrf.mxu0
  %v1957 = vpop.f32.mrf.mxu0
  %1958 = vdwg.mxu0
  %1959 = vrot.lane.b32.xlu0 %v46, 124
  %v1960 = vpop.permute.xlu0 %1959
  %1961 = vrot.lane.b32.xlu0 %v46, 116
  %v1962 = vpop.permute.xlu0 %1961
  %v1964 = vsel %vm51, %v1960, 0
  %v1967 = vsel %vm51, %v1962, 0
  %1969 = vmatprep.subr.bf16.mxu0 0
  %1970 = vmatpush1.bf16.xpose.msra.mxu0 0
  %1971 = vmatprep.subr.bf16.mxu0 0
  %1972 = vmatpush1.bf16.xpose.msra.mxu0 0
  %1973 = vmatprep.subr.bf16.mxu0 0
  %1974 = vmatpush1.bf16.xpose.msra.mxu0 0
  %1975 = vmatprep.subr.bf16.mxu0 0
  %1976 = vmatpush1.bf16.xpose.msra.mxu0 0
  %1977 = vmatprep.subr.bf16.mxu0 0
  %1978 = vmatpush1.bf16.xpose.msra.mxu0 0
  %1979 = vmatprep.subr.bf16.mxu0 0
  %1980 = vmatpush1.bf16.xpose.msra.mxu0 0
  %1981 = vmatprep.subr.bf16.mxu0 0
  %1982 = vmatpush1.bf16.xpose.msra.mxu0 0
  %1983 = vmatprep.subr.bf16.mxu0 0
  %1984 = vmatpush1.bf16.xpose.msra.mxu0 %v1967
  %1985 = vmatprep.subr.bf16.mxu0 0
  %1986 = vmatpush2.bf16.xpose.msra.mxu0 0
  %1987 = vmatprep.subr.bf16.mxu0 0
  %1988 = vmatpush2.bf16.xpose.msra.mxu0 0
  %1989 = vmatprep.subr.bf16.mxu0 0
  %1990 = vmatpush2.bf16.xpose.msra.mxu0 0
  %1991 = vmatprep.subr.bf16.mxu0 0
  %1992 = vmatpush2.bf16.xpose.msra.mxu0 0
  %1993 = vmatprep.subr.bf16.mxu0 0
  %1994 = vmatpush2.bf16.xpose.msra.mxu0 0
  %1995 = vmatprep.subr.bf16.mxu0 0
  %1996 = vmatpush2.bf16.xpose.msra.mxu0 0
  %1997 = vmatprep.subr.bf16.mxu0 0
  %1998 = vmatpush2.bf16.xpose.msra.mxu0 0
  %1999 = vmatprep.subr.bf16.mxu0 0
  %2000 = vmatpush2.bf16.xpose.msra.mxu0 0
  %2001 = vmatprep.mubr.bf16.mxu0 0
  %2002 = vmatmul.mubr.bf16.gmra.mxu0 %v1964
  %v2003 = vpop.f32.mrf.mxu0
  %v2004 = vadd.f32 0.0, %v2003
  %v2005 = vpop.f32.mrf.mxu0
  %v2006 = vpop.f32.mrf.mxu0
  %v2007 = vpop.f32.mrf.mxu0
  %2008 = vdwg.mxu0
  %2009 = vrot.lane.b32.xlu0 %v47, 124
  %v2010 = vpop.permute.xlu0 %2009
  %2011 = vrot.lane.b32.xlu0 %v47, 116
  %v2012 = vpop.permute.xlu0 %2011
  %v2014 = vsel %vm51, %v2010, 0
  %v2017 = vsel %vm51, %v2012, 0
  %2019 = vmatprep.subr.bf16.mxu0 0
  %2020 = vmatpush1.bf16.xpose.msra.mxu0 0
  %2021 = vmatprep.subr.bf16.mxu0 0
  %2022 = vmatpush1.bf16.xpose.msra.mxu0 0
  %2023 = vmatprep.subr.bf16.mxu0 0
  %2024 = vmatpush1.bf16.xpose.msra.mxu0 0
  %2025 = vmatprep.subr.bf16.mxu0 0
  %2026 = vmatpush1.bf16.xpose.msra.mxu0 0
  %2027 = vmatprep.subr.bf16.mxu0 0
  %2028 = vmatpush1.bf16.xpose.msra.mxu0 0
  %2029 = vmatprep.subr.bf16.mxu0 0
  %2030 = vmatpush1.bf16.xpose.msra.mxu0 0
  %2031 = vmatprep.subr.bf16.mxu0 0
  %2032 = vmatpush1.bf16.xpose.msra.mxu0 0
  %2033 = vmatprep.subr.bf16.mxu0 0
  %2034 = vmatpush1.bf16.xpose.msra.mxu0 %v2017
  %2035 = vmatprep.subr.bf16.mxu0 0
  %2036 = vmatpush2.bf16.xpose.msra.mxu0 0
  %2037 = vmatprep.subr.bf16.mxu0 0
  %2038 = vmatpush2.bf16.xpose.msra.mxu0 0
  %2039 = vmatprep.subr.bf16.mxu0 0
  %2040 = vmatpush2.bf16.xpose.msra.mxu0 0
  %2041 = vmatprep.subr.bf16.mxu0 0
  %2042 = vmatpush2.bf16.xpose.msra.mxu0 0
  %2043 = vmatprep.subr.bf16.mxu0 0
  %2044 = vmatpush2.bf16.xpose.msra.mxu0 0
  %2045 = vmatprep.subr.bf16.mxu0 0
  %2046 = vmatpush2.bf16.xpose.msra.mxu0 0
  %2047 = vmatprep.subr.bf16.mxu0 0
  %2048 = vmatpush2.bf16.xpose.msra.mxu0 0
  %2049 = vmatprep.subr.bf16.mxu0 0
  %2050 = vmatpush2.bf16.xpose.msra.mxu0 0
  %2051 = vmatprep.mubr.bf16.mxu0 0
  %2052 = vmatmul.mubr.bf16.gmra.mxu0 %v2014
  %v2053 = vpop.f32.mrf.mxu0
  %v2054 = vadd.f32 0.0, %v2053
  %v2055 = vpop.f32.mrf.mxu0
  %v2056 = vpop.f32.mrf.mxu0
  %v2057 = vpop.f32.mrf.mxu0
  %2058 = vdwg.mxu0
  %v2059 = vmul.f32 %v1504, 0.5
  %v2060 = vmul.f32 %v1554, 0.5
  %v2061 = vmul.f32 %v1604, 0.5
  %v2062 = vmul.f32 %v1654, 0.5
  %v2063 = vmul.f32 %v1704, 0.5
  %v2064 = vmul.f32 %v1754, 0.5
  %v2065 = vmul.f32 %v1804, 0.5
  %v2066 = vmul.f32 %v1854, 0.5
  %v2067 = vmul.f32 %v1904, 0.5
  %v2068 = vmul.f32 %v1954, 0.5
  %v2069 = vmul.f32 %v2004, 0.5
  %v2070 = vmul.f32 %v2054, 0.5
  %v2071 = vadd.f32 %v2059, %v664
  %v2072 = vadd.f32 %v2060, %v668
  %v2073 = vadd.f32 %v2061, %v672
  %v2074 = vadd.f32 %v2062, %v676
  %v2075 = vadd.f32 %v2063, %v680
  %v2076 = vadd.f32 %v2064, %v684
  %v2077 = vadd.f32 %v2065, %v688
  %v2078 = vadd.f32 %v2066, %v692
  %v2079 = vadd.f32 %v2067, %v696
  %v2080 = vadd.f32 %v2068, %v700
  %v2081 = vadd.f32 %v2069, %v704
  %v2082 = vadd.f32 %v2070, %v708
  %v2083 = vsel %vm733, %v2071, -inf
  %2084 = vmax.xlane.f32.xlu0 %v2083
  %v2085 = vpop.xlane.xlu0 %2084
  %v2086 = vsel %vm733, %v2072, -inf
  %2087 = vmax.xlane.f32.xlu0 %v2086
  %v2088 = vpop.xlane.xlu0 %2087
  %v2089 = vsel %vm733, %v2073, -inf
  %2090 = vmax.xlane.f32.xlu0 %v2089
  %v2091 = vpop.xlane.xlu0 %2090
  %v2092 = vsel %vm733, %v2074, -inf
  %2093 = vmax.xlane.f32.xlu0 %v2092
  %v2094 = vpop.xlane.xlu0 %2093
  %v2095 = vsel %vm733, %v2075, -inf
  %2096 = vmax.xlane.f32.xlu0 %v2095
  %v2097 = vpop.xlane.xlu0 %2096
  %v2098 = vsel %vm733, %v2076, -inf
  %2099 = vmax.xlane.f32.xlu0 %v2098
  %v2100 = vpop.xlane.xlu0 %2099
  %v2101 = vsel %vm733, %v2077, -inf
  %2102 = vmax.xlane.f32.xlu0 %v2101
  %v2103 = vpop.xlane.xlu0 %2102
  %v2104 = vsel %vm733, %v2078, -inf
  %2105 = vmax.xlane.f32.xlu0 %v2104
  %v2106 = vpop.xlane.xlu0 %2105
  %v2107 = vsel %vm733, %v2079, -inf
  %2108 = vmax.xlane.f32.xlu0 %v2107
  %v2109 = vpop.xlane.xlu0 %2108
  %v2110 = vsel %vm733, %v2080, -inf
  %2111 = vmax.xlane.f32.xlu0 %v2110
  %v2112 = vpop.xlane.xlu0 %2111
  %v2113 = vsel %vm733, %v2081, -inf
  %2114 = vmax.xlane.f32.xlu0 %v2113
  %v2115 = vpop.xlane.xlu0 %2114
  %v2116 = vsel %vm733, %v2082, -inf
  %2117 = vmax.xlane.f32.xlu0 %v2116
  %v2118 = vpop.xlane.xlu0 %2117
  %v2119 = vsub.f32 %v2071, %v2085
  %v2120 = vsub.f32 %v2072, %v2088
  %v2121 = vsub.f32 %v2073, %v2091
  %v2122 = vsub.f32 %v2074, %v2094
  %v2123 = vsub.f32 %v2075, %v2097
  %v2124 = vsub.f32 %v2076, %v2100
  %v2125 = vsub.f32 %v2077, %v2103
  %v2126 = vsub.f32 %v2078, %v2106
  %v2127 = vsub.f32 %v2079, %v2109
  %v2128 = vsub.f32 %v2080, %v2112
  %v2129 = vsub.f32 %v2081, %v2115
  %v2130 = vsub.f32 %v2082, %v2118
  %v2131 = vmul.f32 %v2119, 1.442695
  %v2132 = vpow.pop %v2131
  %v2133 = vmul.f32 %v2120, 1.442695
  %v2134 = vpow.pop %v2133
  %v2135 = vmul.f32 %v2121, 1.442695
  %v2136 = vpow.pop %v2135
  %v2137 = vmul.f32 %v2122, 1.442695
  %v2138 = vpow.pop %v2137
  %v2139 = vmul.f32 %v2123, 1.442695
  %v2140 = vpow.pop %v2139
  %v2141 = vmul.f32 %v2124, 1.442695
  %v2142 = vpow.pop %v2141
  %v2143 = vmul.f32 %v2125, 1.442695
  %v2144 = vpow.pop %v2143
  %v2145 = vmul.f32 %v2126, 1.442695
  %v2146 = vpow.pop %v2145
  %v2147 = vmul.f32 %v2127, 1.442695
  %v2148 = vpow.pop %v2147
  %v2149 = vmul.f32 %v2128, 1.442695
  %v2150 = vpow.pop %v2149
  %v2151 = vmul.f32 %v2129, 1.442695
  %v2152 = vpow.pop %v2151
  %v2153 = vmul.f32 %v2130, 1.442695
  %v2154 = vpow.pop %v2153
  %v2155 = vsel %vm733, %v2132, 0.0
  %2156 = vadd.xlane.f32.xlu0 %v2155
  %v2157 = vpop.xlane.xlu0 %2156
  %v2158 = vsel %vm733, %v2134, 0.0
  %2159 = vadd.xlane.f32.xlu0 %v2158
  %v2160 = vpop.xlane.xlu0 %2159
  %v2161 = vsel %vm733, %v2136, 0.0
  %2162 = vadd.xlane.f32.xlu0 %v2161
  %v2163 = vpop.xlane.xlu0 %2162
  %v2164 = vsel %vm733, %v2138, 0.0
  %2165 = vadd.xlane.f32.xlu0 %v2164
  %v2166 = vpop.xlane.xlu0 %2165
  %v2167 = vsel %vm733, %v2140, 0.0
  %2168 = vadd.xlane.f32.xlu0 %v2167
  %v2169 = vpop.xlane.xlu0 %2168
  %v2170 = vsel %vm733, %v2142, 0.0
  %2171 = vadd.xlane.f32.xlu0 %v2170
  %v2172 = vpop.xlane.xlu0 %2171
  %v2173 = vsel %vm733, %v2144, 0.0
  %2174 = vadd.xlane.f32.xlu0 %v2173
  %v2175 = vpop.xlane.xlu0 %2174
  %v2176 = vsel %vm733, %v2146, 0.0
  %2177 = vadd.xlane.f32.xlu0 %v2176
  %v2178 = vpop.xlane.xlu0 %2177
  %v2179 = vsel %vm733, %v2148, 0.0
  %2180 = vadd.xlane.f32.xlu0 %v2179
  %v2181 = vpop.xlane.xlu0 %2180
  %v2182 = vsel %vm733, %v2150, 0.0
  %2183 = vadd.xlane.f32.xlu0 %v2182
  %v2184 = vpop.xlane.xlu0 %2183
  %v2185 = vsel %vm733, %v2152, 0.0
  %2186 = vadd.xlane.f32.xlu0 %v2185
  %v2187 = vpop.xlane.xlu0 %2186
  %v2188 = vsel %vm733, %v2154, 0.0
  %2189 = vadd.xlane.f32.xlu0 %v2188
  %v2190 = vpop.xlane.xlu0 %2189
  %v2191 = vrcp.pop %v2157
  %v2192 = vmul.f32 %v2132, %v2191
  %v2193 = vrcp.pop %v2160
  %v2194 = vmul.f32 %v2134, %v2193
  %v2195 = vrcp.pop %v2163
  %v2196 = vmul.f32 %v2136, %v2195
  %v2197 = vrcp.pop %v2166
  %v2198 = vmul.f32 %v2138, %v2197
  %v2199 = vrcp.pop %v2169
  %v2200 = vmul.f32 %v2140, %v2199
  %v2201 = vrcp.pop %v2172
  %v2202 = vmul.f32 %v2142, %v2201
  %v2203 = vrcp.pop %v2175
  %v2204 = vmul.f32 %v2144, %v2203
  %v2205 = vrcp.pop %v2178
  %v2206 = vmul.f32 %v2146, %v2205
  %v2207 = vrcp.pop %v2181
  %v2208 = vmul.f32 %v2148, %v2207
  %v2209 = vrcp.pop %v2184
  %v2210 = vmul.f32 %v2150, %v2209
  %v2211 = vrcp.pop %v2187
  %v2212 = vmul.f32 %v2152, %v2211
  %v2213 = vrcp.pop %v2190
  %v2214 = vmul.f32 %v2154, %v2213
  %v2215 = vpack.c.bf16 %v2192, %v2192
  %v2216 = vpack.c.bf16 %v2194, %v2194
  %v2217 = vpack.c.bf16 %v2196, %v2196
  %v2218 = vpack.c.bf16 %v2198, %v2198
  %v2219 = vpack.c.bf16 %v2200, %v2200
  %v2220 = vpack.c.bf16 %v2202, %v2202
  %v2221 = vpack.c.bf16 %v2204, %v2204
  %v2222 = vpack.c.bf16 %v2206, %v2206
  %v2223 = vpack.c.bf16 %v2208, %v2208
  %v2224 = vpack.c.bf16 %v2210, %v2210
  %v2225 = vpack.c.bf16 %v2212, %v2212
  %v2226 = vpack.c.bf16 %v2214, %v2214
  %2227 = vrot.lane.b32.xlu0 %v36, 108
  %v2228 = vpop.permute.xlu0 %2227
  %v2230 = vsel %vm880, %v2215, 0
  %v2233 = vand.u32 %v2228, %v887
  %2235 = vmatprep.subr.bf16.mxu0 0
  %2236 = vmatpush1.bf16.msra.mxu0 0
  %2237 = vmatprep.subr.bf16.mxu0 0
  %2238 = vmatpush1.bf16.msra.mxu0 0
  %2239 = vmatprep.subr.bf16.mxu0 0
  %2240 = vmatpush1.bf16.msra.mxu0 0
  %2241 = vmatprep.subr.bf16.mxu0 0
  %2242 = vmatpush1.bf16.msra.mxu0 0
  %2243 = vmatprep.subr.bf16.mxu0 0
  %2244 = vmatpush1.bf16.msra.mxu0 0
  %2245 = vmatprep.subr.bf16.mxu0 0
  %2246 = vmatpush1.bf16.msra.mxu0 0
  %2247 = vmatprep.subr.bf16.mxu0 0
  %2248 = vmatpush1.bf16.msra.mxu0 0
  %2249 = vmatprep.subr.bf16.mxu0 0
  %2250 = vmatpush1.bf16.msra.mxu0 %v2233
  %2251 = vmatprep.subr.bf16.mxu0 0
  %2252 = vmatpush2.bf16.msra.mxu0 0
  %2253 = vmatprep.subr.bf16.mxu0 0
  %2254 = vmatpush2.bf16.msra.mxu0 0
  %2255 = vmatprep.subr.bf16.mxu0 0
  %2256 = vmatpush2.bf16.msra.mxu0 0
  %2257 = vmatprep.subr.bf16.mxu0 0
  %2258 = vmatpush2.bf16.msra.mxu0 0
  %2259 = vmatprep.subr.bf16.mxu0 0
  %2260 = vmatpush2.bf16.msra.mxu0 0
  %2261 = vmatprep.subr.bf16.mxu0 0
  %2262 = vmatpush2.bf16.msra.mxu0 0
  %2263 = vmatprep.subr.bf16.mxu0 0
  %2264 = vmatpush2.bf16.msra.mxu0 0
  %2265 = vmatprep.subr.bf16.mxu0 0
  %2266 = vmatpush2.bf16.msra.mxu0 0
  %2267 = vmatprep.mubr.bf16.mxu0 0
  %2268 = vmatmul.mubr.bf16.gmra.mxu0 %v2230
  %v2269 = vpop.f32.mrf.mxu0
  %v2270 = vadd.f32 0.0, %v2269
  %v2271 = vpop.f32.mrf.mxu0
  %v2272 = vpop.f32.mrf.mxu0
  %v2273 = vpop.f32.mrf.mxu0
  %2274 = vdwg.mxu0
  %2275 = vrot.lane.b32.xlu0 %v37, 108
  %v2276 = vpop.permute.xlu0 %2275
  %v2278 = vsel %vm880, %v2216, 0
  %v2281 = vand.u32 %v2276, %v887
  %2283 = vmatprep.subr.bf16.mxu0 0
  %2284 = vmatpush1.bf16.msra.mxu0 0
  %2285 = vmatprep.subr.bf16.mxu0 0
  %2286 = vmatpush1.bf16.msra.mxu0 0
  %2287 = vmatprep.subr.bf16.mxu0 0
  %2288 = vmatpush1.bf16.msra.mxu0 0
  %2289 = vmatprep.subr.bf16.mxu0 0
  %2290 = vmatpush1.bf16.msra.mxu0 0
  %2291 = vmatprep.subr.bf16.mxu0 0
  %2292 = vmatpush1.bf16.msra.mxu0 0
  %2293 = vmatprep.subr.bf16.mxu0 0
  %2294 = vmatpush1.bf16.msra.mxu0 0
  %2295 = vmatprep.subr.bf16.mxu0 0
  %2296 = vmatpush1.bf16.msra.mxu0 0
  %2297 = vmatprep.subr.bf16.mxu0 0
  %2298 = vmatpush1.bf16.msra.mxu0 %v2281
  %2299 = vmatprep.subr.bf16.mxu0 0
  %2300 = vmatpush2.bf16.msra.mxu0 0
  %2301 = vmatprep.subr.bf16.mxu0 0
  %2302 = vmatpush2.bf16.msra.mxu0 0
  %2303 = vmatprep.subr.bf16.mxu0 0
  %2304 = vmatpush2.bf16.msra.mxu0 0
  %2305 = vmatprep.subr.bf16.mxu0 0
  %2306 = vmatpush2.bf16.msra.mxu0 0
  %2307 = vmatprep.subr.bf16.mxu0 0
  %2308 = vmatpush2.bf16.msra.mxu0 0
  %2309 = vmatprep.subr.bf16.mxu0 0
  %2310 = vmatpush2.bf16.msra.mxu0 0
  %2311 = vmatprep.subr.bf16.mxu0 0
  %2312 = vmatpush2.bf16.msra.mxu0 0
  %2313 = vmatprep.subr.bf16.mxu0 0
  %2314 = vmatpush2.bf16.msra.mxu0 0
  %2315 = vmatprep.mubr.bf16.mxu0 0
  %2316 = vmatmul.mubr.bf16.gmra.mxu0 %v2278
  %v2317 = vpop.f32.mrf.mxu0
  %v2318 = vadd.f32 0.0, %v2317
  %v2319 = vpop.f32.mrf.mxu0
  %v2320 = vpop.f32.mrf.mxu0
  %v2321 = vpop.f32.mrf.mxu0
  %2322 = vdwg.mxu0
  %2323 = vrot.lane.b32.xlu0 %v38, 108
  %v2324 = vpop.permute.xlu0 %2323
  %v2326 = vsel %vm880, %v2217, 0
  %v2329 = vand.u32 %v2324, %v887
  %2331 = vmatprep.subr.bf16.mxu0 0
  %2332 = vmatpush1.bf16.msra.mxu0 0
  %2333 = vmatprep.subr.bf16.mxu0 0
  %2334 = vmatpush1.bf16.msra.mxu0 0
  %2335 = vmatprep.subr.bf16.mxu0 0
  %2336 = vmatpush1.bf16.msra.mxu0 0
  %2337 = vmatprep.subr.bf16.mxu0 0
  %2338 = vmatpush1.bf16.msra.mxu0 0
  %2339 = vmatprep.subr.bf16.mxu0 0
  %2340 = vmatpush1.bf16.msra.mxu0 0
  %2341 = vmatprep.subr.bf16.mxu0 0
  %2342 = vmatpush1.bf16.msra.mxu0 0
  %2343 = vmatprep.subr.bf16.mxu0 0
  %2344 = vmatpush1.bf16.msra.mxu0 0
  %2345 = vmatprep.subr.bf16.mxu0 0
  %2346 = vmatpush1.bf16.msra.mxu0 %v2329
  %2347 = vmatprep.subr.bf16.mxu0 0
  %2348 = vmatpush2.bf16.msra.mxu0 0
  %2349 = vmatprep.subr.bf16.mxu0 0
  %2350 = vmatpush2.bf16.msra.mxu0 0
  %2351 = vmatprep.subr.bf16.mxu0 0
  %2352 = vmatpush2.bf16.msra.mxu0 0
  %2353 = vmatprep.subr.bf16.mxu0 0
  %2354 = vmatpush2.bf16.msra.mxu0 0
  %2355 = vmatprep.subr.bf16.mxu0 0
  %2356 = vmatpush2.bf16.msra.mxu0 0
  %2357 = vmatprep.subr.bf16.mxu0 0
  %2358 = vmatpush2.bf16.msra.mxu0 0
  %2359 = vmatprep.subr.bf16.mxu0 0
  %2360 = vmatpush2.bf16.msra.mxu0 0
  %2361 = vmatprep.subr.bf16.mxu0 0
  %2362 = vmatpush2.bf16.msra.mxu0 0
  %2363 = vmatprep.mubr.bf16.mxu0 0
  %2364 = vmatmul.mubr.bf16.gmra.mxu0 %v2326
  %v2365 = vpop.f32.mrf.mxu0
  %v2366 = vadd.f32 0.0, %v2365
  %v2367 = vpop.f32.mrf.mxu0
  %v2368 = vpop.f32.mrf.mxu0
  %v2369 = vpop.f32.mrf.mxu0
  %2370 = vdwg.mxu0
  %2371 = vrot.lane.b32.xlu0 %v39, 108
  %v2372 = vpop.permute.xlu0 %2371
  %v2374 = vsel %vm880, %v2218, 0
  %v2377 = vand.u32 %v2372, %v887
  %2379 = vmatprep.subr.bf16.mxu0 0
  %2380 = vmatpush1.bf16.msra.mxu0 0
  %2381 = vmatprep.subr.bf16.mxu0 0
  %2382 = vmatpush1.bf16.msra.mxu0 0
  %2383 = vmatprep.subr.bf16.mxu0 0
  %2384 = vmatpush1.bf16.msra.mxu0 0
  %2385 = vmatprep.subr.bf16.mxu0 0
  %2386 = vmatpush1.bf16.msra.mxu0 0
  %2387 = vmatprep.subr.bf16.mxu0 0
  %2388 = vmatpush1.bf16.msra.mxu0 0
  %2389 = vmatprep.subr.bf16.mxu0 0
  %2390 = vmatpush1.bf16.msra.mxu0 0
  %2391 = vmatprep.subr.bf16.mxu0 0
  %2392 = vmatpush1.bf16.msra.mxu0 0
  %2393 = vmatprep.subr.bf16.mxu0 0
  %2394 = vmatpush1.bf16.msra.mxu0 %v2377
  %2395 = vmatprep.subr.bf16.mxu0 0
  %2396 = vmatpush2.bf16.msra.mxu0 0
  %2397 = vmatprep.subr.bf16.mxu0 0
  %2398 = vmatpush2.bf16.msra.mxu0 0
  %2399 = vmatprep.subr.bf16.mxu0 0
  %2400 = vmatpush2.bf16.msra.mxu0 0
  %2401 = vmatprep.subr.bf16.mxu0 0
  %2402 = vmatpush2.bf16.msra.mxu0 0
  %2403 = vmatprep.subr.bf16.mxu0 0
  %2404 = vmatpush2.bf16.msra.mxu0 0
  %2405 = vmatprep.subr.bf16.mxu0 0
  %2406 = vmatpush2.bf16.msra.mxu0 0
  %2407 = vmatprep.subr.bf16.mxu0 0
  %2408 = vmatpush2.bf16.msra.mxu0 0
  %2409 = vmatprep.subr.bf16.mxu0 0
  %2410 = vmatpush2.bf16.msra.mxu0 0
  %2411 = vmatprep.mubr.bf16.mxu0 0
  %2412 = vmatmul.mubr.bf16.gmra.mxu0 %v2374
  %v2413 = vpop.f32.mrf.mxu0
  %v2414 = vadd.f32 0.0, %v2413
  %v2415 = vpop.f32.mrf.mxu0
  %v2416 = vpop.f32.mrf.mxu0
  %v2417 = vpop.f32.mrf.mxu0
  %2418 = vdwg.mxu0
  %2419 = vrot.lane.b32.xlu0 %v40, 108
  %v2420 = vpop.permute.xlu0 %2419
  %v2422 = vsel %vm880, %v2219, 0
  %v2425 = vand.u32 %v2420, %v887
  %2427 = vmatprep.subr.bf16.mxu0 0
  %2428 = vmatpush1.bf16.msra.mxu0 0
  %2429 = vmatprep.subr.bf16.mxu0 0
  %2430 = vmatpush1.bf16.msra.mxu0 0
  %2431 = vmatprep.subr.bf16.mxu0 0
  %2432 = vmatpush1.bf16.msra.mxu0 0
  %2433 = vmatprep.subr.bf16.mxu0 0
  %2434 = vmatpush1.bf16.msra.mxu0 0
  %2435 = vmatprep.subr.bf16.mxu0 0
  %2436 = vmatpush1.bf16.msra.mxu0 0
  %2437 = vmatprep.subr.bf16.mxu0 0
  %2438 = vmatpush1.bf16.msra.mxu0 0
  %2439 = vmatprep.subr.bf16.mxu0 0
  %2440 = vmatpush1.bf16.msra.mxu0 0
  %2441 = vmatprep.subr.bf16.mxu0 0
  %2442 = vmatpush1.bf16.msra.mxu0 %v2425
  %2443 = vmatprep.subr.bf16.mxu0 0
  %2444 = vmatpush2.bf16.msra.mxu0 0
  %2445 = vmatprep.subr.bf16.mxu0 0
  %2446 = vmatpush2.bf16.msra.mxu0 0
  %2447 = vmatprep.subr.bf16.mxu0 0
  %2448 = vmatpush2.bf16.msra.mxu0 0
  %2449 = vmatprep.subr.bf16.mxu0 0
  %2450 = vmatpush2.bf16.msra.mxu0 0
  %2451 = vmatprep.subr.bf16.mxu0 0
  %2452 = vmatpush2.bf16.msra.mxu0 0
  %2453 = vmatprep.subr.bf16.mxu0 0
  %2454 = vmatpush2.bf16.msra.mxu0 0
  %2455 = vmatprep.subr.bf16.mxu0 0
  %2456 = vmatpush2.bf16.msra.mxu0 0
  %2457 = vmatprep.subr.bf16.mxu0 0
  %2458 = vmatpush2.bf16.msra.mxu0 0
  %2459 = vmatprep.mubr.bf16.mxu0 0
  %2460 = vmatmul.mubr.bf16.gmra.mxu0 %v2422
  %v2461 = vpop.f32.mrf.mxu0
  %v2462 = vadd.f32 0.0, %v2461
  %v2463 = vpop.f32.mrf.mxu0
  %v2464 = vpop.f32.mrf.mxu0
  %v2465 = vpop.f32.mrf.mxu0
  %2466 = vdwg.mxu0
  %2467 = vrot.lane.b32.xlu0 %v41, 108
  %v2468 = vpop.permute.xlu0 %2467
  %v2470 = vsel %vm880, %v2220, 0
  %v2473 = vand.u32 %v2468, %v887
  %2475 = vmatprep.subr.bf16.mxu0 0
  %2476 = vmatpush1.bf16.msra.mxu0 0
  %2477 = vmatprep.subr.bf16.mxu0 0
  %2478 = vmatpush1.bf16.msra.mxu0 0
  %2479 = vmatprep.subr.bf16.mxu0 0
  %2480 = vmatpush1.bf16.msra.mxu0 0
  %2481 = vmatprep.subr.bf16.mxu0 0
  %2482 = vmatpush1.bf16.msra.mxu0 0
  %2483 = vmatprep.subr.bf16.mxu0 0
  %2484 = vmatpush1.bf16.msra.mxu0 0
  %2485 = vmatprep.subr.bf16.mxu0 0
  %2486 = vmatpush1.bf16.msra.mxu0 0
  %2487 = vmatprep.subr.bf16.mxu0 0
  %2488 = vmatpush1.bf16.msra.mxu0 0
  %2489 = vmatprep.subr.bf16.mxu0 0
  %2490 = vmatpush1.bf16.msra.mxu0 %v2473
  %2491 = vmatprep.subr.bf16.mxu0 0
  %2492 = vmatpush2.bf16.msra.mxu0 0
  %2493 = vmatprep.subr.bf16.mxu0 0
  %2494 = vmatpush2.bf16.msra.mxu0 0
  %2495 = vmatprep.subr.bf16.mxu0 0
  %2496 = vmatpush2.bf16.msra.mxu0 0
  %2497 = vmatprep.subr.bf16.mxu0 0
  %2498 = vmatpush2.bf16.msra.mxu0 0
  %2499 = vmatprep.subr.bf16.mxu0 0
  %2500 = vmatpush2.bf16.msra.mxu0 0
  %2501 = vmatprep.subr.bf16.mxu0 0
  %2502 = vmatpush2.bf16.msra.mxu0 0
  %2503 = vmatprep.subr.bf16.mxu0 0
  %2504 = vmatpush2.bf16.msra.mxu0 0
  %2505 = vmatprep.subr.bf16.mxu0 0
  %2506 = vmatpush2.bf16.msra.mxu0 0
  %2507 = vmatprep.mubr.bf16.mxu0 0
  %2508 = vmatmul.mubr.bf16.gmra.mxu0 %v2470
  %v2509 = vpop.f32.mrf.mxu0
  %v2510 = vadd.f32 0.0, %v2509
  %v2511 = vpop.f32.mrf.mxu0
  %v2512 = vpop.f32.mrf.mxu0
  %v2513 = vpop.f32.mrf.mxu0
  %2514 = vdwg.mxu0
  %2515 = vrot.lane.b32.xlu0 %v42, 108
  %v2516 = vpop.permute.xlu0 %2515
  %v2518 = vsel %vm880, %v2221, 0
  %v2521 = vand.u32 %v2516, %v887
  %2523 = vmatprep.subr.bf16.mxu0 0
  %2524 = vmatpush1.bf16.msra.mxu0 0
  %2525 = vmatprep.subr.bf16.mxu0 0
  %2526 = vmatpush1.bf16.msra.mxu0 0
  %2527 = vmatprep.subr.bf16.mxu0 0
  %2528 = vmatpush1.bf16.msra.mxu0 0
  %2529 = vmatprep.subr.bf16.mxu0 0
  %2530 = vmatpush1.bf16.msra.mxu0 0
  %2531 = vmatprep.subr.bf16.mxu0 0
  %2532 = vmatpush1.bf16.msra.mxu0 0
  %2533 = vmatprep.subr.bf16.mxu0 0
  %2534 = vmatpush1.bf16.msra.mxu0 0
  %2535 = vmatprep.subr.bf16.mxu0 0
  %2536 = vmatpush1.bf16.msra.mxu0 0
  %2537 = vmatprep.subr.bf16.mxu0 0
  %2538 = vmatpush1.bf16.msra.mxu0 %v2521
  %2539 = vmatprep.subr.bf16.mxu0 0
  %2540 = vmatpush2.bf16.msra.mxu0 0
  %2541 = vmatprep.subr.bf16.mxu0 0
  %2542 = vmatpush2.bf16.msra.mxu0 0
  %2543 = vmatprep.subr.bf16.mxu0 0
  %2544 = vmatpush2.bf16.msra.mxu0 0
  %2545 = vmatprep.subr.bf16.mxu0 0
  %2546 = vmatpush2.bf16.msra.mxu0 0
  %2547 = vmatprep.subr.bf16.mxu0 0
  %2548 = vmatpush2.bf16.msra.mxu0 0
  %2549 = vmatprep.subr.bf16.mxu0 0
  %2550 = vmatpush2.bf16.msra.mxu0 0
  %2551 = vmatprep.subr.bf16.mxu0 0
  %2552 = vmatpush2.bf16.msra.mxu0 0
  %2553 = vmatprep.subr.bf16.mxu0 0
  %2554 = vmatpush2.bf16.msra.mxu0 0
  %2555 = vmatprep.mubr.bf16.mxu0 0
  %2556 = vmatmul.mubr.bf16.gmra.mxu0 %v2518
  %v2557 = vpop.f32.mrf.mxu0
  %v2558 = vadd.f32 0.0, %v2557
  %v2559 = vpop.f32.mrf.mxu0
  %v2560 = vpop.f32.mrf.mxu0
  %v2561 = vpop.f32.mrf.mxu0
  %2562 = vdwg.mxu0
  %2563 = vrot.lane.b32.xlu0 %v43, 108
  %v2564 = vpop.permute.xlu0 %2563
  %v2566 = vsel %vm880, %v2222, 0
  %v2569 = vand.u32 %v2564, %v887
  %2571 = vmatprep.subr.bf16.mxu0 0
  %2572 = vmatpush1.bf16.msra.mxu0 0
  %2573 = vmatprep.subr.bf16.mxu0 0
  %2574 = vmatpush1.bf16.msra.mxu0 0
  %2575 = vmatprep.subr.bf16.mxu0 0
  %2576 = vmatpush1.bf16.msra.mxu0 0
  %2577 = vmatprep.subr.bf16.mxu0 0
  %2578 = vmatpush1.bf16.msra.mxu0 0
  %2579 = vmatprep.subr.bf16.mxu0 0
  %2580 = vmatpush1.bf16.msra.mxu0 0
  %2581 = vmatprep.subr.bf16.mxu0 0
  %2582 = vmatpush1.bf16.msra.mxu0 0
  %2583 = vmatprep.subr.bf16.mxu0 0
  %2584 = vmatpush1.bf16.msra.mxu0 0
  %2585 = vmatprep.subr.bf16.mxu0 0
  %2586 = vmatpush1.bf16.msra.mxu0 %v2569
  %2587 = vmatprep.subr.bf16.mxu0 0
  %2588 = vmatpush2.bf16.msra.mxu0 0
  %2589 = vmatprep.subr.bf16.mxu0 0
  %2590 = vmatpush2.bf16.msra.mxu0 0
  %2591 = vmatprep.subr.bf16.mxu0 0
  %2592 = vmatpush2.bf16.msra.mxu0 0
  %2593 = vmatprep.subr.bf16.mxu0 0
  %2594 = vmatpush2.bf16.msra.mxu0 0
  %2595 = vmatprep.subr.bf16.mxu0 0
  %2596 = vmatpush2.bf16.msra.mxu0 0
  %2597 = vmatprep.subr.bf16.mxu0 0
  %2598 = vmatpush2.bf16.msra.mxu0 0
  %2599 = vmatprep.subr.bf16.mxu0 0
  %2600 = vmatpush2.bf16.msra.mxu0 0
  %2601 = vmatprep.subr.bf16.mxu0 0
  %2602 = vmatpush2.bf16.msra.mxu0 0
  %2603 = vmatprep.mubr.bf16.mxu0 0
  %2604 = vmatmul.mubr.bf16.gmra.mxu0 %v2566
  %v2605 = vpop.f32.mrf.mxu0
  %v2606 = vadd.f32 0.0, %v2605
  %v2607 = vpop.f32.mrf.mxu0
  %v2608 = vpop.f32.mrf.mxu0
  %v2609 = vpop.f32.mrf.mxu0
  %2610 = vdwg.mxu0
  %2611 = vrot.lane.b32.xlu0 %v44, 108
  %v2612 = vpop.permute.xlu0 %2611
  %v2614 = vsel %vm880, %v2223, 0
  %v2617 = vand.u32 %v2612, %v887
  %2619 = vmatprep.subr.bf16.mxu0 0
  %2620 = vmatpush1.bf16.msra.mxu0 0
  %2621 = vmatprep.subr.bf16.mxu0 0
  %2622 = vmatpush1.bf16.msra.mxu0 0
  %2623 = vmatprep.subr.bf16.mxu0 0
  %2624 = vmatpush1.bf16.msra.mxu0 0
  %2625 = vmatprep.subr.bf16.mxu0 0
  %2626 = vmatpush1.bf16.msra.mxu0 0
  %2627 = vmatprep.subr.bf16.mxu0 0
  %2628 = vmatpush1.bf16.msra.mxu0 0
  %2629 = vmatprep.subr.bf16.mxu0 0
  %2630 = vmatpush1.bf16.msra.mxu0 0
  %2631 = vmatprep.subr.bf16.mxu0 0
  %2632 = vmatpush1.bf16.msra.mxu0 0
  %2633 = vmatprep.subr.bf16.mxu0 0
  %2634 = vmatpush1.bf16.msra.mxu0 %v2617
  %2635 = vmatprep.subr.bf16.mxu0 0
  %2636 = vmatpush2.bf16.msra.mxu0 0
  %2637 = vmatprep.subr.bf16.mxu0 0
  %2638 = vmatpush2.bf16.msra.mxu0 0
  %2639 = vmatprep.subr.bf16.mxu0 0
  %2640 = vmatpush2.bf16.msra.mxu0 0
  %2641 = vmatprep.subr.bf16.mxu0 0
  %2642 = vmatpush2.bf16.msra.mxu0 0
  %2643 = vmatprep.subr.bf16.mxu0 0
  %2644 = vmatpush2.bf16.msra.mxu0 0
  %2645 = vmatprep.subr.bf16.mxu0 0
  %2646 = vmatpush2.bf16.msra.mxu0 0
  %2647 = vmatprep.subr.bf16.mxu0 0
  %2648 = vmatpush2.bf16.msra.mxu0 0
  %2649 = vmatprep.subr.bf16.mxu0 0
  %2650 = vmatpush2.bf16.msra.mxu0 0
  %2651 = vmatprep.mubr.bf16.mxu0 0
  %2652 = vmatmul.mubr.bf16.gmra.mxu0 %v2614
  %v2653 = vpop.f32.mrf.mxu0
  %v2654 = vadd.f32 0.0, %v2653
  %v2655 = vpop.f32.mrf.mxu0
  %v2656 = vpop.f32.mrf.mxu0
  %v2657 = vpop.f32.mrf.mxu0
  %2658 = vdwg.mxu0
  %2659 = vrot.lane.b32.xlu0 %v45, 108
  %v2660 = vpop.permute.xlu0 %2659
  %v2662 = vsel %vm880, %v2224, 0
  %v2665 = vand.u32 %v2660, %v887
  %2667 = vmatprep.subr.bf16.mxu0 0
  %2668 = vmatpush1.bf16.msra.mxu0 0
  %2669 = vmatprep.subr.bf16.mxu0 0
  %2670 = vmatpush1.bf16.msra.mxu0 0
  %2671 = vmatprep.subr.bf16.mxu0 0
  %2672 = vmatpush1.bf16.msra.mxu0 0
  %2673 = vmatprep.subr.bf16.mxu0 0
  %2674 = vmatpush1.bf16.msra.mxu0 0
  %2675 = vmatprep.subr.bf16.mxu0 0
  %2676 = vmatpush1.bf16.msra.mxu0 0
  %2677 = vmatprep.subr.bf16.mxu0 0
  %2678 = vmatpush1.bf16.msra.mxu0 0
  %2679 = vmatprep.subr.bf16.mxu0 0
  %2680 = vmatpush1.bf16.msra.mxu0 0
  %2681 = vmatprep.subr.bf16.mxu0 0
  %2682 = vmatpush1.bf16.msra.mxu0 %v2665
  %2683 = vmatprep.subr.bf16.mxu0 0
  %2684 = vmatpush2.bf16.msra.mxu0 0
  %2685 = vmatprep.subr.bf16.mxu0 0
  %2686 = vmatpush2.bf16.msra.mxu0 0
  %2687 = vmatprep.subr.bf16.mxu0 0
  %2688 = vmatpush2.bf16.msra.mxu0 0
  %2689 = vmatprep.subr.bf16.mxu0 0
  %2690 = vmatpush2.bf16.msra.mxu0 0
  %2691 = vmatprep.subr.bf16.mxu0 0
  %2692 = vmatpush2.bf16.msra.mxu0 0
  %2693 = vmatprep.subr.bf16.mxu0 0
  %2694 = vmatpush2.bf16.msra.mxu0 0
  %2695 = vmatprep.subr.bf16.mxu0 0
  %2696 = vmatpush2.bf16.msra.mxu0 0
  %2697 = vmatprep.subr.bf16.mxu0 0
  %2698 = vmatpush2.bf16.msra.mxu0 0
  %2699 = vmatprep.mubr.bf16.mxu0 0
  %2700 = vmatmul.mubr.bf16.gmra.mxu0 %v2662
  %v2701 = vpop.f32.mrf.mxu0
  %v2702 = vadd.f32 0.0, %v2701
  %v2703 = vpop.f32.mrf.mxu0
  %v2704 = vpop.f32.mrf.mxu0
  %v2705 = vpop.f32.mrf.mxu0
  %2706 = vdwg.mxu0
  %2707 = vrot.lane.b32.xlu0 %v46, 108
  %v2708 = vpop.permute.xlu0 %2707
  %v2710 = vsel %vm880, %v2225, 0
  %v2713 = vand.u32 %v2708, %v887
  %2715 = vmatprep.subr.bf16.mxu0 0
  %2716 = vmatpush1.bf16.msra.mxu0 0
  %2717 = vmatprep.subr.bf16.mxu0 0
  %2718 = vmatpush1.bf16.msra.mxu0 0
  %2719 = vmatprep.subr.bf16.mxu0 0
  %2720 = vmatpush1.bf16.msra.mxu0 0
  %2721 = vmatprep.subr.bf16.mxu0 0
  %2722 = vmatpush1.bf16.msra.mxu0 0
  %2723 = vmatprep.subr.bf16.mxu0 0
  %2724 = vmatpush1.bf16.msra.mxu0 0
  %2725 = vmatprep.subr.bf16.mxu0 0
  %2726 = vmatpush1.bf16.msra.mxu0 0
  %2727 = vmatprep.subr.bf16.mxu0 0
  %2728 = vmatpush1.bf16.msra.mxu0 0
  %2729 = vmatprep.subr.bf16.mxu0 0
  %2730 = vmatpush1.bf16.msra.mxu0 %v2713
  %2731 = vmatprep.subr.bf16.mxu0 0
  %2732 = vmatpush2.bf16.msra.mxu0 0
  %2733 = vmatprep.subr.bf16.mxu0 0
  %2734 = vmatpush2.bf16.msra.mxu0 0
  %2735 = vmatprep.subr.bf16.mxu0 0
  %2736 = vmatpush2.bf16.msra.mxu0 0
  %2737 = vmatprep.subr.bf16.mxu0 0
  %2738 = vmatpush2.bf16.msra.mxu0 0
  %2739 = vmatprep.subr.bf16.mxu0 0
  %2740 = vmatpush2.bf16.msra.mxu0 0
  %2741 = vmatprep.subr.bf16.mxu0 0
  %2742 = vmatpush2.bf16.msra.mxu0 0
  %2743 = vmatprep.subr.bf16.mxu0 0
  %2744 = vmatpush2.bf16.msra.mxu0 0
  %2745 = vmatprep.subr.bf16.mxu0 0
  %2746 = vmatpush2.bf16.msra.mxu0 0
  %2747 = vmatprep.mubr.bf16.mxu0 0
  %2748 = vmatmul.mubr.bf16.gmra.mxu0 %v2710
  %v2749 = vpop.f32.mrf.mxu0
  %v2750 = vadd.f32 0.0, %v2749
  %v2751 = vpop.f32.mrf.mxu0
  %v2752 = vpop.f32.mrf.mxu0
  %v2753 = vpop.f32.mrf.mxu0
  %2754 = vdwg.mxu0
  %2755 = vrot.lane.b32.xlu0 %v47, 108
  %v2756 = vpop.permute.xlu0 %2755
  %v2758 = vsel %vm880, %v2226, 0
  %v2761 = vand.u32 %v2756, %v887
  %2763 = vmatprep.subr.bf16.mxu0 0
  %2764 = vmatpush1.bf16.msra.mxu0 0
  %2765 = vmatprep.subr.bf16.mxu0 0
  %2766 = vmatpush1.bf16.msra.mxu0 0
  %2767 = vmatprep.subr.bf16.mxu0 0
  %2768 = vmatpush1.bf16.msra.mxu0 0
  %2769 = vmatprep.subr.bf16.mxu0 0
  %2770 = vmatpush1.bf16.msra.mxu0 0
  %2771 = vmatprep.subr.bf16.mxu0 0
  %2772 = vmatpush1.bf16.msra.mxu0 0
  %2773 = vmatprep.subr.bf16.mxu0 0
  %2774 = vmatpush1.bf16.msra.mxu0 0
  %2775 = vmatprep.subr.bf16.mxu0 0
  %2776 = vmatpush1.bf16.msra.mxu0 0
  %2777 = vmatprep.subr.bf16.mxu0 0
  %2778 = vmatpush1.bf16.msra.mxu0 %v2761
  %2779 = vmatprep.subr.bf16.mxu0 0
  %2780 = vmatpush2.bf16.msra.mxu0 0
  %2781 = vmatprep.subr.bf16.mxu0 0
  %2782 = vmatpush2.bf16.msra.mxu0 0
  %2783 = vmatprep.subr.bf16.mxu0 0
  %2784 = vmatpush2.bf16.msra.mxu0 0
  %2785 = vmatprep.subr.bf16.mxu0 0
  %2786 = vmatpush2.bf16.msra.mxu0 0
  %2787 = vmatprep.subr.bf16.mxu0 0
  %2788 = vmatpush2.bf16.msra.mxu0 0
  %2789 = vmatprep.subr.bf16.mxu0 0
  %2790 = vmatpush2.bf16.msra.mxu0 0
  %2791 = vmatprep.subr.bf16.mxu0 0
  %2792 = vmatpush2.bf16.msra.mxu0 0
  %2793 = vmatprep.subr.bf16.mxu0 0
  %2794 = vmatpush2.bf16.msra.mxu0 0
  %2795 = vmatprep.mubr.bf16.mxu0 0
  %2796 = vmatmul.mubr.bf16.gmra.mxu0 %v2758
  %v2797 = vpop.f32.mrf.mxu0
  %v2798 = vadd.f32 0.0, %v2797
  %v2799 = vpop.f32.mrf.mxu0
  %v2800 = vpop.f32.mrf.mxu0
  %v2801 = vpop.f32.mrf.mxu0
  %2802 = vdwg.mxu0
  %2815 = vrot.lane.b32.xlu0 %v2270, 4
  %v2816 = vpop.permute.xlu0 %2815
  %2817 = vrot.lane.b32.xlu0 %v2318, 4
  %v2818 = vpop.permute.xlu0 %2817
  %2819 = vrot.lane.b32.xlu0 %v2366, 4
  %v2820 = vpop.permute.xlu0 %2819
  %2821 = vrot.lane.b32.xlu0 %v2414, 4
  %v2822 = vpop.permute.xlu0 %2821
  %2823 = vrot.lane.b32.xlu0 %v2462, 4
  %v2824 = vpop.permute.xlu0 %2823
  %2825 = vrot.lane.b32.xlu0 %v2510, 4
  %v2826 = vpop.permute.xlu0 %2825
  %2827 = vrot.lane.b32.xlu0 %v2558, 4
  %v2828 = vpop.permute.xlu0 %2827
  %2829 = vrot.lane.b32.xlu0 %v2606, 4
  %v2830 = vpop.permute.xlu0 %2829
  %2831 = vrot.lane.b32.xlu0 %v2654, 4
  %v2832 = vpop.permute.xlu0 %2831
  %2833 = vrot.lane.b32.xlu0 %v2702, 4
  %v2834 = vpop.permute.xlu0 %2833
  %2835 = vrot.lane.b32.xlu0 %v2750, 4
  %v2836 = vpop.permute.xlu0 %2835
  %2837 = vrot.lane.b32.xlu0 %v2798, 4
  %v2838 = vpop.permute.xlu0 %2837
  %v2851 = vsel %vm51, %v926, %v2816
  %v2852 = vsel %vm51, %v974, %v2818
  %v2853 = vsel %vm51, %v1022, %v2820
  %v2854 = vsel %vm51, %v1070, %v2822
  %v2855 = vsel %vm51, %v1118, %v2824
  %v2856 = vsel %vm51, %v1166, %v2826
  %v2857 = vsel %vm51, %v1214, %v2828
  %v2858 = vsel %vm51, %v1262, %v2830
  %v2859 = vsel %vm51, %v1310, %v2832
  %v2860 = vsel %vm51, %v1358, %v2834
  %v2861 = vsel %vm51, %v1406, %v2836
  %v2862 = vsel %vm51, %v1454, %v2838
  %vm2863 = vcmask 59392
  %2864 = vst.msk [vmem:[%s2] sm:$0x7] %vm2863, %v2851
  %2865 = vst.msk [vmem:[%s2 + $0x4] sm:$0x7] %vm2863, %v2852
  %2866 = vst.msk [vmem:[%s2 + $0x8] sm:$0x7] %vm2863, %v2853
  %2867 = vst.msk [vmem:[%s2 + $0xc] sm:$0x7] %vm2863, %v2854
  %2868 = vst.msk [vmem:[%s2 + $0x10] sm:$0x7] %vm2863, %v2855
  %2869 = vst.msk [vmem:[%s2 + $0x14] sm:$0x7] %vm2863, %v2856
  %2870 = vst.msk [vmem:[%s2 + $0x18] sm:$0x7] %vm2863, %v2857
  %2871 = vst.msk [vmem:[%s2 + $0x1c] sm:$0x7] %vm2863, %v2858
  %2872 = vst.msk [vmem:[%s2 + $0x20] sm:$0x7] %vm2863, %v2859
  %2873 = vst.msk [vmem:[%s2 + $0x24] sm:$0x7] %vm2863, %v2860
  %2874 = vst.msk [vmem:[%s2 + $0x28] sm:$0x7] %vm2863, %v2861
  %2875 = vst.msk [vmem:[%s2 + $0x2c] sm:$0x7] %vm2863, %v2862
  // Predicated region
  $region10: #{_lambda_.11} parent=0 // pred_check
    _
  $region11: #{_lambda_.11} parent=0 // pred_check_branch
    %2877 = sbr.rel (0) target = $region13
  $region12: #{_lambda_.11} parent=0 // pred_region
    _
  $region13: #{_lambda_.11} parent=0 // pred_fallthru
    _
  // Predicated region
  $region14: #{_lambda_.11} parent=0 // pred_check
    _
  $region15: #{_lambda_.11} parent=0 // pred_check_branch
    %2879 = sbr.rel (0) target = $region17
  $region16: #{_lambda_.11} parent=0 // pred_region
    _
  $region17: #{_lambda_.11} parent=0 // pred_fallthru
    _

// kernel: _lambda_.12
$region0: #{_lambda_.12}
  #allocation0 [shape = 'u32[]', space=smem, size = 0x4, offset = 0x4, fixed_abs, tag = 'smem constant byte address 0x4 - core index']
  #allocation1 [shape = 'u32[144,128]{1,0:T(1,128)}', space=vmem, size = 0x12000, scoped, tag = 'internal scratch']
  %s0 = inlined_call_operand.vmem [shape: f32[36,8], index: 0, kind: input, shape index: {}]
  %s1 = inlined_call_operand.vmem [shape: f32[36,8], index: 1, kind: input, shape index: {}]
  %s2 = inlined_call_operand.vmem [shape: f32[8,8], index: 2, kind: input, shape index: {}]
  %s3 = inlined_call_operand.vmem [shape: f32[1,8], index: 3, kind: input, shape index: {}]
  %s4 = inlined_call_operand.vmem [shape: f32[1,8], index: 4, kind: input, shape index: {}]
  %s5 = inlined_call_operand.vmem [shape: f32[1,8], index: 5, kind: input, shape index: {}]
  %s6 = inlined_call_operand.vmem [shape: f32[8,2048], index: 6, kind: input, shape index: {}]
  %s7 = inlined_call_operand.vmem [shape: f32[1,2048], index: 7, kind: input, shape index: {}]
  %s8 = inlined_call_operand.vmem [shape: f32[2048,8], index: 8, kind: input, shape index: {}]
  %s9 = inlined_call_operand.vmem [shape: f32[1,8], index: 9, kind: input, shape index: {}]
  %s10 = inlined_call_operand.vmem [shape: f32[1,8], index: 10, kind: input, shape index: {}]
  %s11 = inlined_call_operand.vmem [shape: f32[1,8], index: 11, kind: input, shape index: {}]
  %s12 = inlined_call_operand.vmem [shape: f32[36,8], index: 12, kind: output, shape index: {}]
  %s13 = sld [smem:[#allocation0]]
  $region58: #{_lambda_.12} parent=0
    _
  %s15 = ssub.s32 1, %s13
  %s16 = scalar_select 0, %s15, %s13
  // Predicated region
  $region2: #{_lambda_.12} parent=0 // pred_check
    _
  $region3: #{_lambda_.12} parent=0 // pred_check_branch
    %18 = sbr.rel (0) target = $region5
  $region4: #{_lambda_.12} parent=0 // pred_region
    _
  $region5: #{_lambda_.12} parent=0 // pred_fallthru
    _
  // Predicated region
  $region6: #{_lambda_.12} parent=0 // pred_check
    _
  $region7: #{_lambda_.12} parent=0 // pred_check_branch
    %20 = sbr.rel (0) target = $region9
  $region8: #{_lambda_.12} parent=0 // pred_region
    _
  $region9: #{_lambda_.12} parent=0 // pred_fallthru
    _
  // Predicated region
  $region10: #{_lambda_.12} parent=0 // pred_check
    _
  $region11: #{_lambda_.12} parent=0 // pred_check_branch
    %22 = sbr.rel (0) target = $region13
  $region12: #{_lambda_.12} parent=0 // pred_region
    _
  $region13: #{_lambda_.12} parent=0 // pred_fallthru
    _
  // Predicated region
  $region14: #{_lambda_.12} parent=0 // pred_check
    _
  $region15: #{_lambda_.12} parent=0 // pred_check_branch
    %24 = sbr.rel (0) target = $region17
  $region16: #{_lambda_.12} parent=0 // pred_region
    _
  $region17: #{_lambda_.12} parent=0 // pred_fallthru
    _
  // Predicated region
  $region18: #{_lambda_.12} parent=0 // pred_check
    _
  $region19: #{_lambda_.12} parent=0 // pred_check_branch
    %26 = sbr.rel (0) target = $region21
  $region20: #{_lambda_.12} parent=0 // pred_region
    _
  $region21: #{_lambda_.12} parent=0 // pred_fallthru
    _
  // Predicated region
  $region22: #{_lambda_.12} parent=0 // pred_check
    _
  $region23: #{_lambda_.12} parent=0 // pred_check_branch
    %28 = sbr.rel (0) target = $region25
  $region24: #{_lambda_.12} parent=0 // pred_region
    _
  $region25: #{_lambda_.12} parent=0 // pred_fallthru
    _
  // Predicated region
  $region26: #{_lambda_.12} parent=0 // pred_check
    _
  $region27: #{_lambda_.12} parent=0 // pred_check_branch
    %30 = sbr.rel (0) target = $region29
  $region28: #{_lambda_.12} parent=0 // pred_region
    _
  $region29: #{_lambda_.12} parent=0 // pred_fallthru
    _
  // Predicated region
  $region30: #{_lambda_.12} parent=0 // pred_check
    _
  $region31: #{_lambda_.12} parent=0 // pred_check_branch
    %32 = sbr.rel (0) target = $region33
  $region32: #{_lambda_.12} parent=0 // pred_region
    _
  $region33: #{_lambda_.12} parent=0 // pred_fallthru
    _
  // Predicated region
  $region34: #{_lambda_.12} parent=0 // pred_check
    _
  $region35: #{_lambda_.12} parent=0 // pred_check_branch
    %34 = sbr.rel (0) target = $region37
  $region36: #{_lambda_.12} parent=0 // pred_region
    _
  $region37: #{_lambda_.12} parent=0 // pred_fallthru
    _
  // Predicated region
  $region38: #{_lambda_.12} parent=0 // pred_check
    _
  $region39: #{_lambda_.12} parent=0 // pred_check_branch
    %36 = sbr.rel (0) target = $region41
  $region40: #{_lambda_.12} parent=0 // pred_region
    _
  $region41: #{_lambda_.12} parent=0 // pred_fallthru
    _
  // Predicated region
  $region42: #{_lambda_.12} parent=0 // pred_check
    _
  $region43: #{_lambda_.12} parent=0 // pred_check_branch
    %38 = sbr.rel (0) target = $region45
  $region44: #{_lambda_.12} parent=0 // pred_region
    _
  $region45: #{_lambda_.12} parent=0 // pred_fallthru
    _
  // Predicated region
  $region46: #{_lambda_.12} parent=0 // pred_check
    _
  $region47: #{_lambda_.12} parent=0 // pred_check_branch
    %40 = sbr.rel (0) target = $region49
  $region48: #{_lambda_.12} parent=0 // pred_region
    _
  $region49: #{_lambda_.12} parent=0 // pred_fallthru
    _
  %v42 = vld [vmem:[%s0] sm:$0xff]
  %v43 = vld [vmem:[%s0 + $0x8] sm:$0xff]
  %v44 = vld [vmem:[%s0 + $0x10] sm:$0xff]
  %v45 = vld [vmem:[%s0 + $0x18] sm:$0xff]
  %v46 = vld [vmem:[%s0 + $0x20] sm:$0xf]
  %v47 = vpack.c.bf16 %v43, %v42
  %v48 = vpack.c.bf16 %v45, %v44
  %v49 = vpack.c.bf16 %v46, %v46
  %v50 = vld [vmem:[%s2] sm:$0xff]
  %v51 = vpack.c.bf16 %v50, %v50
  %v52 = vld [vmem:[%s3] sm:$0x1]
  %v54 = vlaneseq
  %v55 = vshrl.u32 %v54, 7
  %v56 = vsub.s32 0, %v55
  %v57 = vrot.slane %v52, %v56
  %vm59 = vcmask 64512
  %v61 = vsel %vm59, %v47, 0
  %v64 = vsel %vm59, %v48, 0
  %v67 = vsel %vm59, %v49, 0
  %vm69 = vcmask 1043456
  %v71 = vsel %vm69, %v51, 0
  %73 = vmatprep.subr.bf16.mxu0 0
  %74 = vmatpush1.bf16.msra.mxu0 0
  %75 = vmatprep.subr.bf16.mxu0 0
  %76 = vmatpush1.bf16.msra.mxu0 0
  %77 = vmatprep.subr.bf16.mxu0 0
  %78 = vmatpush1.bf16.msra.mxu0 0
  %79 = vmatprep.subr.bf16.mxu0 0
  %80 = vmatpush1.bf16.msra.mxu0 0
  %81 = vmatprep.subr.bf16.mxu0 0
  %82 = vmatpush1.bf16.msra.mxu0 0
  %83 = vmatprep.subr.bf16.mxu0 0
  %84 = vmatpush1.bf16.msra.mxu0 0
  %85 = vmatprep.subr.bf16.mxu0 0
  %86 = vmatpush1.bf16.msra.mxu0 0
  %87 = vmatprep.subr.bf16.mxu0 0
  %88 = vmatpush1.bf16.msra.mxu0 %v71
  %89 = vmatprep.subr.bf16.mxu0 0
  %90 = vmatpush2.bf16.msra.mxu0 0
  %91 = vmatprep.subr.bf16.mxu0 0
  %92 = vmatpush2.bf16.msra.mxu0 0
  %93 = vmatprep.subr.bf16.mxu0 0
  %94 = vmatpush2.bf16.msra.mxu0 0
  %95 = vmatprep.subr.bf16.mxu0 0
  %96 = vmatpush2.bf16.msra.mxu0 0
  %97 = vmatprep.subr.bf16.mxu0 0
  %98 = vmatpush2.bf16.msra.mxu0 0
  %99 = vmatprep.subr.bf16.mxu0 0
  %100 = vmatpush2.bf16.msra.mxu0 0
  %101 = vmatprep.subr.bf16.mxu0 0
  %102 = vmatpush2.bf16.msra.mxu0 0
  %103 = vmatprep.subr.bf16.mxu0 0
  %104 = vmatpush2.bf16.msra.mxu0 0
  %105 = vmatprep.mubr.bf16.mxu0 0
  %106 = vmatmul.mubr.bf16.gmra.mxu0 %v61
  %v107 = vpop.f32.mrf.mxu0
  %v108 = vadd.f32 %v57, %v107
  %v109 = vpop.f32.mrf.mxu0
  %v110 = vpop.f32.mrf.mxu0
  %v111 = vadd.f32 %v57, %v110
  %v112 = vpop.f32.mrf.mxu0
  %113 = vmatprep.mubr.bf16.mxu0 0
  %114 = vmatmul.mubr.bf16.gmra.mxu0 %v64
  %v115 = vpop.f32.mrf.mxu0
  %v116 = vadd.f32 %v57, %v115
  %v117 = vpop.f32.mrf.mxu0
  %v118 = vpop.f32.mrf.mxu0
  %v119 = vadd.f32 %v57, %v118
  %v120 = vpop.f32.mrf.mxu0
  %121 = vmatprep.mubr.bf16.mxu0 0
  %122 = vmatmul.mubr.bf16.gmra.mxu0 %v67
  %v123 = vpop.f32.mrf.mxu0
  %v124 = vadd.f32 %v57, %v123
  %v125 = vpop.f32.mrf.mxu0
  %v126 = vpop.f32.mrf.mxu0
  %v127 = vpop.f32.mrf.mxu0
  %128 = vdwg.mxu0
  %v129 = vld [vmem:[%s1] sm:$0xff]
  %v130 = vld [vmem:[%s1 + $0x8] sm:$0xff]
  %v131 = vld [vmem:[%s1 + $0x10] sm:$0xff]
  %v132 = vld [vmem:[%s1 + $0x18] sm:$0xff]
  %v133 = vld [vmem:[%s1 + $0x20] sm:$0xf]
  %v134 = vadd.f32 %v129, %v108
  %v135 = vadd.f32 %v130, %v111
  %v136 = vadd.f32 %v131, %v116
  %v137 = vadd.f32 %v132, %v119
  %v138 = vadd.f32 %v133, %v124
  %v139 = vld [vmem:[%s4] sm:$0x1]
  %v140 = vld [vmem:[%s5] sm:$0x1]
  %v141 = vsel %vm59, %v134, 0.0
  %142 = vadd.xlane.f32.xlu0 %v141
  %v143 = vpop.xlane.xlu0 %142
  %v144 = vsel %vm59, %v135, 0.0
  %145 = vadd.xlane.f32.xlu0 %v144
  %v146 = vpop.xlane.xlu0 %145
  %v147 = vsel %vm59, %v136, 0.0
  %148 = vadd.xlane.f32.xlu0 %v147
  %v149 = vpop.xlane.xlu0 %148
  %v150 = vsel %vm59, %v137, 0.0
  %151 = vadd.xlane.f32.xlu0 %v150
  %v152 = vpop.xlane.xlu0 %151
  %vm153 = vcmask 60416
  %v154 = vsel %vm153, %v138, 0.0
  %155 = vadd.xlane.f32.xlu0 %v154
  %v156 = vpop.xlane.xlu0 %155
  %v157 = vrcp.pop 8.0
  %v158 = vmul.f32 %v143, %v157
  %v159 = vmul.f32 %v146, %v157
  %v160 = vmul.f32 %v149, %v157
  %v161 = vmul.f32 %v152, %v157
  %v162 = vmul.f32 %v156, %v157
  %v163 = vsub.f32 %v134, %v158
  %v164 = vsub.f32 %v135, %v159
  %v165 = vsub.f32 %v136, %v160
  %v166 = vsub.f32 %v137, %v161
  %v167 = vsub.f32 %v138, %v162
  %v168 = vmul.f32 %v163, %v163
  %v169 = vmul.f32 %v164, %v164
  %v170 = vmul.f32 %v165, %v165
  %v171 = vmul.f32 %v166, %v166
  %v172 = vmul.f32 %v167, %v167
  %v173 = vsel %vm59, %v168, 0.0
  %174 = vadd.xlane.f32.xlu0 %v173
  %v175 = vpop.xlane.xlu0 %174
  %v176 = vsel %vm59, %v169, 0.0
  %177 = vadd.xlane.f32.xlu0 %v176
  %v178 = vpop.xlane.xlu0 %177
  %v179 = vsel %vm59, %v170, 0.0
  %180 = vadd.xlane.f32.xlu0 %v179
  %v181 = vpop.xlane.xlu0 %180
  %v182 = vsel %vm59, %v171, 0.0
  %183 = vadd.xlane.f32.xlu0 %v182
  %v184 = vpop.xlane.xlu0 %183
  %v185 = vsel %vm153, %v172, 0.0
  %186 = vadd.xlane.f32.xlu0 %v185
  %v187 = vpop.xlane.xlu0 %186
  %v188 = vmul.f32 %v175, %v157
  %v189 = vmul.f32 %v178, %v157
  %v190 = vmul.f32 %v181, %v157
  %v191 = vmul.f32 %v184, %v157
  %v192 = vmul.f32 %v187, %v157
  %v193 = vadd.f32 %v188, 1e-05
  %v194 = vadd.f32 %v189, 1e-05
  %v195 = vadd.f32 %v190, 1e-05
  %v196 = vadd.f32 %v191, 1e-05
  %v197 = vadd.f32 %v192, 1e-05
  %v198 = vrsqrt.pop %v193
  %v199 = vrsqrt.pop %v194
  %v200 = vrsqrt.pop %v195
  %v201 = vrsqrt.pop %v196
  %v202 = vrsqrt.pop %v197
  %v203 = vmul.f32 %v163, %v198
  %v204 = vmul.f32 %v164, %v199
  %v205 = vmul.f32 %v165, %v200
  %v206 = vmul.f32 %v166, %v201
  %v207 = vmul.f32 %v167, %v202
  %v209 = vlaneseq
  %v210 = vshrl.u32 %v209, 7
  %v211 = vsub.s32 0, %v210
  %v212 = vrot.slane %v139, %v211
  %v214 = vmul.f32 %v203, %v212
  %v215 = vmul.f32 %v204, %v212
  %v216 = vmul.f32 %v205, %v212
  %v217 = vmul.f32 %v206, %v212
  %v218 = vmul.f32 %v207, %v212
  %v220 = vlaneseq
  %v221 = vshrl.u32 %v220, 7
  %v222 = vsub.s32 0, %v221
  %v223 = vrot.slane %v140, %v222
  %v225 = vadd.f32 %v214, %v223
  %v226 = vadd.f32 %v215, %v223
  %v227 = vadd.f32 %v216, %v223
  %v228 = vadd.f32 %v217, %v223
  %v229 = vadd.f32 %v218, %v223
  %v230 = vpack.c.bf16 %v226, %v225
  %v231 = vpack.c.bf16 %v228, %v227
  %v232 = vpack.c.bf16 %v229, %v229
  %v233 = vld [vmem:[%s6] sm:$0xff]
  %v234 = vld [vmem:[%s6 + $0x8] sm:$0xff]
  %v235 = vld [vmem:[%s6 + $0x10] sm:$0xff]
  %v236 = vld [vmem:[%s6 + $0x18] sm:$0xff]
  %v237 = vld [vmem:[%s6 + $0x20] sm:$0xff]
  %v238 = vld [vmem:[%s6 + $0x28] sm:$0xff]
  %v239 = vld [vmem:[%s6 + $0x30] sm:$0xff]
  %v240 = vld [vmem:[%s6 + $0x38] sm:$0xff]
  %v241 = vld [vmem:[%s6 + $0x40] sm:$0xff]
  %v242 = vld [vmem:[%s6 + $0x48] sm:$0xff]
  %v243 = vld [vmem:[%s6 + $0x50] sm:$0xff]
  %v244 = vld [vmem:[%s6 + $0x58] sm:$0xff]
  %v245 = vld [vmem:[%s6 + $0x60] sm:$0xff]
  %v246 = vld [vmem:[%s6 + $0x68] sm:$0xff]
  %v247 = vld [vmem:[%s6 + $0x70] sm:$0xff]
  %v248 = vld [vmem:[%s6 + $0x78] sm:$0xff]
  %v249 = vpack.c.bf16 %v233, %v233
  %v250 = vpack.c.bf16 %v234, %v234
  %v251 = vpack.c.bf16 %v235, %v235
  %v252 = vpack.c.bf16 %v236, %v236
  %v253 = vpack.c.bf16 %v237, %v237
  %v254 = vpack.c.bf16 %v238, %v238
  %v255 = vpack.c.bf16 %v239, %v239
  %v256 = vpack.c.bf16 %v240, %v240
  %v257 = vpack.c.bf16 %v241, %v241
  %v258 = vpack.c.bf16 %v242, %v242
  %v259 = vpack.c.bf16 %v243, %v243
  %v260 = vpack.c.bf16 %v244, %v244
  %v261 = vpack.c.bf16 %v245, %v245
  %v262 = vpack.c.bf16 %v246, %v246
  %v263 = vpack.c.bf16 %v247, %v247
  %v264 = vpack.c.bf16 %v248, %v248
  %v265 = vld [vmem:[%s7] sm:$0xff]
  %v266 = vld [vmem:[%s7 + $0x8] sm:$0xff]
  %v269 = vlaneseq
  %v270 = vshrl.u32 %v269, 7
  %v271 = vsub.s32 0, %v270
  %v272 = vrot.slane %v265, %v271
  %v273 = vlaneseq
  %v274 = vshrl.u32 %v273, 7
  %v275 = vsub.s32 1, %v274
  %v276 = vrot.slane %v265, %v275
  %v277 = vlaneseq
  %v278 = vshrl.u32 %v277, 7
  %v279 = vsub.s32 2, %v278
  %v280 = vrot.slane %v265, %v279
  %v281 = vlaneseq
  %v282 = vshrl.u32 %v281, 7
  %v283 = vsub.s32 3, %v282
  %v284 = vrot.slane %v265, %v283
  %v285 = vlaneseq
  %v286 = vshrl.u32 %v285, 7
  %v287 = vsub.s32 4, %v286
  %v288 = vrot.slane %v265, %v287
  %v289 = vlaneseq
  %v290 = vshrl.u32 %v289, 7
  %v291 = vsub.s32 5, %v290
  %v292 = vrot.slane %v265, %v291
  %v293 = vlaneseq
  %v294 = vshrl.u32 %v293, 7
  %v295 = vsub.s32 6, %v294
  %v296 = vrot.slane %v265, %v295
  %v297 = vlaneseq
  %v298 = vshrl.u32 %v297, 7
  %v299 = vsub.s32 7, %v298
  %v300 = vrot.slane %v265, %v299
  %v301 = vlaneseq
  %v302 = vshrl.u32 %v301, 7
  %v303 = vsub.s32 0, %v302
  %v304 = vrot.slane %v266, %v303
  %v305 = vlaneseq
  %v306 = vshrl.u32 %v305, 7
  %v307 = vsub.s32 1, %v306
  %v308 = vrot.slane %v266, %v307
  %v309 = vlaneseq
  %v310 = vshrl.u32 %v309, 7
  %v311 = vsub.s32 2, %v310
  %v312 = vrot.slane %v266, %v311
  %v313 = vlaneseq
  %v314 = vshrl.u32 %v313, 7
  %v315 = vsub.s32 3, %v314
  %v316 = vrot.slane %v266, %v315
  %v317 = vlaneseq
  %v318 = vshrl.u32 %v317, 7
  %v319 = vsub.s32 4, %v318
  %v320 = vrot.slane %v266, %v319
  %v321 = vlaneseq
  %v322 = vshrl.u32 %v321, 7
  %v323 = vsub.s32 5, %v322
  %v324 = vrot.slane %v266, %v323
  %v325 = vlaneseq
  %v326 = vshrl.u32 %v325, 7
  %v327 = vsub.s32 6, %v326
  %v328 = vrot.slane %v266, %v327
  %v329 = vlaneseq
  %v330 = vshrl.u32 %v329, 7
  %v331 = vsub.s32 7, %v330
  %v332 = vrot.slane %v266, %v331
  %v350 = vsel %vm59, %v230, 0
  %v353 = vsel %vm59, %v231, 0
  %v356 = vsel %vm59, %v232, 0
  %v359 = vsel %vm69, %v249, 0
  %v362 = vsel %vm69, %v250, 0
  %v365 = vsel %vm69, %v251, 0
  %v368 = vsel %vm69, %v252, 0
  %v371 = vsel %vm69, %v253, 0
  %v374 = vsel %vm69, %v254, 0
  %v377 = vsel %vm69, %v255, 0
  %v380 = vsel %vm69, %v256, 0
  %v383 = vsel %vm69, %v257, 0
  %v386 = vsel %vm69, %v258, 0
  %v389 = vsel %vm69, %v259, 0
  %v392 = vsel %vm69, %v260, 0
  %v395 = vsel %vm69, %v261, 0
  %v398 = vsel %vm69, %v262, 0
  %v401 = vsel %vm69, %v263, 0
  %v404 = vsel %vm69, %v264, 0
  %406 = vmatprep.subr.bf16.mxu0 0
  %407 = vmatpush1.bf16.msra.mxu0 0
  %408 = vmatprep.subr.bf16.mxu0 0
  %409 = vmatpush1.bf16.msra.mxu0 0
  %410 = vmatprep.subr.bf16.mxu0 0
  %411 = vmatpush1.bf16.msra.mxu0 0
  %412 = vmatprep.subr.bf16.mxu0 0
  %413 = vmatpush1.bf16.msra.mxu0 0
  %414 = vmatprep.subr.bf16.mxu0 0
  %415 = vmatpush1.bf16.msra.mxu0 0
  %416 = vmatprep.subr.bf16.mxu0 0
  %417 = vmatpush1.bf16.msra.mxu0 0
  %418 = vmatprep.subr.bf16.mxu0 0
  %419 = vmatpush1.bf16.msra.mxu0 0
  %420 = vmatprep.subr.bf16.mxu0 %v362
  %421 = vmatpush1.bf16.msra.mxu0 %v359
  %422 = vmatprep.subr.bf16.mxu0 0
  %423 = vmatpush2.bf16.msra.mxu0 0
  %424 = vmatprep.subr.bf16.mxu0 0
  %425 = vmatpush2.bf16.msra.mxu0 0
  %426 = vmatprep.subr.bf16.mxu0 0
  %427 = vmatpush2.bf16.msra.mxu0 0
  %428 = vmatprep.subr.bf16.mxu0 0
  %429 = vmatpush2.bf16.msra.mxu0 0
  %430 = vmatprep.subr.bf16.mxu0 0
  %431 = vmatpush2.bf16.msra.mxu0 0
  %432 = vmatprep.subr.bf16.mxu0 0
  %433 = vmatpush2.bf16.msra.mxu0 0
  %434 = vmatprep.subr.bf16.mxu0 0
  %435 = vmatpush2.bf16.msra.mxu0 0
  %436 = vmatprep.subr.bf16.mxu0 0
  %437 = vmatpush2.bf16.msra.mxu0 0
  %438 = vmatprep.mubr.bf16.mxu0 0
  %439 = vmatmul.mubr.bf16.gmra.mxu0 %v350
  %v440 = vpop.f32.mrf.mxu0
  %v441 = vadd.f32 %v272, %v440
  %v442 = vpop.f32.mrf.mxu0
  %v443 = vadd.f32 %v276, %v442
  %v444 = vpop.f32.mrf.mxu0
  %v445 = vadd.f32 %v272, %v444
  %v446 = vpop.f32.mrf.mxu0
  %v447 = vadd.f32 %v276, %v446
  %448 = vmatprep.mubr.bf16.mxu0 0
  %449 = vmatmul.mubr.bf16.gmra.mxu0 %v353
  %v450 = vpop.f32.mrf.mxu0
  %v451 = vadd.f32 %v272, %v450
  %v452 = vpop.f32.mrf.mxu0
  %v453 = vadd.f32 %v276, %v452
  %v454 = vpop.f32.mrf.mxu0
  %v455 = vadd.f32 %v272, %v454
  %v456 = vpop.f32.mrf.mxu0
  %v457 = vadd.f32 %v276, %v456
  %458 = vmatprep.mubr.bf16.mxu0 0
  %459 = vmatmul.mubr.bf16.gmra.mxu0 %v356
  %v460 = vpop.f32.mrf.mxu0
  %v461 = vadd.f32 %v272, %v460
  %v462 = vpop.f32.mrf.mxu0
  %v463 = vadd.f32 %v276, %v462
  %v464 = vpop.f32.mrf.mxu0
  %v465 = vpop.f32.mrf.mxu0
  %466 = vdwg.mxu0
  %467 = vmatprep.subr.bf16.mxu0 0
  %468 = vmatpush1.bf16.msra.mxu0 0
  %469 = vmatprep.subr.bf16.mxu0 0
  %470 = vmatpush1.bf16.msra.mxu0 0
  %471 = vmatprep.subr.bf16.mxu0 0
  %472 = vmatpush1.bf16.msra.mxu0 0
  %473 = vmatprep.subr.bf16.mxu0 0
  %474 = vmatpush1.bf16.msra.mxu0 0
  %475 = vmatprep.subr.bf16.mxu0 0
  %476 = vmatpush1.bf16.msra.mxu0 0
  %477 = vmatprep.subr.bf16.mxu0 0
  %478 = vmatpush1.bf16.msra.mxu0 0
  %479 = vmatprep.subr.bf16.mxu0 0
  %480 = vmatpush1.bf16.msra.mxu0 0
  %481 = vmatprep.subr.bf16.mxu0 %v368
  %482 = vmatpush1.bf16.msra.mxu0 %v365
  %483 = vmatprep.subr.bf16.mxu0 0
  %484 = vmatpush2.bf16.msra.mxu0 0
  %485 = vmatprep.subr.bf16.mxu0 0
  %486 = vmatpush2.bf16.msra.mxu0 0
  %487 = vmatprep.subr.bf16.mxu0 0
  %488 = vmatpush2.bf16.msra.mxu0 0
  %489 = vmatprep.subr.bf16.mxu0 0
  %490 = vmatpush2.bf16.msra.mxu0 0
  %491 = vmatprep.subr.bf16.mxu0 0
  %492 = vmatpush2.bf16.msra.mxu0 0
  %493 = vmatprep.subr.bf16.mxu0 0
  %494 = vmatpush2.bf16.msra.mxu0 0
  %495 = vmatprep.subr.bf16.mxu0 0
  %496 = vmatpush2.bf16.msra.mxu0 0
  %497 = vmatprep.subr.bf16.mxu0 0
  %498 = vmatpush2.bf16.msra.mxu0 0
  %499 = vmatprep.mubr.bf16.mxu0 0
  %500 = vmatmul.mubr.bf16.gmra.mxu0 %v350
  %v501 = vpop.f32.mrf.mxu0
  %v502 = vadd.f32 %v280, %v501
  %v503 = vpop.f32.mrf.mxu0
  %v504 = vadd.f32 %v284, %v503
  %v505 = vpop.f32.mrf.mxu0
  %v506 = vadd.f32 %v280, %v505
  %v507 = vpop.f32.mrf.mxu0
  %v508 = vadd.f32 %v284, %v507
  %509 = vmatprep.mubr.bf16.mxu0 0
  %510 = vmatmul.mubr.bf16.gmra.mxu0 %v353
  %v511 = vpop.f32.mrf.mxu0
  %v512 = vadd.f32 %v280, %v511
  %v513 = vpop.f32.mrf.mxu0
  %v514 = vadd.f32 %v284, %v513
  %v515 = vpop.f32.mrf.mxu0
  %v516 = vadd.f32 %v280, %v515
  %v517 = vpop.f32.mrf.mxu0
  %v518 = vadd.f32 %v284, %v517
  %519 = vmatprep.mubr.bf16.mxu0 0
  %520 = vmatmul.mubr.bf16.gmra.mxu0 %v356
  %v521 = vpop.f32.mrf.mxu0
  %v522 = vadd.f32 %v280, %v521
  %v523 = vpop.f32.mrf.mxu0
  %v524 = vadd.f32 %v284, %v523
  %v525 = vpop.f32.mrf.mxu0
  %v526 = vpop.f32.mrf.mxu0
  %527 = vdwg.mxu0
  %528 = vmatprep.subr.bf16.mxu0 0
  %529 = vmatpush1.bf16.msra.mxu0 0
  %530 = vmatprep.subr.bf16.mxu0 0
  %531 = vmatpush1.bf16.msra.mxu0 0
  %532 = vmatprep.subr.bf16.mxu0 0
  %533 = vmatpush1.bf16.msra.mxu0 0
  %534 = vmatprep.subr.bf16.mxu0 0
  %535 = vmatpush1.bf16.msra.mxu0 0
  %536 = vmatprep.subr.bf16.mxu0 0
  %537 = vmatpush1.bf16.msra.mxu0 0
  %538 = vmatprep.subr.bf16.mxu0 0
  %539 = vmatpush1.bf16.msra.mxu0 0
  %540 = vmatprep.subr.bf16.mxu0 0
  %541 = vmatpush1.bf16.msra.mxu0 0
  %542 = vmatprep.subr.bf16.mxu0 %v374
  %543 = vmatpush1.bf16.msra.mxu0 %v371
  %544 = vmatprep.subr.bf16.mxu0 0
  %545 = vmatpush2.bf16.msra.mxu0 0
  %546 = vmatprep.subr.bf16.mxu0 0
  %547 = vmatpush2.bf16.msra.mxu0 0
  %548 = vmatprep.subr.bf16.mxu0 0
  %549 = vmatpush2.bf16.msra.mxu0 0
  %550 = vmatprep.subr.bf16.mxu0 0
  %551 = vmatpush2.bf16.msra.mxu0 0
  %552 = vmatprep.subr.bf16.mxu0 0
  %553 = vmatpush2.bf16.msra.mxu0 0
  %554 = vmatprep.subr.bf16.mxu0 0
  %555 = vmatpush2.bf16.msra.mxu0 0
  %556 = vmatprep.subr.bf16.mxu0 0
  %557 = vmatpush2.bf16.msra.mxu0 0
  %558 = vmatprep.subr.bf16.mxu0 0
  %559 = vmatpush2.bf16.msra.mxu0 0
  %560 = vmatprep.mubr.bf16.mxu0 0
  %561 = vmatmul.mubr.bf16.gmra.mxu0 %v350
  %v562 = vpop.f32.mrf.mxu0
  %v563 = vadd.f32 %v288, %v562
  %v564 = vpop.f32.mrf.mxu0
  %v565 = vadd.f32 %v292, %v564
  %v566 = vpop.f32.mrf.mxu0
  %v567 = vadd.f32 %v288, %v566
  %v568 = vpop.f32.mrf.mxu0
  %v569 = vadd.f32 %v292, %v568
  %570 = vmatprep.mubr.bf16.mxu0 0
  %571 = vmatmul.mubr.bf16.gmra.mxu0 %v353
  %v572 = vpop.f32.mrf.mxu0
  %v573 = vadd.f32 %v288, %v572
  %v574 = vpop.f32.mrf.mxu0
  %v575 = vadd.f32 %v292, %v574
  %v576 = vpop.f32.mrf.mxu0
  %v577 = vadd.f32 %v288, %v576
  %v578 = vpop.f32.mrf.mxu0
  %v579 = vadd.f32 %v292, %v578
  %580 = vmatprep.mubr.bf16.mxu0 0
  %581 = vmatmul.mubr.bf16.gmra.mxu0 %v356
  %v582 = vpop.f32.mrf.mxu0
  %v583 = vadd.f32 %v288, %v582
  %v584 = vpop.f32.mrf.mxu0
  %v585 = vadd.f32 %v292, %v584
  %v586 = vpop.f32.mrf.mxu0
  %v587 = vpop.f32.mrf.mxu0
  %588 = vdwg.mxu0
  %589 = vmatprep.subr.bf16.mxu0 0
  %590 = vmatpush1.bf16.msra.mxu0 0
  %591 = vmatprep.subr.bf16.mxu0 0
  %592 = vmatpush1.bf16.msra.mxu0 0
  %593 = vmatprep.subr.bf16.mxu0 0
  %594 = vmatpush1.bf16.msra.mxu0 0
  %595 = vmatprep.subr.bf16.mxu0 0
  %596 = vmatpush1.bf16.msra.mxu0 0
  %597 = vmatprep.subr.bf16.mxu0 0
  %598 = vmatpush1.bf16.msra.mxu0 0
  %599 = vmatprep.subr.bf16.mxu0 0
  %600 = vmatpush1.bf16.msra.mxu0 0
  %601 = vmatprep.subr.bf16.mxu0 0
  %602 = vmatpush1.bf16.msra.mxu0 0
  %603 = vmatprep.subr.bf16.mxu0 %v380
  %604 = vmatpush1.bf16.msra.mxu0 %v377
  %605 = vmatprep.subr.bf16.mxu0 0
  %606 = vmatpush2.bf16.msra.mxu0 0
  %607 = vmatprep.subr.bf16.mxu0 0
  %608 = vmatpush2.bf16.msra.mxu0 0
  %609 = vmatprep.subr.bf16.mxu0 0
  %610 = vmatpush2.bf16.msra.mxu0 0
  %611 = vmatprep.subr.bf16.mxu0 0
  %612 = vmatpush2.bf16.msra.mxu0 0
  %613 = vmatprep.subr.bf16.mxu0 0
  %614 = vmatpush2.bf16.msra.mxu0 0
  %615 = vmatprep.subr.bf16.mxu0 0
  %616 = vmatpush2.bf16.msra.mxu0 0
  %617 = vmatprep.subr.bf16.mxu0 0
  %618 = vmatpush2.bf16.msra.mxu0 0
  %619 = vmatprep.subr.bf16.mxu0 0
  %620 = vmatpush2.bf16.msra.mxu0 0
  %621 = vmatprep.mubr.bf16.mxu0 0
  %622 = vmatmul.mubr.bf16.gmra.mxu0 %v350
  %v623 = vpop.f32.mrf.mxu0
  %v624 = vadd.f32 %v296, %v623
  %v625 = vpop.f32.mrf.mxu0
  %v626 = vadd.f32 %v300, %v625
  %v627 = vpop.f32.mrf.mxu0
  %v628 = vadd.f32 %v296, %v627
  %v629 = vpop.f32.mrf.mxu0
  %v630 = vadd.f32 %v300, %v629
  %631 = vmatprep.mubr.bf16.mxu0 0
  %632 = vmatmul.mubr.bf16.gmra.mxu0 %v353
  %v633 = vpop.f32.mrf.mxu0
  %v634 = vadd.f32 %v296, %v633
  %v635 = vpop.f32.mrf.mxu0
  %v636 = vadd.f32 %v300, %v635
  %v637 = vpop.f32.mrf.mxu0
  %v638 = vadd.f32 %v296, %v637
  %v639 = vpop.f32.mrf.mxu0
  %v640 = vadd.f32 %v300, %v639
  %641 = vmatprep.mubr.bf16.mxu0 0
  %642 = vmatmul.mubr.bf16.gmra.mxu0 %v356
  %v643 = vpop.f32.mrf.mxu0
  %v644 = vadd.f32 %v296, %v643
  %v645 = vpop.f32.mrf.mxu0
  %v646 = vadd.f32 %v300, %v645
  %v647 = vpop.f32.mrf.mxu0
  %v648 = vpop.f32.mrf.mxu0
  %649 = vdwg.mxu0
  %650 = vmatprep.subr.bf16.mxu0 0
  %651 = vmatpush1.bf16.msra.mxu0 0
  %652 = vmatprep.subr.bf16.mxu0 0
  %653 = vmatpush1.bf16.msra.mxu0 0
  %654 = vmatprep.subr.bf16.mxu0 0
  %655 = vmatpush1.bf16.msra.mxu0 0
  %656 = vmatprep.subr.bf16.mxu0 0
  %657 = vmatpush1.bf16.msra.mxu0 0
  %658 = vmatprep.subr.bf16.mxu0 0
  %659 = vmatpush1.bf16.msra.mxu0 0
  %660 = vmatprep.subr.bf16.mxu0 0
  %661 = vmatpush1.bf16.msra.mxu0 0
  %662 = vmatprep.subr.bf16.mxu0 0
  %663 = vmatpush1.bf16.msra.mxu0 0
  %664 = vmatprep.subr.bf16.mxu0 %v386
  %665 = vmatpush1.bf16.msra.mxu0 %v383
  %666 = vmatprep.subr.bf16.mxu0 0
  %667 = vmatpush2.bf16.msra.mxu0 0
  %668 = vmatprep.subr.bf16.mxu0 0
  %669 = vmatpush2.bf16.msra.mxu0 0
  %670 = vmatprep.subr.bf16.mxu0 0
  %671 = vmatpush2.bf16.msra.mxu0 0
  %672 = vmatprep.subr.bf16.mxu0 0
  %673 = vmatpush2.bf16.msra.mxu0 0
  %674 = vmatprep.subr.bf16.mxu0 0
  %675 = vmatpush2.bf16.msra.mxu0 0
  %676 = vmatprep.subr.bf16.mxu0 0
  %677 = vmatpush2.bf16.msra.mxu0 0
  %678 = vmatprep.subr.bf16.mxu0 0
  %679 = vmatpush2.bf16.msra.mxu0 0
  %680 = vmatprep.subr.bf16.mxu0 0
  %681 = vmatpush2.bf16.msra.mxu0 0
  %682 = vmatprep.mubr.bf16.mxu0 0
  %683 = vmatmul.mubr.bf16.gmra.mxu0 %v350
  %v684 = vpop.f32.mrf.mxu0
  %v685 = vadd.f32 %v304, %v684
  %v686 = vpop.f32.mrf.mxu0
  %v687 = vadd.f32 %v308, %v686
  %v688 = vpop.f32.mrf.mxu0
  %v689 = vadd.f32 %v304, %v688
  %v690 = vpop.f32.mrf.mxu0
  %v691 = vadd.f32 %v308, %v690
  %692 = vmatprep.mubr.bf16.mxu0 0
  %693 = vmatmul.mubr.bf16.gmra.mxu0 %v353
  %v694 = vpop.f32.mrf.mxu0
  %v695 = vadd.f32 %v304, %v694
  %v696 = vpop.f32.mrf.mxu0
  %v697 = vadd.f32 %v308, %v696
  %v698 = vpop.f32.mrf.mxu0
  %v699 = vadd.f32 %v304, %v698
  %v700 = vpop.f32.mrf.mxu0
  %v701 = vadd.f32 %v308, %v700
  %702 = vmatprep.mubr.bf16.mxu0 0
  %703 = vmatmul.mubr.bf16.gmra.mxu0 %v356
  %v704 = vpop.f32.mrf.mxu0
  %v705 = vadd.f32 %v304, %v704
  %v706 = vpop.f32.mrf.mxu0
  %v707 = vadd.f32 %v308, %v706
  %v708 = vpop.f32.mrf.mxu0
  %v709 = vpop.f32.mrf.mxu0
  %710 = vdwg.mxu0
  %711 = vmatprep.subr.bf16.mxu0 0
  %712 = vmatpush1.bf16.msra.mxu0 0
  %713 = vmatprep.subr.bf16.mxu0 0
  %714 = vmatpush1.bf16.msra.mxu0 0
  %715 = vmatprep.subr.bf16.mxu0 0
  %716 = vmatpush1.bf16.msra.mxu0 0
  %717 = vmatprep.subr.bf16.mxu0 0
  %718 = vmatpush1.bf16.msra.mxu0 0
  %719 = vmatprep.subr.bf16.mxu0 0
  %720 = vmatpush1.bf16.msra.mxu0 0
  %721 = vmatprep.subr.bf16.mxu0 0
  %722 = vmatpush1.bf16.msra.mxu0 0
  %723 = vmatprep.subr.bf16.mxu0 0
  %724 = vmatpush1.bf16.msra.mxu0 0
  %725 = vmatprep.subr.bf16.mxu0 %v392
  %726 = vmatpush1.bf16.msra.mxu0 %v389
  %727 = vmatprep.subr.bf16.mxu0 0
  %728 = vmatpush2.bf16.msra.mxu0 0
  %729 = vmatprep.subr.bf16.mxu0 0
  %730 = vmatpush2.bf16.msra.mxu0 0
  %731 = vmatprep.subr.bf16.mxu0 0
  %732 = vmatpush2.bf16.msra.mxu0 0
  %733 = vmatprep.subr.bf16.mxu0 0
  %734 = vmatpush2.bf16.msra.mxu0 0
  %735 = vmatprep.subr.bf16.mxu0 0
  %736 = vmatpush2.bf16.msra.mxu0 0
  %737 = vmatprep.subr.bf16.mxu0 0
  %738 = vmatpush2.bf16.msra.mxu0 0
  %739 = vmatprep.subr.bf16.mxu0 0
  %740 = vmatpush2.bf16.msra.mxu0 0
  %741 = vmatprep.subr.bf16.mxu0 0
  %742 = vmatpush2.bf16.msra.mxu0 0
  %743 = vmatprep.mubr.bf16.mxu0 0
  %744 = vmatmul.mubr.bf16.gmra.mxu0 %v350
  %v745 = vpop.f32.mrf.mxu0
  %v746 = vadd.f32 %v312, %v745
  %v747 = vpop.f32.mrf.mxu0
  %v748 = vadd.f32 %v316, %v747
  %v749 = vpop.f32.mrf.mxu0
  %v750 = vadd.f32 %v312, %v749
  %v751 = vpop.f32.mrf.mxu0
  %v752 = vadd.f32 %v316, %v751
  %753 = vmatprep.mubr.bf16.mxu0 0
  %754 = vmatmul.mubr.bf16.gmra.mxu0 %v353
  %v755 = vpop.f32.mrf.mxu0
  %v756 = vadd.f32 %v312, %v755
  %v757 = vpop.f32.mrf.mxu0
  %v758 = vadd.f32 %v316, %v757
  %v759 = vpop.f32.mrf.mxu0
  %v760 = vadd.f32 %v312, %v759
  %v761 = vpop.f32.mrf.mxu0
  %v762 = vadd.f32 %v316, %v761
  %763 = vmatprep.mubr.bf16.mxu0 0
  %764 = vmatmul.mubr.bf16.gmra.mxu0 %v356
  %v765 = vpop.f32.mrf.mxu0
  %v766 = vadd.f32 %v312, %v765
  %v767 = vpop.f32.mrf.mxu0
  %v768 = vadd.f32 %v316, %v767
  %v769 = vpop.f32.mrf.mxu0
  %v770 = vpop.f32.mrf.mxu0
  %771 = vdwg.mxu0
  %772 = vmatprep.subr.bf16.mxu0 0
  %773 = vmatpush1.bf16.msra.mxu0 0
  %774 = vmatprep.subr.bf16.mxu0 0
  %775 = vmatpush1.bf16.msra.mxu0 0
  %776 = vmatprep.subr.bf16.mxu0 0
  %777 = vmatpush1.bf16.msra.mxu0 0
  %778 = vmatprep.subr.bf16.mxu0 0
  %779 = vmatpush1.bf16.msra.mxu0 0
  %780 = vmatprep.subr.bf16.mxu0 0
  %781 = vmatpush1.bf16.msra.mxu0 0
  %782 = vmatprep.subr.bf16.mxu0 0
  %783 = vmatpush1.bf16.msra.mxu0 0
  %784 = vmatprep.subr.bf16.mxu0 0
  %785 = vmatpush1.bf16.msra.mxu0 0
  %786 = vmatprep.subr.bf16.mxu0 %v398
  %787 = vmatpush1.bf16.msra.mxu0 %v395
  %788 = vmatprep.subr.bf16.mxu0 0
  %789 = vmatpush2.bf16.msra.mxu0 0
  %790 = vmatprep.subr.bf16.mxu0 0
  %791 = vmatpush2.bf16.msra.mxu0 0
  %792 = vmatprep.subr.bf16.mxu0 0
  %793 = vmatpush2.bf16.msra.mxu0 0
  %794 = vmatprep.subr.bf16.mxu0 0
  %795 = vmatpush2.bf16.msra.mxu0 0
  %796 = vmatprep.subr.bf16.mxu0 0
  %797 = vmatpush2.bf16.msra.mxu0 0
  %798 = vmatprep.subr.bf16.mxu0 0
  %799 = vmatpush2.bf16.msra.mxu0 0
  %800 = vmatprep.subr.bf16.mxu0 0
  %801 = vmatpush2.bf16.msra.mxu0 0
  %802 = vmatprep.subr.bf16.mxu0 0
  %803 = vmatpush2.bf16.msra.mxu0 0
  %804 = vmatprep.mubr.bf16.mxu0 0
  %805 = vmatmul.mubr.bf16.gmra.mxu0 %v350
  %v806 = vpop.f32.mrf.mxu0
  %v807 = vadd.f32 %v320, %v806
  %v808 = vpop.f32.mrf.mxu0
  %v809 = vadd.f32 %v324, %v808
  %v810 = vpop.f32.mrf.mxu0
  %v811 = vadd.f32 %v320, %v810
  %v812 = vpop.f32.mrf.mxu0
  %v813 = vadd.f32 %v324, %v812
  %814 = vmatprep.mubr.bf16.mxu0 0
  %815 = vmatmul.mubr.bf16.gmra.mxu0 %v353
  %v816 = vpop.f32.mrf.mxu0
  %v817 = vadd.f32 %v320, %v816
  %v818 = vpop.f32.mrf.mxu0
  %v819 = vadd.f32 %v324, %v818
  %v820 = vpop.f32.mrf.mxu0
  %v821 = vadd.f32 %v320, %v820
  %v822 = vpop.f32.mrf.mxu0
  %v823 = vadd.f32 %v324, %v822
  %824 = vmatprep.mubr.bf16.mxu0 0
  %825 = vmatmul.mubr.bf16.gmra.mxu0 %v356
  %v826 = vpop.f32.mrf.mxu0
  %v827 = vadd.f32 %v320, %v826
  %v828 = vpop.f32.mrf.mxu0
  %v829 = vadd.f32 %v324, %v828
  %v830 = vpop.f32.mrf.mxu0
  %v831 = vpop.f32.mrf.mxu0
  %832 = vdwg.mxu0
  %833 = vmatprep.subr.bf16.mxu0 0
  %834 = vmatpush1.bf16.msra.mxu0 0
  %835 = vmatprep.subr.bf16.mxu0 0
  %836 = vmatpush1.bf16.msra.mxu0 0
  %837 = vmatprep.subr.bf16.mxu0 0
  %838 = vmatpush1.bf16.msra.mxu0 0
  %839 = vmatprep.subr.bf16.mxu0 0
  %840 = vmatpush1.bf16.msra.mxu0 0
  %841 = vmatprep.subr.bf16.mxu0 0
  %842 = vmatpush1.bf16.msra.mxu0 0
  %843 = vmatprep.subr.bf16.mxu0 0
  %844 = vmatpush1.bf16.msra.mxu0 0
  %845 = vmatprep.subr.bf16.mxu0 0
  %846 = vmatpush1.bf16.msra.mxu0 0
  %847 = vmatprep.subr.bf16.mxu0 %v404
  %848 = vmatpush1.bf16.msra.mxu0 %v401
  %849 = vmatprep.subr.bf16.mxu0 0
  %850 = vmatpush2.bf16.msra.mxu0 0
  %851 = vmatprep.subr.bf16.mxu0 0
  %852 = vmatpush2.bf16.msra.mxu0 0
  %853 = vmatprep.subr.bf16.mxu0 0
  %854 = vmatpush2.bf16.msra.mxu0 0
  %855 = vmatprep.subr.bf16.mxu0 0
  %856 = vmatpush2.bf16.msra.mxu0 0
  %857 = vmatprep.subr.bf16.mxu0 0
  %858 = vmatpush2.bf16.msra.mxu0 0
  %859 = vmatprep.subr.bf16.mxu0 0
  %860 = vmatpush2.bf16.msra.mxu0 0
  %861 = vmatprep.subr.bf16.mxu0 0
  %862 = vmatpush2.bf16.msra.mxu0 0
  %863 = vmatprep.subr.bf16.mxu0 0
  %864 = vmatpush2.bf16.msra.mxu0 0
  %865 = vmatprep.mubr.bf16.mxu0 0
  %866 = vmatmul.mubr.bf16.gmra.mxu0 %v350
  %v867 = vpop.f32.mrf.mxu0
  %v868 = vadd.f32 %v328, %v867
  %v869 = vpop.f32.mrf.mxu0
  %v870 = vadd.f32 %v332, %v869
  %v871 = vpop.f32.mrf.mxu0
  %v872 = vadd.f32 %v328, %v871
  %v873 = vpop.f32.mrf.mxu0
  %v874 = vadd.f32 %v332, %v873
  %875 = vmatprep.mubr.bf16.mxu0 0
  %876 = vmatmul.mubr.bf16.gmra.mxu0 %v353
  %v877 = vpop.f32.mrf.mxu0
  %v878 = vadd.f32 %v328, %v877
  %v879 = vpop.f32.mrf.mxu0
  %v880 = vadd.f32 %v332, %v879
  %v881 = vpop.f32.mrf.mxu0
  %v882 = vadd.f32 %v328, %v881
  %v883 = vpop.f32.mrf.mxu0
  %v884 = vadd.f32 %v332, %v883
  %885 = vmatprep.mubr.bf16.mxu0 0
  %886 = vmatmul.mubr.bf16.gmra.mxu0 %v356
  %v887 = vpop.f32.mrf.mxu0
  %v888 = vadd.f32 %v328, %v887
  %v889 = vpop.f32.mrf.mxu0
  %v890 = vadd.f32 %v332, %v889
  %v891 = vpop.f32.mrf.mxu0
  %v892 = vpop.f32.mrf.mxu0
  %893 = vdwg.mxu0
  %v894 = vmax.f32 %v441, 0.0
  %v895 = vmax.f32 %v443, 0.0
  %v896 = vmax.f32 %v502, 0.0
  %v897 = vmax.f32 %v504, 0.0
  %v898 = vmax.f32 %v563, 0.0
  %v899 = vmax.f32 %v565, 0.0
  %v900 = vmax.f32 %v624, 0.0
  %v901 = vmax.f32 %v626, 0.0
  %v902 = vmax.f32 %v685, 0.0
  %v903 = vmax.f32 %v687, 0.0
  %v904 = vmax.f32 %v746, 0.0
  %v905 = vmax.f32 %v748, 0.0
  %v906 = vmax.f32 %v807, 0.0
  %v907 = vmax.f32 %v809, 0.0
  %v908 = vmax.f32 %v868, 0.0
  %v909 = vmax.f32 %v870, 0.0
  %v910 = vmax.f32 %v445, 0.0
  %v911 = vmax.f32 %v447, 0.0
  %v912 = vmax.f32 %v506, 0.0
  %v913 = vmax.f32 %v508, 0.0
  %v914 = vmax.f32 %v567, 0.0
  %v915 = vmax.f32 %v569, 0.0
  %v916 = vmax.f32 %v628, 0.0
  %v917 = vmax.f32 %v630, 0.0
  %v918 = vmax.f32 %v689, 0.0
  %v919 = vmax.f32 %v691, 0.0
  %v920 = vmax.f32 %v750, 0.0
  %v921 = vmax.f32 %v752, 0.0
  %v922 = vmax.f32 %v811, 0.0
  %v923 = vmax.f32 %v813, 0.0
  %v924 = vmax.f32 %v872, 0.0
  %v925 = vmax.f32 %v874, 0.0
  %v926 = vmax.f32 %v451, 0.0
  %v927 = vmax.f32 %v453, 0.0
  %v928 = vmax.f32 %v512, 0.0
  %v929 = vmax.f32 %v514, 0.0
  %v930 = vmax.f32 %v573, 0.0
  %v931 = vmax.f32 %v575, 0.0
  %v932 = vmax.f32 %v634, 0.0
  %v933 = vmax.f32 %v636, 0.0
  %v934 = vmax.f32 %v695, 0.0
  %v935 = vmax.f32 %v697, 0.0
  %v936 = vmax.f32 %v756, 0.0
  %v937 = vmax.f32 %v758, 0.0
  %v938 = vmax.f32 %v817, 0.0
  %v939 = vmax.f32 %v819, 0.0
  %v940 = vmax.f32 %v878, 0.0
  %v941 = vmax.f32 %v880, 0.0
  %v942 = vmax.f32 %v455, 0.0
  %v943 = vmax.f32 %v457, 0.0
  %v944 = vmax.f32 %v516, 0.0
  %v945 = vmax.f32 %v518, 0.0
  %v946 = vmax.f32 %v577, 0.0
  %v947 = vmax.f32 %v579, 0.0
  %v948 = vmax.f32 %v638, 0.0
  %v949 = vmax.f32 %v640, 0.0
  %v950 = vmax.f32 %v699, 0.0
  %v951 = vmax.f32 %v701, 0.0
  %v952 = vmax.f32 %v760, 0.0
  %v953 = vmax.f32 %v762, 0.0
  %v954 = vmax.f32 %v821, 0.0
  %v955 = vmax.f32 %v823, 0.0
  %v956 = vmax.f32 %v882, 0.0
  %v957 = vmax.f32 %v884, 0.0
  %v958 = vmax.f32 %v461, 0.0
  %v959 = vmax.f32 %v463, 0.0
  %v960 = vmax.f32 %v522, 0.0
  %v961 = vmax.f32 %v524, 0.0
  %v962 = vmax.f32 %v583, 0.0
  %v963 = vmax.f32 %v585, 0.0
  %v964 = vmax.f32 %v644, 0.0
  %v965 = vmax.f32 %v646, 0.0
  %v966 = vmax.f32 %v705, 0.0
  %v967 = vmax.f32 %v707, 0.0
  %v968 = vmax.f32 %v766, 0.0
  %v969 = vmax.f32 %v768, 0.0
  %v970 = vmax.f32 %v827, 0.0
  %v971 = vmax.f32 %v829, 0.0
  %v972 = vmax.f32 %v888, 0.0
  %v973 = vmax.f32 %v890, 0.0
  %v974 = vpack.c.bf16 %v910, %v894
  %v975 = vpack.c.bf16 %v911, %v895
  %v976 = vpack.c.bf16 %v912, %v896
  %v977 = vpack.c.bf16 %v913, %v897
  %v978 = vpack.c.bf16 %v914, %v898
  %v979 = vpack.c.bf16 %v915, %v899
  %v980 = vpack.c.bf16 %v916, %v900
  %v981 = vpack.c.bf16 %v917, %v901
  %v982 = vpack.c.bf16 %v918, %v902
  %v983 = vpack.c.bf16 %v919, %v903
  %v984 = vpack.c.bf16 %v920, %v904
  %v985 = vpack.c.bf16 %v921, %v905
  %v986 = vpack.c.bf16 %v922, %v906
  %v987 = vpack.c.bf16 %v923, %v907
  %v988 = vpack.c.bf16 %v924, %v908
  %v989 = vpack.c.bf16 %v925, %v909
  %v990 = vpack.c.bf16 %v942, %v926
  %v991 = vpack.c.bf16 %v943, %v927
  %v992 = vpack.c.bf16 %v944, %v928
  %v993 = vpack.c.bf16 %v945, %v929
  %v994 = vpack.c.bf16 %v946, %v930
  %v995 = vpack.c.bf16 %v947, %v931
  %v996 = vpack.c.bf16 %v948, %v932
  %v997 = vpack.c.bf16 %v949, %v933
  %v998 = vpack.c.bf16 %v950, %v934
  %v999 = vpack.c.bf16 %v951, %v935
  %v1000 = vpack.c.bf16 %v952, %v936
  %v1001 = vpack.c.bf16 %v953, %v937
  %v1002 = vpack.c.bf16 %v954, %v938
  %v1003 = vpack.c.bf16 %v955, %v939
  %v1004 = vpack.c.bf16 %v956, %v940
  %v1005 = vpack.c.bf16 %v957, %v941
  %v1006 = vpack.c.bf16 %v958, %v958
  %v1007 = vpack.c.bf16 %v959, %v959
  %v1008 = vpack.c.bf16 %v960, %v960
  %v1009 = vpack.c.bf16 %v961, %v961
  %v1010 = vpack.c.bf16 %v962, %v962
  %v1011 = vpack.c.bf16 %v963, %v963
  %v1012 = vpack.c.bf16 %v964, %v964
  %v1013 = vpack.c.bf16 %v965, %v965
  %v1014 = vpack.c.bf16 %v966, %v966
  %v1015 = vpack.c.bf16 %v967, %v967
  %v1016 = vpack.c.bf16 %v968, %v968
  %v1017 = vpack.c.bf16 %v969, %v969
  %v1018 = vpack.c.bf16 %v970, %v970
  %v1019 = vpack.c.bf16 %v971, %v971
  %v1020 = vpack.c.bf16 %v972, %v972
  %v1021 = vpack.c.bf16 %v973, %v973
  %v1022 = vld [vmem:[%s8] sm:$0xff]
  %v1023 = vld [vmem:[%s8 + $0x8] sm:$0xff]
  %v1024 = vld [vmem:[%s8 + $0x10] sm:$0xff]
  %v1025 = vld [vmem:[%s8 + $0x18] sm:$0xff]
  %v1026 = vld [vmem:[%s8 + $0x20] sm:$0xff]
  %v1027 = vld [vmem:[%s8 + $0x28] sm:$0xff]
  %v1028 = vld [vmem:[%s8 + $0x30] sm:$0xff]
  %v1029 = vld [vmem:[%s8 + $0x38] sm:$0xff]
  %v1030 = vld [vmem:[%s8 + $0x40] sm:$0xff]
  %v1031 = vld [vmem:[%s8 + $0x48] sm:$0xff]
  %v1032 = vld [vmem:[%s8 + $0x50] sm:$0xff]
  %v1033 = vld [vmem:[%s8 + $0x58] sm:$0xff]
  %v1034 = vld [vmem:[%s8 + $0x60] sm:$0xff]
  %v1035 = vld [vmem:[%s8 + $0x68] sm:$0xff]
  %v1036 = vld [vmem:[%s8 + $0x70] sm:$0xff]
  %v1037 = vld [vmem:[%s8 + $0x78] sm:$0xff]
  %v1038 = vld [vmem:[%s8 + $0x80] sm:$0xff]
  %v1039 = vld [vmem:[%s8 + $0x88] sm:$0xff]
  %v1040 = vld [vmem:[%s8 + $0x90] sm:$0xff]
  %v1041 = vld [vmem:[%s8 + $0x98] sm:$0xff]
  %v1042 = vld [vmem:[%s8 + $0xa0] sm:$0xff]
  %v1043 = vld [vmem:[%s8 + $0xa8] sm:$0xff]
  %v1044 = vld [vmem:[%s8 + $0xb0] sm:$0xff]
  %v1045 = vld [vmem:[%s8 + $0xb8] sm:$0xff]
  %v1046 = vld [vmem:[%s8 + $0xc0] sm:$0xff]
  %v1047 = vld [vmem:[%s8 + $0xc8] sm:$0xff]
  %v1048 = vld [vmem:[%s8 + $0xd0] sm:$0xff]
  %v1049 = vld [vmem:[%s8 + $0xd8] sm:$0xff]
  %v1050 = vld [vmem:[%s8 + $0xe0] sm:$0xff]
  %v1051 = vld [vmem:[%s8 + $0xe8] sm:$0xff]
  %v1052 = vld [vmem:[%s8 + $0xf0] sm:$0xff]
  %v1053 = vld [vmem:[%s8 + $0xf8] sm:$0xff]
  %v1054 = vld [vmem:[%s8 + $0x100] sm:$0xff]
  %v1055 = vld [vmem:[%s8 + $0x108] sm:$0xff]
  %v1056 = vld [vmem:[%s8 + $0x110] sm:$0xff]
  %v1057 = vld [vmem:[%s8 + $0x118] sm:$0xff]
  %v1058 = vld [vmem:[%s8 + $0x120] sm:$0xff]
  %v1059 = vld [vmem:[%s8 + $0x128] sm:$0xff]
  %v1060 = vld [vmem:[%s8 + $0x130] sm:$0xff]
  %v1061 = vld [vmem:[%s8 + $0x138] sm:$0xff]
  %v1062 = vld [vmem:[%s8 + $0x140] sm:$0xff]
  %v1063 = vld [vmem:[%s8 + $0x148] sm:$0xff]
  %v1064 = vld [vmem:[%s8 + $0x150] sm:$0xff]
  %v1065 = vld [vmem:[%s8 + $0x158] sm:$0xff]
  %v1066 = vld [vmem:[%s8 + $0x160] sm:$0xff]
  %v1067 = vld [vmem:[%s8 + $0x168] sm:$0xff]
  %v1068 = vld [vmem:[%s8 + $0x170] sm:$0xff]
  %v1069 = vld [vmem:[%s8 + $0x178] sm:$0xff]
  %v1070 = vld [vmem:[%s8 + $0x180] sm:$0xff]
  %v1071 = vld [vmem:[%s8 + $0x188] sm:$0xff]
  %v1072 = vld [vmem:[%s8 + $0x190] sm:$0xff]
  %v1073 = vld [vmem:[%s8 + $0x198] sm:$0xff]
  %v1074 = vld [vmem:[%s8 + $0x1a0] sm:$0xff]
  %v1075 = vld [vmem:[%s8 + $0x1a8] sm:$0xff]
  %v1076 = vld [vmem:[%s8 + $0x1b0] sm:$0xff]
  %v1077 = vld [vmem:[%s8 + $0x1b8] sm:$0xff]
  %v1078 = vld [vmem:[%s8 + $0x1c0] sm:$0xff]
  %v1079 = vld [vmem:[%s8 + $0x1c8] sm:$0xff]
  %v1080 = vld [vmem:[%s8 + $0x1d0] sm:$0xff]
  %v1081 = vld [vmem:[%s8 + $0x1d8] sm:$0xff]
  %v1082 = vld [vmem:[%s8 + $0x1e0] sm:$0xff]
  %v1083 = vld [vmem:[%s8 + $0x1e8] sm:$0xff]
  %v1084 = vld [vmem:[%s8 + $0x1f0] sm:$0xff]
  %v1085 = vld [vmem:[%s8 + $0x1f8] sm:$0xff]
  %v1086 = vld [vmem:[%s8 + $0x200] sm:$0xff]
  %v1087 = vld [vmem:[%s8 + $0x208] sm:$0xff]
  %v1088 = vld [vmem:[%s8 + $0x210] sm:$0xff]
  %v1089 = vld [vmem:[%s8 + $0x218] sm:$0xff]
  %v1090 = vld [vmem:[%s8 + $0x220] sm:$0xff]
  %v1091 = vld [vmem:[%s8 + $0x228] sm:$0xff]
  %v1092 = vld [vmem:[%s8 + $0x230] sm:$0xff]
  %v1093 = vld [vmem:[%s8 + $0x238] sm:$0xff]
  %v1094 = vld [vmem:[%s8 + $0x240] sm:$0xff]
  %v1095 = vld [vmem:[%s8 + $0x248] sm:$0xff]
  %v1096 = vld [vmem:[%s8 + $0x250] sm:$0xff]
  %v1097 = vld [vmem:[%s8 + $0x258] sm:$0xff]
  %v1098 = vld [vmem:[%s8 + $0x260] sm:$0xff]
  %v1099 = vld [vmem:[%s8 + $0x268] sm:$0xff]
  %v1100 = vld [vmem:[%s8 + $0x270] sm:$0xff]
  %v1101 = vld [vmem:[%s8 + $0x278] sm:$0xff]
  %v1102 = vld [vmem:[%s8 + $0x280] sm:$0xff]
  %v1103 = vld [vmem:[%s8 + $0x288] sm:$0xff]
  %v1104 = vld [vmem:[%s8 + $0x290] sm:$0xff]
  %v1105 = vld [vmem:[%s8 + $0x298] sm:$0xff]
  %v1106 = vld [vmem:[%s8 + $0x2a0] sm:$0xff]
  %v1107 = vld [vmem:[%s8 + $0x2a8] sm:$0xff]
  %v1108 = vld [vmem:[%s8 + $0x2b0] sm:$0xff]
  %v1109 = vld [vmem:[%s8 + $0x2b8] sm:$0xff]
  %v1110 = vld [vmem:[%s8 + $0x2c0] sm:$0xff]
  %v1111 = vld [vmem:[%s8 + $0x2c8] sm:$0xff]
  %v1112 = vld [vmem:[%s8 + $0x2d0] sm:$0xff]
  %v1113 = vld [vmem:[%s8 + $0x2d8] sm:$0xff]
  %v1114 = vld [vmem:[%s8 + $0x2e0] sm:$0xff]
  %v1115 = vld [vmem:[%s8 + $0x2e8] sm:$0xff]
  %v1116 = vld [vmem:[%s8 + $0x2f0] sm:$0xff]
  %v1117 = vld [vmem:[%s8 + $0x2f8] sm:$0xff]
  %v1118 = vld [vmem:[%s8 + $0x300] sm:$0xff]
  %v1119 = vld [vmem:[%s8 + $0x308] sm:$0xff]
  %v1120 = vld [vmem:[%s8 + $0x310] sm:$0xff]
  %v1121 = vld [vmem:[%s8 + $0x318] sm:$0xff]
  %v1122 = vld [vmem:[%s8 + $0x320] sm:$0xff]
  %v1123 = vld [vmem:[%s8 + $0x328] sm:$0xff]
  %v1124 = vld [vmem:[%s8 + $0x330] sm:$0xff]
  %v1125 = vld [vmem:[%s8 + $0x338] sm:$0xff]
  %v1126 = vld [vmem:[%s8 + $0x340] sm:$0xff]
  %v1127 = vld [vmem:[%s8 + $0x348] sm:$0xff]
  %v1128 = vld [vmem:[%s8 + $0x350] sm:$0xff]
  %v1129 = vld [vmem:[%s8 + $0x358] sm:$0xff]
  %v1130 = vld [vmem:[%s8 + $0x360] sm:$0xff]
  %v1131 = vld [vmem:[%s8 + $0x368] sm:$0xff]
  %v1132 = vld [vmem:[%s8 + $0x370] sm:$0xff]
  %v1133 = vld [vmem:[%s8 + $0x378] sm:$0xff]
  %v1134 = vld [vmem:[%s8 + $0x380] sm:$0xff]
  %v1135 = vld [vmem:[%s8 + $0x388] sm:$0xff]
  %v1136 = vld [vmem:[%s8 + $0x390] sm:$0xff]
  %v1137 = vld [vmem:[%s8 + $0x398] sm:$0xff]
  %v1138 = vld [vmem:[%s8 + $0x3a0] sm:$0xff]
  %v1139 = vld [vmem:[%s8 + $0x3a8] sm:$0xff]
  %v1140 = vld [vmem:[%s8 + $0x3b0] sm:$0xff]
  %v1141 = vld [vmem:[%s8 + $0x3b8] sm:$0xff]
  %v1142 = vld [vmem:[%s8 + $0x3c0] sm:$0xff]
  %v1143 = vld [vmem:[%s8 + $0x3c8] sm:$0xff]
  %v1144 = vld [vmem:[%s8 + $0x3d0] sm:$0xff]
  %v1145 = vld [vmem:[%s8 + $0x3d8] sm:$0xff]
  %v1146 = vld [vmem:[%s8 + $0x3e0] sm:$0xff]
  %v1147 = vld [vmem:[%s8 + $0x3e8] sm:$0xff]
  %v1148 = vld [vmem:[%s8 + $0x3f0] sm:$0xff]
  %v1149 = vld [vmem:[%s8 + $0x3f8] sm:$0xff]
  %v1150 = vld [vmem:[%s8 + $0x400] sm:$0xff]
  %v1151 = vld [vmem:[%s8 + $0x408] sm:$0xff]
  %v1152 = vld [vmem:[%s8 + $0x410] sm:$0xff]
  %v1153 = vld [vmem:[%s8 + $0x418] sm:$0xff]
  %v1154 = vld [vmem:[%s8 + $0x420] sm:$0xff]
  %v1155 = vld [vmem:[%s8 + $0x428] sm:$0xff]
  %v1156 = vld [vmem:[%s8 + $0x430] sm:$0xff]
  %v1157 = vld [vmem:[%s8 + $0x438] sm:$0xff]
  %v1158 = vld [vmem:[%s8 + $0x440] sm:$0xff]
  %v1159 = vld [vmem:[%s8 + $0x448] sm:$0xff]
  %v1160 = vld [vmem:[%s8 + $0x450] sm:$0xff]
  %v1161 = vld [vmem:[%s8 + $0x458] sm:$0xff]
  %v1162 = vld [vmem:[%s8 + $0x460] sm:$0xff]
  %v1163 = vld [vmem:[%s8 + $0x468] sm:$0xff]
  %v1164 = vld [vmem:[%s8 + $0x470] sm:$0xff]
  %v1165 = vld [vmem:[%s8 + $0x478] sm:$0xff]
  %v1166 = vld [vmem:[%s8 + $0x480] sm:$0xff]
  %v1167 = vld [vmem:[%s8 + $0x488] sm:$0xff]
  %v1168 = vld [vmem:[%s8 + $0x490] sm:$0xff]
  %v1169 = vld [vmem:[%s8 + $0x498] sm:$0xff]
  %v1170 = vld [vmem:[%s8 + $0x4a0] sm:$0xff]
  %v1171 = vld [vmem:[%s8 + $0x4a8] sm:$0xff]
  %v1172 = vld [vmem:[%s8 + $0x4b0] sm:$0xff]
  %v1173 = vld [vmem:[%s8 + $0x4b8] sm:$0xff]
  %v1174 = vld [vmem:[%s8 + $0x4c0] sm:$0xff]
  %v1175 = vld [vmem:[%s8 + $0x4c8] sm:$0xff]
  %v1176 = vld [vmem:[%s8 + $0x4d0] sm:$0xff]
  %v1177 = vld [vmem:[%s8 + $0x4d8] sm:$0xff]
  %v1178 = vld [vmem:[%s8 + $0x4e0] sm:$0xff]
  %v1179 = vld [vmem:[%s8 + $0x4e8] sm:$0xff]
  %v1180 = vld [vmem:[%s8 + $0x4f0] sm:$0xff]
  %v1181 = vld [vmem:[%s8 + $0x4f8] sm:$0xff]
  %v1182 = vld [vmem:[%s8 + $0x500] sm:$0xff]
  %v1183 = vld [vmem:[%s8 + $0x508] sm:$0xff]
  %v1184 = vld [vmem:[%s8 + $0x510] sm:$0xff]
  %v1185 = vld [vmem:[%s8 + $0x518] sm:$0xff]
  %v1186 = vld [vmem:[%s8 + $0x520] sm:$0xff]
  %v1187 = vld [vmem:[%s8 + $0x528] sm:$0xff]
  %v1188 = vld [vmem:[%s8 + $0x530] sm:$0xff]
  %v1189 = vld [vmem:[%s8 + $0x538] sm:$0xff]
  %v1190 = vld [vmem:[%s8 + $0x540] sm:$0xff]
  %v1191 = vld [vmem:[%s8 + $0x548] sm:$0xff]
  %v1192 = vld [vmem:[%s8 + $0x550] sm:$0xff]
  %v1193 = vld [vmem:[%s8 + $0x558] sm:$0xff]
  %v1194 = vld [vmem:[%s8 + $0x560] sm:$0xff]
  %v1195 = vld [vmem:[%s8 + $0x568] sm:$0xff]
  %v1196 = vld [vmem:[%s8 + $0x570] sm:$0xff]
  %v1197 = vld [vmem:[%s8 + $0x578] sm:$0xff]
  %v1198 = vld [vmem:[%s8 + $0x580] sm:$0xff]
  %v1199 = vld [vmem:[%s8 + $0x588] sm:$0xff]
  %v1200 = vld [vmem:[%s8 + $0x590] sm:$0xff]
  %v1201 = vld [vmem:[%s8 + $0x598] sm:$0xff]
  %v1202 = vld [vmem:[%s8 + $0x5a0] sm:$0xff]
  %v1203 = vld [vmem:[%s8 + $0x5a8] sm:$0xff]
  %v1204 = vld [vmem:[%s8 + $0x5b0] sm:$0xff]
  %v1205 = vld [vmem:[%s8 + $0x5b8] sm:$0xff]
  %v1206 = vld [vmem:[%s8 + $0x5c0] sm:$0xff]
  %v1207 = vld [vmem:[%s8 + $0x5c8] sm:$0xff]
  %v1208 = vld [vmem:[%s8 + $0x5d0] sm:$0xff]
  %v1209 = vld [vmem:[%s8 + $0x5d8] sm:$0xff]
  %v1210 = vld [vmem:[%s8 + $0x5e0] sm:$0xff]
  %v1211 = vld [vmem:[%s8 + $0x5e8] sm:$0xff]
  %v1212 = vld [vmem:[%s8 + $0x5f0] sm:$0xff]
  %v1213 = vld [vmem:[%s8 + $0x5f8] sm:$0xff]
  %v1214 = vld [vmem:[%s8 + $0x600] sm:$0xff]
  %v1215 = vld [vmem:[%s8 + $0x608] sm:$0xff]
  %v1216 = vld [vmem:[%s8 + $0x610] sm:$0xff]
  %v1217 = vld [vmem:[%s8 + $0x618] sm:$0xff]
  %v1218 = vld [vmem:[%s8 + $0x620] sm:$0xff]
  %v1219 = vld [vmem:[%s8 + $0x628] sm:$0xff]
  %v1220 = vld [vmem:[%s8 + $0x630] sm:$0xff]
  %v1221 = vld [vmem:[%s8 + $0x638] sm:$0xff]
  %v1222 = vld [vmem:[%s8 + $0x640] sm:$0xff]
  %v1223 = vld [vmem:[%s8 + $0x648] sm:$0xff]
  %v1224 = vld [vmem:[%s8 + $0x650] sm:$0xff]
  %v1225 = vld [vmem:[%s8 + $0x658] sm:$0xff]
  %v1226 = vld [vmem:[%s8 + $0x660] sm:$0xff]
  %v1227 = vld [vmem:[%s8 + $0x668] sm:$0xff]
  %v1228 = vld [vmem:[%s8 + $0x670] sm:$0xff]
  %v1229 = vld [vmem:[%s8 + $0x678] sm:$0xff]
  %v1230 = vld [vmem:[%s8 + $0x680] sm:$0xff]
  %v1231 = vld [vmem:[%s8 + $0x688] sm:$0xff]
  %v1232 = vld [vmem:[%s8 + $0x690] sm:$0xff]
  %v1233 = vld [vmem:[%s8 + $0x698] sm:$0xff]
  %v1234 = vld [vmem:[%s8 + $0x6a0] sm:$0xff]
  %v1235 = vld [vmem:[%s8 + $0x6a8] sm:$0xff]
  %v1236 = vld [vmem:[%s8 + $0x6b0] sm:$0xff]
  %v1237 = vld [vmem:[%s8 + $0x6b8] sm:$0xff]
  %v1238 = vld [vmem:[%s8 + $0x6c0] sm:$0xff]
  %v1239 = vld [vmem:[%s8 + $0x6c8] sm:$0xff]
  %v1240 = vld [vmem:[%s8 + $0x6d0] sm:$0xff]
  %v1241 = vld [vmem:[%s8 + $0x6d8] sm:$0xff]
  %v1242 = vld [vmem:[%s8 + $0x6e0] sm:$0xff]
  %v1243 = vld [vmem:[%s8 + $0x6e8] sm:$0xff]
  %v1244 = vld [vmem:[%s8 + $0x6f0] sm:$0xff]
  %v1245 = vld [vmem:[%s8 + $0x6f8] sm:$0xff]
  %v1246 = vld [vmem:[%s8 + $0x700] sm:$0xff]
  %v1247 = vld [vmem:[%s8 + $0x708] sm:$0xff]
  %v1248 = vld [vmem:[%s8 + $0x710] sm:$0xff]
  %v1249 = vld [vmem:[%s8 + $0x718] sm:$0xff]
  %v1250 = vld [vmem:[%s8 + $0x720] sm:$0xff]
  %v1251 = vld [vmem:[%s8 + $0x728] sm:$0xff]
  %v1252 = vld [vmem:[%s8 + $0x730] sm:$0xff]
  %v1253 = vld [vmem:[%s8 + $0x738] sm:$0xff]
  %v1254 = vld [vmem:[%s8 + $0x740] sm:$0xff]
  %v1255 = vld [vmem:[%s8 + $0x748] sm:$0xff]
  %v1256 = vld [vmem:[%s8 + $0x750] sm:$0xff]
  %v1257 = vld [vmem:[%s8 + $0x758] sm:$0xff]
  %v1258 = vld [vmem:[%s8 + $0x760] sm:$0xff]
  %v1259 = vld [vmem:[%s8 + $0x768] sm:$0xff]
  %v1260 = vld [vmem:[%s8 + $0x770] sm:$0xff]
  %v1261 = vld [vmem:[%s8 + $0x778] sm:$0xff]
  %v1262 = vld [vmem:[%s8 + $0x780] sm:$0xff]
  %v1263 = vld [vmem:[%s8 + $0x788] sm:$0xff]
  %v1264 = vld [vmem:[%s8 + $0x790] sm:$0xff]
  %v1265 = vld [vmem:[%s8 + $0x798] sm:$0xff]
  %v1266 = vld [vmem:[%s8 + $0x7a0] sm:$0xff]
  %v1267 = vld [vmem:[%s8 + $0x7a8] sm:$0xff]
  %v1268 = vld [vmem:[%s8 + $0x7b0] sm:$0xff]
  %v1269 = vld [vmem:[%s8 + $0x7b8] sm:$0xff]
  %v1270 = vld [vmem:[%s8 + $0x7c0] sm:$0xff]
  %v1271 = vld [vmem:[%s8 + $0x7c8] sm:$0xff]
  %v1272 = vld [vmem:[%s8 + $0x7d0] sm:$0xff]
  %v1273 = vld [vmem:[%s8 + $0x7d8] sm:$0xff]
  %v1274 = vld [vmem:[%s8 + $0x7e0] sm:$0xff]
  %v1275 = vld [vmem:[%s8 + $0x7e8] sm:$0xff]
  %v1276 = vld [vmem:[%s8 + $0x7f0] sm:$0xff]
  %v1277 = vld [vmem:[%s8 + $0x7f8] sm:$0xff]
  %v1278 = vpack.c.bf16 %v1023, %v1022
  %v1279 = vpack.c.bf16 %v1025, %v1024
  %v1280 = vpack.c.bf16 %v1027, %v1026
  %v1281 = vpack.c.bf16 %v1029, %v1028
  %v1282 = vpack.c.bf16 %v1031, %v1030
  %v1283 = vpack.c.bf16 %v1033, %v1032
  %v1284 = vpack.c.bf16 %v1035, %v1034
  %v1285 = vpack.c.bf16 %v1037, %v1036
  %v1286 = vpack.c.bf16 %v1039, %v1038
  %v1287 = vpack.c.bf16 %v1041, %v1040
  %v1288 = vpack.c.bf16 %v1043, %v1042
  %v1289 = vpack.c.bf16 %v1045, %v1044
  %v1290 = vpack.c.bf16 %v1047, %v1046
  %v1291 = vpack.c.bf16 %v1049, %v1048
  %v1292 = vpack.c.bf16 %v1051, %v1050
  %v1293 = vpack.c.bf16 %v1053, %v1052
  %v1294 = vpack.c.bf16 %v1055, %v1054
  %v1295 = vpack.c.bf16 %v1057, %v1056
  %v1296 = vpack.c.bf16 %v1059, %v1058
  %v1297 = vpack.c.bf16 %v1061, %v1060
  %v1298 = vpack.c.bf16 %v1063, %v1062
  %v1299 = vpack.c.bf16 %v1065, %v1064
  %v1300 = vpack.c.bf16 %v1067, %v1066
  %v1301 = vpack.c.bf16 %v1069, %v1068
  %v1302 = vpack.c.bf16 %v1071, %v1070
  %v1303 = vpack.c.bf16 %v1073, %v1072
  %v1304 = vpack.c.bf16 %v1075, %v1074
  %v1305 = vpack.c.bf16 %v1077, %v1076
  %v1306 = vpack.c.bf16 %v1079, %v1078
  %v1307 = vpack.c.bf16 %v1081, %v1080
  %v1308 = vpack.c.bf16 %v1083, %v1082
  %v1309 = vpack.c.bf16 %v1085, %v1084
  %v1310 = vpack.c.bf16 %v1087, %v1086
  %v1311 = vpack.c.bf16 %v1089, %v1088
  %v1312 = vpack.c.bf16 %v1091, %v1090
  %v1313 = vpack.c.bf16 %v1093, %v1092
  %v1314 = vpack.c.bf16 %v1095, %v1094
  %v1315 = vpack.c.bf16 %v1097, %v1096
  %v1316 = vpack.c.bf16 %v1099, %v1098
  %v1317 = vpack.c.bf16 %v1101, %v1100
  %v1318 = vpack.c.bf16 %v1103, %v1102
  %v1319 = vpack.c.bf16 %v1105, %v1104
  %v1320 = vpack.c.bf16 %v1107, %v1106
  %v1321 = vpack.c.bf16 %v1109, %v1108
  %v1322 = vpack.c.bf16 %v1111, %v1110
  %v1323 = vpack.c.bf16 %v1113, %v1112
  %v1324 = vpack.c.bf16 %v1115, %v1114
  %v1325 = vpack.c.bf16 %v1117, %v1116
  %v1326 = vpack.c.bf16 %v1119, %v1118
  %v1327 = vpack.c.bf16 %v1121, %v1120
  %v1328 = vpack.c.bf16 %v1123, %v1122
  %v1329 = vpack.c.bf16 %v1125, %v1124
  %v1330 = vpack.c.bf16 %v1127, %v1126
  %v1331 = vpack.c.bf16 %v1129, %v1128
  %v1332 = vpack.c.bf16 %v1131, %v1130
  %v1333 = vpack.c.bf16 %v1133, %v1132
  %v1334 = vpack.c.bf16 %v1135, %v1134
  %v1335 = vpack.c.bf16 %v1137, %v1136
  %v1336 = vpack.c.bf16 %v1139, %v1138
  %v1337 = vpack.c.bf16 %v1141, %v1140
  %v1338 = vpack.c.bf16 %v1143, %v1142
  %v1339 = vpack.c.bf16 %v1145, %v1144
  %v1340 = vpack.c.bf16 %v1147, %v1146
  %v1341 = vpack.c.bf16 %v1149, %v1148
  %v1342 = vpack.c.bf16 %v1151, %v1150
  %v1343 = vpack.c.bf16 %v1153, %v1152
  %v1344 = vpack.c.bf16 %v1155, %v1154
  %v1345 = vpack.c.bf16 %v1157, %v1156
  %v1346 = vpack.c.bf16 %v1159, %v1158
  %v1347 = vpack.c.bf16 %v1161, %v1160
  %v1348 = vpack.c.bf16 %v1163, %v1162
  %v1349 = vpack.c.bf16 %v1165, %v1164
  %v1350 = vpack.c.bf16 %v1167, %v1166
  %v1351 = vpack.c.bf16 %v1169, %v1168
  %v1352 = vpack.c.bf16 %v1171, %v1170
  %v1353 = vpack.c.bf16 %v1173, %v1172
  %v1354 = vpack.c.bf16 %v1175, %v1174
  %v1355 = vpack.c.bf16 %v1177, %v1176
  %v1356 = vpack.c.bf16 %v1179, %v1178
  %v1357 = vpack.c.bf16 %v1181, %v1180
  %v1358 = vpack.c.bf16 %v1183, %v1182
  %v1359 = vpack.c.bf16 %v1185, %v1184
  %v1360 = vpack.c.bf16 %v1187, %v1186
  %v1361 = vpack.c.bf16 %v1189, %v1188
  %v1362 = vpack.c.bf16 %v1191, %v1190
  %v1363 = vpack.c.bf16 %v1193, %v1192
  %v1364 = vpack.c.bf16 %v1195, %v1194
  %v1365 = vpack.c.bf16 %v1197, %v1196
  %v1366 = vpack.c.bf16 %v1199, %v1198
  %v1367 = vpack.c.bf16 %v1201, %v1200
  %v1368 = vpack.c.bf16 %v1203, %v1202
  %v1369 = vpack.c.bf16 %v1205, %v1204
  %v1370 = vpack.c.bf16 %v1207, %v1206
  %v1371 = vpack.c.bf16 %v1209, %v1208
  %v1372 = vpack.c.bf16 %v1211, %v1210
  %v1373 = vpack.c.bf16 %v1213, %v1212
  %v1374 = vpack.c.bf16 %v1215, %v1214
  %v1375 = vpack.c.bf16 %v1217, %v1216
  %v1376 = vpack.c.bf16 %v1219, %v1218
  %v1377 = vpack.c.bf16 %v1221, %v1220
  %v1378 = vpack.c.bf16 %v1223, %v1222
  %v1379 = vpack.c.bf16 %v1225, %v1224
  %v1380 = vpack.c.bf16 %v1227, %v1226
  %v1381 = vpack.c.bf16 %v1229, %v1228
  %v1382 = vpack.c.bf16 %v1231, %v1230
  %v1383 = vpack.c.bf16 %v1233, %v1232
  %v1384 = vpack.c.bf16 %v1235, %v1234
  %v1385 = vpack.c.bf16 %v1237, %v1236
  %v1386 = vpack.c.bf16 %v1239, %v1238
  %v1387 = vpack.c.bf16 %v1241, %v1240
  %v1388 = vpack.c.bf16 %v1243, %v1242
  %v1389 = vpack.c.bf16 %v1245, %v1244
  %v1390 = vpack.c.bf16 %v1247, %v1246
  %v1391 = vpack.c.bf16 %v1249, %v1248
  %v1392 = vpack.c.bf16 %v1251, %v1250
  %v1393 = vpack.c.bf16 %v1253, %v1252
  %v1394 = vpack.c.bf16 %v1255, %v1254
  %v1395 = vpack.c.bf16 %v1257, %v1256
  %v1396 = vpack.c.bf16 %v1259, %v1258
  %v1397 = vpack.c.bf16 %v1261, %v1260
  %v1398 = vpack.c.bf16 %v1263, %v1262
  %v1399 = vpack.c.bf16 %v1265, %v1264
  %v1400 = vpack.c.bf16 %v1267, %v1266
  %v1401 = vpack.c.bf16 %v1269, %v1268
  %v1402 = vpack.c.bf16 %v1271, %v1270
  %v1403 = vpack.c.bf16 %v1273, %v1272
  %v1404 = vpack.c.bf16 %v1275, %v1274
  %v1405 = vpack.c.bf16 %v1277, %v1276
  %v1406 = vld [vmem:[%s9] sm:$0x1]
  %v1408 = vlaneseq
  %v1409 = vshrl.u32 %v1408, 7
  %v1410 = vsub.s32 0, %v1409
  %v1411 = vrot.slane %v1406, %v1410
  %1413 = vmatprep.subr.bf16.mxu0 0
  %1414 = vmatpush1.bf16.msra.mxu0 %v1285
  %1415 = vmatprep.subr.bf16.mxu0 0
  %1416 = vmatpush1.bf16.msra.mxu0 %v1284
  %1417 = vmatprep.subr.bf16.mxu0 0
  %1418 = vmatpush1.bf16.msra.mxu0 %v1283
  %1419 = vmatprep.subr.bf16.mxu0 0
  %1420 = vmatpush1.bf16.msra.mxu0 %v1282
  %1421 = vmatprep.subr.bf16.mxu0 0
  %1422 = vmatpush1.bf16.msra.mxu0 %v1281
  %1423 = vmatprep.subr.bf16.mxu0 0
  %1424 = vmatpush1.bf16.msra.mxu0 %v1280
  %1425 = vmatprep.subr.bf16.mxu0 0
  %1426 = vmatpush1.bf16.msra.mxu0 %v1279
  %1427 = vmatprep.subr.bf16.mxu0 0
  %1428 = vmatpush1.bf16.msra.mxu0 %v1278
  %1429 = vmatprep.subr.bf16.mxu0 0
  %1430 = vmatpush2.bf16.msra.mxu0 %v1293
  %1431 = vmatprep.subr.bf16.mxu0 0
  %1432 = vmatpush2.bf16.msra.mxu0 %v1292
  %1433 = vmatprep.subr.bf16.mxu0 0
  %1434 = vmatpush2.bf16.msra.mxu0 %v1291
  %1435 = vmatprep.subr.bf16.mxu0 0
  %1436 = vmatpush2.bf16.msra.mxu0 %v1290
  %1437 = vmatprep.subr.bf16.mxu0 0
  %1438 = vmatpush2.bf16.msra.mxu0 %v1289
  %1439 = vmatprep.subr.bf16.mxu0 0
  %1440 = vmatpush2.bf16.msra.mxu0 %v1288
  %1441 = vmatprep.subr.bf16.mxu0 0
  %1442 = vmatpush2.bf16.msra.mxu0 %v1287
  %1443 = vmatprep.subr.bf16.mxu0 0
  %1444 = vmatpush2.bf16.msra.mxu0 %v1286
  %1445 = vmatprep.mubr.bf16.mxu0 %v975
  %1446 = vmatmul.mubr.bf16.gmra.mxu0 %v974
  %v1447 = vpop.f32.mrf.mxu0
  %v1448 = vadd.f32 %v1411, %v1447
  %v1449 = vpop.f32.mrf.mxu0
  %v1450 = vpop.f32.mrf.mxu0
  %v1451 = vadd.f32 %v1411, %v1450
  %v1452 = vpop.f32.mrf.mxu0
  %1453 = vmatprep.mubr.bf16.mxu0 %v991
  %1454 = vmatmul.mubr.bf16.gmra.mxu0 %v990
  %v1455 = vpop.f32.mrf.mxu0
  %v1456 = vadd.f32 %v1411, %v1455
  %v1457 = vpop.f32.mrf.mxu0
  %v1458 = vpop.f32.mrf.mxu0
  %v1459 = vadd.f32 %v1411, %v1458
  %v1460 = vpop.f32.mrf.mxu0
  %1461 = vmatprep.mubr.bf16.mxu0 %v1007
  %1462 = vmatmul.mubr.bf16.gmra.mxu0 %v1006
  %v1463 = vpop.f32.mrf.mxu0
  %v1464 = vadd.f32 %v1411, %v1463
  %v1465 = vpop.f32.mrf.mxu0
  %v1466 = vpop.f32.mrf.mxu0
  %v1467 = vpop.f32.mrf.mxu0
  %1468 = vdwg.mxu0
  %1469 = vmatprep.subr.bf16.mxu0 0
  %1470 = vmatpush1.bf16.msra.mxu0 %v1301
  %1471 = vmatprep.subr.bf16.mxu0 0
  %1472 = vmatpush1.bf16.msra.mxu0 %v1300
  %1473 = vmatprep.subr.bf16.mxu0 0
  %1474 = vmatpush1.bf16.msra.mxu0 %v1299
  %1475 = vmatprep.subr.bf16.mxu0 0
  %1476 = vmatpush1.bf16.msra.mxu0 %v1298
  %1477 = vmatprep.subr.bf16.mxu0 0
  %1478 = vmatpush1.bf16.msra.mxu0 %v1297
  %1479 = vmatprep.subr.bf16.mxu0 0
  %1480 = vmatpush1.bf16.msra.mxu0 %v1296
  %1481 = vmatprep.subr.bf16.mxu0 0
  %1482 = vmatpush1.bf16.msra.mxu0 %v1295
  %1483 = vmatprep.subr.bf16.mxu0 0
  %1484 = vmatpush1.bf16.msra.mxu0 %v1294
  %1485 = vmatprep.subr.bf16.mxu0 0
  %1486 = vmatpush2.bf16.msra.mxu0 %v1309
  %1487 = vmatprep.subr.bf16.mxu0 0
  %1488 = vmatpush2.bf16.msra.mxu0 %v1308
  %1489 = vmatprep.subr.bf16.mxu0 0
  %1490 = vmatpush2.bf16.msra.mxu0 %v1307
  %1491 = vmatprep.subr.bf16.mxu0 0
  %1492 = vmatpush2.bf16.msra.mxu0 %v1306
  %1493 = vmatprep.subr.bf16.mxu0 0
  %1494 = vmatpush2.bf16.msra.mxu0 %v1305
  %1495 = vmatprep.subr.bf16.mxu0 0
  %1496 = vmatpush2.bf16.msra.mxu0 %v1304
  %1497 = vmatprep.subr.bf16.mxu0 0
  %1498 = vmatpush2.bf16.msra.mxu0 %v1303
  %1499 = vmatprep.subr.bf16.mxu0 0
  %1500 = vmatpush2.bf16.msra.mxu0 %v1302
  %1501 = vmatprep.mubr.bf16.mxu0 %v977
  %1502 = vmatmul.mubr.bf16.gmra.mxu0 %v976
  %v1503 = vpop.f32.mrf.mxu0
  %v1504 = vadd.f32 %v1448, %v1503
  %v1505 = vpop.f32.mrf.mxu0
  %v1506 = vpop.f32.mrf.mxu0
  %v1507 = vadd.f32 %v1451, %v1506
  %v1508 = vpop.f32.mrf.mxu0
  %1509 = vmatprep.mubr.bf16.mxu0 %v993
  %1510 = vmatmul.mubr.bf16.gmra.mxu0 %v992
  %v1511 = vpop.f32.mrf.mxu0
  %v1512 = vadd.f32 %v1456, %v1511
  %v1513 = vpop.f32.mrf.mxu0
  %v1514 = vpop.f32.mrf.mxu0
  %v1515 = vadd.f32 %v1459, %v1514
  %v1516 = vpop.f32.mrf.mxu0
  %1517 = vmatprep.mubr.bf16.mxu0 %v1009
  %1518 = vmatmul.mubr.bf16.gmra.mxu0 %v1008
  %v1519 = vpop.f32.mrf.mxu0
  %v1520 = vadd.f32 %v1464, %v1519
  %v1521 = vpop.f32.mrf.mxu0
  %v1522 = vpop.f32.mrf.mxu0
  %v1523 = vpop.f32.mrf.mxu0
  %1524 = vdwg.mxu0
  %1525 = vmatprep.subr.bf16.mxu0 0
  %1526 = vmatpush1.bf16.msra.mxu0 %v1317
  %1527 = vmatprep.subr.bf16.mxu0 0
  %1528 = vmatpush1.bf16.msra.mxu0 %v1316
  %1529 = vmatprep.subr.bf16.mxu0 0
  %1530 = vmatpush1.bf16.msra.mxu0 %v1315
  %1531 = vmatprep.subr.bf16.mxu0 0
  %1532 = vmatpush1.bf16.msra.mxu0 %v1314
  %1533 = vmatprep.subr.bf16.mxu0 0
  %1534 = vmatpush1.bf16.msra.mxu0 %v1313
  %1535 = vmatprep.subr.bf16.mxu0 0
  %1536 = vmatpush1.bf16.msra.mxu0 %v1312
  %1537 = vmatprep.subr.bf16.mxu0 0
  %1538 = vmatpush1.bf16.msra.mxu0 %v1311
  %1539 = vmatprep.subr.bf16.mxu0 0
  %1540 = vmatpush1.bf16.msra.mxu0 %v1310
  %1541 = vmatprep.subr.bf16.mxu0 0
  %1542 = vmatpush2.bf16.msra.mxu0 %v1325
  %1543 = vmatprep.subr.bf16.mxu0 0
  %1544 = vmatpush2.bf16.msra.mxu0 %v1324
  %1545 = vmatprep.subr.bf16.mxu0 0
  %1546 = vmatpush2.bf16.msra.mxu0 %v1323
  %1547 = vmatprep.subr.bf16.mxu0 0
  %1548 = vmatpush2.bf16.msra.mxu0 %v1322
  %1549 = vmatprep.subr.bf16.mxu0 0
  %1550 = vmatpush2.bf16.msra.mxu0 %v1321
  %1551 = vmatprep.subr.bf16.mxu0 0
  %1552 = vmatpush2.bf16.msra.mxu0 %v1320
  %1553 = vmatprep.subr.bf16.mxu0 0
  %1554 = vmatpush2.bf16.msra.mxu0 %v1319
  %1555 = vmatprep.subr.bf16.mxu0 0
  %1556 = vmatpush2.bf16.msra.mxu0 %v1318
  %1557 = vmatprep.mubr.bf16.mxu0 %v979
  %1558 = vmatmul.mubr.bf16.gmra.mxu0 %v978
  %v1559 = vpop.f32.mrf.mxu0
  %v1560 = vadd.f32 %v1504, %v1559
  %v1561 = vpop.f32.mrf.mxu0
  %v1562 = vpop.f32.mrf.mxu0
  %v1563 = vadd.f32 %v1507, %v1562
  %v1564 = vpop.f32.mrf.mxu0
  %1565 = vmatprep.mubr.bf16.mxu0 %v995
  %1566 = vmatmul.mubr.bf16.gmra.mxu0 %v994
  %v1567 = vpop.f32.mrf.mxu0
  %v1568 = vadd.f32 %v1512, %v1567
  %v1569 = vpop.f32.mrf.mxu0
  %v1570 = vpop.f32.mrf.mxu0
  %v1571 = vadd.f32 %v1515, %v1570
  %v1572 = vpop.f32.mrf.mxu0
  %1573 = vmatprep.mubr.bf16.mxu0 %v1011
  %1574 = vmatmul.mubr.bf16.gmra.mxu0 %v1010
  %v1575 = vpop.f32.mrf.mxu0
  %v1576 = vadd.f32 %v1520, %v1575
  %v1577 = vpop.f32.mrf.mxu0
  %v1578 = vpop.f32.mrf.mxu0
  %v1579 = vpop.f32.mrf.mxu0
  %1580 = vdwg.mxu0
  %1581 = vmatprep.subr.bf16.mxu0 0
  %1582 = vmatpush1.bf16.msra.mxu0 %v1333
  %1583 = vmatprep.subr.bf16.mxu0 0
  %1584 = vmatpush1.bf16.msra.mxu0 %v1332
  %1585 = vmatprep.subr.bf16.mxu0 0
  %1586 = vmatpush1.bf16.msra.mxu0 %v1331
  %1587 = vmatprep.subr.bf16.mxu0 0
  %1588 = vmatpush1.bf16.msra.mxu0 %v1330
  %1589 = vmatprep.subr.bf16.mxu0 0
  %1590 = vmatpush1.bf16.msra.mxu0 %v1329
  %1591 = vmatprep.subr.bf16.mxu0 0
  %1592 = vmatpush1.bf16.msra.mxu0 %v1328
  %1593 = vmatprep.subr.bf16.mxu0 0
  %1594 = vmatpush1.bf16.msra.mxu0 %v1327
  %1595 = vmatprep.subr.bf16.mxu0 0
  %1596 = vmatpush1.bf16.msra.mxu0 %v1326
  %1597 = vmatprep.subr.bf16.mxu0 0
  %1598 = vmatpush2.bf16.msra.mxu0 %v1341
  %1599 = vmatprep.subr.bf16.mxu0 0
  %1600 = vmatpush2.bf16.msra.mxu0 %v1340
  %1601 = vmatprep.subr.bf16.mxu0 0
  %1602 = vmatpush2.bf16.msra.mxu0 %v1339
  %1603 = vmatprep.subr.bf16.mxu0 0
  %1604 = vmatpush2.bf16.msra.mxu0 %v1338
  %1605 = vmatprep.subr.bf16.mxu0 0
  %1606 = vmatpush2.bf16.msra.mxu0 %v1337
  %1607 = vmatprep.subr.bf16.mxu0 0
  %1608 = vmatpush2.bf16.msra.mxu0 %v1336
  %1609 = vmatprep.subr.bf16.mxu0 0
  %1610 = vmatpush2.bf16.msra.mxu0 %v1335
  %1611 = vmatprep.subr.bf16.mxu0 0
  %1612 = vmatpush2.bf16.msra.mxu0 %v1334
  %1613 = vmatprep.mubr.bf16.mxu0 %v981
  %1614 = vmatmul.mubr.bf16.gmra.mxu0 %v980
  %v1615 = vpop.f32.mrf.mxu0
  %v1616 = vadd.f32 %v1560, %v1615
  %v1617 = vpop.f32.mrf.mxu0
  %v1618 = vpop.f32.mrf.mxu0
  %v1619 = vadd.f32 %v1563, %v1618
  %v1620 = vpop.f32.mrf.mxu0
  %1621 = vmatprep.mubr.bf16.mxu0 %v997
  %1622 = vmatmul.mubr.bf16.gmra.mxu0 %v996
  %v1623 = vpop.f32.mrf.mxu0
  %v1624 = vadd.f32 %v1568, %v1623
  %v1625 = vpop.f32.mrf.mxu0
  %v1626 = vpop.f32.mrf.mxu0
  %v1627 = vadd.f32 %v1571, %v1626
  %v1628 = vpop.f32.mrf.mxu0
  %1629 = vmatprep.mubr.bf16.mxu0 %v1013
  %1630 = vmatmul.mubr.bf16.gmra.mxu0 %v1012
  %v1631 = vpop.f32.mrf.mxu0
  %v1632 = vadd.f32 %v1576, %v1631
  %v1633 = vpop.f32.mrf.mxu0
  %v1634 = vpop.f32.mrf.mxu0
  %v1635 = vpop.f32.mrf.mxu0
  %1636 = vdwg.mxu0
  %1637 = vmatprep.subr.bf16.mxu0 0
  %1638 = vmatpush1.bf16.msra.mxu0 %v1349
  %1639 = vmatprep.subr.bf16.mxu0 0
  %1640 = vmatpush1.bf16.msra.mxu0 %v1348
  %1641 = vmatprep.subr.bf16.mxu0 0
  %1642 = vmatpush1.bf16.msra.mxu0 %v1347
  %1643 = vmatprep.subr.bf16.mxu0 0
  %1644 = vmatpush1.bf16.msra.mxu0 %v1346
  %1645 = vmatprep.subr.bf16.mxu0 0
  %1646 = vmatpush1.bf16.msra.mxu0 %v1345
  %1647 = vmatprep.subr.bf16.mxu0 0
  %1648 = vmatpush1.bf16.msra.mxu0 %v1344
  %1649 = vmatprep.subr.bf16.mxu0 0
  %1650 = vmatpush1.bf16.msra.mxu0 %v1343
  %1651 = vmatprep.subr.bf16.mxu0 0
  %1652 = vmatpush1.bf16.msra.mxu0 %v1342
  %1653 = vmatprep.subr.bf16.mxu0 0
  %1654 = vmatpush2.bf16.msra.mxu0 %v1357
  %1655 = vmatprep.subr.bf16.mxu0 0
  %1656 = vmatpush2.bf16.msra.mxu0 %v1356
  %1657 = vmatprep.subr.bf16.mxu0 0
  %1658 = vmatpush2.bf16.msra.mxu0 %v1355
  %1659 = vmatprep.subr.bf16.mxu0 0
  %1660 = vmatpush2.bf16.msra.mxu0 %v1354
  %1661 = vmatprep.subr.bf16.mxu0 0
  %1662 = vmatpush2.bf16.msra.mxu0 %v1353
  %1663 = vmatprep.subr.bf16.mxu0 0
  %1664 = vmatpush2.bf16.msra.mxu0 %v1352
  %1665 = vmatprep.subr.bf16.mxu0 0
  %1666 = vmatpush2.bf16.msra.mxu0 %v1351
  %1667 = vmatprep.subr.bf16.mxu0 0
  %1668 = vmatpush2.bf16.msra.mxu0 %v1350
  %1669 = vmatprep.mubr.bf16.mxu0 %v983
  %1670 = vmatmul.mubr.bf16.gmra.mxu0 %v982
  %v1671 = vpop.f32.mrf.mxu0
  %v1672 = vadd.f32 %v1616, %v1671
  %v1673 = vpop.f32.mrf.mxu0
  %v1674 = vpop.f32.mrf.mxu0
  %v1675 = vadd.f32 %v1619, %v1674
  %v1676 = vpop.f32.mrf.mxu0
  %1677 = vmatprep.mubr.bf16.mxu0 %v999
  %1678 = vmatmul.mubr.bf16.gmra.mxu0 %v998
  %v1679 = vpop.f32.mrf.mxu0
  %v1680 = vadd.f32 %v1624, %v1679
  %v1681 = vpop.f32.mrf.mxu0
  %v1682 = vpop.f32.mrf.mxu0
  %v1683 = vadd.f32 %v1627, %v1682
  %v1684 = vpop.f32.mrf.mxu0
  %1685 = vmatprep.mubr.bf16.mxu0 %v1015
  %1686 = vmatmul.mubr.bf16.gmra.mxu0 %v1014
  %v1687 = vpop.f32.mrf.mxu0
  %v1688 = vadd.f32 %v1632, %v1687
  %v1689 = vpop.f32.mrf.mxu0
  %v1690 = vpop.f32.mrf.mxu0
  %v1691 = vpop.f32.mrf.mxu0
  %1692 = vdwg.mxu0
  %1693 = vmatprep.subr.bf16.mxu0 0
  %1694 = vmatpush1.bf16.msra.mxu0 %v1365
  %1695 = vmatprep.subr.bf16.mxu0 0
  %1696 = vmatpush1.bf16.msra.mxu0 %v1364
  %1697 = vmatprep.subr.bf16.mxu0 0
  %1698 = vmatpush1.bf16.msra.mxu0 %v1363
  %1699 = vmatprep.subr.bf16.mxu0 0
  %1700 = vmatpush1.bf16.msra.mxu0 %v1362
  %1701 = vmatprep.subr.bf16.mxu0 0
  %1702 = vmatpush1.bf16.msra.mxu0 %v1361
  %1703 = vmatprep.subr.bf16.mxu0 0
  %1704 = vmatpush1.bf16.msra.mxu0 %v1360
  %1705 = vmatprep.subr.bf16.mxu0 0
  %1706 = vmatpush1.bf16.msra.mxu0 %v1359
  %1707 = vmatprep.subr.bf16.mxu0 0
  %1708 = vmatpush1.bf16.msra.mxu0 %v1358
  %1709 = vmatprep.subr.bf16.mxu0 0
  %1710 = vmatpush2.bf16.msra.mxu0 %v1373
  %1711 = vmatprep.subr.bf16.mxu0 0
  %1712 = vmatpush2.bf16.msra.mxu0 %v1372
  %1713 = vmatprep.subr.bf16.mxu0 0
  %1714 = vmatpush2.bf16.msra.mxu0 %v1371
  %1715 = vmatprep.subr.bf16.mxu0 0
  %1716 = vmatpush2.bf16.msra.mxu0 %v1370
  %1717 = vmatprep.subr.bf16.mxu0 0
  %1718 = vmatpush2.bf16.msra.mxu0 %v1369
  %1719 = vmatprep.subr.bf16.mxu0 0
  %1720 = vmatpush2.bf16.msra.mxu0 %v1368
  %1721 = vmatprep.subr.bf16.mxu0 0
  %1722 = vmatpush2.bf16.msra.mxu0 %v1367
  %1723 = vmatprep.subr.bf16.mxu0 0
  %1724 = vmatpush2.bf16.msra.mxu0 %v1366
  %1725 = vmatprep.mubr.bf16.mxu0 %v985
  %1726 = vmatmul.mubr.bf16.gmra.mxu0 %v984
  %v1727 = vpop.f32.mrf.mxu0
  %v1728 = vadd.f32 %v1672, %v1727
  %v1729 = vpop.f32.mrf.mxu0
  %v1730 = vpop.f32.mrf.mxu0
  %v1731 = vadd.f32 %v1675, %v1730
  %v1732 = vpop.f32.mrf.mxu0
  %1733 = vmatprep.mubr.bf16.mxu0 %v1001
  %1734 = vmatmul.mubr.bf16.gmra.mxu0 %v1000
  %v1735 = vpop.f32.mrf.mxu0
  %v1736 = vadd.f32 %v1680, %v1735
  %v1737 = vpop.f32.mrf.mxu0
  %v1738 = vpop.f32.mrf.mxu0
  %v1739 = vadd.f32 %v1683, %v1738
  %v1740 = vpop.f32.mrf.mxu0
  %1741 = vmatprep.mubr.bf16.mxu0 %v1017
  %1742 = vmatmul.mubr.bf16.gmra.mxu0 %v1016
  %v1743 = vpop.f32.mrf.mxu0
  %v1744 = vadd.f32 %v1688, %v1743
  %v1745 = vpop.f32.mrf.mxu0
  %v1746 = vpop.f32.mrf.mxu0
  %v1747 = vpop.f32.mrf.mxu0
  %1748 = vdwg.mxu0
  %1749 = vmatprep.subr.bf16.mxu0 0
  %1750 = vmatpush1.bf16.msra.mxu0 %v1381
  %1751 = vmatprep.subr.bf16.mxu0 0
  %1752 = vmatpush1.bf16.msra.mxu0 %v1380
  %1753 = vmatprep.subr.bf16.mxu0 0
  %1754 = vmatpush1.bf16.msra.mxu0 %v1379
  %1755 = vmatprep.subr.bf16.mxu0 0
  %1756 = vmatpush1.bf16.msra.mxu0 %v1378
  %1757 = vmatprep.subr.bf16.mxu0 0
  %1758 = vmatpush1.bf16.msra.mxu0 %v1377
  %1759 = vmatprep.subr.bf16.mxu0 0
  %1760 = vmatpush1.bf16.msra.mxu0 %v1376
  %1761 = vmatprep.subr.bf16.mxu0 0
  %1762 = vmatpush1.bf16.msra.mxu0 %v1375
  %1763 = vmatprep.subr.bf16.mxu0 0
  %1764 = vmatpush1.bf16.msra.mxu0 %v1374
  %1765 = vmatprep.subr.bf16.mxu0 0
  %1766 = vmatpush2.bf16.msra.mxu0 %v1389
  %1767 = vmatprep.subr.bf16.mxu0 0
  %1768 = vmatpush2.bf16.msra.mxu0 %v1388
  %1769 = vmatprep.subr.bf16.mxu0 0
  %1770 = vmatpush2.bf16.msra.mxu0 %v1387
  %1771 = vmatprep.subr.bf16.mxu0 0
  %1772 = vmatpush2.bf16.msra.mxu0 %v1386
  %1773 = vmatprep.subr.bf16.mxu0 0
  %1774 = vmatpush2.bf16.msra.mxu0 %v1385
  %1775 = vmatprep.subr.bf16.mxu0 0
  %1776 = vmatpush2.bf16.msra.mxu0 %v1384
  %1777 = vmatprep.subr.bf16.mxu0 0
  %1778 = vmatpush2.bf16.msra.mxu0 %v1383
  %1779 = vmatprep.subr.bf16.mxu0 0
  %1780 = vmatpush2.bf16.msra.mxu0 %v1382
  %1781 = vmatprep.mubr.bf16.mxu0 %v987
  %1782 = vmatmul.mubr.bf16.gmra.mxu0 %v986
  %v1783 = vpop.f32.mrf.mxu0
  %v1784 = vadd.f32 %v1728, %v1783
  %v1785 = vpop.f32.mrf.mxu0
  %v1786 = vpop.f32.mrf.mxu0
  %v1787 = vadd.f32 %v1731, %v1786
  %v1788 = vpop.f32.mrf.mxu0
  %1789 = vmatprep.mubr.bf16.mxu0 %v1003
  %1790 = vmatmul.mubr.bf16.gmra.mxu0 %v1002
  %v1791 = vpop.f32.mrf.mxu0
  %v1792 = vadd.f32 %v1736, %v1791
  %v1793 = vpop.f32.mrf.mxu0
  %v1794 = vpop.f32.mrf.mxu0
  %v1795 = vadd.f32 %v1739, %v1794
  %v1796 = vpop.f32.mrf.mxu0
  %1797 = vmatprep.mubr.bf16.mxu0 %v1019
  %1798 = vmatmul.mubr.bf16.gmra.mxu0 %v1018
  %v1799 = vpop.f32.mrf.mxu0
  %v1800 = vadd.f32 %v1744, %v1799
  %v1801 = vpop.f32.mrf.mxu0
  %v1802 = vpop.f32.mrf.mxu0
  %v1803 = vpop.f32.mrf.mxu0
  %1804 = vdwg.mxu0
  %1805 = vmatprep.subr.bf16.mxu0 0
  %1806 = vmatpush1.bf16.msra.mxu0 %v1397
  %1807 = vmatprep.subr.bf16.mxu0 0
  %1808 = vmatpush1.bf16.msra.mxu0 %v1396
  %1809 = vmatprep.subr.bf16.mxu0 0
  %1810 = vmatpush1.bf16.msra.mxu0 %v1395
  %1811 = vmatprep.subr.bf16.mxu0 0
  %1812 = vmatpush1.bf16.msra.mxu0 %v1394
  %1813 = vmatprep.subr.bf16.mxu0 0
  %1814 = vmatpush1.bf16.msra.mxu0 %v1393
  %1815 = vmatprep.subr.bf16.mxu0 0
  %1816 = vmatpush1.bf16.msra.mxu0 %v1392
  %1817 = vmatprep.subr.bf16.mxu0 0
  %1818 = vmatpush1.bf16.msra.mxu0 %v1391
  %1819 = vmatprep.subr.bf16.mxu0 0
  %1820 = vmatpush1.bf16.msra.mxu0 %v1390
  %1821 = vmatprep.subr.bf16.mxu0 0
  %1822 = vmatpush2.bf16.msra.mxu0 %v1405
  %1823 = vmatprep.subr.bf16.mxu0 0
  %1824 = vmatpush2.bf16.msra.mxu0 %v1404
  %1825 = vmatprep.subr.bf16.mxu0 0
  %1826 = vmatpush2.bf16.msra.mxu0 %v1403
  %1827 = vmatprep.subr.bf16.mxu0 0
  %1828 = vmatpush2.bf16.msra.mxu0 %v1402
  %1829 = vmatprep.subr.bf16.mxu0 0
  %1830 = vmatpush2.bf16.msra.mxu0 %v1401
  %1831 = vmatprep.subr.bf16.mxu0 0
  %1832 = vmatpush2.bf16.msra.mxu0 %v1400
  %1833 = vmatprep.subr.bf16.mxu0 0
  %1834 = vmatpush2.bf16.msra.mxu0 %v1399
  %1835 = vmatprep.subr.bf16.mxu0 0
  %1836 = vmatpush2.bf16.msra.mxu0 %v1398
  %1837 = vmatprep.mubr.bf16.mxu0 %v989
  %1838 = vmatmul.mubr.bf16.gmra.mxu0 %v988
  %v1839 = vpop.f32.mrf.mxu0
  %v1840 = vadd.f32 %v1784, %v1839
  %v1841 = vpop.f32.mrf.mxu0
  %v1842 = vpop.f32.mrf.mxu0
  %v1843 = vadd.f32 %v1787, %v1842
  %v1844 = vpop.f32.mrf.mxu0
  %1845 = vmatprep.mubr.bf16.mxu0 %v1005
  %1846 = vmatmul.mubr.bf16.gmra.mxu0 %v1004
  %v1847 = vpop.f32.mrf.mxu0
  %v1848 = vadd.f32 %v1792, %v1847
  %v1849 = vpop.f32.mrf.mxu0
  %v1850 = vpop.f32.mrf.mxu0
  %v1851 = vadd.f32 %v1795, %v1850
  %v1852 = vpop.f32.mrf.mxu0
  %1853 = vmatprep.mubr.bf16.mxu0 %v1021
  %1854 = vmatmul.mubr.bf16.gmra.mxu0 %v1020
  %v1855 = vpop.f32.mrf.mxu0
  %v1856 = vadd.f32 %v1800, %v1855
  %v1857 = vpop.f32.mrf.mxu0
  %v1858 = vpop.f32.mrf.mxu0
  %v1859 = vpop.f32.mrf.mxu0
  %1860 = vdwg.mxu0
  %v1861 = vadd.f32 %v225, %v1840
  %v1862 = vadd.f32 %v226, %v1843
  %v1863 = vadd.f32 %v227, %v1848
  %v1864 = vadd.f32 %v228, %v1851
  %v1865 = vadd.f32 %v229, %v1856
  %v1866 = vld [vmem:[%s10] sm:$0x1]
  %v1867 = vld [vmem:[%s11] sm:$0x1]
  %v1868 = vsel %vm59, %v1861, 0.0
  %1869 = vadd.xlane.f32.xlu0 %v1868
  %v1870 = vpop.xlane.xlu0 %1869
  %v1871 = vsel %vm59, %v1862, 0.0
  %1872 = vadd.xlane.f32.xlu0 %v1871
  %v1873 = vpop.xlane.xlu0 %1872
  %v1874 = vsel %vm59, %v1863, 0.0
  %1875 = vadd.xlane.f32.xlu0 %v1874
  %v1876 = vpop.xlane.xlu0 %1875
  %v1877 = vsel %vm59, %v1864, 0.0
  %1878 = vadd.xlane.f32.xlu0 %v1877
  %v1879 = vpop.xlane.xlu0 %1878
  %v1880 = vsel %vm153, %v1865, 0.0
  %1881 = vadd.xlane.f32.xlu0 %v1880
  %v1882 = vpop.xlane.xlu0 %1881
  %v1883 = vmul.f32 %v1870, %v157
  %v1884 = vmul.f32 %v1873, %v157
  %v1885 = vmul.f32 %v1876, %v157
  %v1886 = vmul.f32 %v1879, %v157
  %v1887 = vmul.f32 %v1882, %v157
  %v1888 = vsub.f32 %v1861, %v1883
  %v1889 = vsub.f32 %v1862, %v1884
  %v1890 = vsub.f32 %v1863, %v1885
  %v1891 = vsub.f32 %v1864, %v1886
  %v1892 = vsub.f32 %v1865, %v1887
  %v1893 = vmul.f32 %v1888, %v1888
  %v1894 = vmul.f32 %v1889, %v1889
  %v1895 = vmul.f32 %v1890, %v1890
  %v1896 = vmul.f32 %v1891, %v1891
  %v1897 = vmul.f32 %v1892, %v1892
  %v1898 = vsel %vm59, %v1893, 0.0
  %1899 = vadd.xlane.f32.xlu0 %v1898
  %v1900 = vpop.xlane.xlu0 %1899
  %v1901 = vsel %vm59, %v1894, 0.0
  %1902 = vadd.xlane.f32.xlu0 %v1901
  %v1903 = vpop.xlane.xlu0 %1902
  %v1904 = vsel %vm59, %v1895, 0.0
  %1905 = vadd.xlane.f32.xlu0 %v1904
  %v1906 = vpop.xlane.xlu0 %1905
  %v1907 = vsel %vm59, %v1896, 0.0
  %1908 = vadd.xlane.f32.xlu0 %v1907
  %v1909 = vpop.xlane.xlu0 %1908
  %v1910 = vsel %vm153, %v1897, 0.0
  %1911 = vadd.xlane.f32.xlu0 %v1910
  %v1912 = vpop.xlane.xlu0 %1911
  %v1913 = vmul.f32 %v1900, %v157
  %v1914 = vmul.f32 %v1903, %v157
  %v1915 = vmul.f32 %v1906, %v157
  %v1916 = vmul.f32 %v1909, %v157
  %v1917 = vmul.f32 %v1912, %v157
  %v1918 = vadd.f32 %v1913, 1e-05
  %v1919 = vadd.f32 %v1914, 1e-05
  %v1920 = vadd.f32 %v1915, 1e-05
  %v1921 = vadd.f32 %v1916, 1e-05
  %v1922 = vadd.f32 %v1917, 1e-05
  %v1923 = vrsqrt.pop %v1918
  %v1924 = vrsqrt.pop %v1919
  %v1925 = vrsqrt.pop %v1920
  %v1926 = vrsqrt.pop %v1921
  %v1927 = vrsqrt.pop %v1922
  %v1928 = vmul.f32 %v1888, %v1923
  %v1929 = vmul.f32 %v1889, %v1924
  %v1930 = vmul.f32 %v1890, %v1925
  %v1931 = vmul.f32 %v1891, %v1926
  %v1932 = vmul.f32 %v1892, %v1927
  %v1934 = vlaneseq
  %v1935 = vshrl.u32 %v1934, 7
  %v1936 = vsub.s32 0, %v1935
  %v1937 = vrot.slane %v1866, %v1936
  %v1939 = vmul.f32 %v1928, %v1937
  %v1940 = vmul.f32 %v1929, %v1937
  %v1941 = vmul.f32 %v1930, %v1937
  %v1942 = vmul.f32 %v1931, %v1937
  %v1943 = vmul.f32 %v1932, %v1937
  %v1945 = vlaneseq
  %v1946 = vshrl.u32 %v1945, 7
  %v1947 = vsub.s32 0, %v1946
  %v1948 = vrot.slane %v1867, %v1947
  %v1950 = vadd.f32 %v1939, %v1948
  %v1951 = vadd.f32 %v1940, %v1948
  %v1952 = vadd.f32 %v1941, %v1948
  %v1953 = vadd.f32 %v1942, %v1948
  %v1954 = vadd.f32 %v1943, %v1948
  %1955 = vst.msk [vmem:[%s12] sm:$0xff] %vm59, %v1950
  %1956 = vst.msk [vmem:[%s12 + $0x8] sm:$0xff] %vm59, %v1951
  %1957 = vst.msk [vmem:[%s12 + $0x10] sm:$0xff] %vm59, %v1952
  %1958 = vst.msk [vmem:[%s12 + $0x18] sm:$0xff] %vm59, %v1953
  %1959 = vst.msk [vmem:[%s12 + $0x20] sm:$0xf] %vm153, %v1954
  // Predicated region
  $region50: #{_lambda_.12} parent=0 // pred_check
    _
  $region51: #{_lambda_.12} parent=0 // pred_check_branch
    %1961 = sbr.rel (0) target = $region53
  $region52: #{_lambda_.12} parent=0 // pred_region
    _
  $region53: #{_lambda_.12} parent=0 // pred_fallthru
    _
  // Predicated region
  $region54: #{_lambda_.12} parent=0 // pred_check
    _
  $region55: #{_lambda_.12} parent=0 // pred_check_branch
    %1963 = sbr.rel (0) target = $region57
  $region56: #{_lambda_.12} parent=0 // pred_region
    _
  $region57: #{_lambda_.12} parent=0 // pred_fallthru
    _

// kernel: _lambda_.14
$region0: #{_lambda_.14}
  #allocation0 [shape = 'u32[]', space=smem, size = 0x4, offset = 0x4, fixed_abs, tag = 'smem constant byte address 0x4 - core index']
  #allocation1 [shape = 'u32[144,128]{1,0:T(1,128)}', space=vmem, size = 0x12000, scoped, tag = 'internal scratch']
  %s0 = inlined_call_operand.vmem [shape: f32[24,4], index: 0, kind: input, shape index: {}]
  %s1 = inlined_call_operand.vmem [shape: f32[4,16], index: 1, kind: input, shape index: {}]
  %s2 = inlined_call_operand.vmem [shape: f32[1,16], index: 2, kind: input, shape index: {}]
  %s3 = inlined_call_operand.vmem [shape: f32[16,32], index: 3, kind: input, shape index: {}]
  %s4 = inlined_call_operand.vmem [shape: f32[24,32], index: 4, kind: output, shape index: {}]
  %s5 = sld [smem:[#allocation0]]
  $region26: #{_lambda_.14} parent=0
    _
  %s7 = ssub.s32 1, %s5
  %s8 = scalar_select 0, %s7, %s5
  // Predicated region
  $region2: #{_lambda_.14} parent=0 // pred_check
    _
  $region3: #{_lambda_.14} parent=0 // pred_check_branch
    %10 = sbr.rel (0) target = $region5
  $region4: #{_lambda_.14} parent=0 // pred_region
    _
  $region5: #{_lambda_.14} parent=0 // pred_fallthru
    _
  // Predicated region
  $region6: #{_lambda_.14} parent=0 // pred_check
    _
  $region7: #{_lambda_.14} parent=0 // pred_check_branch
    %12 = sbr.rel (0) target = $region9
  $region8: #{_lambda_.14} parent=0 // pred_region
    _
  $region9: #{_lambda_.14} parent=0 // pred_fallthru
    _
  // Predicated region
  $region10: #{_lambda_.14} parent=0 // pred_check
    _
  $region11: #{_lambda_.14} parent=0 // pred_check_branch
    %14 = sbr.rel (0) target = $region13
  $region12: #{_lambda_.14} parent=0 // pred_region
    _
  $region13: #{_lambda_.14} parent=0 // pred_fallthru
    _
  // Predicated region
  $region14: #{_lambda_.14} parent=0 // pred_check
    _
  $region15: #{_lambda_.14} parent=0 // pred_check_branch
    %16 = sbr.rel (0) target = $region17
  $region16: #{_lambda_.14} parent=0 // pred_region
    _
  $region17: #{_lambda_.14} parent=0 // pred_fallthru
    _
  %v18 = vld [vmem:[%s0] sm:$0xff]
  %v19 = vld [vmem:[%s0 + $0x8] sm:$0xff]
  %v20 = vld [vmem:[%s0 + $0x10] sm:$0xff]
  %v21 = vpack.c.bf16 %v19, %v18
  %v22 = vpack.c.bf16 %v20, %v20
  %v23 = vld [vmem:[%s1] sm:$0xf]
  %v24 = vpack.c.bf16 %v23, %v23
  %v25 = vld [vmem:[%s2] sm:$0x1]
  %v27 = vlaneseq
  %v28 = vshrl.u32 %v27, 7
  %v29 = vsub.s32 0, %v28
  %v30 = vrot.slane %v25, %v29
  %vm32 = vcmask 31744
  %v34 = vsel %vm32, %v21, 0
  %v37 = vsel %vm32, %v22, 0
  %vm39 = vcmask 1041408
  %v41 = vsel %vm39, %v24, 0
  %43 = vmatprep.subr.bf16.mxu0 0
  %44 = vmatpush1.bf16.msra.mxu0 0
  %45 = vmatprep.subr.bf16.mxu0 0
  %46 = vmatpush1.bf16.msra.mxu0 0
  %47 = vmatprep.subr.bf16.mxu0 0
  %48 = vmatpush1.bf16.msra.mxu0 0
  %49 = vmatprep.subr.bf16.mxu0 0
  %50 = vmatpush1.bf16.msra.mxu0 0
  %51 = vmatprep.subr.bf16.mxu0 0
  %52 = vmatpush1.bf16.msra.mxu0 0
  %53 = vmatprep.subr.bf16.mxu0 0
  %54 = vmatpush1.bf16.msra.mxu0 0
  %55 = vmatprep.subr.bf16.mxu0 0
  %56 = vmatpush1.bf16.msra.mxu0 0
  %57 = vmatprep.subr.bf16.mxu0 0
  %58 = vmatpush1.bf16.msra.mxu0 %v41
  %59 = vmatprep.subr.bf16.mxu0 0
  %60 = vmatpush2.bf16.msra.mxu0 0
  %61 = vmatprep.subr.bf16.mxu0 0
  %62 = vmatpush2.bf16.msra.mxu0 0
  %63 = vmatprep.subr.bf16.mxu0 0
  %64 = vmatpush2.bf16.msra.mxu0 0
  %65 = vmatprep.subr.bf16.mxu0 0
  %66 = vmatpush2.bf16.msra.mxu0 0
  %67 = vmatprep.subr.bf16.mxu0 0
  %68 = vmatpush2.bf16.msra.mxu0 0
  %69 = vmatprep.subr.bf16.mxu0 0
  %70 = vmatpush2.bf16.msra.mxu0 0
  %71 = vmatprep.subr.bf16.mxu0 0
  %72 = vmatpush2.bf16.msra.mxu0 0
  %73 = vmatprep.subr.bf16.mxu0 0
  %74 = vmatpush2.bf16.msra.mxu0 0
  %75 = vmatprep.mubr.bf16.mxu0 0
  %76 = vmatmul.mubr.bf16.gmra.mxu0 %v34
  %v77 = vpop.f32.mrf.mxu0
  %v78 = vadd.f32 %v30, %v77
  %v79 = vpop.f32.mrf.mxu0
  %v80 = vpop.f32.mrf.mxu0
  %v81 = vadd.f32 %v30, %v80
  %v82 = vpop.f32.mrf.mxu0
  %83 = vmatprep.mubr.bf16.mxu0 0
  %84 = vmatmul.mubr.bf16.gmra.mxu0 %v37
  %v85 = vpop.f32.mrf.mxu0
  %v86 = vadd.f32 %v30, %v85
  %v87 = vpop.f32.mrf.mxu0
  %v88 = vpop.f32.mrf.mxu0
  %v89 = vpop.f32.mrf.mxu0
  %90 = vdwg.mxu0
  %v91 = vpack.c.bf16 %v81, %v78
  %v92 = vpack.c.bf16 %v86, %v86
  %v93 = vld [vmem:[%s3] sm:$0xff]
  %v94 = vld [vmem:[%s3 + $0x8] sm:$0xff]
  %v95 = vpack.c.bf16 %v94, %v93
  %vm96 = vcmask 130048
  %v98 = vsel %vm96, %v91, 0
  %v101 = vsel %vm96, %v92, 0
  %103 = vmatprep.subr.bf16.mxu0 0
  %104 = vmatpush1.bf16.msra.mxu0 0
  %105 = vmatprep.subr.bf16.mxu0 0
  %106 = vmatpush1.bf16.msra.mxu0 0
  %107 = vmatprep.subr.bf16.mxu0 0
  %108 = vmatpush1.bf16.msra.mxu0 0
  %109 = vmatprep.subr.bf16.mxu0 0
  %110 = vmatpush1.bf16.msra.mxu0 0
  %111 = vmatprep.subr.bf16.mxu0 0
  %112 = vmatpush1.bf16.msra.mxu0 0
  %113 = vmatprep.subr.bf16.mxu0 0
  %114 = vmatpush1.bf16.msra.mxu0 0
  %115 = vmatprep.subr.bf16.mxu0 0
  %116 = vmatpush1.bf16.msra.mxu0 0
  %117 = vmatprep.subr.bf16.mxu0 0
  %118 = vmatpush1.bf16.msra.mxu0 %v95
  %119 = vmatprep.subr.bf16.mxu0 0
  %120 = vmatpush2.bf16.msra.mxu0 0
  %121 = vmatprep.subr.bf16.mxu0 0
  %122 = vmatpush2.bf16.msra.mxu0 0
  %123 = vmatprep.subr.bf16.mxu0 0
  %124 = vmatpush2.bf16.msra.mxu0 0
  %125 = vmatprep.subr.bf16.mxu0 0
  %126 = vmatpush2.bf16.msra.mxu0 0
  %127 = vmatprep.subr.bf16.mxu0 0
  %128 = vmatpush2.bf16.msra.mxu0 0
  %129 = vmatprep.subr.bf16.mxu0 0
  %130 = vmatpush2.bf16.msra.mxu0 0
  %131 = vmatprep.subr.bf16.mxu0 0
  %132 = vmatpush2.bf16.msra.mxu0 0
  %133 = vmatprep.subr.bf16.mxu0 0
  %134 = vmatpush2.bf16.msra.mxu0 0
  %135 = vmatprep.mubr.bf16.mxu0 0
  %136 = vmatmul.mubr.bf16.gmra.mxu0 %v98
  %v137 = vpop.f32.mrf.mxu0
  %v138 = vadd.f32 0.0, %v137
  %v139 = vpop.f32.mrf.mxu0
  %v140 = vpop.f32.mrf.mxu0
  %v141 = vadd.f32 0.0, %v140
  %v142 = vpop.f32.mrf.mxu0
  %143 = vmatprep.mubr.bf16.mxu0 0
  %144 = vmatmul.mubr.bf16.gmra.mxu0 %v101
  %v145 = vpop.f32.mrf.mxu0
  %v146 = vadd.f32 0.0, %v145
  %v147 = vpop.f32.mrf.mxu0
  %v148 = vpop.f32.mrf.mxu0
  %v149 = vpop.f32.mrf.mxu0
  %150 = vdwg.mxu0
  %vm151 = vcmask 261120
  %152 = vst.msk [vmem:[%s4] sm:$0xff] %vm151, %v138
  %153 = vst.msk [vmem:[%s4 + $0x8] sm:$0xff] %vm151, %v141
  %154 = vst.msk [vmem:[%s4 + $0x10] sm:$0xff] %vm151, %v146
  // Predicated region
  $region18: #{_lambda_.14} parent=0 // pred_check
    _
  $region19: #{_lambda_.14} parent=0 // pred_check_branch
    %156 = sbr.rel (0) target = $region21
  $region20: #{_lambda_.14} parent=0 // pred_region
    _
  $region21: #{_lambda_.14} parent=0 // pred_fallthru
    _
  // Predicated region
  $region22: #{_lambda_.14} parent=0 // pred_check
    _
  $region23: #{_lambda_.14} parent=0 // pred_check_branch
    %158 = sbr.rel (0) target = $region25
  $region24: #{_lambda_.14} parent=0 // pred_region
    _
  $region25: #{_lambda_.14} parent=0 // pred_fallthru
    _

// kernel: _lambda_.17
$region0: #{_lambda_.17}
  #allocation0 [shape = 'u32[]', space=smem, size = 0x4, offset = 0x4, fixed_abs, tag = 'smem constant byte address 0x4 - core index']
  #allocation1 [shape = 'u32[144,128]{1,0:T(1,128)}', space=vmem, size = 0x12000, scoped, tag = 'internal scratch']
  #allocation2 [shape = 'f32[1,1]{1,0:T(1,128)S(1)}', space=vmem, size = 0x200, scoped, tag = 'scoped memory for _lambda_.17']
  %s0 = inlined_call_operand.vmem [shape: f32[2,16], index: 0, kind: input, shape index: {}]
  %s1 = inlined_call_operand.vmem [shape: f32[2,5], index: 1, kind: input, shape index: {}]
  %s2 = inlined_call_operand.vmem [shape: f32[5,16], index: 2, kind: input, shape index: {}]
  %s3 = inlined_call_operand.vmem [shape: f32[1,16], index: 3, kind: input, shape index: {}]
  %s4 = inlined_call_operand.vmem [shape: f32[32,5], index: 4, kind: input, shape index: {}]
  %s5 = inlined_call_operand.vmem [shape: f32[1,5], index: 5, kind: input, shape index: {}]
  %s6 = inlined_call_operand.vmem [shape: f32[32,1], index: 6, kind: input, shape index: {}]
  %s7 = inlined_call_operand.<no memory space> [shape: f32[1,1], index: 7, kind: input, shape index: {}]
  %s8 = inlined_call_operand.vmem [shape: f32[2,5], index: 8, kind: output, shape index: {0}]
  %s9 = inlined_call_operand.vmem [shape: f32[2,1], index: 9, kind: output, shape index: {1}]
  %10 = xla_tuple %s8, %s9
  %s11 = sld [smem:[#allocation0]]
  $region50: #{_lambda_.17} parent=0
    _
  %s13 = ssub.s32 1, %s11
  %s14 = scalar_select 0, %s13, %s11
  %v15 = vstv %s7
  %16 = vst [vmem:[#allocation2] sm:$0x1] %v15
  // Predicated region
  $region2: #{_lambda_.17} parent=0 // pred_check
    _
  $region3: #{_lambda_.17} parent=0 // pred_check_branch
    %18 = sbr.rel (0) target = $region5
  $region4: #{_lambda_.17} parent=0 // pred_region
    _
  $region5: #{_lambda_.17} parent=0 // pred_fallthru
    _
  // Predicated region
  $region6: #{_lambda_.17} parent=0 // pred_check
    _
  $region7: #{_lambda_.17} parent=0 // pred_check_branch
    %20 = sbr.rel (0) target = $region9
  $region8: #{_lambda_.17} parent=0 // pred_region
    _
  $region9: #{_lambda_.17} parent=0 // pred_fallthru
    _
  // Predicated region
  $region10: #{_lambda_.17} parent=0 // pred_check
    _
  $region11: #{_lambda_.17} parent=0 // pred_check_branch
    %22 = sbr.rel (0) target = $region13
  $region12: #{_lambda_.17} parent=0 // pred_region
    _
  $region13: #{_lambda_.17} parent=0 // pred_fallthru
    _
  // Predicated region
  $region14: #{_lambda_.17} parent=0 // pred_check
    _
  $region15: #{_lambda_.17} parent=0 // pred_check_branch
    %24 = sbr.rel (0) target = $region17
  $region16: #{_lambda_.17} parent=0 // pred_region
    _
  $region17: #{_lambda_.17} parent=0 // pred_fallthru
    _
  // Predicated region
  $region18: #{_lambda_.17} parent=0 // pred_check
    _
  $region19: #{_lambda_.17} parent=0 // pred_check_branch
    %26 = sbr.rel (0) target = $region21
  $region20: #{_lambda_.17} parent=0 // pred_region
    _
  $region21: #{_lambda_.17} parent=0 // pred_fallthru
    _
  // Predicated region
  $region22: #{_lambda_.17} parent=0 // pred_check
    _
  $region23: #{_lambda_.17} parent=0 // pred_check_branch
    %28 = sbr.rel (0) target = $region25
  $region24: #{_lambda_.17} parent=0 // pred_region
    _
  $region25: #{_lambda_.17} parent=0 // pred_fallthru
    _
  // Predicated region
  $region26: #{_lambda_.17} parent=0 // pred_check
    _
  $region27: #{_lambda_.17} parent=0 // pred_check_branch
    %30 = sbr.rel (0) target = $region29
  $region28: #{_lambda_.17} parent=0 // pred_region
    _
  $region29: #{_lambda_.17} parent=0 // pred_fallthru
    _
  // Predicated region
  $region30: #{_lambda_.17} parent=0 // pred_check
    _
  $region31: #{_lambda_.17} parent=0 // pred_check_branch
    %32 = sbr.rel (0) target = $region33
  $region32: #{_lambda_.17} parent=0 // pred_region
    _
  $region33: #{_lambda_.17} parent=0 // pred_fallthru
    _
  %v33 = vld [vmem:[%s1] sm:$0x3]
  %v34 = vld [vmem:[%s2] sm:$0x1f]
  %v35 = vld [vmem:[%s3] sm:$0x1]
  %v37 = vlaneseq
  %v38 = vshrl.u32 %v37, 7
  %v39 = vsub.s32 0, %v38
  %v40 = vrot.slane %v35, %v39
  %vm42 = vcmask 39936
  %v44 = vsel %vm42, %v33, 0
  %vm46 = vcmask 1044480
  %v48 = vsel %vm46, %v34, 0
  %50 = vmatprep.subr.mxu0 0.0
  %51 = vmatpush1.msra.mxu0 0.0
  %52 = vmatprep.subr.mxu0 0.0
  %53 = vmatpush1.msra.mxu0 0.0
  %54 = vmatprep.subr.mxu0 0.0
  %55 = vmatpush1.msra.mxu0 0.0
  %56 = vmatprep.subr.mxu0 0.0
  %57 = vmatpush1.msra.mxu0 0.0
  %58 = vmatprep.subr.mxu0 0.0
  %59 = vmatpush1.msra.mxu0 0.0
  %60 = vmatprep.subr.mxu0 0.0
  %61 = vmatpush1.msra.mxu0 0.0
  %62 = vmatprep.subr.mxu0 0.0
  %63 = vmatpush1.msra.mxu0 0.0
  %64 = vmatprep.subr.mxu0 0.0
  %65 = vmatpush1.msra.mxu0 0.0
  %66 = vmatprep.subr.mxu0 0.0
  %67 = vmatpush1.msra.mxu0 0.0
  %68 = vmatprep.subr.mxu0 0.0
  %69 = vmatpush1.msra.mxu0 0.0
  %70 = vmatprep.subr.mxu0 0.0
  %71 = vmatpush1.msra.mxu0 0.0
  %72 = vmatprep.subr.mxu0 0.0
  %73 = vmatpush1.msra.mxu0 0.0
  %74 = vmatprep.subr.mxu0 0.0
  %75 = vmatpush1.msra.mxu0 0.0
  %76 = vmatprep.subr.mxu0 0.0
  %77 = vmatpush1.msra.mxu0 0.0
  %78 = vmatprep.subr.mxu0 0.0
  %79 = vmatpush1.msra.mxu0 0.0
  %80 = vmatprep.subr.mxu0 0.0
  %81 = vmatpush1.msra.mxu0 %v48
  %82 = vmatprep.subr.mxu0 0.0
  %83 = vmatpush2.msra.mxu0 0.0
  %84 = vmatprep.subr.mxu0 0.0
  %85 = vmatpush2.msra.mxu0 0.0
  %86 = vmatprep.subr.mxu0 0.0
  %87 = vmatpush2.msra.mxu0 0.0
  %88 = vmatprep.subr.mxu0 0.0
  %89 = vmatpush2.msra.mxu0 0.0
  %90 = vmatprep.subr.mxu0 0.0
  %91 = vmatpush2.msra.mxu0 0.0
  %92 = vmatprep.subr.mxu0 0.0
  %93 = vmatpush2.msra.mxu0 0.0
  %94 = vmatprep.subr.mxu0 0.0
  %95 = vmatpush2.msra.mxu0 0.0
  %96 = vmatprep.subr.mxu0 0.0
  %97 = vmatpush2.msra.mxu0 0.0
  %98 = vmatprep.subr.mxu0 0.0
  %99 = vmatpush2.msra.mxu0 0.0
  %100 = vmatprep.subr.mxu0 0.0
  %101 = vmatpush2.msra.mxu0 0.0
  %102 = vmatprep.subr.mxu0 0.0
  %103 = vmatpush2.msra.mxu0 0.0
  %104 = vmatprep.subr.mxu0 0.0
  %105 = vmatpush2.msra.mxu0 0.0
  %106 = vmatprep.subr.mxu0 0.0
  %107 = vmatpush2.msra.mxu0 0.0
  %108 = vmatprep.subr.mxu0 0.0
  %109 = vmatpush2.msra.mxu0 0.0
  %110 = vmatprep.subr.mxu0 0.0
  %111 = vmatpush2.msra.mxu0 0.0
  %112 = vmatprep.subr.mxu0 0.0
  %113 = vmatpush2.msra.mxu0 0.0
  %114 = vmatprep.mubr.f32.mxu0 0.0
  %115 = vmatmul.mubr.f32.gmra.mxu0 %v44
  %v116 = vpop.f32.mrf.mxu0
  %v117 = vadd.f32 %v40, %v116
  %v118 = vpop.f32.mrf.mxu0
  %119 = vdwg.mxu0
  %v120 = vld [vmem:[%s0] sm:$0x3]
  %122 = vrot.lane.b32.xlu0 %v117, 16
  %v123 = vpop.permute.xlu0 %122
  %vm125 = vcmask 130048
  %v126 = vsel %vm125, %v120, %v123
  %v127 = vld [vmem:[%s4] sm:$0xff]
  %v128 = vld [vmem:[%s4 + $0x8] sm:$0xff]
  %v129 = vld [vmem:[%s4 + $0x10] sm:$0xff]
  %v130 = vld [vmem:[%s4 + $0x18] sm:$0xff]
  %v131 = vld [vmem:[%s5] sm:$0x1]
  %v133 = vlaneseq
  %v134 = vshrl.u32 %v133, 7
  %v135 = vsub.s32 0, %v134
  %v136 = vrot.slane %v131, %v135
  %vm138 = vcmask 261120
  %v140 = vsel %vm138, %v126, 0
  %142 = vmatprep.subr.mxu0 0.0
  %143 = vmatpush1.msra.mxu0 0.0
  %144 = vmatprep.subr.mxu0 0.0
  %145 = vmatpush1.msra.mxu0 0.0
  %146 = vmatprep.subr.mxu0 0.0
  %147 = vmatpush1.msra.mxu0 0.0
  %148 = vmatprep.subr.mxu0 0.0
  %149 = vmatpush1.msra.mxu0 0.0
  %150 = vmatprep.subr.mxu0 0.0
  %151 = vmatpush1.msra.mxu0 0.0
  %152 = vmatprep.subr.mxu0 0.0
  %153 = vmatpush1.msra.mxu0 0.0
  %154 = vmatprep.subr.mxu0 0.0
  %155 = vmatpush1.msra.mxu0 0.0
  %156 = vmatprep.subr.mxu0 0.0
  %157 = vmatpush1.msra.mxu0 0.0
  %158 = vmatprep.subr.mxu0 0.0
  %159 = vmatpush1.msra.mxu0 0.0
  %160 = vmatprep.subr.mxu0 0.0
  %161 = vmatpush1.msra.mxu0 0.0
  %162 = vmatprep.subr.mxu0 0.0
  %163 = vmatpush1.msra.mxu0 0.0
  %164 = vmatprep.subr.mxu0 0.0
  %165 = vmatpush1.msra.mxu0 0.0
  %166 = vmatprep.subr.mxu0 0.0
  %167 = vmatpush1.msra.mxu0 %v130
  %168 = vmatprep.subr.mxu0 0.0
  %169 = vmatpush1.msra.mxu0 %v129
  %170 = vmatprep.subr.mxu0 0.0
  %171 = vmatpush1.msra.mxu0 %v128
  %172 = vmatprep.subr.mxu0 0.0
  %173 = vmatpush1.msra.mxu0 %v127
  %174 = vmatprep.subr.mxu0 0.0
  %175 = vmatpush2.msra.mxu0 0.0
  %176 = vmatprep.subr.mxu0 0.0
  %177 = vmatpush2.msra.mxu0 0.0
  %178 = vmatprep.subr.mxu0 0.0
  %179 = vmatpush2.msra.mxu0 0.0
  %180 = vmatprep.subr.mxu0 0.0
  %181 = vmatpush2.msra.mxu0 0.0
  %182 = vmatprep.subr.mxu0 0.0
  %183 = vmatpush2.msra.mxu0 0.0
  %184 = vmatprep.subr.mxu0 0.0
  %185 = vmatpush2.msra.mxu0 0.0
  %186 = vmatprep.subr.mxu0 0.0
  %187 = vmatpush2.msra.mxu0 0.0
  %188 = vmatprep.subr.mxu0 0.0
  %189 = vmatpush2.msra.mxu0 0.0
  %190 = vmatprep.subr.mxu0 0.0
  %191 = vmatpush2.msra.mxu0 0.0
  %192 = vmatprep.subr.mxu0 0.0
  %193 = vmatpush2.msra.mxu0 0.0
  %194 = vmatprep.subr.mxu0 0.0
  %195 = vmatpush2.msra.mxu0 0.0
  %196 = vmatprep.subr.mxu0 0.0
  %197 = vmatpush2.msra.mxu0 0.0
  %198 = vmatprep.subr.mxu0 0.0
  %199 = vmatpush2.msra.mxu0 0.0
  %200 = vmatprep.subr.mxu0 0.0
  %201 = vmatpush2.msra.mxu0 0.0
  %202 = vmatprep.subr.mxu0 0.0
  %203 = vmatpush2.msra.mxu0 0.0
  %204 = vmatprep.subr.mxu0 0.0
  %205 = vmatpush2.msra.mxu0 0.0
  %206 = vmatprep.mubr.f32.mxu0 0.0
  %207 = vmatmul.mubr.f32.gmra.mxu0 %v140
  %v208 = vpop.f32.mrf.mxu0
  %v209 = vadd.f32 %v136, %v208
  %v210 = vpop.f32.mrf.mxu0
  %211 = vdwg.mxu0
  %vm212 = vcmask 33792
  %213 = vst.msk [vmem:[%s8] sm:$0x3] %vm212, %v209
  %v214 = vld [vmem:[%s6] sm:$0xff]
  %v215 = vld [vmem:[%s6 + $0x8] sm:$0xff]
  %v216 = vld [vmem:[%s6 + $0x10] sm:$0xff]
  %v217 = vld [vmem:[%s6 + $0x18] sm:$0xff]
  %v218 = vld [vmem:[#allocation2] sm:$0x1]
  %v220 = vlaneseq
  %v221 = vshrl.u32 %v220, 7
  %v222 = vsub.s32 0, %v221
  %v223 = vrot.slane %v218, %v222
  %225 = vmatprep.subr.mxu0 0.0
  %226 = vmatpush1.msra.mxu0 0.0
  %227 = vmatprep.subr.mxu0 0.0
  %228 = vmatpush1.msra.mxu0 0.0
  %229 = vmatprep.subr.mxu0 0.0
  %230 = vmatpush1.msra.mxu0 0.0
  %231 = vmatprep.subr.mxu0 0.0
  %232 = vmatpush1.msra.mxu0 0.0
  %233 = vmatprep.subr.mxu0 0.0
  %234 = vmatpush1.msra.mxu0 0.0
  %235 = vmatprep.subr.mxu0 0.0
  %236 = vmatpush1.msra.mxu0 0.0
  %237 = vmatprep.subr.mxu0 0.0
  %238 = vmatpush1.msra.mxu0 0.0
  %239 = vmatprep.subr.mxu0 0.0
  %240 = vmatpush1.msra.mxu0 0.0
  %241 = vmatprep.subr.mxu0 0.0
  %242 = vmatpush1.msra.mxu0 0.0
  %243 = vmatprep.subr.mxu0 0.0
  %244 = vmatpush1.msra.mxu0 0.0
  %245 = vmatprep.subr.mxu0 0.0
  %246 = vmatpush1.msra.mxu0 0.0
  %247 = vmatprep.subr.mxu0 0.0
  %248 = vmatpush1.msra.mxu0 0.0
  %249 = vmatprep.subr.mxu0 0.0
  %250 = vmatpush1.msra.mxu0 %v217
  %251 = vmatprep.subr.mxu0 0.0
  %252 = vmatpush1.msra.mxu0 %v216
  %253 = vmatprep.subr.mxu0 0.0
  %254 = vmatpush1.msra.mxu0 %v215
  %255 = vmatprep.subr.mxu0 0.0
  %256 = vmatpush1.msra.mxu0 %v214
  %257 = vmatprep.subr.mxu0 0.0
  %258 = vmatpush2.msra.mxu0 0.0
  %259 = vmatprep.subr.mxu0 0.0
  %260 = vmatpush2.msra.mxu0 0.0
  %261 = vmatprep.subr.mxu0 0.0
  %262 = vmatpush2.msra.mxu0 0.0
  %263 = vmatprep.subr.mxu0 0.0
  %264 = vmatpush2.msra.mxu0 0.0
  %265 = vmatprep.subr.mxu0 0.0
  %266 = vmatpush2.msra.mxu0 0.0
  %267 = vmatprep.subr.mxu0 0.0
  %268 = vmatpush2.msra.mxu0 0.0
  %269 = vmatprep.subr.mxu0 0.0
  %270 = vmatpush2.msra.mxu0 0.0
  %271 = vmatprep.subr.mxu0 0.0
  %272 = vmatpush2.msra.mxu0 0.0
  %273 = vmatprep.subr.mxu0 0.0
  %274 = vmatpush2.msra.mxu0 0.0
  %275 = vmatprep.subr.mxu0 0.0
  %276 = vmatpush2.msra.mxu0 0.0
  %277 = vmatprep.subr.mxu0 0.0
  %278 = vmatpush2.msra.mxu0 0.0
  %279 = vmatprep.subr.mxu0 0.0
  %280 = vmatpush2.msra.mxu0 0.0
  %281 = vmatprep.subr.mxu0 0.0
  %282 = vmatpush2.msra.mxu0 0.0
  %283 = vmatprep.subr.mxu0 0.0
  %284 = vmatpush2.msra.mxu0 0.0
  %285 = vmatprep.subr.mxu0 0.0
  %286 = vmatpush2.msra.mxu0 0.0
  %287 = vmatprep.subr.mxu0 0.0
  %288 = vmatpush2.msra.mxu0 0.0
  %289 = vmatprep.mubr.f32.mxu0 0.0
  %290 = vmatmul.mubr.f32.gmra.mxu0 %v140
  %v291 = vpop.f32.mrf.mxu0
  %v292 = vadd.f32 %v223, %v291
  %v293 = vpop.f32.mrf.mxu0
  %294 = vdwg.mxu0
  %vm295 = vcmask 1024
  %296 = vst.msk [vmem:[%s9] sm:$0x3] %vm295, %v292
  // Predicated region
  $region34: #{_lambda_.17} parent=0 // pred_check
    _
  $region35: #{_lambda_.17} parent=0 // pred_check_branch
    %298 = sbr.rel (0) target = $region37
  $region36: #{_lambda_.17} parent=0 // pred_region
    _
  $region37: #{_lambda_.17} parent=0 // pred_fallthru
    _
  // Predicated region
  $region38: #{_lambda_.17} parent=0 // pred_check
    _
  $region39: #{_lambda_.17} parent=0 // pred_check_branch
    %300 = sbr.rel (0) target = $region41
  $region40: #{_lambda_.17} parent=0 // pred_region
    _
  $region41: #{_lambda_.17} parent=0 // pred_fallthru
    _
  // Predicated region
  $region42: #{_lambda_.17} parent=0 // pred_check
    _
  $region43: #{_lambda_.17} parent=0 // pred_check_branch
    %302 = sbr.rel (0) target = $region45
  $region44: #{_lambda_.17} parent=0 // pred_region
    _
  $region45: #{_lambda_.17} parent=0 // pred_fallthru
    _
  // Predicated region
  $region46: #{_lambda_.17} parent=0 // pred_check
    _
  $region47: #{_lambda_.17} parent=0 // pred_check_branch
    %304 = sbr.rel (0) target = $region49
  $region48: #{_lambda_.17} parent=0 // pred_region
    _
  $region49: #{_lambda_.17} parent=0 // pred_fallthru
    _

// kernel: _lambda_.15
$region0: #{_lambda_.15}
  #allocation0 [shape = 'u32[]', space=smem, size = 0x4, offset = 0x4, fixed_abs, tag = 'smem constant byte address 0x4 - core index']
  #allocation1 [shape = 'u32[144,128]{1,0:T(1,128)}', space=vmem, size = 0x12000, scoped, tag = 'internal scratch']
  %s0 = inlined_call_operand.vmem [shape: f32[12,16], index: 0, kind: input, shape index: {}]
  %s1 = inlined_call_operand.vmem [shape: f32[12,12,16], index: 1, kind: input, shape index: {}]
  %s2 = inlined_call_operand.vmem [shape: f32[12,12], index: 2, kind: input, shape index: {}]
  %s3 = inlined_call_operand.vmem [shape: f32[12,12], index: 3, kind: input, shape index: {}]
  %s4 = inlined_call_operand.vmem [shape: f32[16,80], index: 4, kind: input, shape index: {}]
  %s5 = inlined_call_operand.vmem [shape: f32[1,16], index: 5, kind: input, shape index: {}]
  %s6 = inlined_call_operand.vmem [shape: f32[16,16], index: 6, kind: input, shape index: {}]
  %s7 = inlined_call_operand.vmem [shape: f32[1,16], index: 7, kind: input, shape index: {}]
  %s8 = inlined_call_operand.vmem [shape: f32[1,16], index: 8, kind: input, shape index: {}]
  %s9 = inlined_call_operand.vmem [shape: f32[1,16], index: 9, kind: input, shape index: {}]
  %s10 = inlined_call_operand.vmem [shape: f32[16,32], index: 10, kind: input, shape index: {}]
  %s11 = inlined_call_operand.vmem [shape: f32[1,32], index: 11, kind: input, shape index: {}]
  %s12 = inlined_call_operand.vmem [shape: f32[32,16], index: 12, kind: input, shape index: {}]
  %s13 = inlined_call_operand.vmem [shape: f32[1,16], index: 13, kind: input, shape index: {}]
  %s14 = inlined_call_operand.vmem [shape: f32[1,16], index: 14, kind: input, shape index: {}]
  %s15 = inlined_call_operand.vmem [shape: f32[1,16], index: 15, kind: input, shape index: {}]
  %s16 = inlined_call_operand.vmem [shape: f32[12,16], index: 16, kind: output, shape index: {}]
  %s17 = sld [smem:[#allocation0]]
  $region74: #{_lambda_.15} parent=0
    _
  %s19 = ssub.s32 1, %s17
  %s20 = scalar_select 0, %s19, %s17
  // Predicated region
  $region2: #{_lambda_.15} parent=0 // pred_check
    _
  $region3: #{_lambda_.15} parent=0 // pred_check_branch
    %22 = sbr.rel (0) target = $region5
  $region4: #{_lambda_.15} parent=0 // pred_region
    _
  $region5: #{_lambda_.15} parent=0 // pred_fallthru
    _
  // Predicated region
  $region6: #{_lambda_.15} parent=0 // pred_check
    _
  $region7: #{_lambda_.15} parent=0 // pred_check_branch
    %24 = sbr.rel (0) target = $region9
  $region8: #{_lambda_.15} parent=0 // pred_region
    _
  $region9: #{_lambda_.15} parent=0 // pred_fallthru
    _
  // Predicated region
  $region10: #{_lambda_.15} parent=0 // pred_check
    _
  $region11: #{_lambda_.15} parent=0 // pred_check_branch
    %26 = sbr.rel (0) target = $region13
  $region12: #{_lambda_.15} parent=0 // pred_region
    _
  $region13: #{_lambda_.15} parent=0 // pred_fallthru
    _
  // Predicated region
  $region14: #{_lambda_.15} parent=0 // pred_check
    _
  $region15: #{_lambda_.15} parent=0 // pred_check_branch
    %28 = sbr.rel (0) target = $region17
  $region16: #{_lambda_.15} parent=0 // pred_region
    _
  $region17: #{_lambda_.15} parent=0 // pred_fallthru
    _
  // Predicated region
  $region18: #{_lambda_.15} parent=0 // pred_check
    _
  $region19: #{_lambda_.15} parent=0 // pred_check_branch
    %30 = sbr.rel (0) target = $region21
  $region20: #{_lambda_.15} parent=0 // pred_region
    _
  $region21: #{_lambda_.15} parent=0 // pred_fallthru
    _
  // Predicated region
  $region22: #{_lambda_.15} parent=0 // pred_check
    _
  $region23: #{_lambda_.15} parent=0 // pred_check_branch
    %32 = sbr.rel (0) target = $region25
  $region24: #{_lambda_.15} parent=0 // pred_region
    _
  $region25: #{_lambda_.15} parent=0 // pred_fallthru
    _
  // Predicated region
  $region26: #{_lambda_.15} parent=0 // pred_check
    _
  $region27: #{_lambda_.15} parent=0 // pred_check_branch
    %34 = sbr.rel (0) target = $region29
  $region28: #{_lambda_.15} parent=0 // pred_region
    _
  $region29: #{_lambda_.15} parent=0 // pred_fallthru
    _
  // Predicated region
  $region30: #{_lambda_.15} parent=0 // pred_check
    _
  $region31: #{_lambda_.15} parent=0 // pred_check_branch
    %36 = sbr.rel (0) target = $region33
  $region32: #{_lambda_.15} parent=0 // pred_region
    _
  $region33: #{_lambda_.15} parent=0 // pred_fallthru
    _
  // Predicated region
  $region34: #{_lambda_.15} parent=0 // pred_check
    _
  $region35: #{_lambda_.15} parent=0 // pred_check_branch
    %38 = sbr.rel (0) target = $region37
  $region36: #{_lambda_.15} parent=0 // pred_region
    _
  $region37: #{_lambda_.15} parent=0 // pred_fallthru
    _
  // Predicated region
  $region38: #{_lambda_.15} parent=0 // pred_check
    _
  $region39: #{_lambda_.15} parent=0 // pred_check_branch
    %40 = sbr.rel (0) target = $region41
  $region40: #{_lambda_.15} parent=0 // pred_region
    _
  $region41: #{_lambda_.15} parent=0 // pred_fallthru
    _
  // Predicated region
  $region42: #{_lambda_.15} parent=0 // pred_check
    _
  $region43: #{_lambda_.15} parent=0 // pred_check_branch
    %42 = sbr.rel (0) target = $region45
  $region44: #{_lambda_.15} parent=0 // pred_region
    _
  $region45: #{_lambda_.15} parent=0 // pred_fallthru
    _
  // Predicated region
  $region46: #{_lambda_.15} parent=0 // pred_check
    _
  $region47: #{_lambda_.15} parent=0 // pred_check_branch
    %44 = sbr.rel (0) target = $region49
  $region48: #{_lambda_.15} parent=0 // pred_region
    _
  $region49: #{_lambda_.15} parent=0 // pred_fallthru
    _
  // Predicated region
  $region50: #{_lambda_.15} parent=0 // pred_check
    _
  $region51: #{_lambda_.15} parent=0 // pred_check_branch
    %46 = sbr.rel (0) target = $region53
  $region52: #{_lambda_.15} parent=0 // pred_region
    _
  $region53: #{_lambda_.15} parent=0 // pred_fallthru
    _
  // Predicated region
  $region54: #{_lambda_.15} parent=0 // pred_check
    _
  $region55: #{_lambda_.15} parent=0 // pred_check_branch
    %48 = sbr.rel (0) target = $region57
  $region56: #{_lambda_.15} parent=0 // pred_region
    _
  $region57: #{_lambda_.15} parent=0 // pred_fallthru
    _
  // Predicated region
  $region58: #{_lambda_.15} parent=0 // pred_check
    _
  $region59: #{_lambda_.15} parent=0 // pred_check_branch
    %50 = sbr.rel (0) target = $region61
  $region60: #{_lambda_.15} parent=0 // pred_region
    _
  $region61: #{_lambda_.15} parent=0 // pred_fallthru
    _
  // Predicated region
  $region62: #{_lambda_.15} parent=0 // pred_check
    _
  $region63: #{_lambda_.15} parent=0 // pred_check_branch
    %52 = sbr.rel (0) target = $region65
  $region64: #{_lambda_.15} parent=0 // pred_region
    _
  $region65: #{_lambda_.15} parent=0 // pred_fallthru
    _
  %v54 = vld [vmem:[%s0] sm:$0xff]
  %v55 = vld [vmem:[%s0 + $0x8] sm:$0xf]
  %v56 = vpack.c.bf16 %v55, %v54
  %v57 = vld [vmem:[%s4] sm:$0xff]
  %v58 = vld [vmem:[%s4 + $0x8] sm:$0xff]
  %v59 = vpack.c.bf16 %v58, %v57
  %vm60 = vcmask 130048
  %v62 = vsel %vm60, %v56, 0
  %64 = vmatprep.subr.bf16.mxu0 0
  %65 = vmatpush1.bf16.msra.mxu0 0
  %66 = vmatprep.subr.bf16.mxu0 0
  %67 = vmatpush1.bf16.msra.mxu0 0
  %68 = vmatprep.subr.bf16.mxu0 0
  %69 = vmatpush1.bf16.msra.mxu0 0
  %70 = vmatprep.subr.bf16.mxu0 0
  %71 = vmatpush1.bf16.msra.mxu0 0
  %72 = vmatprep.subr.bf16.mxu0 0
  %73 = vmatpush1.bf16.msra.mxu0 0
  %74 = vmatprep.subr.bf16.mxu0 0
  %75 = vmatpush1.bf16.msra.mxu0 0
  %76 = vmatprep.subr.bf16.mxu0 0
  %77 = vmatpush1.bf16.msra.mxu0 0
  %78 = vmatprep.subr.bf16.mxu0 0
  %79 = vmatpush1.bf16.msra.mxu0 %v59
  %80 = vmatprep.subr.bf16.mxu0 0
  %81 = vmatpush2.bf16.msra.mxu0 0
  %82 = vmatprep.subr.bf16.mxu0 0
  %83 = vmatpush2.bf16.msra.mxu0 0
  %84 = vmatprep.subr.bf16.mxu0 0
  %85 = vmatpush2.bf16.msra.mxu0 0
  %86 = vmatprep.subr.bf16.mxu0 0
  %87 = vmatpush2.bf16.msra.mxu0 0
  %88 = vmatprep.subr.bf16.mxu0 0
  %89 = vmatpush2.bf16.msra.mxu0 0
  %90 = vmatprep.subr.bf16.mxu0 0
  %91 = vmatpush2.bf16.msra.mxu0 0
  %92 = vmatprep.subr.bf16.mxu0 0
  %93 = vmatpush2.bf16.msra.mxu0 0
  %94 = vmatprep.subr.bf16.mxu0 0
  %95 = vmatpush2.bf16.msra.mxu0 0
  %96 = vmatprep.mubr.bf16.mxu0 0
  %97 = vmatmul.mubr.bf16.gmra.mxu0 %v62
  %v98 = vpop.f32.mrf.mxu0
  %v99 = vadd.f32 0.0, %v98
  %v100 = vpop.f32.mrf.mxu0
  %v101 = vpop.f32.mrf.mxu0
  %v102 = vadd.f32 0.0, %v101
  %v103 = vpop.f32.mrf.mxu0
  %104 = vdwg.mxu0
  %v105 = vld [vmem:[%s1] sm:$0xff]
  %v106 = vld [vmem:[%s1 + $0x8] sm:$0xf]
  %v107 = vld [vmem:[%s1 + $0x10] sm:$0xff]
  %v108 = vld [vmem:[%s1 + $0x18] sm:$0xf]
  %v109 = vld [vmem:[%s1 + $0x20] sm:$0xff]
  %v110 = vld [vmem:[%s1 + $0x28] sm:$0xf]
  %v111 = vld [vmem:[%s1 + $0x30] sm:$0xff]
  %v112 = vld [vmem:[%s1 + $0x38] sm:$0xf]
  %v113 = vld [vmem:[%s1 + $0x40] sm:$0xff]
  %v114 = vld [vmem:[%s1 + $0x48] sm:$0xf]
  %v115 = vld [vmem:[%s1 + $0x50] sm:$0xff]
  %v116 = vld [vmem:[%s1 + $0x58] sm:$0xf]
  %v117 = vld [vmem:[%s1 + $0x60] sm:$0xff]
  %v118 = vld [vmem:[%s1 + $0x68] sm:$0xf]
  %v119 = vld [vmem:[%s1 + $0x70] sm:$0xff]
  %v120 = vld [vmem:[%s1 + $0x78] sm:$0xf]
  %v121 = vld [vmem:[%s1 + $0x80] sm:$0xff]
  %v122 = vld [vmem:[%s1 + $0x88] sm:$0xf]
  %v123 = vld [vmem:[%s1 + $0x90] sm:$0xff]
  %v124 = vld [vmem:[%s1 + $0x98] sm:$0xf]
  %v125 = vld [vmem:[%s1 + $0xa0] sm:$0xff]
  %v126 = vld [vmem:[%s1 + $0xa8] sm:$0xf]
  %v127 = vld [vmem:[%s1 + $0xb0] sm:$0xff]
  %v128 = vld [vmem:[%s1 + $0xb8] sm:$0xf]
  %v129 = vld [vmem:[%s2] sm:$0xff]
  %v130 = vld [vmem:[%s2 + $0x8] sm:$0xf]
  %v131 = vld [vmem:[%s3] sm:$0xff]
  %v132 = vld [vmem:[%s3 + $0x8] sm:$0xf]
  %v133 = vld [vmem:[%s5] sm:$0x1]
  %v134 = vmul.f32 %v99, 0.35355338
  %v135 = vmul.f32 %v102, 0.35355338
  %138 = vrot.lane.b32.xlu0 %v99, 112
  %v139 = vpop.permute.xlu0 %138
  %140 = vrot.lane.b32.xlu0 %v102, 112
  %v141 = vpop.permute.xlu0 %140
  %v144 = vmul.f32 %v105, %v139
  %v145 = vmul.f32 %v106, %v141
  %v146 = vmul.f32 %v107, %v139
  %v147 = vmul.f32 %v108, %v141
  %v148 = vmul.f32 %v109, %v139
  %v149 = vmul.f32 %v110, %v141
  %v150 = vmul.f32 %v111, %v139
  %v151 = vmul.f32 %v112, %v141
  %v152 = vmul.f32 %v113, %v139
  %v153 = vmul.f32 %v114, %v141
  %v154 = vmul.f32 %v115, %v139
  %v155 = vmul.f32 %v116, %v141
  %v156 = vmul.f32 %v117, %v139
  %v157 = vmul.f32 %v118, %v141
  %v158 = vmul.f32 %v119, %v139
  %v159 = vmul.f32 %v120, %v141
  %v160 = vmul.f32 %v121, %v139
  %v161 = vmul.f32 %v122, %v141
  %v162 = vmul.f32 %v123, %v139
  %v163 = vmul.f32 %v124, %v141
  %v164 = vmul.f32 %v125, %v139
  %v165 = vmul.f32 %v126, %v141
  %v166 = vmul.f32 %v127, %v139
  %v167 = vmul.f32 %v128, %v141
  %v168 = vpack.c.bf16 %v145, %v144
  %v169 = vpack.c.bf16 %v147, %v146
  %v170 = vpack.c.bf16 %v149, %v148
  %v171 = vpack.c.bf16 %v151, %v150
  %v172 = vpack.c.bf16 %v153, %v152
  %v173 = vpack.c.bf16 %v155, %v154
  %v174 = vpack.c.bf16 %v157, %v156
  %v175 = vpack.c.bf16 %v159, %v158
  %v176 = vpack.c.bf16 %v161, %v160
  %v177 = vpack.c.bf16 %v163, %v162
  %v178 = vpack.c.bf16 %v165, %v164
  %v179 = vpack.c.bf16 %v167, %v166
  %v180 = vpack.c.bf16 %v135, %v134
  %v182 = vcombine.high %v180, %v180
  %v184 = vunpack.c.l.s4 1966171168
  %v185 = vunpack.c.0.s8 %v184
  %v186 = vlaneseq
  %v187 = vshrl.u32 %v186, 7
  %v188 = vsub.s32 %v185, %v187
  %v189 = vrot.slane %v180, %v188
  %v191 = vunpack.c.l.s4 1966171168
  %v192 = vunpack.c.0.s8 %v191
  %v193 = vlaneseq
  %v194 = vshrl.u32 %v193, 7
  %v195 = vsub.s32 %v192, %v194
  %v196 = vrot.slane %v182, %v195
  %v197 = vcombine.high %v189, %v189
  %v198 = vcombine.high %v196, %v196
  %v200 = vunpack.c.l.s4 1966171168
  %v201 = vunpack.c.0.s8 %v200
  %v202 = vlaneseq
  %v203 = vshrl.u32 %v202, 7
  %v204 = vsub.s32 %v201, %v203
  %v205 = vrot.slane %v189, %v204
  %v207 = vunpack.c.l.s4 1966171168
  %v208 = vunpack.c.0.s8 %v207
  %v209 = vlaneseq
  %v210 = vshrl.u32 %v209, 7
  %v211 = vsub.s32 %v208, %v210
  %v212 = vrot.slane %v196, %v211
  %v214 = vunpack.c.l.s4 1966171168
  %v215 = vunpack.c.0.s8 %v214
  %v216 = vlaneseq
  %v217 = vshrl.u32 %v216, 7
  %v218 = vsub.s32 %v215, %v217
  %v219 = vrot.slane %v197, %v218
  %v221 = vunpack.c.l.s4 1966171168
  %v222 = vunpack.c.0.s8 %v221
  %v223 = vlaneseq
  %v224 = vshrl.u32 %v223, 7
  %v225 = vsub.s32 %v222, %v224
  %v226 = vrot.slane %v198, %v225
  %v227 = vcombine.high %v205, %v205
  %v228 = vcombine.high %v219, %v219
  %v229 = vunpack.i.l.s16 %v205
  %v230 = vunpack.i.h.s16 %v205
  %v231 = vunpack.i.l.s16 %v219
  %v232 = vunpack.i.h.s16 %v219
  %v233 = vunpack.i.l.s16 %v227
  %v234 = vunpack.i.h.s16 %v227
  %v235 = vunpack.i.l.s16 %v228
  %v236 = vunpack.i.h.s16 %v228
  %v237 = vunpack.i.l.s16 %v212
  %v238 = vunpack.i.h.s16 %v212
  %v239 = vunpack.i.l.s16 %v226
  %v240 = vunpack.i.h.s16 %v226
  %v241 = vpack.i.b16 %v229, %v229
  %v242 = vlaneseq
  %v243 = vshrl.u32 %v242, 7
  %v244 = vsub.s32 0, %v243
  %v245 = vrot.slane %v241, %v244
  %vm246 = vcmask 64512
  %v248 = vsel %vm246, %v168, 0
  %v251 = vsel %vm246, %v245, 0
  %253 = vmatprep.subr.bf16.mxu0 0
  %254 = vmatpush1.bf16.xpose.msra.mxu0 0
  %255 = vmatprep.subr.bf16.mxu0 0
  %256 = vmatpush1.bf16.xpose.msra.mxu0 0
  %257 = vmatprep.subr.bf16.mxu0 0
  %258 = vmatpush1.bf16.xpose.msra.mxu0 0
  %259 = vmatprep.subr.bf16.mxu0 0
  %260 = vmatpush1.bf16.xpose.msra.mxu0 0
  %261 = vmatprep.subr.bf16.mxu0 0
  %262 = vmatpush1.bf16.xpose.msra.mxu0 0
  %263 = vmatprep.subr.bf16.mxu0 0
  %264 = vmatpush1.bf16.xpose.msra.mxu0 0
  %265 = vmatprep.subr.bf16.mxu0 0
  %266 = vmatpush1.bf16.xpose.msra.mxu0 0
  %267 = vmatprep.subr.bf16.mxu0 0
  %268 = vmatpush1.bf16.xpose.msra.mxu0 %v251
  %269 = vmatprep.subr.bf16.mxu0 0
  %270 = vmatpush2.bf16.xpose.msra.mxu0 0
  %271 = vmatprep.subr.bf16.mxu0 0
  %272 = vmatpush2.bf16.xpose.msra.mxu0 0
  %273 = vmatprep.subr.bf16.mxu0 0
  %274 = vmatpush2.bf16.xpose.msra.mxu0 0
  %275 = vmatprep.subr.bf16.mxu0 0
  %276 = vmatpush2.bf16.xpose.msra.mxu0 0
  %277 = vmatprep.subr.bf16.mxu0 0
  %278 = vmatpush2.bf16.xpose.msra.mxu0 0
  %279 = vmatprep.subr.bf16.mxu0 0
  %280 = vmatpush2.bf16.xpose.msra.mxu0 0
  %281 = vmatprep.subr.bf16.mxu0 0
  %282 = vmatpush2.bf16.xpose.msra.mxu0 0
  %283 = vmatprep.subr.bf16.mxu0 0
  %284 = vmatpush2.bf16.xpose.msra.mxu0 0
  %285 = vmatprep.mubr.bf16.mxu0 0
  %286 = vmatmul.mubr.bf16.gmra.mxu0 %v248
  %v287 = vpop.f32.mrf.mxu0
  %v288 = vadd.f32 0.0, %v287
  %v289 = vpop.f32.mrf.mxu0
  %v290 = vpop.f32.mrf.mxu0
  %v291 = vadd.f32 0.0, %v290
  %v292 = vpop.f32.mrf.mxu0
  %293 = vdwg.mxu0
  %v294 = vpack.i.b16 %v230, %v230
  %v295 = vlaneseq
  %v296 = vshrl.u32 %v295, 7
  %v297 = vsub.s32 0, %v296
  %v298 = vrot.slane %v294, %v297
  %v300 = vsel %vm246, %v169, 0
  %v303 = vsel %vm246, %v298, 0
  %305 = vmatprep.subr.bf16.mxu0 0
  %306 = vmatpush1.bf16.xpose.msra.mxu0 0
  %307 = vmatprep.subr.bf16.mxu0 0
  %308 = vmatpush1.bf16.xpose.msra.mxu0 0
  %309 = vmatprep.subr.bf16.mxu0 0
  %310 = vmatpush1.bf16.xpose.msra.mxu0 0
  %311 = vmatprep.subr.bf16.mxu0 0
  %312 = vmatpush1.bf16.xpose.msra.mxu0 0
  %313 = vmatprep.subr.bf16.mxu0 0
  %314 = vmatpush1.bf16.xpose.msra.mxu0 0
  %315 = vmatprep.subr.bf16.mxu0 0
  %316 = vmatpush1.bf16.xpose.msra.mxu0 0
  %317 = vmatprep.subr.bf16.mxu0 0
  %318 = vmatpush1.bf16.xpose.msra.mxu0 0
  %319 = vmatprep.subr.bf16.mxu0 0
  %320 = vmatpush1.bf16.xpose.msra.mxu0 %v303
  %321 = vmatprep.subr.bf16.mxu0 0
  %322 = vmatpush2.bf16.xpose.msra.mxu0 0
  %323 = vmatprep.subr.bf16.mxu0 0
  %324 = vmatpush2.bf16.xpose.msra.mxu0 0
  %325 = vmatprep.subr.bf16.mxu0 0
  %326 = vmatpush2.bf16.xpose.msra.mxu0 0
  %327 = vmatprep.subr.bf16.mxu0 0
  %328 = vmatpush2.bf16.xpose.msra.mxu0 0
  %329 = vmatprep.subr.bf16.mxu0 0
  %330 = vmatpush2.bf16.xpose.msra.mxu0 0
  %331 = vmatprep.subr.bf16.mxu0 0
  %332 = vmatpush2.bf16.xpose.msra.mxu0 0
  %333 = vmatprep.subr.bf16.mxu0 0
  %334 = vmatpush2.bf16.xpose.msra.mxu0 0
  %335 = vmatprep.subr.bf16.mxu0 0
  %336 = vmatpush2.bf16.xpose.msra.mxu0 0
  %337 = vmatprep.mubr.bf16.mxu0 0
  %338 = vmatmul.mubr.bf16.gmra.mxu0 %v300
  %v339 = vpop.f32.mrf.mxu0
  %v340 = vadd.f32 0.0, %v339
  %v341 = vpop.f32.mrf.mxu0
  %v342 = vpop.f32.mrf.mxu0
  %v343 = vadd.f32 0.0, %v342
  %v344 = vpop.f32.mrf.mxu0
  %345 = vdwg.mxu0
  %v346 = vpack.i.b16 %v231, %v231
  %v347 = vlaneseq
  %v348 = vshrl.u32 %v347, 7
  %v349 = vsub.s32 0, %v348
  %v350 = vrot.slane %v346, %v349
  %v352 = vsel %vm246, %v170, 0
  %v355 = vsel %vm246, %v350, 0
  %357 = vmatprep.subr.bf16.mxu0 0
  %358 = vmatpush1.bf16.xpose.msra.mxu0 0
  %359 = vmatprep.subr.bf16.mxu0 0
  %360 = vmatpush1.bf16.xpose.msra.mxu0 0
  %361 = vmatprep.subr.bf16.mxu0 0
  %362 = vmatpush1.bf16.xpose.msra.mxu0 0
  %363 = vmatprep.subr.bf16.mxu0 0
  %364 = vmatpush1.bf16.xpose.msra.mxu0 0
  %365 = vmatprep.subr.bf16.mxu0 0
  %366 = vmatpush1.bf16.xpose.msra.mxu0 0
  %367 = vmatprep.subr.bf16.mxu0 0
  %368 = vmatpush1.bf16.xpose.msra.mxu0 0
  %369 = vmatprep.subr.bf16.mxu0 0
  %370 = vmatpush1.bf16.xpose.msra.mxu0 0
  %371 = vmatprep.subr.bf16.mxu0 0
  %372 = vmatpush1.bf16.xpose.msra.mxu0 %v355
  %373 = vmatprep.subr.bf16.mxu0 0
  %374 = vmatpush2.bf16.xpose.msra.mxu0 0
  %375 = vmatprep.subr.bf16.mxu0 0
  %376 = vmatpush2.bf16.xpose.msra.mxu0 0
  %377 = vmatprep.subr.bf16.mxu0 0
  %378 = vmatpush2.bf16.xpose.msra.mxu0 0
  %379 = vmatprep.subr.bf16.mxu0 0
  %380 = vmatpush2.bf16.xpose.msra.mxu0 0
  %381 = vmatprep.subr.bf16.mxu0 0
  %382 = vmatpush2.bf16.xpose.msra.mxu0 0
  %383 = vmatprep.subr.bf16.mxu0 0
  %384 = vmatpush2.bf16.xpose.msra.mxu0 0
  %385 = vmatprep.subr.bf16.mxu0 0
  %386 = vmatpush2.bf16.xpose.msra.mxu0 0
  %387 = vmatprep.subr.bf16.mxu0 0
  %388 = vmatpush2.bf16.xpose.msra.mxu0 0
  %389 = vmatprep.mubr.bf16.mxu0 0
  %390 = vmatmul.mubr.bf16.gmra.mxu0 %v352
  %v391 = vpop.f32.mrf.mxu0
  %v392 = vadd.f32 0.0, %v391
  %v393 = vpop.f32.mrf.mxu0
  %v394 = vpop.f32.mrf.mxu0
  %v395 = vadd.f32 0.0, %v394
  %v396 = vpop.f32.mrf.mxu0
  %397 = vdwg.mxu0
  %v398 = vpack.i.b16 %v232, %v232
  %v399 = vlaneseq
  %v400 = vshrl.u32 %v399, 7
  %v401 = vsub.s32 0, %v400
  %v402 = vrot.slane %v398, %v401
  %v404 = vsel %vm246, %v171, 0
  %v407 = vsel %vm246, %v402, 0
  %409 = vmatprep.subr.bf16.mxu0 0
  %410 = vmatpush1.bf16.xpose.msra.mxu0 0
  %411 = vmatprep.subr.bf16.mxu0 0
  %412 = vmatpush1.bf16.xpose.msra.mxu0 0
  %413 = vmatprep.subr.bf16.mxu0 0
  %414 = vmatpush1.bf16.xpose.msra.mxu0 0
  %415 = vmatprep.subr.bf16.mxu0 0
  %416 = vmatpush1.bf16.xpose.msra.mxu0 0
  %417 = vmatprep.subr.bf16.mxu0 0
  %418 = vmatpush1.bf16.xpose.msra.mxu0 0
  %419 = vmatprep.subr.bf16.mxu0 0
  %420 = vmatpush1.bf16.xpose.msra.mxu0 0
  %421 = vmatprep.subr.bf16.mxu0 0
  %422 = vmatpush1.bf16.xpose.msra.mxu0 0
  %423 = vmatprep.subr.bf16.mxu0 0
  %424 = vmatpush1.bf16.xpose.msra.mxu0 %v407
  %425 = vmatprep.subr.bf16.mxu0 0
  %426 = vmatpush2.bf16.xpose.msra.mxu0 0
  %427 = vmatprep.subr.bf16.mxu0 0
  %428 = vmatpush2.bf16.xpose.msra.mxu0 0
  %429 = vmatprep.subr.bf16.mxu0 0
  %430 = vmatpush2.bf16.xpose.msra.mxu0 0
  %431 = vmatprep.subr.bf16.mxu0 0
  %432 = vmatpush2.bf16.xpose.msra.mxu0 0
  %433 = vmatprep.subr.bf16.mxu0 0
  %434 = vmatpush2.bf16.xpose.msra.mxu0 0
  %435 = vmatprep.subr.bf16.mxu0 0
  %436 = vmatpush2.bf16.xpose.msra.mxu0 0
  %437 = vmatprep.subr.bf16.mxu0 0
  %438 = vmatpush2.bf16.xpose.msra.mxu0 0
  %439 = vmatprep.subr.bf16.mxu0 0
  %440 = vmatpush2.bf16.xpose.msra.mxu0 0
  %441 = vmatprep.mubr.bf16.mxu0 0
  %442 = vmatmul.mubr.bf16.gmra.mxu0 %v404
  %v443 = vpop.f32.mrf.mxu0
  %v444 = vadd.f32 0.0, %v443
  %v445 = vpop.f32.mrf.mxu0
  %v446 = vpop.f32.mrf.mxu0
  %v447 = vadd.f32 0.0, %v446
  %v448 = vpop.f32.mrf.mxu0
  %449 = vdwg.mxu0
  %v450 = vpack.i.b16 %v233, %v233
  %v451 = vlaneseq
  %v452 = vshrl.u32 %v451, 7
  %v453 = vsub.s32 0, %v452
  %v454 = vrot.slane %v450, %v453
  %v456 = vsel %vm246, %v172, 0
  %v459 = vsel %vm246, %v454, 0
  %461 = vmatprep.subr.bf16.mxu0 0
  %462 = vmatpush1.bf16.xpose.msra.mxu0 0
  %463 = vmatprep.subr.bf16.mxu0 0
  %464 = vmatpush1.bf16.xpose.msra.mxu0 0
  %465 = vmatprep.subr.bf16.mxu0 0
  %466 = vmatpush1.bf16.xpose.msra.mxu0 0
  %467 = vmatprep.subr.bf16.mxu0 0
  %468 = vmatpush1.bf16.xpose.msra.mxu0 0
  %469 = vmatprep.subr.bf16.mxu0 0
  %470 = vmatpush1.bf16.xpose.msra.mxu0 0
  %471 = vmatprep.subr.bf16.mxu0 0
  %472 = vmatpush1.bf16.xpose.msra.mxu0 0
  %473 = vmatprep.subr.bf16.mxu0 0
  %474 = vmatpush1.bf16.xpose.msra.mxu0 0
  %475 = vmatprep.subr.bf16.mxu0 0
  %476 = vmatpush1.bf16.xpose.msra.mxu0 %v459
  %477 = vmatprep.subr.bf16.mxu0 0
  %478 = vmatpush2.bf16.xpose.msra.mxu0 0
  %479 = vmatprep.subr.bf16.mxu0 0
  %480 = vmatpush2.bf16.xpose.msra.mxu0 0
  %481 = vmatprep.subr.bf16.mxu0 0
  %482 = vmatpush2.bf16.xpose.msra.mxu0 0
  %483 = vmatprep.subr.bf16.mxu0 0
  %484 = vmatpush2.bf16.xpose.msra.mxu0 0
  %485 = vmatprep.subr.bf16.mxu0 0
  %486 = vmatpush2.bf16.xpose.msra.mxu0 0
  %487 = vmatprep.subr.bf16.mxu0 0
  %488 = vmatpush2.bf16.xpose.msra.mxu0 0
  %489 = vmatprep.subr.bf16.mxu0 0
  %490 = vmatpush2.bf16.xpose.msra.mxu0 0
  %491 = vmatprep.subr.bf16.mxu0 0
  %492 = vmatpush2.bf16.xpose.msra.mxu0 0
  %493 = vmatprep.mubr.bf16.mxu0 0
  %494 = vmatmul.mubr.bf16.gmra.mxu0 %v456
  %v495 = vpop.f32.mrf.mxu0
  %v496 = vadd.f32 0.0, %v495
  %v497 = vpop.f32.mrf.mxu0
  %v498 = vpop.f32.mrf.mxu0
  %v499 = vadd.f32 0.0, %v498
  %v500 = vpop.f32.mrf.mxu0
  %501 = vdwg.mxu0
  %v502 = vpack.i.b16 %v234, %v234
  %v503 = vlaneseq
  %v504 = vshrl.u32 %v503, 7
  %v505 = vsub.s32 0, %v504
  %v506 = vrot.slane %v502, %v505
  %v508 = vsel %vm246, %v173, 0
  %v511 = vsel %vm246, %v506, 0
  %513 = vmatprep.subr.bf16.mxu0 0
  %514 = vmatpush1.bf16.xpose.msra.mxu0 0
  %515 = vmatprep.subr.bf16.mxu0 0
  %516 = vmatpush1.bf16.xpose.msra.mxu0 0
  %517 = vmatprep.subr.bf16.mxu0 0
  %518 = vmatpush1.bf16.xpose.msra.mxu0 0
  %519 = vmatprep.subr.bf16.mxu0 0
  %520 = vmatpush1.bf16.xpose.msra.mxu0 0
  %521 = vmatprep.subr.bf16.mxu0 0
  %522 = vmatpush1.bf16.xpose.msra.mxu0 0
  %523 = vmatprep.subr.bf16.mxu0 0
  %524 = vmatpush1.bf16.xpose.msra.mxu0 0
  %525 = vmatprep.subr.bf16.mxu0 0
  %526 = vmatpush1.bf16.xpose.msra.mxu0 0
  %527 = vmatprep.subr.bf16.mxu0 0
  %528 = vmatpush1.bf16.xpose.msra.mxu0 %v511
  %529 = vmatprep.subr.bf16.mxu0 0
  %530 = vmatpush2.bf16.xpose.msra.mxu0 0
  %531 = vmatprep.subr.bf16.mxu0 0
  %532 = vmatpush2.bf16.xpose.msra.mxu0 0
  %533 = vmatprep.subr.bf16.mxu0 0
  %534 = vmatpush2.bf16.xpose.msra.mxu0 0
  %535 = vmatprep.subr.bf16.mxu0 0
  %536 = vmatpush2.bf16.xpose.msra.mxu0 0
  %537 = vmatprep.subr.bf16.mxu0 0
  %538 = vmatpush2.bf16.xpose.msra.mxu0 0
  %539 = vmatprep.subr.bf16.mxu0 0
  %540 = vmatpush2.bf16.xpose.msra.mxu0 0
  %541 = vmatprep.subr.bf16.mxu0 0
  %542 = vmatpush2.bf16.xpose.msra.mxu0 0
  %543 = vmatprep.subr.bf16.mxu0 0
  %544 = vmatpush2.bf16.xpose.msra.mxu0 0
  %545 = vmatprep.mubr.bf16.mxu0 0
  %546 = vmatmul.mubr.bf16.gmra.mxu0 %v508
  %v547 = vpop.f32.mrf.mxu0
  %v548 = vadd.f32 0.0, %v547
  %v549 = vpop.f32.mrf.mxu0
  %v550 = vpop.f32.mrf.mxu0
  %v551 = vadd.f32 0.0, %v550
  %v552 = vpop.f32.mrf.mxu0
  %553 = vdwg.mxu0
  %v554 = vpack.i.b16 %v235, %v235
  %v555 = vlaneseq
  %v556 = vshrl.u32 %v555, 7
  %v557 = vsub.s32 0, %v556
  %v558 = vrot.slane %v554, %v557
  %v560 = vsel %vm246, %v174, 0
  %v563 = vsel %vm246, %v558, 0
  %565 = vmatprep.subr.bf16.mxu0 0
  %566 = vmatpush1.bf16.xpose.msra.mxu0 0
  %567 = vmatprep.subr.bf16.mxu0 0
  %568 = vmatpush1.bf16.xpose.msra.mxu0 0
  %569 = vmatprep.subr.bf16.mxu0 0
  %570 = vmatpush1.bf16.xpose.msra.mxu0 0
  %571 = vmatprep.subr.bf16.mxu0 0
  %572 = vmatpush1.bf16.xpose.msra.mxu0 0
  %573 = vmatprep.subr.bf16.mxu0 0
  %574 = vmatpush1.bf16.xpose.msra.mxu0 0
  %575 = vmatprep.subr.bf16.mxu0 0
  %576 = vmatpush1.bf16.xpose.msra.mxu0 0
  %577 = vmatprep.subr.bf16.mxu0 0
  %578 = vmatpush1.bf16.xpose.msra.mxu0 0
  %579 = vmatprep.subr.bf16.mxu0 0
  %580 = vmatpush1.bf16.xpose.msra.mxu0 %v563
  %581 = vmatprep.subr.bf16.mxu0 0
  %582 = vmatpush2.bf16.xpose.msra.mxu0 0
  %583 = vmatprep.subr.bf16.mxu0 0
  %584 = vmatpush2.bf16.xpose.msra.mxu0 0
  %585 = vmatprep.subr.bf16.mxu0 0
  %586 = vmatpush2.bf16.xpose.msra.mxu0 0
  %587 = vmatprep.subr.bf16.mxu0 0
  %588 = vmatpush2.bf16.xpose.msra.mxu0 0
  %589 = vmatprep.subr.bf16.mxu0 0
  %590 = vmatpush2.bf16.xpose.msra.mxu0 0
  %591 = vmatprep.subr.bf16.mxu0 0
  %592 = vmatpush2.bf16.xpose.msra.mxu0 0
  %593 = vmatprep.subr.bf16.mxu0 0
  %594 = vmatpush2.bf16.xpose.msra.mxu0 0
  %595 = vmatprep.subr.bf16.mxu0 0
  %596 = vmatpush2.bf16.xpose.msra.mxu0 0
  %597 = vmatprep.mubr.bf16.mxu0 0
  %598 = vmatmul.mubr.bf16.gmra.mxu0 %v560
  %v599 = vpop.f32.mrf.mxu0
  %v600 = vadd.f32 0.0, %v599
  %v601 = vpop.f32.mrf.mxu0
  %v602 = vpop.f32.mrf.mxu0
  %v603 = vadd.f32 0.0, %v602
  %v604 = vpop.f32.mrf.mxu0
  %605 = vdwg.mxu0
  %v606 = vpack.i.b16 %v236, %v236
  %v607 = vlaneseq
  %v608 = vshrl.u32 %v607, 7
  %v609 = vsub.s32 0, %v608
  %v610 = vrot.slane %v606, %v609
  %v612 = vsel %vm246, %v175, 0
  %v615 = vsel %vm246, %v610, 0
  %617 = vmatprep.subr.bf16.mxu0 0
  %618 = vmatpush1.bf16.xpose.msra.mxu0 0
  %619 = vmatprep.subr.bf16.mxu0 0
  %620 = vmatpush1.bf16.xpose.msra.mxu0 0
  %621 = vmatprep.subr.bf16.mxu0 0
  %622 = vmatpush1.bf16.xpose.msra.mxu0 0
  %623 = vmatprep.subr.bf16.mxu0 0
  %624 = vmatpush1.bf16.xpose.msra.mxu0 0
  %625 = vmatprep.subr.bf16.mxu0 0
  %626 = vmatpush1.bf16.xpose.msra.mxu0 0
  %627 = vmatprep.subr.bf16.mxu0 0
  %628 = vmatpush1.bf16.xpose.msra.mxu0 0
  %629 = vmatprep.subr.bf16.mxu0 0
  %630 = vmatpush1.bf16.xpose.msra.mxu0 0
  %631 = vmatprep.subr.bf16.mxu0 0
  %632 = vmatpush1.bf16.xpose.msra.mxu0 %v615
  %633 = vmatprep.subr.bf16.mxu0 0
  %634 = vmatpush2.bf16.xpose.msra.mxu0 0
  %635 = vmatprep.subr.bf16.mxu0 0
  %636 = vmatpush2.bf16.xpose.msra.mxu0 0
  %637 = vmatprep.subr.bf16.mxu0 0
  %638 = vmatpush2.bf16.xpose.msra.mxu0 0
  %639 = vmatprep.subr.bf16.mxu0 0
  %640 = vmatpush2.bf16.xpose.msra.mxu0 0
  %641 = vmatprep.subr.bf16.mxu0 0
  %642 = vmatpush2.bf16.xpose.msra.mxu0 0
  %643 = vmatprep.subr.bf16.mxu0 0
  %644 = vmatpush2.bf16.xpose.msra.mxu0 0
  %645 = vmatprep.subr.bf16.mxu0 0
  %646 = vmatpush2.bf16.xpose.msra.mxu0 0
  %647 = vmatprep.subr.bf16.mxu0 0
  %648 = vmatpush2.bf16.xpose.msra.mxu0 0
  %649 = vmatprep.mubr.bf16.mxu0 0
  %650 = vmatmul.mubr.bf16.gmra.mxu0 %v612
  %v651 = vpop.f32.mrf.mxu0
  %v652 = vadd.f32 0.0, %v651
  %v653 = vpop.f32.mrf.mxu0
  %v654 = vpop.f32.mrf.mxu0
  %v655 = vadd.f32 0.0, %v654
  %v656 = vpop.f32.mrf.mxu0
  %657 = vdwg.mxu0
  %v658 = vpack.i.b16 %v237, %v237
  %v659 = vlaneseq
  %v660 = vshrl.u32 %v659, 7
  %v661 = vsub.s32 0, %v660
  %v662 = vrot.slane %v658, %v661
  %v664 = vsel %vm246, %v176, 0
  %v667 = vsel %vm246, %v662, 0
  %669 = vmatprep.subr.bf16.mxu0 0
  %670 = vmatpush1.bf16.xpose.msra.mxu0 0
  %671 = vmatprep.subr.bf16.mxu0 0
  %672 = vmatpush1.bf16.xpose.msra.mxu0 0
  %673 = vmatprep.subr.bf16.mxu0 0
  %674 = vmatpush1.bf16.xpose.msra.mxu0 0
  %675 = vmatprep.subr.bf16.mxu0 0
  %676 = vmatpush1.bf16.xpose.msra.mxu0 0
  %677 = vmatprep.subr.bf16.mxu0 0
  %678 = vmatpush1.bf16.xpose.msra.mxu0 0
  %679 = vmatprep.subr.bf16.mxu0 0
  %680 = vmatpush1.bf16.xpose.msra.mxu0 0
  %681 = vmatprep.subr.bf16.mxu0 0
  %682 = vmatpush1.bf16.xpose.msra.mxu0 0
  %683 = vmatprep.subr.bf16.mxu0 0
  %684 = vmatpush1.bf16.xpose.msra.mxu0 %v667
  %685 = vmatprep.subr.bf16.mxu0 0
  %686 = vmatpush2.bf16.xpose.msra.mxu0 0
  %687 = vmatprep.subr.bf16.mxu0 0
  %688 = vmatpush2.bf16.xpose.msra.mxu0 0
  %689 = vmatprep.subr.bf16.mxu0 0
  %690 = vmatpush2.bf16.xpose.msra.mxu0 0
  %691 = vmatprep.subr.bf16.mxu0 0
  %692 = vmatpush2.bf16.xpose.msra.mxu0 0
  %693 = vmatprep.subr.bf16.mxu0 0
  %694 = vmatpush2.bf16.xpose.msra.mxu0 0
  %695 = vmatprep.subr.bf16.mxu0 0
  %696 = vmatpush2.bf16.xpose.msra.mxu0 0
  %697 = vmatprep.subr.bf16.mxu0 0
  %698 = vmatpush2.bf16.xpose.msra.mxu0 0
  %699 = vmatprep.subr.bf16.mxu0 0
  %700 = vmatpush2.bf16.xpose.msra.mxu0 0
  %701 = vmatprep.mubr.bf16.mxu0 0
  %702 = vmatmul.mubr.bf16.gmra.mxu0 %v664
  %v703 = vpop.f32.mrf.mxu0
  %v704 = vadd.f32 0.0, %v703
  %v705 = vpop.f32.mrf.mxu0
  %v706 = vpop.f32.mrf.mxu0
  %v707 = vadd.f32 0.0, %v706
  %v708 = vpop.f32.mrf.mxu0
  %709 = vdwg.mxu0
  %v710 = vpack.i.b16 %v238, %v238
  %v711 = vlaneseq
  %v712 = vshrl.u32 %v711, 7
  %v713 = vsub.s32 0, %v712
  %v714 = vrot.slane %v710, %v713
  %v716 = vsel %vm246, %v177, 0
  %v719 = vsel %vm246, %v714, 0
  %721 = vmatprep.subr.bf16.mxu0 0
  %722 = vmatpush1.bf16.xpose.msra.mxu0 0
  %723 = vmatprep.subr.bf16.mxu0 0
  %724 = vmatpush1.bf16.xpose.msra.mxu0 0
  %725 = vmatprep.subr.bf16.mxu0 0
  %726 = vmatpush1.bf16.xpose.msra.mxu0 0
  %727 = vmatprep.subr.bf16.mxu0 0
  %728 = vmatpush1.bf16.xpose.msra.mxu0 0
  %729 = vmatprep.subr.bf16.mxu0 0
  %730 = vmatpush1.bf16.xpose.msra.mxu0 0
  %731 = vmatprep.subr.bf16.mxu0 0
  %732 = vmatpush1.bf16.xpose.msra.mxu0 0
  %733 = vmatprep.subr.bf16.mxu0 0
  %734 = vmatpush1.bf16.xpose.msra.mxu0 0
  %735 = vmatprep.subr.bf16.mxu0 0
  %736 = vmatpush1.bf16.xpose.msra.mxu0 %v719
  %737 = vmatprep.subr.bf16.mxu0 0
  %738 = vmatpush2.bf16.xpose.msra.mxu0 0
  %739 = vmatprep.subr.bf16.mxu0 0
  %740 = vmatpush2.bf16.xpose.msra.mxu0 0
  %741 = vmatprep.subr.bf16.mxu0 0
  %742 = vmatpush2.bf16.xpose.msra.mxu0 0
  %743 = vmatprep.subr.bf16.mxu0 0
  %744 = vmatpush2.bf16.xpose.msra.mxu0 0
  %745 = vmatprep.subr.bf16.mxu0 0
  %746 = vmatpush2.bf16.xpose.msra.mxu0 0
  %747 = vmatprep.subr.bf16.mxu0 0
  %748 = vmatpush2.bf16.xpose.msra.mxu0 0
  %749 = vmatprep.subr.bf16.mxu0 0
  %750 = vmatpush2.bf16.xpose.msra.mxu0 0
  %751 = vmatprep.subr.bf16.mxu0 0
  %752 = vmatpush2.bf16.xpose.msra.mxu0 0
  %753 = vmatprep.mubr.bf16.mxu0 0
  %754 = vmatmul.mubr.bf16.gmra.mxu0 %v716
  %v755 = vpop.f32.mrf.mxu0
  %v756 = vadd.f32 0.0, %v755
  %v757 = vpop.f32.mrf.mxu0
  %v758 = vpop.f32.mrf.mxu0
  %v759 = vadd.f32 0.0, %v758
  %v760 = vpop.f32.mrf.mxu0
  %761 = vdwg.mxu0
  %v762 = vpack.i.b16 %v239, %v239
  %v763 = vlaneseq
  %v764 = vshrl.u32 %v763, 7
  %v765 = vsub.s32 0, %v764
  %v766 = vrot.slane %v762, %v765
  %v768 = vsel %vm246, %v178, 0
  %v771 = vsel %vm246, %v766, 0
  %773 = vmatprep.subr.bf16.mxu0 0
  %774 = vmatpush1.bf16.xpose.msra.mxu0 0
  %775 = vmatprep.subr.bf16.mxu0 0
  %776 = vmatpush1.bf16.xpose.msra.mxu0 0
  %777 = vmatprep.subr.bf16.mxu0 0
  %778 = vmatpush1.bf16.xpose.msra.mxu0 0
  %779 = vmatprep.subr.bf16.mxu0 0
  %780 = vmatpush1.bf16.xpose.msra.mxu0 0
  %781 = vmatprep.subr.bf16.mxu0 0
  %782 = vmatpush1.bf16.xpose.msra.mxu0 0
  %783 = vmatprep.subr.bf16.mxu0 0
  %784 = vmatpush1.bf16.xpose.msra.mxu0 0
  %785 = vmatprep.subr.bf16.mxu0 0
  %786 = vmatpush1.bf16.xpose.msra.mxu0 0
  %787 = vmatprep.subr.bf16.mxu0 0
  %788 = vmatpush1.bf16.xpose.msra.mxu0 %v771
  %789 = vmatprep.subr.bf16.mxu0 0
  %790 = vmatpush2.bf16.xpose.msra.mxu0 0
  %791 = vmatprep.subr.bf16.mxu0 0
  %792 = vmatpush2.bf16.xpose.msra.mxu0 0
  %793 = vmatprep.subr.bf16.mxu0 0
  %794 = vmatpush2.bf16.xpose.msra.mxu0 0
  %795 = vmatprep.subr.bf16.mxu0 0
  %796 = vmatpush2.bf16.xpose.msra.mxu0 0
  %797 = vmatprep.subr.bf16.mxu0 0
  %798 = vmatpush2.bf16.xpose.msra.mxu0 0
  %799 = vmatprep.subr.bf16.mxu0 0
  %800 = vmatpush2.bf16.xpose.msra.mxu0 0
  %801 = vmatprep.subr.bf16.mxu0 0
  %802 = vmatpush2.bf16.xpose.msra.mxu0 0
  %803 = vmatprep.subr.bf16.mxu0 0
  %804 = vmatpush2.bf16.xpose.msra.mxu0 0
  %805 = vmatprep.mubr.bf16.mxu0 0
  %806 = vmatmul.mubr.bf16.gmra.mxu0 %v768
  %v807 = vpop.f32.mrf.mxu0
  %v808 = vadd.f32 0.0, %v807
  %v809 = vpop.f32.mrf.mxu0
  %v810 = vpop.f32.mrf.mxu0
  %v811 = vadd.f32 0.0, %v810
  %v812 = vpop.f32.mrf.mxu0
  %813 = vdwg.mxu0
  %v814 = vpack.i.b16 %v240, %v240
  %v815 = vlaneseq
  %v816 = vshrl.u32 %v815, 7
  %v817 = vsub.s32 0, %v816
  %v818 = vrot.slane %v814, %v817
  %v820 = vsel %vm246, %v179, 0
  %v823 = vsel %vm246, %v818, 0
  %825 = vmatprep.subr.bf16.mxu0 0
  %826 = vmatpush1.bf16.xpose.msra.mxu0 0
  %827 = vmatprep.subr.bf16.mxu0 0
  %828 = vmatpush1.bf16.xpose.msra.mxu0 0
  %829 = vmatprep.subr.bf16.mxu0 0
  %830 = vmatpush1.bf16.xpose.msra.mxu0 0
  %831 = vmatprep.subr.bf16.mxu0 0
  %832 = vmatpush1.bf16.xpose.msra.mxu0 0
  %833 = vmatprep.subr.bf16.mxu0 0
  %834 = vmatpush1.bf16.xpose.msra.mxu0 0
  %835 = vmatprep.subr.bf16.mxu0 0
  %836 = vmatpush1.bf16.xpose.msra.mxu0 0
  %837 = vmatprep.subr.bf16.mxu0 0
  %838 = vmatpush1.bf16.xpose.msra.mxu0 0
  %839 = vmatprep.subr.bf16.mxu0 0
  %840 = vmatpush1.bf16.xpose.msra.mxu0 %v823
  %841 = vmatprep.subr.bf16.mxu0 0
  %842 = vmatpush2.bf16.xpose.msra.mxu0 0
  %843 = vmatprep.subr.bf16.mxu0 0
  %844 = vmatpush2.bf16.xpose.msra.mxu0 0
  %845 = vmatprep.subr.bf16.mxu0 0
  %846 = vmatpush2.bf16.xpose.msra.mxu0 0
  %847 = vmatprep.subr.bf16.mxu0 0
  %848 = vmatpush2.bf16.xpose.msra.mxu0 0
  %849 = vmatprep.subr.bf16.mxu0 0
  %850 = vmatpush2.bf16.xpose.msra.mxu0 0
  %851 = vmatprep.subr.bf16.mxu0 0
  %852 = vmatpush2.bf16.xpose.msra.mxu0 0
  %853 = vmatprep.subr.bf16.mxu0 0
  %854 = vmatpush2.bf16.xpose.msra.mxu0 0
  %855 = vmatprep.subr.bf16.mxu0 0
  %856 = vmatpush2.bf16.xpose.msra.mxu0 0
  %857 = vmatprep.mubr.bf16.mxu0 0
  %858 = vmatmul.mubr.bf16.gmra.mxu0 %v820
  %v859 = vpop.f32.mrf.mxu0
  %v860 = vadd.f32 0.0, %v859
  %v861 = vpop.f32.mrf.mxu0
  %v862 = vpop.f32.mrf.mxu0
  %v863 = vadd.f32 0.0, %v862
  %v864 = vpop.f32.mrf.mxu0
  %865 = vdwg.mxu0
  %v866 = vadd.f32 %v288, 0.0
  %v867 = vadd.f32 %v291, 0.0
  %v868 = vadd.f32 %v340, 0.0
  %v869 = vadd.f32 %v343, 0.0
  %v870 = vadd.f32 %v392, 0.0
  %v871 = vadd.f32 %v395, 0.0
  %v872 = vadd.f32 %v444, 0.0
  %v873 = vadd.f32 %v447, 0.0
  %v874 = vadd.f32 %v496, 0.0
  %v875 = vadd.f32 %v499, 0.0
  %v876 = vadd.f32 %v548, 0.0
  %v877 = vadd.f32 %v551, 0.0
  %v878 = vadd.f32 %v600, 0.0
  %v879 = vadd.f32 %v603, 0.0
  %v880 = vadd.f32 %v652, 0.0
  %v881 = vadd.f32 %v655, 0.0
  %v882 = vadd.f32 %v704, 0.0
  %v883 = vadd.f32 %v707, 0.0
  %v884 = vadd.f32 %v756, 0.0
  %v885 = vadd.f32 %v759, 0.0
  %v886 = vadd.f32 %v808, 0.0
  %v887 = vadd.f32 %v811, 0.0
  %v888 = vadd.f32 %v860, 0.0
  %v889 = vadd.f32 %v863, 0.0
  %v890 = vmax.f32 %v866, -5.0
  %v891 = vmax.f32 %v867, -5.0
  %v892 = vmax.f32 %v868, -5.0
  %v893 = vmax.f32 %v869, -5.0
  %v894 = vmax.f32 %v870, -5.0
  %v895 = vmax.f32 %v871, -5.0
  %v896 = vmax.f32 %v872, -5.0
  %v897 = vmax.f32 %v873, -5.0
  %v898 = vmax.f32 %v874, -5.0
  %v899 = vmax.f32 %v875, -5.0
  %v900 = vmax.f32 %v876, -5.0
  %v901 = vmax.f32 %v877, -5.0
  %v902 = vmax.f32 %v878, -5.0
  %v903 = vmax.f32 %v879, -5.0
  %v904 = vmax.f32 %v880, -5.0
  %v905 = vmax.f32 %v881, -5.0
  %v906 = vmax.f32 %v882, -5.0
  %v907 = vmax.f32 %v883, -5.0
  %v908 = vmax.f32 %v884, -5.0
  %v909 = vmax.f32 %v885, -5.0
  %v910 = vmax.f32 %v886, -5.0
  %v911 = vmax.f32 %v887, -5.0
  %v912 = vmax.f32 %v888, -5.0
  %v913 = vmax.f32 %v889, -5.0
  %v914 = vmin.f32 %v890, 5.0
  %v915 = vmin.f32 %v891, 5.0
  %v916 = vmin.f32 %v892, 5.0
  %v917 = vmin.f32 %v893, 5.0
  %v918 = vmin.f32 %v894, 5.0
  %v919 = vmin.f32 %v895, 5.0
  %v920 = vmin.f32 %v896, 5.0
  %v921 = vmin.f32 %v897, 5.0
  %v922 = vmin.f32 %v898, 5.0
  %v923 = vmin.f32 %v899, 5.0
  %v924 = vmin.f32 %v900, 5.0
  %v925 = vmin.f32 %v901, 5.0
  %v926 = vmin.f32 %v902, 5.0
  %v927 = vmin.f32 %v903, 5.0
  %v928 = vmin.f32 %v904, 5.0
  %v929 = vmin.f32 %v905, 5.0
  %v930 = vmin.f32 %v906, 5.0
  %v931 = vmin.f32 %v907, 5.0
  %v932 = vmin.f32 %v908, 5.0
  %v933 = vmin.f32 %v909, 5.0
  %v934 = vmin.f32 %v910, 5.0
  %v935 = vmin.f32 %v911, 5.0
  %v936 = vmin.f32 %v912, 5.0
  %v937 = vmin.f32 %v913, 5.0
  %v938 = vmul.f32 %v914, 1.442695
  %v939 = vpow.pop %v938
  %v940 = vmul.f32 %v915, 1.442695
  %v941 = vpow.pop %v940
  %v942 = vmul.f32 %v916, 1.442695
  %v943 = vpow.pop %v942
  %v944 = vmul.f32 %v917, 1.442695
  %v945 = vpow.pop %v944
  %v946 = vmul.f32 %v918, 1.442695
  %v947 = vpow.pop %v946
  %v948 = vmul.f32 %v919, 1.442695
  %v949 = vpow.pop %v948
  %v950 = vmul.f32 %v920, 1.442695
  %v951 = vpow.pop %v950
  %v952 = vmul.f32 %v921, 1.442695
  %v953 = vpow.pop %v952
  %v954 = vmul.f32 %v922, 1.442695
  %v955 = vpow.pop %v954
  %v956 = vmul.f32 %v923, 1.442695
  %v957 = vpow.pop %v956
  %v958 = vmul.f32 %v924, 1.442695
  %v959 = vpow.pop %v958
  %v960 = vmul.f32 %v925, 1.442695
  %v961 = vpow.pop %v960
  %v962 = vmul.f32 %v926, 1.442695
  %v963 = vpow.pop %v962
  %v964 = vmul.f32 %v927, 1.442695
  %v965 = vpow.pop %v964
  %v966 = vmul.f32 %v928, 1.442695
  %v967 = vpow.pop %v966
  %v968 = vmul.f32 %v929, 1.442695
  %v969 = vpow.pop %v968
  %v970 = vmul.f32 %v930, 1.442695
  %v971 = vpow.pop %v970
  %v972 = vmul.f32 %v931, 1.442695
  %v973 = vpow.pop %v972
  %v974 = vmul.f32 %v932, 1.442695
  %v975 = vpow.pop %v974
  %v976 = vmul.f32 %v933, 1.442695
  %v977 = vpow.pop %v976
  %v978 = vmul.f32 %v934, 1.442695
  %v979 = vpow.pop %v978
  %v980 = vmul.f32 %v935, 1.442695
  %v981 = vpow.pop %v980
  %v982 = vmul.f32 %v936, 1.442695
  %v983 = vpow.pop %v982
  %v984 = vmul.f32 %v937, 1.442695
  %v985 = vpow.pop %v984
  %v988 = vlaneseq
  %v989 = vshrl.u32 %v988, 7
  %v990 = vsub.s32 0, %v989
  %v991 = vrot.slane %v129, %v990
  %993 = vbcast.lane.b32.xlu0 %v991, 256
  %v994 = vpop.permute.xlu0 %993
  %s996 = sor.u32 256, 8
  %997 = vbcast.lane.b32.xlu0 %v991, %s996
  %v998 = vpop.permute.xlu0 %997
  %v999 = vlaneseq
  %v1000 = vshrl.u32 %v999, 7
  %v1001 = vsub.s32 1, %v1000
  %v1002 = vrot.slane %v129, %v1001
  %1004 = vbcast.lane.b32.xlu0 %v1002, 256
  %v1005 = vpop.permute.xlu0 %1004
  %s1007 = sor.u32 256, 8
  %1008 = vbcast.lane.b32.xlu0 %v1002, %s1007
  %v1009 = vpop.permute.xlu0 %1008
  %v1010 = vlaneseq
  %v1011 = vshrl.u32 %v1010, 7
  %v1012 = vsub.s32 2, %v1011
  %v1013 = vrot.slane %v129, %v1012
  %1015 = vbcast.lane.b32.xlu0 %v1013, 256
  %v1016 = vpop.permute.xlu0 %1015
  %s1018 = sor.u32 256, 8
  %1019 = vbcast.lane.b32.xlu0 %v1013, %s1018
  %v1020 = vpop.permute.xlu0 %1019
  %v1021 = vlaneseq
  %v1022 = vshrl.u32 %v1021, 7
  %v1023 = vsub.s32 3, %v1022
  %v1024 = vrot.slane %v129, %v1023
  %1026 = vbcast.lane.b32.xlu0 %v1024, 256
  %v1027 = vpop.permute.xlu0 %1026
  %s1029 = sor.u32 256, 8
  %1030 = vbcast.lane.b32.xlu0 %v1024, %s1029
  %v1031 = vpop.permute.xlu0 %1030
  %v1032 = vlaneseq
  %v1033 = vshrl.u32 %v1032, 7
  %v1034 = vsub.s32 4, %v1033
  %v1035 = vrot.slane %v129, %v1034
  %1037 = vbcast.lane.b32.xlu0 %v1035, 256
  %v1038 = vpop.permute.xlu0 %1037
  %s1040 = sor.u32 256, 8
  %1041 = vbcast.lane.b32.xlu0 %v1035, %s1040
  %v1042 = vpop.permute.xlu0 %1041
  %v1043 = vlaneseq
  %v1044 = vshrl.u32 %v1043, 7
  %v1045 = vsub.s32 5, %v1044
  %v1046 = vrot.slane %v129, %v1045
  %1048 = vbcast.lane.b32.xlu0 %v1046, 256
  %v1049 = vpop.permute.xlu0 %1048
  %s1051 = sor.u32 256, 8
  %1052 = vbcast.lane.b32.xlu0 %v1046, %s1051
  %v1053 = vpop.permute.xlu0 %1052
  %v1054 = vlaneseq
  %v1055 = vshrl.u32 %v1054, 7
  %v1056 = vsub.s32 6, %v1055
  %v1057 = vrot.slane %v129, %v1056
  %1059 = vbcast.lane.b32.xlu0 %v1057, 256
  %v1060 = vpop.permute.xlu0 %1059
  %s1062 = sor.u32 256, 8
  %1063 = vbcast.lane.b32.xlu0 %v1057, %s1062
  %v1064 = vpop.permute.xlu0 %1063
  %v1065 = vlaneseq
  %v1066 = vshrl.u32 %v1065, 7
  %v1067 = vsub.s32 7, %v1066
  %v1068 = vrot.slane %v129, %v1067
  %1070 = vbcast.lane.b32.xlu0 %v1068, 256
  %v1071 = vpop.permute.xlu0 %1070
  %s1073 = sor.u32 256, 8
  %1074 = vbcast.lane.b32.xlu0 %v1068, %s1073
  %v1075 = vpop.permute.xlu0 %1074
  %v1076 = vlaneseq
  %v1077 = vshrl.u32 %v1076, 7
  %v1078 = vsub.s32 0, %v1077
  %v1079 = vrot.slane %v130, %v1078
  %1081 = vbcast.lane.b32.xlu0 %v1079, 256
  %v1082 = vpop.permute.xlu0 %1081
  %s1084 = sor.u32 256, 8
  %1085 = vbcast.lane.b32.xlu0 %v1079, %s1084
  %v1086 = vpop.permute.xlu0 %1085
  %v1087 = vlaneseq
  %v1088 = vshrl.u32 %v1087, 7
  %v1089 = vsub.s32 1, %v1088
  %v1090 = vrot.slane %v130, %v1089
  %1092 = vbcast.lane.b32.xlu0 %v1090, 256
  %v1093 = vpop.permute.xlu0 %1092
  %s1095 = sor.u32 256, 8
  %1096 = vbcast.lane.b32.xlu0 %v1090, %s1095
  %v1097 = vpop.permute.xlu0 %1096
  %v1098 = vlaneseq
  %v1099 = vshrl.u32 %v1098, 7
  %v1100 = vsub.s32 2, %v1099
  %v1101 = vrot.slane %v130, %v1100
  %1103 = vbcast.lane.b32.xlu0 %v1101, 256
  %v1104 = vpop.permute.xlu0 %1103
  %s1106 = sor.u32 256, 8
  %1107 = vbcast.lane.b32.xlu0 %v1101, %s1106
  %v1108 = vpop.permute.xlu0 %1107
  %v1109 = vlaneseq
  %v1110 = vshrl.u32 %v1109, 7
  %v1111 = vsub.s32 3, %v1110
  %v1112 = vrot.slane %v130, %v1111
  %1114 = vbcast.lane.b32.xlu0 %v1112, 256
  %v1115 = vpop.permute.xlu0 %1114
  %s1117 = sor.u32 256, 8
  %1118 = vbcast.lane.b32.xlu0 %v1112, %s1117
  %v1119 = vpop.permute.xlu0 %1118
  %v1144 = vmul.f32 %v939, %v994
  %v1145 = vmul.f32 %v941, %v998
  %v1146 = vmul.f32 %v943, %v1005
  %v1147 = vmul.f32 %v945, %v1009
  %v1148 = vmul.f32 %v947, %v1016
  %v1149 = vmul.f32 %v949, %v1020
  %v1150 = vmul.f32 %v951, %v1027
  %v1151 = vmul.f32 %v953, %v1031
  %v1152 = vmul.f32 %v955, %v1038
  %v1153 = vmul.f32 %v957, %v1042
  %v1154 = vmul.f32 %v959, %v1049
  %v1155 = vmul.f32 %v961, %v1053
  %v1156 = vmul.f32 %v963, %v1060
  %v1157 = vmul.f32 %v965, %v1064
  %v1158 = vmul.f32 %v967, %v1071
  %v1159 = vmul.f32 %v969, %v1075
  %v1160 = vmul.f32 %v971, %v1082
  %v1161 = vmul.f32 %v973, %v1086
  %v1162 = vmul.f32 %v975, %v1093
  %v1163 = vmul.f32 %v977, %v1097
  %v1164 = vmul.f32 %v979, %v1104
  %v1165 = vmul.f32 %v981, %v1108
  %v1166 = vmul.f32 %v983, %v1115
  %v1167 = vmul.f32 %v985, %v1119
  %v1168 = vmul.f32 %v1144, 0.90909094
  %v1169 = vmul.f32 %v1145, 0.90909094
  %v1170 = vmul.f32 %v1146, 0.90909094
  %v1171 = vmul.f32 %v1147, 0.90909094
  %v1172 = vmul.f32 %v1148, 0.90909094
  %v1173 = vmul.f32 %v1149, 0.90909094
  %v1174 = vmul.f32 %v1150, 0.90909094
  %v1175 = vmul.f32 %v1151, 0.90909094
  %v1176 = vmul.f32 %v1152, 0.90909094
  %v1177 = vmul.f32 %v1153, 0.90909094
  %v1178 = vmul.f32 %v1154, 0.90909094
  %v1179 = vmul.f32 %v1155, 0.90909094
  %v1180 = vmul.f32 %v1156, 0.90909094
  %v1181 = vmul.f32 %v1157, 0.90909094
  %v1182 = vmul.f32 %v1158, 0.90909094
  %v1183 = vmul.f32 %v1159, 0.90909094
  %v1184 = vmul.f32 %v1160, 0.90909094
  %v1185 = vmul.f32 %v1161, 0.90909094
  %v1186 = vmul.f32 %v1162, 0.90909094
  %v1187 = vmul.f32 %v1163, 0.90909094
  %v1188 = vmul.f32 %v1164, 0.90909094
  %v1189 = vmul.f32 %v1165, 0.90909094
  %v1190 = vmul.f32 %v1166, 0.90909094
  %v1191 = vmul.f32 %v1167, 0.90909094
  %v1193 = vlaneseq
  %v1194 = vshrl.u32 %v1193, 7
  %v1195 = vsub.s32 0, %v1194
  %v1196 = vrot.slane %v133, %v1195
  %1197 = vrot.lane.b32.xlu0 %v1196, 48
  %v1198 = vpop.permute.xlu0 %1197
  %v1200 = vmul.f32 %v134, %v1198
  %v1201 = vmul.f32 %v135, %v1198
  %v1202 = vpack.c.bf16 %v1201, %v1200
  %v1203 = vpack.c.bf16 %v102, %v99
  %1205 = vrot.lane.b32.xlu0 %v1202, 80
  %v1206 = vpop.permute.xlu0 %1205
  %1208 = vrot.lane.b32.xlu0 %v1203, 64
  %v1209 = vpop.permute.xlu0 %1208
  %v1211 = vsel %vm246, %v1206, 0
  %v1214 = vsel %vm246, %v1209, 0
  %1216 = vmatprep.subr.bf16.mxu0 0
  %1217 = vmatpush1.bf16.xpose.msra.mxu0 0
  %1218 = vmatprep.subr.bf16.mxu0 0
  %1219 = vmatpush1.bf16.xpose.msra.mxu0 0
  %1220 = vmatprep.subr.bf16.mxu0 0
  %1221 = vmatpush1.bf16.xpose.msra.mxu0 0
  %1222 = vmatprep.subr.bf16.mxu0 0
  %1223 = vmatpush1.bf16.xpose.msra.mxu0 0
  %1224 = vmatprep.subr.bf16.mxu0 0
  %1225 = vmatpush1.bf16.xpose.msra.mxu0 0
  %1226 = vmatprep.subr.bf16.mxu0 0
  %1227 = vmatpush1.bf16.xpose.msra.mxu0 0
  %1228 = vmatprep.subr.bf16.mxu0 0
  %1229 = vmatpush1.bf16.xpose.msra.mxu0 0
  %1230 = vmatprep.subr.bf16.mxu0 0
  %1231 = vmatpush1.bf16.xpose.msra.mxu0 %v1214
  %1232 = vmatprep.subr.bf16.mxu0 0
  %1233 = vmatpush2.bf16.xpose.msra.mxu0 0
  %1234 = vmatprep.subr.bf16.mxu0 0
  %1235 = vmatpush2.bf16.xpose.msra.mxu0 0
  %1236 = vmatprep.subr.bf16.mxu0 0
  %1237 = vmatpush2.bf16.xpose.msra.mxu0 0
  %1238 = vmatprep.subr.bf16.mxu0 0
  %1239 = vmatpush2.bf16.xpose.msra.mxu0 0
  %1240 = vmatprep.subr.bf16.mxu0 0
  %1241 = vmatpush2.bf16.xpose.msra.mxu0 0
  %1242 = vmatprep.subr.bf16.mxu0 0
  %1243 = vmatpush2.bf16.xpose.msra.mxu0 0
  %1244 = vmatprep.subr.bf16.mxu0 0
  %1245 = vmatpush2.bf16.xpose.msra.mxu0 0
  %1246 = vmatprep.subr.bf16.mxu0 0
  %1247 = vmatpush2.bf16.xpose.msra.mxu0 0
  %1248 = vmatprep.mubr.bf16.mxu0 0
  %1249 = vmatmul.mubr.bf16.gmra.mxu0 %v1211
  %v1250 = vpop.f32.mrf.mxu0
  %v1251 = vadd.f32 0.0, %v1250
  %v1252 = vpop.f32.mrf.mxu0
  %v1253 = vpop.f32.mrf.mxu0
  %v1254 = vadd.f32 0.0, %v1253
  %v1255 = vpop.f32.mrf.mxu0
  %1256 = vdwg.mxu0
  %v1257 = vmax.f32 %v1251, -5.0
  %v1258 = vmax.f32 %v1254, -5.0
  %v1259 = vmin.f32 %v1257, 5.0
  %v1260 = vmin.f32 %v1258, 5.0
  %v1261 = vmul.f32 %v1259, 1.442695
  %v1262 = vpow.pop %v1261
  %v1263 = vmul.f32 %v1260, 1.442695
  %v1264 = vpow.pop %v1263
  %v1265 = vmul.f32 %v1262, 0.1
  %v1266 = vmul.f32 %v1264, 0.1
  %v1267 = vmul.f32 %v1265, %v131
  %v1268 = vmul.f32 %v1266, %v132
  %v1269 = vmul.f32 %v1267, 0.90909094
  %v1270 = vmul.f32 %v1268, 0.90909094
  %v1273 = vlaneseq
  %v1274 = vshrl.u32 %v1273, 7
  %v1275 = vsub.s32 0, %v1274
  %v1276 = vrot.slane %v1269, %v1275
  %1278 = vbcast.lane.b32.xlu0 %v1276, 256
  %v1279 = vpop.permute.xlu0 %1278
  %s1281 = sor.u32 256, 8
  %1282 = vbcast.lane.b32.xlu0 %v1276, %s1281
  %v1283 = vpop.permute.xlu0 %1282
  %v1284 = vlaneseq
  %v1285 = vshrl.u32 %v1284, 7
  %v1286 = vsub.s32 1, %v1285
  %v1287 = vrot.slane %v1269, %v1286
  %1289 = vbcast.lane.b32.xlu0 %v1287, 256
  %v1290 = vpop.permute.xlu0 %1289
  %s1292 = sor.u32 256, 8
  %1293 = vbcast.lane.b32.xlu0 %v1287, %s1292
  %v1294 = vpop.permute.xlu0 %1293
  %v1295 = vlaneseq
  %v1296 = vshrl.u32 %v1295, 7
  %v1297 = vsub.s32 2, %v1296
  %v1298 = vrot.slane %v1269, %v1297
  %1300 = vbcast.lane.b32.xlu0 %v1298, 256
  %v1301 = vpop.permute.xlu0 %1300
  %s1303 = sor.u32 256, 8
  %1304 = vbcast.lane.b32.xlu0 %v1298, %s1303
  %v1305 = vpop.permute.xlu0 %1304
  %v1306 = vlaneseq
  %v1307 = vshrl.u32 %v1306, 7
  %v1308 = vsub.s32 3, %v1307
  %v1309 = vrot.slane %v1269, %v1308
  %1311 = vbcast.lane.b32.xlu0 %v1309, 256
  %v1312 = vpop.permute.xlu0 %1311
  %s1314 = sor.u32 256, 8
  %1315 = vbcast.lane.b32.xlu0 %v1309, %s1314
  %v1316 = vpop.permute.xlu0 %1315
  %v1317 = vlaneseq
  %v1318 = vshrl.u32 %v1317, 7
  %v1319 = vsub.s32 4, %v1318
  %v1320 = vrot.slane %v1269, %v1319
  %1322 = vbcast.lane.b32.xlu0 %v1320, 256
  %v1323 = vpop.permute.xlu0 %1322
  %s1325 = sor.u32 256, 8
  %1326 = vbcast.lane.b32.xlu0 %v1320, %s1325
  %v1327 = vpop.permute.xlu0 %1326
  %v1328 = vlaneseq
  %v1329 = vshrl.u32 %v1328, 7
  %v1330 = vsub.s32 5, %v1329
  %v1331 = vrot.slane %v1269, %v1330
  %1333 = vbcast.lane.b32.xlu0 %v1331, 256
  %v1334 = vpop.permute.xlu0 %1333
  %s1336 = sor.u32 256, 8
  %1337 = vbcast.lane.b32.xlu0 %v1331, %s1336
  %v1338 = vpop.permute.xlu0 %1337
  %v1339 = vlaneseq
  %v1340 = vshrl.u32 %v1339, 7
  %v1341 = vsub.s32 6, %v1340
  %v1342 = vrot.slane %v1269, %v1341
  %1344 = vbcast.lane.b32.xlu0 %v1342, 256
  %v1345 = vpop.permute.xlu0 %1344
  %s1347 = sor.u32 256, 8
  %1348 = vbcast.lane.b32.xlu0 %v1342, %s1347
  %v1349 = vpop.permute.xlu0 %1348
  %v1350 = vlaneseq
  %v1351 = vshrl.u32 %v1350, 7
  %v1352 = vsub.s32 7, %v1351
  %v1353 = vrot.slane %v1269, %v1352
  %1355 = vbcast.lane.b32.xlu0 %v1353, 256
  %v1356 = vpop.permute.xlu0 %1355
  %s1358 = sor.u32 256, 8
  %1359 = vbcast.lane.b32.xlu0 %v1353, %s1358
  %v1360 = vpop.permute.xlu0 %1359
  %v1361 = vlaneseq
  %v1362 = vshrl.u32 %v1361, 7
  %v1363 = vsub.s32 0, %v1362
  %v1364 = vrot.slane %v1270, %v1363
  %1366 = vbcast.lane.b32.xlu0 %v1364, 256
  %v1367 = vpop.permute.xlu0 %1366
  %s1369 = sor.u32 256, 8
  %1370 = vbcast.lane.b32.xlu0 %v1364, %s1369
  %v1371 = vpop.permute.xlu0 %1370
  %v1372 = vlaneseq
  %v1373 = vshrl.u32 %v1372, 7
  %v1374 = vsub.s32 1, %v1373
  %v1375 = vrot.slane %v1270, %v1374
  %1377 = vbcast.lane.b32.xlu0 %v1375, 256
  %v1378 = vpop.permute.xlu0 %1377
  %s1380 = sor.u32 256, 8
  %1381 = vbcast.lane.b32.xlu0 %v1375, %s1380
  %v1382 = vpop.permute.xlu0 %1381
  %v1383 = vlaneseq
  %v1384 = vshrl.u32 %v1383, 7
  %v1385 = vsub.s32 2, %v1384
  %v1386 = vrot.slane %v1270, %v1385
  %1388 = vbcast.lane.b32.xlu0 %v1386, 256
  %v1389 = vpop.permute.xlu0 %1388
  %s1391 = sor.u32 256, 8
  %1392 = vbcast.lane.b32.xlu0 %v1386, %s1391
  %v1393 = vpop.permute.xlu0 %1392
  %v1394 = vlaneseq
  %v1395 = vshrl.u32 %v1394, 7
  %v1396 = vsub.s32 3, %v1395
  %v1397 = vrot.slane %v1270, %v1396
  %1399 = vbcast.lane.b32.xlu0 %v1397, 256
  %v1400 = vpop.permute.xlu0 %1399
  %s1402 = sor.u32 256, 8
  %1403 = vbcast.lane.b32.xlu0 %v1397, %s1402
  %v1404 = vpop.permute.xlu0 %1403
  %v1429 = vadd.f32 %v1168, %v1279
  %v1430 = vadd.f32 %v1169, %v1283
  %v1431 = vadd.f32 %v1170, %v1290
  %v1432 = vadd.f32 %v1171, %v1294
  %v1433 = vadd.f32 %v1172, %v1301
  %v1434 = vadd.f32 %v1173, %v1305
  %v1435 = vadd.f32 %v1174, %v1312
  %v1436 = vadd.f32 %v1175, %v1316
  %v1437 = vadd.f32 %v1176, %v1323
  %v1438 = vadd.f32 %v1177, %v1327
  %v1439 = vadd.f32 %v1178, %v1334
  %v1440 = vadd.f32 %v1179, %v1338
  %v1441 = vadd.f32 %v1180, %v1345
  %v1442 = vadd.f32 %v1181, %v1349
  %v1443 = vadd.f32 %v1182, %v1356
  %v1444 = vadd.f32 %v1183, %v1360
  %v1445 = vadd.f32 %v1184, %v1367
  %v1446 = vadd.f32 %v1185, %v1371
  %v1447 = vadd.f32 %v1186, %v1378
  %v1448 = vadd.f32 %v1187, %v1382
  %v1449 = vadd.f32 %v1188, %v1389
  %v1450 = vadd.f32 %v1189, %v1393
  %v1451 = vadd.f32 %v1190, %v1400
  %v1452 = vadd.f32 %v1191, %v1404
  %1453 = vrot.lane.b32.xlu0 %v99, 96
  %v1454 = vpop.permute.xlu0 %1453
  %1455 = vrot.lane.b32.xlu0 %v102, 96
  %v1456 = vpop.permute.xlu0 %1455
  %v1459 = vsel %vm246, %v1454, 1.0
  %v1460 = vsel %vm246, %v1456, 1.0
  %v1461 = vpack.c.bf16 %v1430, %v1429
  %v1462 = vpack.c.bf16 %v1432, %v1431
  %v1463 = vpack.c.bf16 %v1434, %v1433
  %v1464 = vpack.c.bf16 %v1436, %v1435
  %v1465 = vpack.c.bf16 %v1438, %v1437
  %v1466 = vpack.c.bf16 %v1440, %v1439
  %v1467 = vpack.c.bf16 %v1442, %v1441
  %v1468 = vpack.c.bf16 %v1444, %v1443
  %v1469 = vpack.c.bf16 %v1446, %v1445
  %v1470 = vpack.c.bf16 %v1448, %v1447
  %v1471 = vpack.c.bf16 %v1450, %v1449
  %v1472 = vpack.c.bf16 %v1452, %v1451
  %v1473 = vpack.c.bf16 %v1460, %v1459
  %v1486 = vunpack.c.l.b16 %v1461
  %v1487 = vunpack.c.h.b16 %v1461
  %v1488 = vunpack.c.l.b16 %v1462
  %v1489 = vunpack.c.h.b16 %v1462
  %v1490 = vunpack.c.l.b16 %v1463
  %v1491 = vunpack.c.h.b16 %v1463
  %v1492 = vunpack.c.l.b16 %v1464
  %v1493 = vunpack.c.h.b16 %v1464
  %v1494 = vunpack.c.l.b16 %v1465
  %v1495 = vunpack.c.h.b16 %v1465
  %v1496 = vunpack.c.l.b16 %v1466
  %v1497 = vunpack.c.h.b16 %v1466
  %v1498 = vunpack.c.l.b16 %v1467
  %v1499 = vunpack.c.h.b16 %v1467
  %v1500 = vunpack.c.l.b16 %v1468
  %v1501 = vunpack.c.h.b16 %v1468
  %v1502 = vunpack.c.l.b16 %v1469
  %v1503 = vunpack.c.h.b16 %v1469
  %v1504 = vunpack.c.l.b16 %v1470
  %v1505 = vunpack.c.h.b16 %v1470
  %v1506 = vunpack.c.l.b16 %v1471
  %v1507 = vunpack.c.h.b16 %v1471
  %v1508 = vunpack.c.l.b16 %v1472
  %v1509 = vunpack.c.h.b16 %v1472
  %1510 = vset.pattern.permute.xlu0 0
  %1511 = vperm.xlu0 %1510, %v1486
  %v1512 = vpop.permute.xlu0 %1511
  %1513 = vset.pattern.permute.xlu0 0
  %1514 = vperm.xlu0 %1513, %v1487
  %v1515 = vpop.permute.xlu0 %1514
  %1516 = vset.pattern.permute.xlu0 0
  %1517 = vperm.xlu0 %1516, %v1488
  %v1518 = vpop.permute.xlu0 %1517
  %1519 = vset.pattern.permute.xlu0 0
  %1520 = vperm.xlu0 %1519, %v1489
  %v1521 = vpop.permute.xlu0 %1520
  %1522 = vset.pattern.permute.xlu0 0
  %1523 = vperm.xlu0 %1522, %v1490
  %v1524 = vpop.permute.xlu0 %1523
  %1525 = vset.pattern.permute.xlu0 0
  %1526 = vperm.xlu0 %1525, %v1491
  %v1527 = vpop.permute.xlu0 %1526
  %1528 = vset.pattern.permute.xlu0 0
  %1529 = vperm.xlu0 %1528, %v1492
  %v1530 = vpop.permute.xlu0 %1529
  %1531 = vset.pattern.permute.xlu0 0
  %1532 = vperm.xlu0 %1531, %v1493
  %v1533 = vpop.permute.xlu0 %1532
  %1534 = vset.pattern.permute.xlu0 0
  %1535 = vperm.xlu0 %1534, %v1494
  %v1536 = vpop.permute.xlu0 %1535
  %1537 = vset.pattern.permute.xlu0 0
  %1538 = vperm.xlu0 %1537, %v1495
  %v1539 = vpop.permute.xlu0 %1538
  %1540 = vset.pattern.permute.xlu0 0
  %1541 = vperm.xlu0 %1540, %v1496
  %v1542 = vpop.permute.xlu0 %1541
  %1543 = vset.pattern.permute.xlu0 0
  %1544 = vperm.xlu0 %1543, %v1497
  %v1545 = vpop.permute.xlu0 %1544
  %1546 = vset.pattern.permute.xlu0 0
  %1547 = vperm.xlu0 %1546, %v1498
  %v1548 = vpop.permute.xlu0 %1547
  %1549 = vset.pattern.permute.xlu0 0
  %1550 = vperm.xlu0 %1549, %v1499
  %v1551 = vpop.permute.xlu0 %1550
  %1552 = vset.pattern.permute.xlu0 0
  %1553 = vperm.xlu0 %1552, %v1500
  %v1554 = vpop.permute.xlu0 %1553
  %1555 = vset.pattern.permute.xlu0 0
  %1556 = vperm.xlu0 %1555, %v1501
  %v1557 = vpop.permute.xlu0 %1556
  %1558 = vset.pattern.permute.xlu0 0
  %1559 = vperm.xlu0 %1558, %v1502
  %v1560 = vpop.permute.xlu0 %1559
  %1561 = vset.pattern.permute.xlu0 0
  %1562 = vperm.xlu0 %1561, %v1503
  %v1563 = vpop.permute.xlu0 %1562
  %1564 = vset.pattern.permute.xlu0 0
  %1565 = vperm.xlu0 %1564, %v1504
  %v1566 = vpop.permute.xlu0 %1565
  %1567 = vset.pattern.permute.xlu0 0
  %1568 = vperm.xlu0 %1567, %v1505
  %v1569 = vpop.permute.xlu0 %1568
  %1570 = vset.pattern.permute.xlu0 0
  %1571 = vperm.xlu0 %1570, %v1506
  %v1572 = vpop.permute.xlu0 %1571
  %1573 = vset.pattern.permute.xlu0 0
  %1574 = vperm.xlu0 %1573, %v1507
  %v1575 = vpop.permute.xlu0 %1574
  %1576 = vset.pattern.permute.xlu0 0
  %1577 = vperm.xlu0 %1576, %v1508
  %v1578 = vpop.permute.xlu0 %1577
  %1579 = vset.pattern.permute.xlu0 0
  %1580 = vperm.xlu0 %1579, %v1509
  %v1581 = vpop.permute.xlu0 %1580
  %v1582 = vlaneseq
  %v1583 = vand.u32 %v1582, 127
  %v1584 = vlaneseq
  %v1585 = vshrl.u32 %v1584, 7
  %v1586 = vsub.s32 %v1583, %v1585
  %v1587 = vrot.slane %v1512, %v1586
  %v1588 = vadd.s32 %v1583, 4294967288
  %v1589 = vlaneseq
  %v1590 = vshrl.u32 %v1589, 7
  %v1591 = vsub.s32 %v1588, %v1590
  %v1592 = vrot.slane %v1515, %v1591
  %vm1593 = vcmask 130112
  %v1594 = vsel %vm1593, %v1592, %v1587
  %v1595 = vlaneseq
  %v1596 = vshrl.u32 %v1595, 7
  %v1597 = vsub.s32 %v1583, %v1596
  %v1598 = vrot.slane %v1518, %v1597
  %v1599 = vlaneseq
  %v1600 = vshrl.u32 %v1599, 7
  %v1601 = vsub.s32 %v1588, %v1600
  %v1602 = vrot.slane %v1521, %v1601
  %v1603 = vsel %vm1593, %v1602, %v1598
  %v1604 = vlaneseq
  %v1605 = vshrl.u32 %v1604, 7
  %v1606 = vsub.s32 %v1583, %v1605
  %v1607 = vrot.slane %v1524, %v1606
  %v1608 = vlaneseq
  %v1609 = vshrl.u32 %v1608, 7
  %v1610 = vsub.s32 %v1588, %v1609
  %v1611 = vrot.slane %v1527, %v1610
  %v1612 = vsel %vm1593, %v1611, %v1607
  %v1613 = vlaneseq
  %v1614 = vshrl.u32 %v1613, 7
  %v1615 = vsub.s32 %v1583, %v1614
  %v1616 = vrot.slane %v1530, %v1615
  %v1617 = vlaneseq
  %v1618 = vshrl.u32 %v1617, 7
  %v1619 = vsub.s32 %v1588, %v1618
  %v1620 = vrot.slane %v1533, %v1619
  %v1621 = vsel %vm1593, %v1620, %v1616
  %v1622 = vlaneseq
  %v1623 = vshrl.u32 %v1622, 7
  %v1624 = vsub.s32 %v1583, %v1623
  %v1625 = vrot.slane %v1536, %v1624
  %v1626 = vlaneseq
  %v1627 = vshrl.u32 %v1626, 7
  %v1628 = vsub.s32 %v1588, %v1627
  %v1629 = vrot.slane %v1539, %v1628
  %v1630 = vsel %vm1593, %v1629, %v1625
  %v1631 = vlaneseq
  %v1632 = vshrl.u32 %v1631, 7
  %v1633 = vsub.s32 %v1583, %v1632
  %v1634 = vrot.slane %v1542, %v1633
  %v1635 = vlaneseq
  %v1636 = vshrl.u32 %v1635, 7
  %v1637 = vsub.s32 %v1588, %v1636
  %v1638 = vrot.slane %v1545, %v1637
  %v1639 = vsel %vm1593, %v1638, %v1634
  %v1640 = vlaneseq
  %v1641 = vshrl.u32 %v1640, 7
  %v1642 = vsub.s32 %v1583, %v1641
  %v1643 = vrot.slane %v1548, %v1642
  %v1644 = vlaneseq
  %v1645 = vshrl.u32 %v1644, 7
  %v1646 = vsub.s32 %v1588, %v1645
  %v1647 = vrot.slane %v1551, %v1646
  %v1648 = vsel %vm1593, %v1647, %v1643
  %v1649 = vlaneseq
  %v1650 = vshrl.u32 %v1649, 7
  %v1651 = vsub.s32 %v1583, %v1650
  %v1652 = vrot.slane %v1554, %v1651
  %v1653 = vlaneseq
  %v1654 = vshrl.u32 %v1653, 7
  %v1655 = vsub.s32 %v1588, %v1654
  %v1656 = vrot.slane %v1557, %v1655
  %v1657 = vsel %vm1593, %v1656, %v1652
  %v1658 = vlaneseq
  %v1659 = vshrl.u32 %v1658, 7
  %v1660 = vsub.s32 %v1583, %v1659
  %v1661 = vrot.slane %v1560, %v1660
  %v1662 = vlaneseq
  %v1663 = vshrl.u32 %v1662, 7
  %v1664 = vsub.s32 %v1588, %v1663
  %v1665 = vrot.slane %v1563, %v1664
  %v1666 = vsel %vm1593, %v1665, %v1661
  %v1667 = vlaneseq
  %v1668 = vshrl.u32 %v1667, 7
  %v1669 = vsub.s32 %v1583, %v1668
  %v1670 = vrot.slane %v1566, %v1669
  %v1671 = vlaneseq
  %v1672 = vshrl.u32 %v1671, 7
  %v1673 = vsub.s32 %v1588, %v1672
  %v1674 = vrot.slane %v1569, %v1673
  %v1675 = vsel %vm1593, %v1674, %v1670
  %v1676 = vlaneseq
  %v1677 = vshrl.u32 %v1676, 7
  %v1678 = vsub.s32 %v1583, %v1677
  %v1679 = vrot.slane %v1572, %v1678
  %v1680 = vlaneseq
  %v1681 = vshrl.u32 %v1680, 7
  %v1682 = vsub.s32 %v1588, %v1681
  %v1683 = vrot.slane %v1575, %v1682
  %v1684 = vsel %vm1593, %v1683, %v1679
  %v1685 = vlaneseq
  %v1686 = vshrl.u32 %v1685, 7
  %v1687 = vsub.s32 %v1583, %v1686
  %v1688 = vrot.slane %v1578, %v1687
  %v1689 = vlaneseq
  %v1690 = vshrl.u32 %v1689, 7
  %v1691 = vsub.s32 %v1588, %v1690
  %v1692 = vrot.slane %v1581, %v1691
  %v1693 = vsel %vm1593, %v1692, %v1688
  %vm1694 = vcmask 1041409
  %v1695 = vsel %vm1694, %v1603, %v1594
  %vm1696 = vcmask 1042434
  %v1697 = vsel %vm1696, %v1612, %v1695
  %vm1698 = vcmask 1043459
  %v1699 = vsel %vm1698, %v1621, %v1697
  %vm1700 = vcmask 1044484
  %v1701 = vsel %vm1700, %v1630, %v1699
  %vm1702 = vcmask 1045509
  %v1703 = vsel %vm1702, %v1639, %v1701
  %vm1704 = vcmask 1046534
  %v1705 = vsel %vm1704, %v1648, %v1703
  %vm1706 = vcmask 1047559
  %v1707 = vsel %vm1706, %v1657, %v1705
  %v1708 = vsel %vm1694, %v1675, %v1666
  %v1709 = vsel %vm1696, %v1684, %v1708
  %v1710 = vsel %vm1698, %v1693, %v1709
  %v1711 = vpack.c.b16 %v1710, %v1707
  %vm1712 = vcmask 97280
  %v1714 = vsel %vm1712, %v1711, 0
  %vm1716 = vcmask 1045504
  %v1718 = vsel %vm1716, %v1473, 0
  %1720 = vmatprep.subr.bf16.mxu0 0
  %1721 = vmatpush1.bf16.msra.mxu0 0
  %1722 = vmatprep.subr.bf16.mxu0 0
  %1723 = vmatpush1.bf16.msra.mxu0 0
  %1724 = vmatprep.subr.bf16.mxu0 0
  %1725 = vmatpush1.bf16.msra.mxu0 0
  %1726 = vmatprep.subr.bf16.mxu0 0
  %1727 = vmatpush1.bf16.msra.mxu0 0
  %1728 = vmatprep.subr.bf16.mxu0 0
  %1729 = vmatpush1.bf16.msra.mxu0 0
  %1730 = vmatprep.subr.bf16.mxu0 0
  %1731 = vmatpush1.bf16.msra.mxu0 0
  %1732 = vmatprep.subr.bf16.mxu0 0
  %1733 = vmatpush1.bf16.msra.mxu0 0
  %1734 = vmatprep.subr.bf16.mxu0 0
  %1735 = vmatpush1.bf16.msra.mxu0 %v1718
  %1736 = vmatprep.subr.bf16.mxu0 0
  %1737 = vmatpush2.bf16.msra.mxu0 0
  %1738 = vmatprep.subr.bf16.mxu0 0
  %1739 = vmatpush2.bf16.msra.mxu0 0
  %1740 = vmatprep.subr.bf16.mxu0 0
  %1741 = vmatpush2.bf16.msra.mxu0 0
  %1742 = vmatprep.subr.bf16.mxu0 0
  %1743 = vmatpush2.bf16.msra.mxu0 0
  %1744 = vmatprep.subr.bf16.mxu0 0
  %1745 = vmatpush2.bf16.msra.mxu0 0
  %1746 = vmatprep.subr.bf16.mxu0 0
  %1747 = vmatpush2.bf16.msra.mxu0 0
  %1748 = vmatprep.subr.bf16.mxu0 0
  %1749 = vmatpush2.bf16.msra.mxu0 0
  %1750 = vmatprep.subr.bf16.mxu0 0
  %1751 = vmatpush2.bf16.msra.mxu0 0
  %1752 = vmatprep.mubr.bf16.mxu0 0
  %1753 = vmatmul.mubr.bf16.gmra.mxu0 %v1714
  %v1754 = vpop.f32.mrf.mxu0
  %v1755 = vadd.f32 0.0, %v1754
  %v1756 = vpop.f32.mrf.mxu0
  %v1757 = vpop.f32.mrf.mxu0
  %v1758 = vadd.f32 0.0, %v1757
  %v1759 = vpop.f32.mrf.mxu0
  %1760 = vdwg.mxu0
  %v1761 = vadd.f32 %v1755, 1e-06
  %v1762 = vadd.f32 %v1758, 1e-06
  %v1763 = vrcp.pop %v1761
  %v1764 = vrcp.pop %v1762
  %1766 = vset.pattern.permute.xlu0 8
  %1767 = vperm.xlu0 %1766, %v1763
  %v1768 = vpop.permute.xlu0 %1767
  %1771 = vset.pattern.permute.xlu0 8
  %1772 = vperm.xlu0 %1771, %v1764
  %v1773 = vpop.permute.xlu0 %1772
  %v1775 = vmul.f32 %v1755, %v1768
  %v1776 = vmul.f32 %v1758, %v1773
  %1778 = vrot.lane.b32.xlu0 %v168, 120
  %v1779 = vpop.permute.xlu0 %1778
  %1780 = vrot.lane.b32.xlu0 %v245, 120
  %v1781 = vpop.permute.xlu0 %1780
  %v1783 = vsel %vm246, %v1779, 0
  %v1786 = vsel %vm246, %v1781, 0
  %1788 = vmatprep.subr.bf16.mxu0 0
  %1789 = vmatpush1.bf16.xpose.msra.mxu0 0
  %1790 = vmatprep.subr.bf16.mxu0 0
  %1791 = vmatpush1.bf16.xpose.msra.mxu0 0
  %1792 = vmatprep.subr.bf16.mxu0 0
  %1793 = vmatpush1.bf16.xpose.msra.mxu0 0
  %1794 = vmatprep.subr.bf16.mxu0 0
  %1795 = vmatpush1.bf16.xpose.msra.mxu0 0
  %1796 = vmatprep.subr.bf16.mxu0 0
  %1797 = vmatpush1.bf16.xpose.msra.mxu0 0
  %1798 = vmatprep.subr.bf16.mxu0 0
  %1799 = vmatpush1.bf16.xpose.msra.mxu0 0
  %1800 = vmatprep.subr.bf16.mxu0 0
  %1801 = vmatpush1.bf16.xpose.msra.mxu0 0
  %1802 = vmatprep.subr.bf16.mxu0 0
  %1803 = vmatpush1.bf16.xpose.msra.mxu0 %v1786
  %1804 = vmatprep.subr.bf16.mxu0 0
  %1805 = vmatpush2.bf16.xpose.msra.mxu0 0
  %1806 = vmatprep.subr.bf16.mxu0 0
  %1807 = vmatpush2.bf16.xpose.msra.mxu0 0
  %1808 = vmatprep.subr.bf16.mxu0 0
  %1809 = vmatpush2.bf16.xpose.msra.mxu0 0
  %1810 = vmatprep.subr.bf16.mxu0 0
  %1811 = vmatpush2.bf16.xpose.msra.mxu0 0
  %1812 = vmatprep.subr.bf16.mxu0 0
  %1813 = vmatpush2.bf16.xpose.msra.mxu0 0
  %1814 = vmatprep.subr.bf16.mxu0 0
  %1815 = vmatpush2.bf16.xpose.msra.mxu0 0
  %1816 = vmatprep.subr.bf16.mxu0 0
  %1817 = vmatpush2.bf16.xpose.msra.mxu0 0
  %1818 = vmatprep.subr.bf16.mxu0 0
  %1819 = vmatpush2.bf16.xpose.msra.mxu0 0
  %1820 = vmatprep.mubr.bf16.mxu0 0
  %1821 = vmatmul.mubr.bf16.gmra.mxu0 %v1783
  %v1822 = vpop.f32.mrf.mxu0
  %v1823 = vadd.f32 0.0, %v1822
  %v1824 = vpop.f32.mrf.mxu0
  %v1825 = vpop.f32.mrf.mxu0
  %v1826 = vadd.f32 0.0, %v1825
  %v1827 = vpop.f32.mrf.mxu0
  %1828 = vdwg.mxu0
  %1830 = vrot.lane.b32.xlu0 %v169, 120
  %v1831 = vpop.permute.xlu0 %1830
  %1832 = vrot.lane.b32.xlu0 %v298, 120
  %v1833 = vpop.permute.xlu0 %1832
  %v1835 = vsel %vm246, %v1831, 0
  %v1838 = vsel %vm246, %v1833, 0
  %1840 = vmatprep.subr.bf16.mxu0 0
  %1841 = vmatpush1.bf16.xpose.msra.mxu0 0
  %1842 = vmatprep.subr.bf16.mxu0 0
  %1843 = vmatpush1.bf16.xpose.msra.mxu0 0
  %1844 = vmatprep.subr.bf16.mxu0 0
  %1845 = vmatpush1.bf16.xpose.msra.mxu0 0
  %1846 = vmatprep.subr.bf16.mxu0 0
  %1847 = vmatpush1.bf16.xpose.msra.mxu0 0
  %1848 = vmatprep.subr.bf16.mxu0 0
  %1849 = vmatpush1.bf16.xpose.msra.mxu0 0
  %1850 = vmatprep.subr.bf16.mxu0 0
  %1851 = vmatpush1.bf16.xpose.msra.mxu0 0
  %1852 = vmatprep.subr.bf16.mxu0 0
  %1853 = vmatpush1.bf16.xpose.msra.mxu0 0
  %1854 = vmatprep.subr.bf16.mxu0 0
  %1855 = vmatpush1.bf16.xpose.msra.mxu0 %v1838
  %1856 = vmatprep.subr.bf16.mxu0 0
  %1857 = vmatpush2.bf16.xpose.msra.mxu0 0
  %1858 = vmatprep.subr.bf16.mxu0 0
  %1859 = vmatpush2.bf16.xpose.msra.mxu0 0
  %1860 = vmatprep.subr.bf16.mxu0 0
  %1861 = vmatpush2.bf16.xpose.msra.mxu0 0
  %1862 = vmatprep.subr.bf16.mxu0 0
  %1863 = vmatpush2.bf16.xpose.msra.mxu0 0
  %1864 = vmatprep.subr.bf16.mxu0 0
  %1865 = vmatpush2.bf16.xpose.msra.mxu0 0
  %1866 = vmatprep.subr.bf16.mxu0 0
  %1867 = vmatpush2.bf16.xpose.msra.mxu0 0
  %1868 = vmatprep.subr.bf16.mxu0 0
  %1869 = vmatpush2.bf16.xpose.msra.mxu0 0
  %1870 = vmatprep.subr.bf16.mxu0 0
  %1871 = vmatpush2.bf16.xpose.msra.mxu0 0
  %1872 = vmatprep.mubr.bf16.mxu0 0
  %1873 = vmatmul.mubr.bf16.gmra.mxu0 %v1835
  %v1874 = vpop.f32.mrf.mxu0
  %v1875 = vadd.f32 0.0, %v1874
  %v1876 = vpop.f32.mrf.mxu0
  %v1877 = vpop.f32.mrf.mxu0
  %v1878 = vadd.f32 0.0, %v1877
  %v1879 = vpop.f32.mrf.mxu0
  %1880 = vdwg.mxu0
  %1882 = vrot.lane.b32.xlu0 %v170, 120
  %v1883 = vpop.permute.xlu0 %1882
  %1884 = vrot.lane.b32.xlu0 %v350, 120
  %v1885 = vpop.permute.xlu0 %1884
  %v1887 = vsel %vm246, %v1883, 0
  %v1890 = vsel %vm246, %v1885, 0
  %1892 = vmatprep.subr.bf16.mxu0 0
  %1893 = vmatpush1.bf16.xpose.msra.mxu0 0
  %1894 = vmatprep.subr.bf16.mxu0 0
  %1895 = vmatpush1.bf16.xpose.msra.mxu0 0
  %1896 = vmatprep.subr.bf16.mxu0 0
  %1897 = vmatpush1.bf16.xpose.msra.mxu0 0
  %1898 = vmatprep.subr.bf16.mxu0 0
  %1899 = vmatpush1.bf16.xpose.msra.mxu0 0
  %1900 = vmatprep.subr.bf16.mxu0 0
  %1901 = vmatpush1.bf16.xpose.msra.mxu0 0
  %1902 = vmatprep.subr.bf16.mxu0 0
  %1903 = vmatpush1.bf16.xpose.msra.mxu0 0
  %1904 = vmatprep.subr.bf16.mxu0 0
  %1905 = vmatpush1.bf16.xpose.msra.mxu0 0
  %1906 = vmatprep.subr.bf16.mxu0 0
  %1907 = vmatpush1.bf16.xpose.msra.mxu0 %v1890
  %1908 = vmatprep.subr.bf16.mxu0 0
  %1909 = vmatpush2.bf16.xpose.msra.mxu0 0
  %1910 = vmatprep.subr.bf16.mxu0 0
  %1911 = vmatpush2.bf16.xpose.msra.mxu0 0
  %1912 = vmatprep.subr.bf16.mxu0 0
  %1913 = vmatpush2.bf16.xpose.msra.mxu0 0
  %1914 = vmatprep.subr.bf16.mxu0 0
  %1915 = vmatpush2.bf16.xpose.msra.mxu0 0
  %1916 = vmatprep.subr.bf16.mxu0 0
  %1917 = vmatpush2.bf16.xpose.msra.mxu0 0
  %1918 = vmatprep.subr.bf16.mxu0 0
  %1919 = vmatpush2.bf16.xpose.msra.mxu0 0
  %1920 = vmatprep.subr.bf16.mxu0 0
  %1921 = vmatpush2.bf16.xpose.msra.mxu0 0
  %1922 = vmatprep.subr.bf16.mxu0 0
  %1923 = vmatpush2.bf16.xpose.msra.mxu0 0
  %1924 = vmatprep.mubr.bf16.mxu0 0
  %1925 = vmatmul.mubr.bf16.gmra.mxu0 %v1887
  %v1926 = vpop.f32.mrf.mxu0
  %v1927 = vadd.f32 0.0, %v1926
  %v1928 = vpop.f32.mrf.mxu0
  %v1929 = vpop.f32.mrf.mxu0
  %v1930 = vadd.f32 0.0, %v1929
  %v1931 = vpop.f32.mrf.mxu0
  %1932 = vdwg.mxu0
  %1934 = vrot.lane.b32.xlu0 %v171, 120
  %v1935 = vpop.permute.xlu0 %1934
  %1936 = vrot.lane.b32.xlu0 %v402, 120
  %v1937 = vpop.permute.xlu0 %1936
  %v1939 = vsel %vm246, %v1935, 0
  %v1942 = vsel %vm246, %v1937, 0
  %1944 = vmatprep.subr.bf16.mxu0 0
  %1945 = vmatpush1.bf16.xpose.msra.mxu0 0
  %1946 = vmatprep.subr.bf16.mxu0 0
  %1947 = vmatpush1.bf16.xpose.msra.mxu0 0
  %1948 = vmatprep.subr.bf16.mxu0 0
  %1949 = vmatpush1.bf16.xpose.msra.mxu0 0
  %1950 = vmatprep.subr.bf16.mxu0 0
  %1951 = vmatpush1.bf16.xpose.msra.mxu0 0
  %1952 = vmatprep.subr.bf16.mxu0 0
  %1953 = vmatpush1.bf16.xpose.msra.mxu0 0
  %1954 = vmatprep.subr.bf16.mxu0 0
  %1955 = vmatpush1.bf16.xpose.msra.mxu0 0
  %1956 = vmatprep.subr.bf16.mxu0 0
  %1957 = vmatpush1.bf16.xpose.msra.mxu0 0
  %1958 = vmatprep.subr.bf16.mxu0 0
  %1959 = vmatpush1.bf16.xpose.msra.mxu0 %v1942
  %1960 = vmatprep.subr.bf16.mxu0 0
  %1961 = vmatpush2.bf16.xpose.msra.mxu0 0
  %1962 = vmatprep.subr.bf16.mxu0 0
  %1963 = vmatpush2.bf16.xpose.msra.mxu0 0
  %1964 = vmatprep.subr.bf16.mxu0 0
  %1965 = vmatpush2.bf16.xpose.msra.mxu0 0
  %1966 = vmatprep.subr.bf16.mxu0 0
  %1967 = vmatpush2.bf16.xpose.msra.mxu0 0
  %1968 = vmatprep.subr.bf16.mxu0 0
  %1969 = vmatpush2.bf16.xpose.msra.mxu0 0
  %1970 = vmatprep.subr.bf16.mxu0 0
  %1971 = vmatpush2.bf16.xpose.msra.mxu0 0
  %1972 = vmatprep.subr.bf16.mxu0 0
  %1973 = vmatpush2.bf16.xpose.msra.mxu0 0
  %1974 = vmatprep.subr.bf16.mxu0 0
  %1975 = vmatpush2.bf16.xpose.msra.mxu0 0
  %1976 = vmatprep.mubr.bf16.mxu0 0
  %1977 = vmatmul.mubr.bf16.gmra.mxu0 %v1939
  %v1978 = vpop.f32.mrf.mxu0
  %v1979 = vadd.f32 0.0, %v1978
  %v1980 = vpop.f32.mrf.mxu0
  %v1981 = vpop.f32.mrf.mxu0
  %v1982 = vadd.f32 0.0, %v1981
  %v1983 = vpop.f32.mrf.mxu0
  %1984 = vdwg.mxu0
  %1986 = vrot.lane.b32.xlu0 %v172, 120
  %v1987 = vpop.permute.xlu0 %1986
  %1988 = vrot.lane.b32.xlu0 %v454, 120
  %v1989 = vpop.permute.xlu0 %1988
  %v1991 = vsel %vm246, %v1987, 0
  %v1994 = vsel %vm246, %v1989, 0
  %1996 = vmatprep.subr.bf16.mxu0 0
  %1997 = vmatpush1.bf16.xpose.msra.mxu0 0
  %1998 = vmatprep.subr.bf16.mxu0 0
  %1999 = vmatpush1.bf16.xpose.msra.mxu0 0
  %2000 = vmatprep.subr.bf16.mxu0 0
  %2001 = vmatpush1.bf16.xpose.msra.mxu0 0
  %2002 = vmatprep.subr.bf16.mxu0 0
  %2003 = vmatpush1.bf16.xpose.msra.mxu0 0
  %2004 = vmatprep.subr.bf16.mxu0 0
  %2005 = vmatpush1.bf16.xpose.msra.mxu0 0
  %2006 = vmatprep.subr.bf16.mxu0 0
  %2007 = vmatpush1.bf16.xpose.msra.mxu0 0
  %2008 = vmatprep.subr.bf16.mxu0 0
  %2009 = vmatpush1.bf16.xpose.msra.mxu0 0
  %2010 = vmatprep.subr.bf16.mxu0 0
  %2011 = vmatpush1.bf16.xpose.msra.mxu0 %v1994
  %2012 = vmatprep.subr.bf16.mxu0 0
  %2013 = vmatpush2.bf16.xpose.msra.mxu0 0
  %2014 = vmatprep.subr.bf16.mxu0 0
  %2015 = vmatpush2.bf16.xpose.msra.mxu0 0
  %2016 = vmatprep.subr.bf16.mxu0 0
  %2017 = vmatpush2.bf16.xpose.msra.mxu0 0
  %2018 = vmatprep.subr.bf16.mxu0 0
  %2019 = vmatpush2.bf16.xpose.msra.mxu0 0
  %2020 = vmatprep.subr.bf16.mxu0 0
  %2021 = vmatpush2.bf16.xpose.msra.mxu0 0
  %2022 = vmatprep.subr.bf16.mxu0 0
  %2023 = vmatpush2.bf16.xpose.msra.mxu0 0
  %2024 = vmatprep.subr.bf16.mxu0 0
  %2025 = vmatpush2.bf16.xpose.msra.mxu0 0
  %2026 = vmatprep.subr.bf16.mxu0 0
  %2027 = vmatpush2.bf16.xpose.msra.mxu0 0
  %2028 = vmatprep.mubr.bf16.mxu0 0
  %2029 = vmatmul.mubr.bf16.gmra.mxu0 %v1991
  %v2030 = vpop.f32.mrf.mxu0
  %v2031 = vadd.f32 0.0, %v2030
  %v2032 = vpop.f32.mrf.mxu0
  %v2033 = vpop.f32.mrf.mxu0
  %v2034 = vadd.f32 0.0, %v2033
  %v2035 = vpop.f32.mrf.mxu0
  %2036 = vdwg.mxu0
  %2038 = vrot.lane.b32.xlu0 %v173, 120
  %v2039 = vpop.permute.xlu0 %2038
  %2040 = vrot.lane.b32.xlu0 %v506, 120
  %v2041 = vpop.permute.xlu0 %2040
  %v2043 = vsel %vm246, %v2039, 0
  %v2046 = vsel %vm246, %v2041, 0
  %2048 = vmatprep.subr.bf16.mxu0 0
  %2049 = vmatpush1.bf16.xpose.msra.mxu0 0
  %2050 = vmatprep.subr.bf16.mxu0 0
  %2051 = vmatpush1.bf16.xpose.msra.mxu0 0
  %2052 = vmatprep.subr.bf16.mxu0 0
  %2053 = vmatpush1.bf16.xpose.msra.mxu0 0
  %2054 = vmatprep.subr.bf16.mxu0 0
  %2055 = vmatpush1.bf16.xpose.msra.mxu0 0
  %2056 = vmatprep.subr.bf16.mxu0 0
  %2057 = vmatpush1.bf16.xpose.msra.mxu0 0
  %2058 = vmatprep.subr.bf16.mxu0 0
  %2059 = vmatpush1.bf16.xpose.msra.mxu0 0
  %2060 = vmatprep.subr.bf16.mxu0 0
  %2061 = vmatpush1.bf16.xpose.msra.mxu0 0
  %2062 = vmatprep.subr.bf16.mxu0 0
  %2063 = vmatpush1.bf16.xpose.msra.mxu0 %v2046
  %2064 = vmatprep.subr.bf16.mxu0 0
  %2065 = vmatpush2.bf16.xpose.msra.mxu0 0
  %2066 = vmatprep.subr.bf16.mxu0 0
  %2067 = vmatpush2.bf16.xpose.msra.mxu0 0
  %2068 = vmatprep.subr.bf16.mxu0 0
  %2069 = vmatpush2.bf16.xpose.msra.mxu0 0
  %2070 = vmatprep.subr.bf16.mxu0 0
  %2071 = vmatpush2.bf16.xpose.msra.mxu0 0
  %2072 = vmatprep.subr.bf16.mxu0 0
  %2073 = vmatpush2.bf16.xpose.msra.mxu0 0
  %2074 = vmatprep.subr.bf16.mxu0 0
  %2075 = vmatpush2.bf16.xpose.msra.mxu0 0
  %2076 = vmatprep.subr.bf16.mxu0 0
  %2077 = vmatpush2.bf16.xpose.msra.mxu0 0
  %2078 = vmatprep.subr.bf16.mxu0 0
  %2079 = vmatpush2.bf16.xpose.msra.mxu0 0
  %2080 = vmatprep.mubr.bf16.mxu0 0
  %2081 = vmatmul.mubr.bf16.gmra.mxu0 %v2043
  %v2082 = vpop.f32.mrf.mxu0
  %v2083 = vadd.f32 0.0, %v2082
  %v2084 = vpop.f32.mrf.mxu0
  %v2085 = vpop.f32.mrf.mxu0
  %v2086 = vadd.f32 0.0, %v2085
  %v2087 = vpop.f32.mrf.mxu0
  %2088 = vdwg.mxu0
  %2090 = vrot.lane.b32.xlu0 %v174, 120
  %v2091 = vpop.permute.xlu0 %2090
  %2092 = vrot.lane.b32.xlu0 %v558, 120
  %v2093 = vpop.permute.xlu0 %2092
  %v2095 = vsel %vm246, %v2091, 0
  %v2098 = vsel %vm246, %v2093, 0
  %2100 = vmatprep.subr.bf16.mxu0 0
  %2101 = vmatpush1.bf16.xpose.msra.mxu0 0
  %2102 = vmatprep.subr.bf16.mxu0 0
  %2103 = vmatpush1.bf16.xpose.msra.mxu0 0
  %2104 = vmatprep.subr.bf16.mxu0 0
  %2105 = vmatpush1.bf16.xpose.msra.mxu0 0
  %2106 = vmatprep.subr.bf16.mxu0 0
  %2107 = vmatpush1.bf16.xpose.msra.mxu0 0
  %2108 = vmatprep.subr.bf16.mxu0 0
  %2109 = vmatpush1.bf16.xpose.msra.mxu0 0
  %2110 = vmatprep.subr.bf16.mxu0 0
  %2111 = vmatpush1.bf16.xpose.msra.mxu0 0
  %2112 = vmatprep.subr.bf16.mxu0 0
  %2113 = vmatpush1.bf16.xpose.msra.mxu0 0
  %2114 = vmatprep.subr.bf16.mxu0 0
  %2115 = vmatpush1.bf16.xpose.msra.mxu0 %v2098
  %2116 = vmatprep.subr.bf16.mxu0 0
  %2117 = vmatpush2.bf16.xpose.msra.mxu0 0
  %2118 = vmatprep.subr.bf16.mxu0 0
  %2119 = vmatpush2.bf16.xpose.msra.mxu0 0
  %2120 = vmatprep.subr.bf16.mxu0 0
  %2121 = vmatpush2.bf16.xpose.msra.mxu0 0
  %2122 = vmatprep.subr.bf16.mxu0 0
  %2123 = vmatpush2.bf16.xpose.msra.mxu0 0
  %2124 = vmatprep.subr.bf16.mxu0 0
  %2125 = vmatpush2.bf16.xpose.msra.mxu0 0
  %2126 = vmatprep.subr.bf16.mxu0 0
  %2127 = vmatpush2.bf16.xpose.msra.mxu0 0
  %2128 = vmatprep.subr.bf16.mxu0 0
  %2129 = vmatpush2.bf16.xpose.msra.mxu0 0
  %2130 = vmatprep.subr.bf16.mxu0 0
  %2131 = vmatpush2.bf16.xpose.msra.mxu0 0
  %2132 = vmatprep.mubr.bf16.mxu0 0
  %2133 = vmatmul.mubr.bf16.gmra.mxu0 %v2095
  %v2134 = vpop.f32.mrf.mxu0
  %v2135 = vadd.f32 0.0, %v2134
  %v2136 = vpop.f32.mrf.mxu0
  %v2137 = vpop.f32.mrf.mxu0
  %v2138 = vadd.f32 0.0, %v2137
  %v2139 = vpop.f32.mrf.mxu0
  %2140 = vdwg.mxu0
  %2142 = vrot.lane.b32.xlu0 %v175, 120
  %v2143 = vpop.permute.xlu0 %2142
  %2144 = vrot.lane.b32.xlu0 %v610, 120
  %v2145 = vpop.permute.xlu0 %2144
  %v2147 = vsel %vm246, %v2143, 0
  %v2150 = vsel %vm246, %v2145, 0
  %2152 = vmatprep.subr.bf16.mxu0 0
  %2153 = vmatpush1.bf16.xpose.msra.mxu0 0
  %2154 = vmatprep.subr.bf16.mxu0 0
  %2155 = vmatpush1.bf16.xpose.msra.mxu0 0
  %2156 = vmatprep.subr.bf16.mxu0 0
  %2157 = vmatpush1.bf16.xpose.msra.mxu0 0
  %2158 = vmatprep.subr.bf16.mxu0 0
  %2159 = vmatpush1.bf16.xpose.msra.mxu0 0
  %2160 = vmatprep.subr.bf16.mxu0 0
  %2161 = vmatpush1.bf16.xpose.msra.mxu0 0
  %2162 = vmatprep.subr.bf16.mxu0 0
  %2163 = vmatpush1.bf16.xpose.msra.mxu0 0
  %2164 = vmatprep.subr.bf16.mxu0 0
  %2165 = vmatpush1.bf16.xpose.msra.mxu0 0
  %2166 = vmatprep.subr.bf16.mxu0 0
  %2167 = vmatpush1.bf16.xpose.msra.mxu0 %v2150
  %2168 = vmatprep.subr.bf16.mxu0 0
  %2169 = vmatpush2.bf16.xpose.msra.mxu0 0
  %2170 = vmatprep.subr.bf16.mxu0 0
  %2171 = vmatpush2.bf16.xpose.msra.mxu0 0
  %2172 = vmatprep.subr.bf16.mxu0 0
  %2173 = vmatpush2.bf16.xpose.msra.mxu0 0
  %2174 = vmatprep.subr.bf16.mxu0 0
  %2175 = vmatpush2.bf16.xpose.msra.mxu0 0
  %2176 = vmatprep.subr.bf16.mxu0 0
  %2177 = vmatpush2.bf16.xpose.msra.mxu0 0
  %2178 = vmatprep.subr.bf16.mxu0 0
  %2179 = vmatpush2.bf16.xpose.msra.mxu0 0
  %2180 = vmatprep.subr.bf16.mxu0 0
  %2181 = vmatpush2.bf16.xpose.msra.mxu0 0
  %2182 = vmatprep.subr.bf16.mxu0 0
  %2183 = vmatpush2.bf16.xpose.msra.mxu0 0
  %2184 = vmatprep.mubr.bf16.mxu0 0
  %2185 = vmatmul.mubr.bf16.gmra.mxu0 %v2147
  %v2186 = vpop.f32.mrf.mxu0
  %v2187 = vadd.f32 0.0, %v2186
  %v2188 = vpop.f32.mrf.mxu0
  %v2189 = vpop.f32.mrf.mxu0
  %v2190 = vadd.f32 0.0, %v2189
  %v2191 = vpop.f32.mrf.mxu0
  %2192 = vdwg.mxu0
  %2194 = vrot.lane.b32.xlu0 %v176, 120
  %v2195 = vpop.permute.xlu0 %2194
  %2196 = vrot.lane.b32.xlu0 %v662, 120
  %v2197 = vpop.permute.xlu0 %2196
  %v2199 = vsel %vm246, %v2195, 0
  %v2202 = vsel %vm246, %v2197, 0
  %2204 = vmatprep.subr.bf16.mxu0 0
  %2205 = vmatpush1.bf16.xpose.msra.mxu0 0
  %2206 = vmatprep.subr.bf16.mxu0 0
  %2207 = vmatpush1.bf16.xpose.msra.mxu0 0
  %2208 = vmatprep.subr.bf16.mxu0 0
  %2209 = vmatpush1.bf16.xpose.msra.mxu0 0
  %2210 = vmatprep.subr.bf16.mxu0 0
  %2211 = vmatpush1.bf16.xpose.msra.mxu0 0
  %2212 = vmatprep.subr.bf16.mxu0 0
  %2213 = vmatpush1.bf16.xpose.msra.mxu0 0
  %2214 = vmatprep.subr.bf16.mxu0 0
  %2215 = vmatpush1.bf16.xpose.msra.mxu0 0
  %2216 = vmatprep.subr.bf16.mxu0 0
  %2217 = vmatpush1.bf16.xpose.msra.mxu0 0
  %2218 = vmatprep.subr.bf16.mxu0 0
  %2219 = vmatpush1.bf16.xpose.msra.mxu0 %v2202
  %2220 = vmatprep.subr.bf16.mxu0 0
  %2221 = vmatpush2.bf16.xpose.msra.mxu0 0
  %2222 = vmatprep.subr.bf16.mxu0 0
  %2223 = vmatpush2.bf16.xpose.msra.mxu0 0
  %2224 = vmatprep.subr.bf16.mxu0 0
  %2225 = vmatpush2.bf16.xpose.msra.mxu0 0
  %2226 = vmatprep.subr.bf16.mxu0 0
  %2227 = vmatpush2.bf16.xpose.msra.mxu0 0
  %2228 = vmatprep.subr.bf16.mxu0 0
  %2229 = vmatpush2.bf16.xpose.msra.mxu0 0
  %2230 = vmatprep.subr.bf16.mxu0 0
  %2231 = vmatpush2.bf16.xpose.msra.mxu0 0
  %2232 = vmatprep.subr.bf16.mxu0 0
  %2233 = vmatpush2.bf16.xpose.msra.mxu0 0
  %2234 = vmatprep.subr.bf16.mxu0 0
  %2235 = vmatpush2.bf16.xpose.msra.mxu0 0
  %2236 = vmatprep.mubr.bf16.mxu0 0
  %2237 = vmatmul.mubr.bf16.gmra.mxu0 %v2199
  %v2238 = vpop.f32.mrf.mxu0
  %v2239 = vadd.f32 0.0, %v2238
  %v2240 = vpop.f32.mrf.mxu0
  %v2241 = vpop.f32.mrf.mxu0
  %v2242 = vadd.f32 0.0, %v2241
  %v2243 = vpop.f32.mrf.mxu0
  %2244 = vdwg.mxu0
  %2246 = vrot.lane.b32.xlu0 %v177, 120
  %v2247 = vpop.permute.xlu0 %2246
  %2248 = vrot.lane.b32.xlu0 %v714, 120
  %v2249 = vpop.permute.xlu0 %2248
  %v2251 = vsel %vm246, %v2247, 0
  %v2254 = vsel %vm246, %v2249, 0
  %2256 = vmatprep.subr.bf16.mxu0 0
  %2257 = vmatpush1.bf16.xpose.msra.mxu0 0
  %2258 = vmatprep.subr.bf16.mxu0 0
  %2259 = vmatpush1.bf16.xpose.msra.mxu0 0
  %2260 = vmatprep.subr.bf16.mxu0 0
  %2261 = vmatpush1.bf16.xpose.msra.mxu0 0
  %2262 = vmatprep.subr.bf16.mxu0 0
  %2263 = vmatpush1.bf16.xpose.msra.mxu0 0
  %2264 = vmatprep.subr.bf16.mxu0 0
  %2265 = vmatpush1.bf16.xpose.msra.mxu0 0
  %2266 = vmatprep.subr.bf16.mxu0 0
  %2267 = vmatpush1.bf16.xpose.msra.mxu0 0
  %2268 = vmatprep.subr.bf16.mxu0 0
  %2269 = vmatpush1.bf16.xpose.msra.mxu0 0
  %2270 = vmatprep.subr.bf16.mxu0 0
  %2271 = vmatpush1.bf16.xpose.msra.mxu0 %v2254
  %2272 = vmatprep.subr.bf16.mxu0 0
  %2273 = vmatpush2.bf16.xpose.msra.mxu0 0
  %2274 = vmatprep.subr.bf16.mxu0 0
  %2275 = vmatpush2.bf16.xpose.msra.mxu0 0
  %2276 = vmatprep.subr.bf16.mxu0 0
  %2277 = vmatpush2.bf16.xpose.msra.mxu0 0
  %2278 = vmatprep.subr.bf16.mxu0 0
  %2279 = vmatpush2.bf16.xpose.msra.mxu0 0
  %2280 = vmatprep.subr.bf16.mxu0 0
  %2281 = vmatpush2.bf16.xpose.msra.mxu0 0
  %2282 = vmatprep.subr.bf16.mxu0 0
  %2283 = vmatpush2.bf16.xpose.msra.mxu0 0
  %2284 = vmatprep.subr.bf16.mxu0 0
  %2285 = vmatpush2.bf16.xpose.msra.mxu0 0
  %2286 = vmatprep.subr.bf16.mxu0 0
  %2287 = vmatpush2.bf16.xpose.msra.mxu0 0
  %2288 = vmatprep.mubr.bf16.mxu0 0
  %2289 = vmatmul.mubr.bf16.gmra.mxu0 %v2251
  %v2290 = vpop.f32.mrf.mxu0
  %v2291 = vadd.f32 0.0, %v2290
  %v2292 = vpop.f32.mrf.mxu0
  %v2293 = vpop.f32.mrf.mxu0
  %v2294 = vadd.f32 0.0, %v2293
  %v2295 = vpop.f32.mrf.mxu0
  %2296 = vdwg.mxu0
  %2298 = vrot.lane.b32.xlu0 %v178, 120
  %v2299 = vpop.permute.xlu0 %2298
  %2300 = vrot.lane.b32.xlu0 %v766, 120
  %v2301 = vpop.permute.xlu0 %2300
  %v2303 = vsel %vm246, %v2299, 0
  %v2306 = vsel %vm246, %v2301, 0
  %2308 = vmatprep.subr.bf16.mxu0 0
  %2309 = vmatpush1.bf16.xpose.msra.mxu0 0
  %2310 = vmatprep.subr.bf16.mxu0 0
  %2311 = vmatpush1.bf16.xpose.msra.mxu0 0
  %2312 = vmatprep.subr.bf16.mxu0 0
  %2313 = vmatpush1.bf16.xpose.msra.mxu0 0
  %2314 = vmatprep.subr.bf16.mxu0 0
  %2315 = vmatpush1.bf16.xpose.msra.mxu0 0
  %2316 = vmatprep.subr.bf16.mxu0 0
  %2317 = vmatpush1.bf16.xpose.msra.mxu0 0
  %2318 = vmatprep.subr.bf16.mxu0 0
  %2319 = vmatpush1.bf16.xpose.msra.mxu0 0
  %2320 = vmatprep.subr.bf16.mxu0 0
  %2321 = vmatpush1.bf16.xpose.msra.mxu0 0
  %2322 = vmatprep.subr.bf16.mxu0 0
  %2323 = vmatpush1.bf16.xpose.msra.mxu0 %v2306
  %2324 = vmatprep.subr.bf16.mxu0 0
  %2325 = vmatpush2.bf16.xpose.msra.mxu0 0
  %2326 = vmatprep.subr.bf16.mxu0 0
  %2327 = vmatpush2.bf16.xpose.msra.mxu0 0
  %2328 = vmatprep.subr.bf16.mxu0 0
  %2329 = vmatpush2.bf16.xpose.msra.mxu0 0
  %2330 = vmatprep.subr.bf16.mxu0 0
  %2331 = vmatpush2.bf16.xpose.msra.mxu0 0
  %2332 = vmatprep.subr.bf16.mxu0 0
  %2333 = vmatpush2.bf16.xpose.msra.mxu0 0
  %2334 = vmatprep.subr.bf16.mxu0 0
  %2335 = vmatpush2.bf16.xpose.msra.mxu0 0
  %2336 = vmatprep.subr.bf16.mxu0 0
  %2337 = vmatpush2.bf16.xpose.msra.mxu0 0
  %2338 = vmatprep.subr.bf16.mxu0 0
  %2339 = vmatpush2.bf16.xpose.msra.mxu0 0
  %2340 = vmatprep.mubr.bf16.mxu0 0
  %2341 = vmatmul.mubr.bf16.gmra.mxu0 %v2303
  %v2342 = vpop.f32.mrf.mxu0
  %v2343 = vadd.f32 0.0, %v2342
  %v2344 = vpop.f32.mrf.mxu0
  %v2345 = vpop.f32.mrf.mxu0
  %v2346 = vadd.f32 0.0, %v2345
  %v2347 = vpop.f32.mrf.mxu0
  %2348 = vdwg.mxu0
  %2350 = vrot.lane.b32.xlu0 %v179, 120
  %v2351 = vpop.permute.xlu0 %2350
  %2352 = vrot.lane.b32.xlu0 %v818, 120
  %v2353 = vpop.permute.xlu0 %2352
  %v2355 = vsel %vm246, %v2351, 0
  %v2358 = vsel %vm246, %v2353, 0
  %2360 = vmatprep.subr.bf16.mxu0 0
  %2361 = vmatpush1.bf16.xpose.msra.mxu0 0
  %2362 = vmatprep.subr.bf16.mxu0 0
  %2363 = vmatpush1.bf16.xpose.msra.mxu0 0
  %2364 = vmatprep.subr.bf16.mxu0 0
  %2365 = vmatpush1.bf16.xpose.msra.mxu0 0
  %2366 = vmatprep.subr.bf16.mxu0 0
  %2367 = vmatpush1.bf16.xpose.msra.mxu0 0
  %2368 = vmatprep.subr.bf16.mxu0 0
  %2369 = vmatpush1.bf16.xpose.msra.mxu0 0
  %2370 = vmatprep.subr.bf16.mxu0 0
  %2371 = vmatpush1.bf16.xpose.msra.mxu0 0
  %2372 = vmatprep.subr.bf16.mxu0 0
  %2373 = vmatpush1.bf16.xpose.msra.mxu0 0
  %2374 = vmatprep.subr.bf16.mxu0 0
  %2375 = vmatpush1.bf16.xpose.msra.mxu0 %v2358
  %2376 = vmatprep.subr.bf16.mxu0 0
  %2377 = vmatpush2.bf16.xpose.msra.mxu0 0
  %2378 = vmatprep.subr.bf16.mxu0 0
  %2379 = vmatpush2.bf16.xpose.msra.mxu0 0
  %2380 = vmatprep.subr.bf16.mxu0 0
  %2381 = vmatpush2.bf16.xpose.msra.mxu0 0
  %2382 = vmatprep.subr.bf16.mxu0 0
  %2383 = vmatpush2.bf16.xpose.msra.mxu0 0
  %2384 = vmatprep.subr.bf16.mxu0 0
  %2385 = vmatpush2.bf16.xpose.msra.mxu0 0
  %2386 = vmatprep.subr.bf16.mxu0 0
  %2387 = vmatpush2.bf16.xpose.msra.mxu0 0
  %2388 = vmatprep.subr.bf16.mxu0 0
  %2389 = vmatpush2.bf16.xpose.msra.mxu0 0
  %2390 = vmatprep.subr.bf16.mxu0 0
  %2391 = vmatpush2.bf16.xpose.msra.mxu0 0
  %2392 = vmatprep.mubr.bf16.mxu0 0
  %2393 = vmatmul.mubr.bf16.gmra.mxu0 %v2355
  %v2394 = vpop.f32.mrf.mxu0
  %v2395 = vadd.f32 0.0, %v2394
  %v2396 = vpop.f32.mrf.mxu0
  %v2397 = vpop.f32.mrf.mxu0
  %v2398 = vadd.f32 0.0, %v2397
  %v2399 = vpop.f32.mrf.mxu0
  %2400 = vdwg.mxu0
  %v2401 = vadd.f32 %v1823, 0.0
  %v2402 = vadd.f32 %v1826, 0.0
  %v2403 = vadd.f32 %v1875, 0.0
  %v2404 = vadd.f32 %v1878, 0.0
  %v2405 = vadd.f32 %v1927, 0.0
  %v2406 = vadd.f32 %v1930, 0.0
  %v2407 = vadd.f32 %v1979, 0.0
  %v2408 = vadd.f32 %v1982, 0.0
  %v2409 = vadd.f32 %v2031, 0.0
  %v2410 = vadd.f32 %v2034, 0.0
  %v2411 = vadd.f32 %v2083, 0.0
  %v2412 = vadd.f32 %v2086, 0.0
  %v2413 = vadd.f32 %v2135, 0.0
  %v2414 = vadd.f32 %v2138, 0.0
  %v2415 = vadd.f32 %v2187, 0.0
  %v2416 = vadd.f32 %v2190, 0.0
  %v2417 = vadd.f32 %v2239, 0.0
  %v2418 = vadd.f32 %v2242, 0.0
  %v2419 = vadd.f32 %v2291, 0.0
  %v2420 = vadd.f32 %v2294, 0.0
  %v2421 = vadd.f32 %v2343, 0.0
  %v2422 = vadd.f32 %v2346, 0.0
  %v2423 = vadd.f32 %v2395, 0.0
  %v2424 = vadd.f32 %v2398, 0.0
  %v2425 = vmax.f32 %v2401, -5.0
  %v2426 = vmax.f32 %v2402, -5.0
  %v2427 = vmax.f32 %v2403, -5.0
  %v2428 = vmax.f32 %v2404, -5.0
  %v2429 = vmax.f32 %v2405, -5.0
  %v2430 = vmax.f32 %v2406, -5.0
  %v2431 = vmax.f32 %v2407, -5.0
  %v2432 = vmax.f32 %v2408, -5.0
  %v2433 = vmax.f32 %v2409, -5.0
  %v2434 = vmax.f32 %v2410, -5.0
  %v2435 = vmax.f32 %v2411, -5.0
  %v2436 = vmax.f32 %v2412, -5.0
  %v2437 = vmax.f32 %v2413, -5.0
  %v2438 = vmax.f32 %v2414, -5.0
  %v2439 = vmax.f32 %v2415, -5.0
  %v2440 = vmax.f32 %v2416, -5.0
  %v2441 = vmax.f32 %v2417, -5.0
  %v2442 = vmax.f32 %v2418, -5.0
  %v2443 = vmax.f32 %v2419, -5.0
  %v2444 = vmax.f32 %v2420, -5.0
  %v2445 = vmax.f32 %v2421, -5.0
  %v2446 = vmax.f32 %v2422, -5.0
  %v2447 = vmax.f32 %v2423, -5.0
  %v2448 = vmax.f32 %v2424, -5.0
  %v2449 = vmin.f32 %v2425, 5.0
  %v2450 = vmin.f32 %v2426, 5.0
  %v2451 = vmin.f32 %v2427, 5.0
  %v2452 = vmin.f32 %v2428, 5.0
  %v2453 = vmin.f32 %v2429, 5.0
  %v2454 = vmin.f32 %v2430, 5.0
  %v2455 = vmin.f32 %v2431, 5.0
  %v2456 = vmin.f32 %v2432, 5.0
  %v2457 = vmin.f32 %v2433, 5.0
  %v2458 = vmin.f32 %v2434, 5.0
  %v2459 = vmin.f32 %v2435, 5.0
  %v2460 = vmin.f32 %v2436, 5.0
  %v2461 = vmin.f32 %v2437, 5.0
  %v2462 = vmin.f32 %v2438, 5.0
  %v2463 = vmin.f32 %v2439, 5.0
  %v2464 = vmin.f32 %v2440, 5.0
  %v2465 = vmin.f32 %v2441, 5.0
  %v2466 = vmin.f32 %v2442, 5.0
  %v2467 = vmin.f32 %v2443, 5.0
  %v2468 = vmin.f32 %v2444, 5.0
  %v2469 = vmin.f32 %v2445, 5.0
  %v2470 = vmin.f32 %v2446, 5.0
  %v2471 = vmin.f32 %v2447, 5.0
  %v2472 = vmin.f32 %v2448, 5.0
  %v2473 = vmul.f32 %v2449, 1.442695
  %v2474 = vpow.pop %v2473
  %v2475 = vmul.f32 %v2450, 1.442695
  %v2476 = vpow.pop %v2475
  %v2477 = vmul.f32 %v2451, 1.442695
  %v2478 = vpow.pop %v2477
  %v2479 = vmul.f32 %v2452, 1.442695
  %v2480 = vpow.pop %v2479
  %v2481 = vmul.f32 %v2453, 1.442695
  %v2482 = vpow.pop %v2481
  %v2483 = vmul.f32 %v2454, 1.442695
  %v2484 = vpow.pop %v2483
  %v2485 = vmul.f32 %v2455, 1.442695
  %v2486 = vpow.pop %v2485
  %v2487 = vmul.f32 %v2456, 1.442695
  %v2488 = vpow.pop %v2487
  %v2489 = vmul.f32 %v2457, 1.442695
  %v2490 = vpow.pop %v2489
  %v2491 = vmul.f32 %v2458, 1.442695
  %v2492 = vpow.pop %v2491
  %v2493 = vmul.f32 %v2459, 1.442695
  %v2494 = vpow.pop %v2493
  %v2495 = vmul.f32 %v2460, 1.442695
  %v2496 = vpow.pop %v2495
  %v2497 = vmul.f32 %v2461, 1.442695
  %v2498 = vpow.pop %v2497
  %v2499 = vmul.f32 %v2462, 1.442695
  %v2500 = vpow.pop %v2499
  %v2501 = vmul.f32 %v2463, 1.442695
  %v2502 = vpow.pop %v2501
  %v2503 = vmul.f32 %v2464, 1.442695
  %v2504 = vpow.pop %v2503
  %v2505 = vmul.f32 %v2465, 1.442695
  %v2506 = vpow.pop %v2505
  %v2507 = vmul.f32 %v2466, 1.442695
  %v2508 = vpow.pop %v2507
  %v2509 = vmul.f32 %v2467, 1.442695
  %v2510 = vpow.pop %v2509
  %v2511 = vmul.f32 %v2468, 1.442695
  %v2512 = vpow.pop %v2511
  %v2513 = vmul.f32 %v2469, 1.442695
  %v2514 = vpow.pop %v2513
  %v2515 = vmul.f32 %v2470, 1.442695
  %v2516 = vpow.pop %v2515
  %v2517 = vmul.f32 %v2471, 1.442695
  %v2518 = vpow.pop %v2517
  %v2519 = vmul.f32 %v2472, 1.442695
  %v2520 = vpow.pop %v2519
  %v2521 = vmul.f32 %v2474, %v994
  %v2522 = vmul.f32 %v2476, %v998
  %v2523 = vmul.f32 %v2478, %v1005
  %v2524 = vmul.f32 %v2480, %v1009
  %v2525 = vmul.f32 %v2482, %v1016
  %v2526 = vmul.f32 %v2484, %v1020
  %v2527 = vmul.f32 %v2486, %v1027
  %v2528 = vmul.f32 %v2488, %v1031
  %v2529 = vmul.f32 %v2490, %v1038
  %v2530 = vmul.f32 %v2492, %v1042
  %v2531 = vmul.f32 %v2494, %v1049
  %v2532 = vmul.f32 %v2496, %v1053
  %v2533 = vmul.f32 %v2498, %v1060
  %v2534 = vmul.f32 %v2500, %v1064
  %v2535 = vmul.f32 %v2502, %v1071
  %v2536 = vmul.f32 %v2504, %v1075
  %v2537 = vmul.f32 %v2506, %v1082
  %v2538 = vmul.f32 %v2508, %v1086
  %v2539 = vmul.f32 %v2510, %v1093
  %v2540 = vmul.f32 %v2512, %v1097
  %v2541 = vmul.f32 %v2514, %v1104
  %v2542 = vmul.f32 %v2516, %v1108
  %v2543 = vmul.f32 %v2518, %v1115
  %v2544 = vmul.f32 %v2520, %v1119
  %v2545 = vmul.f32 %v2521, 0.90909094
  %v2546 = vmul.f32 %v2522, 0.90909094
  %v2547 = vmul.f32 %v2523, 0.90909094
  %v2548 = vmul.f32 %v2524, 0.90909094
  %v2549 = vmul.f32 %v2525, 0.90909094
  %v2550 = vmul.f32 %v2526, 0.90909094
  %v2551 = vmul.f32 %v2527, 0.90909094
  %v2552 = vmul.f32 %v2528, 0.90909094
  %v2553 = vmul.f32 %v2529, 0.90909094
  %v2554 = vmul.f32 %v2530, 0.90909094
  %v2555 = vmul.f32 %v2531, 0.90909094
  %v2556 = vmul.f32 %v2532, 0.90909094
  %v2557 = vmul.f32 %v2533, 0.90909094
  %v2558 = vmul.f32 %v2534, 0.90909094
  %v2559 = vmul.f32 %v2535, 0.90909094
  %v2560 = vmul.f32 %v2536, 0.90909094
  %v2561 = vmul.f32 %v2537, 0.90909094
  %v2562 = vmul.f32 %v2538, 0.90909094
  %v2563 = vmul.f32 %v2539, 0.90909094
  %v2564 = vmul.f32 %v2540, 0.90909094
  %v2565 = vmul.f32 %v2541, 0.90909094
  %v2566 = vmul.f32 %v2542, 0.90909094
  %v2567 = vmul.f32 %v2543, 0.90909094
  %v2568 = vmul.f32 %v2544, 0.90909094
  %2569 = vrot.lane.b32.xlu0 %v1202, 72
  %v2570 = vpop.permute.xlu0 %2569
  %2571 = vrot.lane.b32.xlu0 %v1203, 56
  %v2572 = vpop.permute.xlu0 %2571
  %v2574 = vsel %vm246, %v2570, 0
  %v2577 = vsel %vm246, %v2572, 0
  %2579 = vmatprep.subr.bf16.mxu0 0
  %2580 = vmatpush1.bf16.xpose.msra.mxu0 0
  %2581 = vmatprep.subr.bf16.mxu0 0
  %2582 = vmatpush1.bf16.xpose.msra.mxu0 0
  %2583 = vmatprep.subr.bf16.mxu0 0
  %2584 = vmatpush1.bf16.xpose.msra.mxu0 0
  %2585 = vmatprep.subr.bf16.mxu0 0
  %2586 = vmatpush1.bf16.xpose.msra.mxu0 0
  %2587 = vmatprep.subr.bf16.mxu0 0
  %2588 = vmatpush1.bf16.xpose.msra.mxu0 0
  %2589 = vmatprep.subr.bf16.mxu0 0
  %2590 = vmatpush1.bf16.xpose.msra.mxu0 0
  %2591 = vmatprep.subr.bf16.mxu0 0
  %2592 = vmatpush1.bf16.xpose.msra.mxu0 0
  %2593 = vmatprep.subr.bf16.mxu0 0
  %2594 = vmatpush1.bf16.xpose.msra.mxu0 %v2577
  %2595 = vmatprep.subr.bf16.mxu0 0
  %2596 = vmatpush2.bf16.xpose.msra.mxu0 0
  %2597 = vmatprep.subr.bf16.mxu0 0
  %2598 = vmatpush2.bf16.xpose.msra.mxu0 0
  %2599 = vmatprep.subr.bf16.mxu0 0
  %2600 = vmatpush2.bf16.xpose.msra.mxu0 0
  %2601 = vmatprep.subr.bf16.mxu0 0
  %2602 = vmatpush2.bf16.xpose.msra.mxu0 0
  %2603 = vmatprep.subr.bf16.mxu0 0
  %2604 = vmatpush2.bf16.xpose.msra.mxu0 0
  %2605 = vmatprep.subr.bf16.mxu0 0
  %2606 = vmatpush2.bf16.xpose.msra.mxu0 0
  %2607 = vmatprep.subr.bf16.mxu0 0
  %2608 = vmatpush2.bf16.xpose.msra.mxu0 0
  %2609 = vmatprep.subr.bf16.mxu0 0
  %2610 = vmatpush2.bf16.xpose.msra.mxu0 0
  %2611 = vmatprep.mubr.bf16.mxu0 0
  %2612 = vmatmul.mubr.bf16.gmra.mxu0 %v2574
  %v2613 = vpop.f32.mrf.mxu0
  %v2614 = vadd.f32 0.0, %v2613
  %v2615 = vpop.f32.mrf.mxu0
  %v2616 = vpop.f32.mrf.mxu0
  %v2617 = vadd.f32 0.0, %v2616
  %v2618 = vpop.f32.mrf.mxu0
  %2619 = vdwg.mxu0
  %v2620 = vmax.f32 %v2614, -5.0
  %v2621 = vmax.f32 %v2617, -5.0
  %v2622 = vmin.f32 %v2620, 5.0
  %v2623 = vmin.f32 %v2621, 5.0
  %v2624 = vmul.f32 %v2622, 1.442695
  %v2625 = vpow.pop %v2624
  %v2626 = vmul.f32 %v2623, 1.442695
  %v2627 = vpow.pop %v2626
  %v2628 = vmul.f32 %v2625, 0.1
  %v2629 = vmul.f32 %v2627, 0.1
  %v2630 = vmul.f32 %v2628, %v131
  %v2631 = vmul.f32 %v2629, %v132
  %v2632 = vmul.f32 %v2630, 0.90909094
  %v2633 = vmul.f32 %v2631, 0.90909094
  %v2636 = vlaneseq
  %v2637 = vshrl.u32 %v2636, 7
  %v2638 = vsub.s32 0, %v2637
  %v2639 = vrot.slane %v2632, %v2638
  %2641 = vbcast.lane.b32.xlu0 %v2639, 256
  %v2642 = vpop.permute.xlu0 %2641
  %s2644 = sor.u32 256, 8
  %2645 = vbcast.lane.b32.xlu0 %v2639, %s2644
  %v2646 = vpop.permute.xlu0 %2645
  %v2647 = vlaneseq
  %v2648 = vshrl.u32 %v2647, 7
  %v2649 = vsub.s32 1, %v2648
  %v2650 = vrot.slane %v2632, %v2649
  %2652 = vbcast.lane.b32.xlu0 %v2650, 256
  %v2653 = vpop.permute.xlu0 %2652
  %s2655 = sor.u32 256, 8
  %2656 = vbcast.lane.b32.xlu0 %v2650, %s2655
  %v2657 = vpop.permute.xlu0 %2656
  %v2658 = vlaneseq
  %v2659 = vshrl.u32 %v2658, 7
  %v2660 = vsub.s32 2, %v2659
  %v2661 = vrot.slane %v2632, %v2660
  %2663 = vbcast.lane.b32.xlu0 %v2661, 256
  %v2664 = vpop.permute.xlu0 %2663
  %s2666 = sor.u32 256, 8
  %2667 = vbcast.lane.b32.xlu0 %v2661, %s2666
  %v2668 = vpop.permute.xlu0 %2667
  %v2669 = vlaneseq
  %v2670 = vshrl.u32 %v2669, 7
  %v2671 = vsub.s32 3, %v2670
  %v2672 = vrot.slane %v2632, %v2671
  %2674 = vbcast.lane.b32.xlu0 %v2672, 256
  %v2675 = vpop.permute.xlu0 %2674
  %s2677 = sor.u32 256, 8
  %2678 = vbcast.lane.b32.xlu0 %v2672, %s2677
  %v2679 = vpop.permute.xlu0 %2678
  %v2680 = vlaneseq
  %v2681 = vshrl.u32 %v2680, 7
  %v2682 = vsub.s32 4, %v2681
  %v2683 = vrot.slane %v2632, %v2682
  %2685 = vbcast.lane.b32.xlu0 %v2683, 256
  %v2686 = vpop.permute.xlu0 %2685
  %s2688 = sor.u32 256, 8
  %2689 = vbcast.lane.b32.xlu0 %v2683, %s2688
  %v2690 = vpop.permute.xlu0 %2689
  %v2691 = vlaneseq
  %v2692 = vshrl.u32 %v2691, 7
  %v2693 = vsub.s32 5, %v2692
  %v2694 = vrot.slane %v2632, %v2693
  %2696 = vbcast.lane.b32.xlu0 %v2694, 256
  %v2697 = vpop.permute.xlu0 %2696
  %s2699 = sor.u32 256, 8
  %2700 = vbcast.lane.b32.xlu0 %v2694, %s2699
  %v2701 = vpop.permute.xlu0 %2700
  %v2702 = vlaneseq
  %v2703 = vshrl.u32 %v2702, 7
  %v2704 = vsub.s32 6, %v2703
  %v2705 = vrot.slane %v2632, %v2704
  %2707 = vbcast.lane.b32.xlu0 %v2705, 256
  %v2708 = vpop.permute.xlu0 %2707
  %s2710 = sor.u32 256, 8
  %2711 = vbcast.lane.b32.xlu0 %v2705, %s2710
  %v2712 = vpop.permute.xlu0 %2711
  %v2713 = vlaneseq
  %v2714 = vshrl.u32 %v2713, 7
  %v2715 = vsub.s32 7, %v2714
  %v2716 = vrot.slane %v2632, %v2715
  %2718 = vbcast.lane.b32.xlu0 %v2716, 256
  %v2719 = vpop.permute.xlu0 %2718
  %s2721 = sor.u32 256, 8
  %2722 = vbcast.lane.b32.xlu0 %v2716, %s2721
  %v2723 = vpop.permute.xlu0 %2722
  %v2724 = vlaneseq
  %v2725 = vshrl.u32 %v2724, 7
  %v2726 = vsub.s32 0, %v2725
  %v2727 = vrot.slane %v2633, %v2726
  %2729 = vbcast.lane.b32.xlu0 %v2727, 256
  %v2730 = vpop.permute.xlu0 %2729
  %s2732 = sor.u32 256, 8
  %2733 = vbcast.lane.b32.xlu0 %v2727, %s2732
  %v2734 = vpop.permute.xlu0 %2733
  %v2735 = vlaneseq
  %v2736 = vshrl.u32 %v2735, 7
  %v2737 = vsub.s32 1, %v2736
  %v2738 = vrot.slane %v2633, %v2737
  %2740 = vbcast.lane.b32.xlu0 %v2738, 256
  %v2741 = vpop.permute.xlu0 %2740
  %s2743 = sor.u32 256, 8
  %2744 = vbcast.lane.b32.xlu0 %v2738, %s2743
  %v2745 = vpop.permute.xlu0 %2744
  %v2746 = vlaneseq
  %v2747 = vshrl.u32 %v2746, 7
  %v2748 = vsub.s32 2, %v2747
  %v2749 = vrot.slane %v2633, %v2748
  %2751 = vbcast.lane.b32.xlu0 %v2749, 256
  %v2752 = vpop.permute.xlu0 %2751
  %s2754 = sor.u32 256, 8
  %2755 = vbcast.lane.b32.xlu0 %v2749, %s2754
  %v2756 = vpop.permute.xlu0 %2755
  %v2757 = vlaneseq
  %v2758 = vshrl.u32 %v2757, 7
  %v2759 = vsub.s32 3, %v2758
  %v2760 = vrot.slane %v2633, %v2759
  %2762 = vbcast.lane.b32.xlu0 %v2760, 256
  %v2763 = vpop.permute.xlu0 %2762
  %s2765 = sor.u32 256, 8
  %2766 = vbcast.lane.b32.xlu0 %v2760, %s2765
  %v2767 = vpop.permute.xlu0 %2766
  %v2792 = vadd.f32 %v2545, %v2642
  %v2793 = vadd.f32 %v2546, %v2646
  %v2794 = vadd.f32 %v2547, %v2653
  %v2795 = vadd.f32 %v2548, %v2657
  %v2796 = vadd.f32 %v2549, %v2664
  %v2797 = vadd.f32 %v2550, %v2668
  %v2798 = vadd.f32 %v2551, %v2675
  %v2799 = vadd.f32 %v2552, %v2679
  %v2800 = vadd.f32 %v2553, %v2686
  %v2801 = vadd.f32 %v2554, %v2690
  %v2802 = vadd.f32 %v2555, %v2697
  %v2803 = vadd.f32 %v2556, %v2701
  %v2804 = vadd.f32 %v2557, %v2708
  %v2805 = vadd.f32 %v2558, %v2712
  %v2806 = vadd.f32 %v2559, %v2719
  %v2807 = vadd.f32 %v2560, %v2723
  %v2808 = vadd.f32 %v2561, %v2730
  %v2809 = vadd.f32 %v2562, %v2734
  %v2810 = vadd.f32 %v2563, %v2741
  %v2811 = vadd.f32 %v2564, %v2745
  %v2812 = vadd.f32 %v2565, %v2752
  %v2813 = vadd.f32 %v2566, %v2756
  %v2814 = vadd.f32 %v2567, %v2763
  %v2815 = vadd.f32 %v2568, %v2767
  %2816 = vrot.lane.b32.xlu0 %v99, 88
  %v2817 = vpop.permute.xlu0 %2816
  %2818 = vrot.lane.b32.xlu0 %v102, 88
  %v2819 = vpop.permute.xlu0 %2818
  %v2822 = vsel %vm246, %v2817, 1.0
  %v2823 = vsel %vm246, %v2819, 1.0
  %v2824 = vpack.c.bf16 %v2793, %v2792
  %v2825 = vpack.c.bf16 %v2795, %v2794
  %v2826 = vpack.c.bf16 %v2797, %v2796
  %v2827 = vpack.c.bf16 %v2799, %v2798
  %v2828 = vpack.c.bf16 %v2801, %v2800
  %v2829 = vpack.c.bf16 %v2803, %v2802
  %v2830 = vpack.c.bf16 %v2805, %v2804
  %v2831 = vpack.c.bf16 %v2807, %v2806
  %v2832 = vpack.c.bf16 %v2809, %v2808
  %v2833 = vpack.c.bf16 %v2811, %v2810
  %v2834 = vpack.c.bf16 %v2813, %v2812
  %v2835 = vpack.c.bf16 %v2815, %v2814
  %v2836 = vpack.c.bf16 %v2823, %v2822
  %v2849 = vunpack.c.l.b16 %v2824
  %v2850 = vunpack.c.h.b16 %v2824
  %v2851 = vunpack.c.l.b16 %v2825
  %v2852 = vunpack.c.h.b16 %v2825
  %v2853 = vunpack.c.l.b16 %v2826
  %v2854 = vunpack.c.h.b16 %v2826
  %v2855 = vunpack.c.l.b16 %v2827
  %v2856 = vunpack.c.h.b16 %v2827
  %v2857 = vunpack.c.l.b16 %v2828
  %v2858 = vunpack.c.h.b16 %v2828
  %v2859 = vunpack.c.l.b16 %v2829
  %v2860 = vunpack.c.h.b16 %v2829
  %v2861 = vunpack.c.l.b16 %v2830
  %v2862 = vunpack.c.h.b16 %v2830
  %v2863 = vunpack.c.l.b16 %v2831
  %v2864 = vunpack.c.h.b16 %v2831
  %v2865 = vunpack.c.l.b16 %v2832
  %v2866 = vunpack.c.h.b16 %v2832
  %v2867 = vunpack.c.l.b16 %v2833
  %v2868 = vunpack.c.h.b16 %v2833
  %v2869 = vunpack.c.l.b16 %v2834
  %v2870 = vunpack.c.h.b16 %v2834
  %v2871 = vunpack.c.l.b16 %v2835
  %v2872 = vunpack.c.h.b16 %v2835
  %2873 = vset.pattern.permute.xlu0 0
  %2874 = vperm.xlu0 %2873, %v2849
  %v2875 = vpop.permute.xlu0 %2874
  %2876 = vset.pattern.permute.xlu0 0
  %2877 = vperm.xlu0 %2876, %v2850
  %v2878 = vpop.permute.xlu0 %2877
  %2879 = vset.pattern.permute.xlu0 0
  %2880 = vperm.xlu0 %2879, %v2851
  %v2881 = vpop.permute.xlu0 %2880
  %2882 = vset.pattern.permute.xlu0 0
  %2883 = vperm.xlu0 %2882, %v2852
  %v2884 = vpop.permute.xlu0 %2883
  %2885 = vset.pattern.permute.xlu0 0
  %2886 = vperm.xlu0 %2885, %v2853
  %v2887 = vpop.permute.xlu0 %2886
  %2888 = vset.pattern.permute.xlu0 0
  %2889 = vperm.xlu0 %2888, %v2854
  %v2890 = vpop.permute.xlu0 %2889
  %2891 = vset.pattern.permute.xlu0 0
  %2892 = vperm.xlu0 %2891, %v2855
  %v2893 = vpop.permute.xlu0 %2892
  %2894 = vset.pattern.permute.xlu0 0
  %2895 = vperm.xlu0 %2894, %v2856
  %v2896 = vpop.permute.xlu0 %2895
  %2897 = vset.pattern.permute.xlu0 0
  %2898 = vperm.xlu0 %2897, %v2857
  %v2899 = vpop.permute.xlu0 %2898
  %2900 = vset.pattern.permute.xlu0 0
  %2901 = vperm.xlu0 %2900, %v2858
  %v2902 = vpop.permute.xlu0 %2901
  %2903 = vset.pattern.permute.xlu0 0
  %2904 = vperm.xlu0 %2903, %v2859
  %v2905 = vpop.permute.xlu0 %2904
  %2906 = vset.pattern.permute.xlu0 0
  %2907 = vperm.xlu0 %2906, %v2860
  %v2908 = vpop.permute.xlu0 %2907
  %2909 = vset.pattern.permute.xlu0 0
  %2910 = vperm.xlu0 %2909, %v2861
  %v2911 = vpop.permute.xlu0 %2910
  %2912 = vset.pattern.permute.xlu0 0
  %2913 = vperm.xlu0 %2912, %v2862
  %v2914 = vpop.permute.xlu0 %2913
  %2915 = vset.pattern.permute.xlu0 0
  %2916 = vperm.xlu0 %2915, %v2863
  %v2917 = vpop.permute.xlu0 %2916
  %2918 = vset.pattern.permute.xlu0 0
  %2919 = vperm.xlu0 %2918, %v2864
  %v2920 = vpop.permute.xlu0 %2919
  %2921 = vset.pattern.permute.xlu0 0
  %2922 = vperm.xlu0 %2921, %v2865
  %v2923 = vpop.permute.xlu0 %2922
  %2924 = vset.pattern.permute.xlu0 0
  %2925 = vperm.xlu0 %2924, %v2866
  %v2926 = vpop.permute.xlu0 %2925
  %2927 = vset.pattern.permute.xlu0 0
  %2928 = vperm.xlu0 %2927, %v2867
  %v2929 = vpop.permute.xlu0 %2928
  %2930 = vset.pattern.permute.xlu0 0
  %2931 = vperm.xlu0 %2930, %v2868
  %v2932 = vpop.permute.xlu0 %2931
  %2933 = vset.pattern.permute.xlu0 0
  %2934 = vperm.xlu0 %2933, %v2869
  %v2935 = vpop.permute.xlu0 %2934
  %2936 = vset.pattern.permute.xlu0 0
  %2937 = vperm.xlu0 %2936, %v2870
  %v2938 = vpop.permute.xlu0 %2937
  %2939 = vset.pattern.permute.xlu0 0
  %2940 = vperm.xlu0 %2939, %v2871
  %v2941 = vpop.permute.xlu0 %2940
  %2942 = vset.pattern.permute.xlu0 0
  %2943 = vperm.xlu0 %2942, %v2872
  %v2944 = vpop.permute.xlu0 %2943
  %v2945 = vlaneseq
  %v2946 = vshrl.u32 %v2945, 7
  %v2947 = vsub.s32 %v1583, %v2946
  %v2948 = vrot.slane %v2875, %v2947
  %v2949 = vlaneseq
  %v2950 = vshrl.u32 %v2949, 7
  %v2951 = vsub.s32 %v1588, %v2950
  %v2952 = vrot.slane %v2878, %v2951
  %v2953 = vsel %vm1593, %v2952, %v2948
  %v2954 = vlaneseq
  %v2955 = vshrl.u32 %v2954, 7
  %v2956 = vsub.s32 %v1583, %v2955
  %v2957 = vrot.slane %v2881, %v2956
  %v2958 = vlaneseq
  %v2959 = vshrl.u32 %v2958, 7
  %v2960 = vsub.s32 %v1588, %v2959
  %v2961 = vrot.slane %v2884, %v2960
  %v2962 = vsel %vm1593, %v2961, %v2957
  %v2963 = vlaneseq
  %v2964 = vshrl.u32 %v2963, 7
  %v2965 = vsub.s32 %v1583, %v2964
  %v2966 = vrot.slane %v2887, %v2965
  %v2967 = vlaneseq
  %v2968 = vshrl.u32 %v2967, 7
  %v2969 = vsub.s32 %v1588, %v2968
  %v2970 = vrot.slane %v2890, %v2969
  %v2971 = vsel %vm1593, %v2970, %v2966
  %v2972 = vlaneseq
  %v2973 = vshrl.u32 %v2972, 7
  %v2974 = vsub.s32 %v1583, %v2973
  %v2975 = vrot.slane %v2893, %v2974
  %v2976 = vlaneseq
  %v2977 = vshrl.u32 %v2976, 7
  %v2978 = vsub.s32 %v1588, %v2977
  %v2979 = vrot.slane %v2896, %v2978
  %v2980 = vsel %vm1593, %v2979, %v2975
  %v2981 = vlaneseq
  %v2982 = vshrl.u32 %v2981, 7
  %v2983 = vsub.s32 %v1583, %v2982
  %v2984 = vrot.slane %v2899, %v2983
  %v2985 = vlaneseq
  %v2986 = vshrl.u32 %v2985, 7
  %v2987 = vsub.s32 %v1588, %v2986
  %v2988 = vrot.slane %v2902, %v2987
  %v2989 = vsel %vm1593, %v2988, %v2984
  %v2990 = vlaneseq
  %v2991 = vshrl.u32 %v2990, 7
  %v2992 = vsub.s32 %v1583, %v2991
  %v2993 = vrot.slane %v2905, %v2992
  %v2994 = vlaneseq
  %v2995 = vshrl.u32 %v2994, 7
  %v2996 = vsub.s32 %v1588, %v2995
  %v2997 = vrot.slane %v2908, %v2996
  %v2998 = vsel %vm1593, %v2997, %v2993
  %v2999 = vlaneseq
  %v3000 = vshrl.u32 %v2999, 7
  %v3001 = vsub.s32 %v1583, %v3000
  %v3002 = vrot.slane %v2911, %v3001
  %v3003 = vlaneseq
  %v3004 = vshrl.u32 %v3003, 7
  %v3005 = vsub.s32 %v1588, %v3004
  %v3006 = vrot.slane %v2914, %v3005
  %v3007 = vsel %vm1593, %v3006, %v3002
  %v3008 = vlaneseq
  %v3009 = vshrl.u32 %v3008, 7
  %v3010 = vsub.s32 %v1583, %v3009
  %v3011 = vrot.slane %v2917, %v3010
  %v3012 = vlaneseq
  %v3013 = vshrl.u32 %v3012, 7
  %v3014 = vsub.s32 %v1588, %v3013
  %v3015 = vrot.slane %v2920, %v3014
  %v3016 = vsel %vm1593, %v3015, %v3011
  %v3017 = vlaneseq
  %v3018 = vshrl.u32 %v3017, 7
  %v3019 = vsub.s32 %v1583, %v3018
  %v3020 = vrot.slane %v2923, %v3019
  %v3021 = vlaneseq
  %v3022 = vshrl.u32 %v3021, 7
  %v3023 = vsub.s32 %v1588, %v3022
  %v3024 = vrot.slane %v2926, %v3023
  %v3025 = vsel %vm1593, %v3024, %v3020
  %v3026 = vlaneseq
  %v3027 = vshrl.u32 %v3026, 7
  %v3028 = vsub.s32 %v1583, %v3027
  %v3029 = vrot.slane %v2929, %v3028
  %v3030 = vlaneseq
  %v3031 = vshrl.u32 %v3030, 7
  %v3032 = vsub.s32 %v1588, %v3031
  %v3033 = vrot.slane %v2932, %v3032
  %v3034 = vsel %vm1593, %v3033, %v3029
  %v3035 = vlaneseq
  %v3036 = vshrl.u32 %v3035, 7
  %v3037 = vsub.s32 %v1583, %v3036
  %v3038 = vrot.slane %v2935, %v3037
  %v3039 = vlaneseq
  %v3040 = vshrl.u32 %v3039, 7
  %v3041 = vsub.s32 %v1588, %v3040
  %v3042 = vrot.slane %v2938, %v3041
  %v3043 = vsel %vm1593, %v3042, %v3038
  %v3044 = vlaneseq
  %v3045 = vshrl.u32 %v3044, 7
  %v3046 = vsub.s32 %v1583, %v3045
  %v3047 = vrot.slane %v2941, %v3046
  %v3048 = vlaneseq
  %v3049 = vshrl.u32 %v3048, 7
  %v3050 = vsub.s32 %v1588, %v3049
  %v3051 = vrot.slane %v2944, %v3050
  %v3052 = vsel %vm1593, %v3051, %v3047
  %v3053 = vsel %vm1694, %v2962, %v2953
  %v3054 = vsel %vm1696, %v2971, %v3053
  %v3055 = vsel %vm1698, %v2980, %v3054
  %v3056 = vsel %vm1700, %v2989, %v3055
  %v3057 = vsel %vm1702, %v2998, %v3056
  %v3058 = vsel %vm1704, %v3007, %v3057
  %v3059 = vsel %vm1706, %v3016, %v3058
  %v3060 = vsel %vm1694, %v3034, %v3025
  %v3061 = vsel %vm1696, %v3043, %v3060
  %v3062 = vsel %vm1698, %v3052, %v3061
  %v3063 = vpack.c.b16 %v3062, %v3059
  %v3065 = vsel %vm1712, %v3063, 0
  %v3068 = vsel %vm1716, %v2836, 0
  %3070 = vmatprep.subr.bf16.mxu0 0
  %3071 = vmatpush1.bf16.msra.mxu0 0
  %3072 = vmatprep.subr.bf16.mxu0 0
  %3073 = vmatpush1.bf16.msra.mxu0 0
  %3074 = vmatprep.subr.bf16.mxu0 0
  %3075 = vmatpush1.bf16.msra.mxu0 0
  %3076 = vmatprep.subr.bf16.mxu0 0
  %3077 = vmatpush1.bf16.msra.mxu0 0
  %3078 = vmatprep.subr.bf16.mxu0 0
  %3079 = vmatpush1.bf16.msra.mxu0 0
  %3080 = vmatprep.subr.bf16.mxu0 0
  %3081 = vmatpush1.bf16.msra.mxu0 0
  %3082 = vmatprep.subr.bf16.mxu0 0
  %3083 = vmatpush1.bf16.msra.mxu0 0
  %3084 = vmatprep.subr.bf16.mxu0 0
  %3085 = vmatpush1.bf16.msra.mxu0 %v3068
  %3086 = vmatprep.subr.bf16.mxu0 0
  %3087 = vmatpush2.bf16.msra.mxu0 0
  %3088 = vmatprep.subr.bf16.mxu0 0
  %3089 = vmatpush2.bf16.msra.mxu0 0
  %3090 = vmatprep.subr.bf16.mxu0 0
  %3091 = vmatpush2.bf16.msra.mxu0 0
  %3092 = vmatprep.subr.bf16.mxu0 0
  %3093 = vmatpush2.bf16.msra.mxu0 0
  %3094 = vmatprep.subr.bf16.mxu0 0
  %3095 = vmatpush2.bf16.msra.mxu0 0
  %3096 = vmatprep.subr.bf16.mxu0 0
  %3097 = vmatpush2.bf16.msra.mxu0 0
  %3098 = vmatprep.subr.bf16.mxu0 0
  %3099 = vmatpush2.bf16.msra.mxu0 0
  %3100 = vmatprep.subr.bf16.mxu0 0
  %3101 = vmatpush2.bf16.msra.mxu0 0
  %3102 = vmatprep.mubr.bf16.mxu0 0
  %3103 = vmatmul.mubr.bf16.gmra.mxu0 %v3065
  %v3104 = vpop.f32.mrf.mxu0
  %v3105 = vadd.f32 0.0, %v3104
  %v3106 = vpop.f32.mrf.mxu0
  %v3107 = vpop.f32.mrf.mxu0
  %v3108 = vadd.f32 0.0, %v3107
  %v3109 = vpop.f32.mrf.mxu0
  %3110 = vdwg.mxu0
  %v3111 = vadd.f32 %v3105, 1e-06
  %v3112 = vadd.f32 %v3108, 1e-06
  %v3113 = vrcp.pop %v3111
  %v3114 = vrcp.pop %v3112
  %3116 = vset.pattern.permute.xlu0 8
  %3117 = vperm.xlu0 %3116, %v3113
  %v3118 = vpop.permute.xlu0 %3117
  %3121 = vset.pattern.permute.xlu0 8
  %3122 = vperm.xlu0 %3121, %v3114
  %v3123 = vpop.permute.xlu0 %3122
  %v3125 = vmul.f32 %v3105, %v3118
  %v3126 = vmul.f32 %v3108, %v3123
  %3129 = vrot.lane.b32.xlu0 %v3125, 8
  %v3130 = vpop.permute.xlu0 %3129
  %3131 = vrot.lane.b32.xlu0 %v3126, 8
  %v3132 = vpop.permute.xlu0 %3131
  %v3135 = vsel %vm246, %v1775, %v3130
  %v3136 = vsel %vm246, %v1776, %v3132
  %v3137 = vpack.c.bf16 %v3136, %v3135
  %v3138 = vld [vmem:[%s6] sm:$0xff]
  %v3139 = vld [vmem:[%s6 + $0x8] sm:$0xff]
  %v3140 = vpack.c.bf16 %v3139, %v3138
  %v3141 = vld [vmem:[%s7] sm:$0x1]
  %v3143 = vlaneseq
  %v3144 = vshrl.u32 %v3143, 7
  %v3145 = vsub.s32 0, %v3144
  %v3146 = vrot.slane %v3141, %v3145
  %v3149 = vsel %vm60, %v3137, 0
  %3151 = vmatprep.subr.bf16.mxu0 0
  %3152 = vmatpush1.bf16.msra.mxu0 0
  %3153 = vmatprep.subr.bf16.mxu0 0
  %3154 = vmatpush1.bf16.msra.mxu0 0
  %3155 = vmatprep.subr.bf16.mxu0 0
  %3156 = vmatpush1.bf16.msra.mxu0 0
  %3157 = vmatprep.subr.bf16.mxu0 0
  %3158 = vmatpush1.bf16.msra.mxu0 0
  %3159 = vmatprep.subr.bf16.mxu0 0
  %3160 = vmatpush1.bf16.msra.mxu0 0
  %3161 = vmatprep.subr.bf16.mxu0 0
  %3162 = vmatpush1.bf16.msra.mxu0 0
  %3163 = vmatprep.subr.bf16.mxu0 0
  %3164 = vmatpush1.bf16.msra.mxu0 0
  %3165 = vmatprep.subr.bf16.mxu0 0
  %3166 = vmatpush1.bf16.msra.mxu0 %v3140
  %3167 = vmatprep.subr.bf16.mxu0 0
  %3168 = vmatpush2.bf16.msra.mxu0 0
  %3169 = vmatprep.subr.bf16.mxu0 0
  %3170 = vmatpush2.bf16.msra.mxu0 0
  %3171 = vmatprep.subr.bf16.mxu0 0
  %3172 = vmatpush2.bf16.msra.mxu0 0
  %3173 = vmatprep.subr.bf16.mxu0 0
  %3174 = vmatpush2.bf16.msra.mxu0 0
  %3175 = vmatprep.subr.bf16.mxu0 0
  %3176 = vmatpush2.bf16.msra.mxu0 0
  %3177 = vmatprep.subr.bf16.mxu0 0
  %3178 = vmatpush2.bf16.msra.mxu0 0
  %3179 = vmatprep.subr.bf16.mxu0 0
  %3180 = vmatpush2.bf16.msra.mxu0 0
  %3181 = vmatprep.subr.bf16.mxu0 0
  %3182 = vmatpush2.bf16.msra.mxu0 0
  %3183 = vmatprep.mubr.bf16.mxu0 0
  %3184 = vmatmul.mubr.bf16.gmra.mxu0 %v3149
  %v3185 = vpop.f32.mrf.mxu0
  %v3186 = vadd.f32 %v3146, %v3185
  %v3187 = vpop.f32.mrf.mxu0
  %v3188 = vpop.f32.mrf.mxu0
  %v3189 = vadd.f32 %v3146, %v3188
  %v3190 = vpop.f32.mrf.mxu0
  %3191 = vdwg.mxu0
  %v3192 = vadd.f32 %v54, %v3186
  %v3193 = vadd.f32 %v55, %v3189
  %v3194 = vld [vmem:[%s8] sm:$0x1]
  %v3196 = vlaneseq
  %v3197 = vshrl.u32 %v3196, 7
  %v3198 = vsub.s32 0, %v3197
  %v3199 = vrot.slane %v3194, %v3198
  %v3201 = vmul.f32 %v3192, %v3199
  %v3202 = vmul.f32 %v3193, %v3199
  %v3203 = vld [vmem:[%s9] sm:$0x1]
  %v3205 = vlaneseq
  %v3206 = vshrl.u32 %v3205, 7
  %v3207 = vsub.s32 0, %v3206
  %v3208 = vrot.slane %v3203, %v3207
  %v3210 = vadd.f32 %v3201, %v3208
  %v3211 = vadd.f32 %v3202, %v3208
  %v3212 = vpack.c.bf16 %v3211, %v3210
  %v3213 = vld [vmem:[%s10] sm:$0xff]
  %v3214 = vld [vmem:[%s10 + $0x8] sm:$0xff]
  %v3215 = vpack.c.bf16 %v3214, %v3213
  %v3216 = vld [vmem:[%s11] sm:$0x1]
  %v3218 = vlaneseq
  %v3219 = vshrl.u32 %v3218, 7
  %v3220 = vsub.s32 0, %v3219
  %v3221 = vrot.slane %v3216, %v3220
  %v3224 = vsel %vm60, %v3212, 0
  %3226 = vmatprep.subr.bf16.mxu0 0
  %3227 = vmatpush1.bf16.msra.mxu0 0
  %3228 = vmatprep.subr.bf16.mxu0 0
  %3229 = vmatpush1.bf16.msra.mxu0 0
  %3230 = vmatprep.subr.bf16.mxu0 0
  %3231 = vmatpush1.bf16.msra.mxu0 0
  %3232 = vmatprep.subr.bf16.mxu0 0
  %3233 = vmatpush1.bf16.msra.mxu0 0
  %3234 = vmatprep.subr.bf16.mxu0 0
  %3235 = vmatpush1.bf16.msra.mxu0 0
  %3236 = vmatprep.subr.bf16.mxu0 0
  %3237 = vmatpush1.bf16.msra.mxu0 0
  %3238 = vmatprep.subr.bf16.mxu0 0
  %3239 = vmatpush1.bf16.msra.mxu0 0
  %3240 = vmatprep.subr.bf16.mxu0 0
  %3241 = vmatpush1.bf16.msra.mxu0 %v3215
  %3242 = vmatprep.subr.bf16.mxu0 0
  %3243 = vmatpush2.bf16.msra.mxu0 0
  %3244 = vmatprep.subr.bf16.mxu0 0
  %3245 = vmatpush2.bf16.msra.mxu0 0
  %3246 = vmatprep.subr.bf16.mxu0 0
  %3247 = vmatpush2.bf16.msra.mxu0 0
  %3248 = vmatprep.subr.bf16.mxu0 0
  %3249 = vmatpush2.bf16.msra.mxu0 0
  %3250 = vmatprep.subr.bf16.mxu0 0
  %3251 = vmatpush2.bf16.msra.mxu0 0
  %3252 = vmatprep.subr.bf16.mxu0 0
  %3253 = vmatpush2.bf16.msra.mxu0 0
  %3254 = vmatprep.subr.bf16.mxu0 0
  %3255 = vmatpush2.bf16.msra.mxu0 0
  %3256 = vmatprep.subr.bf16.mxu0 0
  %3257 = vmatpush2.bf16.msra.mxu0 0
  %3258 = vmatprep.mubr.bf16.mxu0 0
  %3259 = vmatmul.mubr.bf16.gmra.mxu0 %v3224
  %v3260 = vpop.f32.mrf.mxu0
  %v3261 = vadd.f32 %v3221, %v3260
  %v3262 = vpop.f32.mrf.mxu0
  %v3263 = vpop.f32.mrf.mxu0
  %v3264 = vadd.f32 %v3221, %v3263
  %v3265 = vpop.f32.mrf.mxu0
  %3266 = vdwg.mxu0
  %v3267 = vmax.f32 %v3261, 0.0
  %v3268 = vmax.f32 %v3264, 0.0
  %v3269 = vpack.c.bf16 %v3268, %v3267
  %v3270 = vld [vmem:[%s12] sm:$0xff]
  %v3271 = vld [vmem:[%s12 + $0x8] sm:$0xff]
  %v3272 = vld [vmem:[%s12 + $0x10] sm:$0xff]
  %v3273 = vld [vmem:[%s12 + $0x18] sm:$0xff]
  %v3274 = vpack.c.bf16 %v3271, %v3270
  %v3275 = vpack.c.bf16 %v3273, %v3272
  %v3276 = vld [vmem:[%s13] sm:$0x1]
  %v3278 = vlaneseq
  %v3279 = vshrl.u32 %v3278, 7
  %v3280 = vsub.s32 0, %v3279
  %v3281 = vrot.slane %v3276, %v3280
  %vm3283 = vcmask 261120
  %v3285 = vsel %vm3283, %v3269, 0
  %3287 = vmatprep.subr.bf16.mxu0 0
  %3288 = vmatpush1.bf16.msra.mxu0 0
  %3289 = vmatprep.subr.bf16.mxu0 0
  %3290 = vmatpush1.bf16.msra.mxu0 0
  %3291 = vmatprep.subr.bf16.mxu0 0
  %3292 = vmatpush1.bf16.msra.mxu0 0
  %3293 = vmatprep.subr.bf16.mxu0 0
  %3294 = vmatpush1.bf16.msra.mxu0 0
  %3295 = vmatprep.subr.bf16.mxu0 0
  %3296 = vmatpush1.bf16.msra.mxu0 0
  %3297 = vmatprep.subr.bf16.mxu0 0
  %3298 = vmatpush1.bf16.msra.mxu0 0
  %3299 = vmatprep.subr.bf16.mxu0 0
  %3300 = vmatpush1.bf16.msra.mxu0 %v3275
  %3301 = vmatprep.subr.bf16.mxu0 0
  %3302 = vmatpush1.bf16.msra.mxu0 %v3274
  %3303 = vmatprep.subr.bf16.mxu0 0
  %3304 = vmatpush2.bf16.msra.mxu0 0
  %3305 = vmatprep.subr.bf16.mxu0 0
  %3306 = vmatpush2.bf16.msra.mxu0 0
  %3307 = vmatprep.subr.bf16.mxu0 0
  %3308 = vmatpush2.bf16.msra.mxu0 0
  %3309 = vmatprep.subr.bf16.mxu0 0
  %3310 = vmatpush2.bf16.msra.mxu0 0
  %3311 = vmatprep.subr.bf16.mxu0 0
  %3312 = vmatpush2.bf16.msra.mxu0 0
  %3313 = vmatprep.subr.bf16.mxu0 0
  %3314 = vmatpush2.bf16.msra.mxu0 0
  %3315 = vmatprep.subr.bf16.mxu0 0
  %3316 = vmatpush2.bf16.msra.mxu0 0
  %3317 = vmatprep.subr.bf16.mxu0 0
  %3318 = vmatpush2.bf16.msra.mxu0 0
  %3319 = vmatprep.mubr.bf16.mxu0 0
  %3320 = vmatmul.mubr.bf16.gmra.mxu0 %v3285
  %v3321 = vpop.f32.mrf.mxu0
  %v3322 = vadd.f32 %v3281, %v3321
  %v3323 = vpop.f32.mrf.mxu0
  %v3324 = vpop.f32.mrf.mxu0
  %v3325 = vadd.f32 %v3281, %v3324
  %v3326 = vpop.f32.mrf.mxu0
  %3327 = vdwg.mxu0
  %v3328 = vadd.f32 %v3210, %v3322
  %v3329 = vadd.f32 %v3211, %v3325
  %v3330 = vld [vmem:[%s14] sm:$0x1]
  %v3332 = vlaneseq
  %v3333 = vshrl.u32 %v3332, 7
  %v3334 = vsub.s32 0, %v3333
  %v3335 = vrot.slane %v3330, %v3334
  %v3337 = vmul.f32 %v3328, %v3335
  %v3338 = vmul.f32 %v3329, %v3335
  %v3339 = vld [vmem:[%s15] sm:$0x1]
  %v3341 = vlaneseq
  %v3342 = vshrl.u32 %v3341, 7
  %v3343 = vsub.s32 0, %v3342
  %v3344 = vrot.slane %v3339, %v3343
  %v3346 = vadd.f32 %v3337, %v3344
  %v3347 = vadd.f32 %v3338, %v3344
  %3348 = vst.msk [vmem:[%s16] sm:$0xff] %vm60, %v3346
  %vm3349 = vcmask 125952
  %3350 = vst.msk [vmem:[%s16 + $0x8] sm:$0xf] %vm3349, %v3347
  // Predicated region
  $region66: #{_lambda_.15} parent=0 // pred_check
    _
  $region67: #{_lambda_.15} parent=0 // pred_check_branch
    %3352 = sbr.rel (0) target = $region69
  $region68: #{_lambda_.15} parent=0 // pred_region
    _
  $region69: #{_lambda_.15} parent=0 // pred_fallthru
    _
  // Predicated region
  $region70: #{_lambda_.15} parent=0 // pred_check
    _
  $region71: #{_lambda_.15} parent=0 // pred_check_branch
    %3354 = sbr.rel (0) target = $region73
  $region72: #{_lambda_.15} parent=0 // pred_region
    _
  $region73: #{_lambda_.15} parent=0 // pred_fallthru
    _

</llo_original>
